<compile_context>
chip_gen: v7x
topology: tpu7x:2x2x1
jax: 0.10.0
libtpu: 0.0.40
codegen_flags: <defaults>
</compile_context>

<pallas_src>
import functools
import numpy as np
import jax
import jax.numpy as jnp
from jax import lax
from jax.experimental import pallas as pl
from jax.experimental.pallas import tpu as pltpu

OUT_PAD = 128  # lane-dense padded width of the kernel output slab


# ------------------------------ fused kernel ---------------------------------
def fused_model2_kernel(x_ref,
                        w0_ih, w0_hh, b0,
                        w1_ih, w1_hh, b1,
                        w2_ih, w2_hh, b2,
                        w3_ih, w3_hh, b3,
                        fcw_ref, fcb_ref,
                        out_ref, h3_buf, *, T, B):
    L = 4
    wih_refs = (w0_ih, w1_ih, w2_ih, w3_ih)
    whh_refs = (w0_hh, w1_hh, w2_hh, w3_hh)
    b_refs = (b0, b1, b2, b3)
    hps = tuple(r.shape[0] for r in whh_refs)   # padded hidden width per layer

    # Hoisted layer-0 input projection: one fat (B*T, 512) @ (512, 256) matmul
    # (bias folded in); rows are batch-major (row = b*T + t).
    xp0 = (jnp.dot(x_ref[...], w0_ih[...], preferred_element_type=jnp.float32)
           + b0[...]).reshape(B, T, 4 * hps[0])

    def lstm_cell(gates, c_prev, hp):
        i_g = jax.nn.sigmoid(gates[:, 0 * hp:1 * hp])
        f_g = jax.nn.sigmoid(gates[:, 1 * hp:2 * hp])
        g_g = jnp.tanh(gates[:, 2 * hp:3 * hp])
        o_g = jax.nn.sigmoid(gates[:, 3 * hp:4 * hp])
        c_new = f_g * c_prev + i_g * g_g
        h_new = o_g * jnp.tanh(c_new)
        return h_new, c_new

    h = [jnp.zeros((B, hp), jnp.float32) for hp in hps]
    c = [jnp.zeros((B, hp), jnp.float32) for hp in hps]
    # layer_out[l][t]: layer-l hidden at time t (only needed as input of l+1)
    layer_out = [[None] * T for _ in range(L - 1)]

    # Wavefront over layers: at step s, layer l processes timestep t = s - l.
    # All updates within one step are mutually independent (inputs were
    # produced at step s-1 or earlier), so their matmul/EUP latencies overlap.
    for s in range(T + L - 1):
        for l in range(L - 1, -1, -1):
            t = s - l
            if t < 0 or t >= T:
                continue
            rec = jnp.dot(h[l], whh_refs[l][...],
                          preferred_element_type=jnp.float32)
            if l == 0:
                gates = xp0[:, t, :] + rec
            else:
                gates = (jnp.dot(layer_out[l - 1][t], wih_refs[l][...],
                                 preferred_element_type=jnp.float32)
                         + rec + b_refs[l][...])
            h[l], c[l] = lstm_cell(gates, c[l], hps[l])
            if l < L - 1:
                layer_out[l][t] = h[l]
            else:
                h3_buf[:, t, :] = h[l]           # (B, 32) per timestep

    # fc epilogue: per-batch (T, 32) @ (32, 128) matmul; rows bb*T .. bb*T+T-1
    # form exactly one (8, 128) tile -> unmasked lane-dense stores.
    for bb in range(B):
        out_ref[pl.ds(bb * T, T), :] = (
            jnp.dot(h3_buf[bb], fcw_ref[...],
                    preferred_element_type=jnp.float32) + fcb_ref[...])


# ------------------------------ host-side prep --------------------------------
def _pad_hidden(h):
    """Padded per-gate width: smallest multiple of 32 >= H (so 4*hp % 128 == 0)."""
    return ((h + 31) // 32) * 32


def _pack_lstm_layer(w_ih, w_hh, b_ih, b_hh, in_pad, hp):
    """Pad/realign PyTorch-layout LSTM weights to lane-packed gate blocks.

    Returns (wih_p: (in_pad, 4*hp), whh_p: (hp, 4*hp), bias_p: (1, 4*hp)) with
    gate k's real H columns at [k*hp, k*hp + H) and zeros elsewhere, so the
    padded lanes of h/c stay exactly zero through the recurrence.
    """
    w_ih = np.asarray(w_ih, np.float32)
    w_hh = np.asarray(w_hh, np.float32)
    bias = np.asarray(b_ih, np.float32) + np.asarray(b_hh, np.float32)
    H4, d_in = w_ih.shape
    H = H4 // 4
    assert hp >= H and d_in <= in_pad
    wih_p = np.zeros((in_pad, 4 * hp), np.float32)
    whh_p = np.zeros((hp, 4 * hp), np.float32)
    b_p = np.zeros((1, 4 * hp), np.float32)
    for g in range(4):
        wih_p[:d_in, g * hp:g * hp + H] = w_ih[g * H:(g + 1) * H, :].T
        whh_p[:H, g * hp:g * hp + H] = w_hh[g * H:(g + 1) * H, :].T
        b_p[0, g * hp:g * hp + H] = bias[g * H:(g + 1) * H]
    return jnp.asarray(wih_p), jnp.asarray(whh_p), jnp.asarray(b_p)


def pack_model2_params(lstm1_params, lstm2_params, fc_w, fc_b, input_size):
    packed = []
    in_pad = input_size                       # layer 0 sees the raw 512 input
    for p in list(lstm1_params) + list(lstm2_params):
        H = p["w_hh"].shape[1]
        hp = _pad_hidden(H)
        packed.extend(_pack_lstm_layer(p["w_ih"], p["w_hh"],
                                       p["b_ih"], p["b_hh"], in_pad, hp))
        in_pad = hp                           # later layers consume padded h
    fc_w = np.asarray(fc_w, np.float32)
    fc_b = np.asarray(fc_b, np.float32)
    fo, fi = fc_w.shape
    fcw_p = np.zeros((in_pad, OUT_PAD), np.float32)
    fcb_p = np.zeros((1, OUT_PAD), np.float32)
    fcw_p[:fi, :fo] = fc_w.T
    fcb_p[0, :fo] = fc_b
    packed += [jnp.asarray(fcw_p), jnp.asarray(fcb_p)]
    return packed


def _full_spec(shape):
    nd = len(shape)
    return pl.BlockSpec(shape, lambda *_, _nd=nd: (0,) * _nd)


# ------------------------------ forward wrapper --------------------------------
def model2_forward(x_btd, packed):
    """x_btd: (B, T, 512) batch-first, like the PyTorch module. Returns (B, T, 6)."""
    B, T, D = x_btd.shape
    x_flat = x_btd.reshape(B * T, D).astype(jnp.float32)   # batch-major, no transpose
    hp_last = packed[-2].shape[0]              # padded hidden width of last layer
    operands = [x_flat] + list(packed)
    out = pl.pallas_call(
        functools.partial(fused_model2_kernel, T=T, B=B),
        out_shape=jax.ShapeDtypeStruct((B * T, OUT_PAD), jnp.float32),
        grid=(),
        in_specs=[_full_spec(op.shape) for op in operands],
        out_specs=_full_spec((B * T, OUT_PAD)),
        scratch_shapes=[pltpu.VMEM((B, T, hp_last), jnp.float32)],
    )(*operands)
    return out[:, :6].reshape(B, T, 6)


# ------------------------------ parameter init ---------------------------------
def init_lstm_params(key, input_size, hidden_size, num_layers):
    """PyTorch-style uniform(-1/sqrt(H), 1/sqrt(H)) init, deterministic."""
    k = 1.0 / np.sqrt(hidden_size)
    params = []
    for layer in range(num_layers):
        d_in = input_size if layer == 0 else hidden_size
        key, k1, k2, k3, k4 = jax.random.split(key, 5)
        params.append(dict(
            w_ih=jax.random.uniform(k1, (4 * hidden_size, d_in), jnp.float32, -k, k),
            w_hh=jax.random.uniform(k2, (4 * hidden_size, hidden_size), jnp.float32, -k, k),
            b_ih=jax.random.uniform(k3, (4 * hidden_size,), jnp.float32, -k, k),
            b_hh=jax.random.uniform(k4, (4 * hidden_size,), jnp.float32, -k, k),
        ))
    return key, params


# ------------------------------ JAX reference -----------------------------------
def lstm_layer_ref(x_tbd, w_ih, w_hh, b_ih, b_hh):
    H = w_hh.shape[1]

    def step(carry, x_t):
        h, c = carry
        gates = x_t @ w_ih.T + h @ w_hh.T + b_ih + b_hh
        i_g = jax.nn.sigmoid(gates[:, 0 * H:1 * H])
        f_g = jax.nn.sigmoid(gates[:, 1 * H:2 * H])
        g_g = jnp.tanh(gates[:, 2 * H:3 * H])
        o_g = jax.nn.sigmoid(gates[:, 3 * H:4 * H])
        c_new = f_g * c + i_g * g_g
        h_new = o_g * jnp.tanh(c_new)
        return (h_new, c_new), h_new

    B = x_tbd.shape[1]
    init = (jnp.zeros((B, H), jnp.float32), jnp.zeros((B, H), jnp.float32))
    _, outs = lax.scan(step, init, x_tbd)
    return outs


def model2_ref(x_btd, lstm1_params, lstm2_params, fc_w, fc_b):
    h = jnp.transpose(x_btd, (1, 0, 2))
    for p in lstm1_params:
        h = lstm_layer_ref(h, p["w_ih"], p["w_hh"], p["b_ih"], p["b_hh"])
    for p in lstm2_params:
        h = lstm_layer_ref(h, p["w_ih"], p["w_hh"], p["b_ih"], p["b_hh"])
    y = h @ fc_w.T + fc_b
    return jnp.transpose(y, (1, 0, 2))


# ----------------------------------- main ----------------------------------------
if __name__ == "__main__":
    INPUT_SIZE, HIDDEN_SIZE, NUM_LAYERS = 512, 64, 2
    B, T = 2, 8

    key = jax.random.PRNGKey(0)
    key, lstm1_params = init_lstm_params(key, INPUT_SIZE, HIDDEN_SIZE, NUM_LAYERS)
    key, lstm2_params = init_lstm_params(key, HIDDEN_SIZE, 6, NUM_LAYERS)
    key, kw, kb, kx = jax.random.split(key, 4)
    kf = 1.0 / np.sqrt(6.0)
    fc_w = jax.random.uniform(kw, (6, 6), jnp.float32, -kf, kf)
    fc_b = jax.random.uniform(kb, (6,), jnp.float32, -kf, kf)

    x = jax.random.normal(kx, (B, T, INPUT_SIZE), jnp.float32)

    packed = pack_model2_params(lstm1_params, lstm2_params, fc_w, fc_b, INPUT_SIZE)

    fwd = jax.jit(model2_forward)
    out = jax.block_until_ready(fwd(x, packed))

    ref = jax.block_until_ready(model2_ref(x, lstm1_params, lstm2_params, fc_w, fc_b))
    assert out.shape == (B, T, 6), out.shape
    np.testing.assert_allclose(np.asarray(out), np.asarray(ref), rtol=1e-4, atol=1e-4)

    print("KERNEL_OK")
</pallas_src>

<mosaic_0001>
module attributes {stable_mosaic.version = 11 : i64} {
  func.func @fused_model2_kernel(%arg0: memref<16x512xf32, #tpu.memory_space<vmem>>, %arg1: memref<512x256xf32, #tpu.memory_space<vmem>>, %arg2: memref<64x256xf32, #tpu.memory_space<vmem>>, %arg3: memref<1x256xf32, #tpu.memory_space<vmem>>, %arg4: memref<64x256xf32, #tpu.memory_space<vmem>>, %arg5: memref<64x256xf32, #tpu.memory_space<vmem>>, %arg6: memref<1x256xf32, #tpu.memory_space<vmem>>, %arg7: memref<64x128xf32, #tpu.memory_space<vmem>>, %arg8: memref<32x128xf32, #tpu.memory_space<vmem>>, %arg9: memref<1x128xf32, #tpu.memory_space<vmem>>, %arg10: memref<32x128xf32, #tpu.memory_space<vmem>>, %arg11: memref<32x128xf32, #tpu.memory_space<vmem>>, %arg12: memref<1x128xf32, #tpu.memory_space<vmem>>, %arg13: memref<32x128xf32, #tpu.memory_space<vmem>>, %arg14: memref<1x128xf32, #tpu.memory_space<vmem>>, %arg15: memref<16x128xf32, #tpu.memory_space<vmem>>, %arg16: memref<2x8x32xf32, #tpu.memory_space<vmem>>) attributes {dimension_semantics = [], scalar_prefetch = 0 : i64, scratch_operands = 1 : i64, tpu.core_type = #tpu.core_type<tc>} {
    %c0 = arith.constant 0 : index
    %c0_0 = arith.constant 0 : index
    %0 = vector.load %arg0[%c0, %c0_0] : memref<16x512xf32, #tpu.memory_space<vmem>>, vector<16x512xf32>
    %c0_1 = arith.constant 0 : index
    %c0_2 = arith.constant 0 : index
    %1 = vector.load %arg1[%c0_1, %c0_2] : memref<512x256xf32, #tpu.memory_space<vmem>>, vector<512x256xf32>
    %cst = arith.constant dense<0.000000e+00> : vector<16x256xf32>
    %2 = tpu.matmul %0, %1, %cst {dimension_numbers = #tpu.dot_dimension_numbers<[1], [0], [0], [1], [0, 0, 1, 1], [], []>} : vector<16x512xf32>, vector<512x256xf32>, vector<16x256xf32> -> vector<16x256xf32>
    %c0_3 = arith.constant 0 : index
    %c0_4 = arith.constant 0 : index
    %3 = vector.load %arg3[%c0_3, %c0_4] : memref<1x256xf32, #tpu.memory_space<vmem>>, vector<1x256xf32>
    %4 = vector.broadcast %3 : vector<1x256xf32> to vector<16x256xf32>
    %5 = arith.addf %2, %4 : vector<16x256xf32>
    %6 = vector.shape_cast %5 : vector<16x256xf32> to vector<2x8x256xf32>
    %cst_5 = arith.constant 0.000000e+00 : f32
    %7 = vector.broadcast %cst_5 : f32 to vector<2x64xf32>
    %cst_6 = arith.constant 0.000000e+00 : f32
    %8 = vector.broadcast %cst_6 : f32 to vector<2x64xf32>
    %cst_7 = arith.constant 0.000000e+00 : f32
    %9 = vector.broadcast %cst_7 : f32 to vector<2x32xf32>
    %cst_8 = arith.constant 0.000000e+00 : f32
    %10 = vector.broadcast %cst_8 : f32 to vector<2x32xf32>
    %cst_9 = arith.constant 0.000000e+00 : f32
    %11 = vector.broadcast %cst_9 : f32 to vector<2x64xf32>
    %cst_10 = arith.constant 0.000000e+00 : f32
    %12 = vector.broadcast %cst_10 : f32 to vector<2x64xf32>
    %cst_11 = arith.constant 0.000000e+00 : f32
    %13 = vector.broadcast %cst_11 : f32 to vector<2x32xf32>
    %cst_12 = arith.constant 0.000000e+00 : f32
    %14 = vector.broadcast %cst_12 : f32 to vector<2x32xf32>
    %c0_13 = arith.constant 0 : index
    %c0_14 = arith.constant 0 : index
    %15 = vector.load %arg2[%c0_13, %c0_14] : memref<64x256xf32, #tpu.memory_space<vmem>>, vector<64x256xf32>
    %cst_15 = arith.constant dense<0.000000e+00> : vector<2x256xf32>
    %16 = tpu.matmul %7, %15, %cst_15 {dimension_numbers = #tpu.dot_dimension_numbers<[1], [0], [0], [1], [0, 0, 1, 1], [], []>} : vector<2x64xf32>, vector<64x256xf32>, vector<2x256xf32> -> vector<2x256xf32>
    %17 = vector.extract_strided_slice %6 {offsets = [0, 0, 0], sizes = [2, 1, 256], strides = [1, 1, 1]} : vector<2x8x256xf32> to vector<2x1x256xf32>
    %18 = vector.shape_cast %17 : vector<2x1x256xf32> to vector<2x256xf32>
    %19 = arith.addf %18, %16 : vector<2x256xf32>
    %20 = vector.extract_strided_slice %19 {offsets = [0, 0], sizes = [2, 64], strides = [1, 1]} : vector<2x256xf32> to vector<2x64xf32>
    %21 = arith.negf %20 : vector<2x64xf32>
    %22 = math.exp %21 : vector<2x64xf32>
    %cst_16 = arith.constant 1.000000e+00 : f32
    %23 = vector.broadcast %cst_16 : f32 to vector<2x64xf32>
    %24 = arith.addf %23, %22 : vector<2x64xf32>
    %25 = arith.divf %23, %24 : vector<2x64xf32>
    %26 = vector.extract_strided_slice %19 {offsets = [0, 64], sizes = [2, 64], strides = [1, 1]} : vector<2x256xf32> to vector<2x64xf32>
    %27 = arith.negf %26 : vector<2x64xf32>
    %28 = math.exp %27 : vector<2x64xf32>
    %cst_17 = arith.constant 1.000000e+00 : f32
    %29 = vector.broadcast %cst_17 : f32 to vector<2x64xf32>
    %30 = arith.addf %29, %28 : vector<2x64xf32>
    %31 = arith.divf %29, %30 : vector<2x64xf32>
    %32 = vector.extract_strided_slice %19 {offsets = [0, 128], sizes = [2, 64], strides = [1, 1]} : vector<2x256xf32> to vector<2x64xf32>
    %33 = math.tanh %32 : vector<2x64xf32>
    %34 = vector.extract_strided_slice %19 {offsets = [0, 192], sizes = [2, 64], strides = [1, 1]} : vector<2x256xf32> to vector<2x64xf32>
    %35 = arith.negf %34 : vector<2x64xf32>
    %36 = math.exp %35 : vector<2x64xf32>
    %cst_18 = arith.constant 1.000000e+00 : f32
    %37 = vector.broadcast %cst_18 : f32 to vector<2x64xf32>
    %38 = arith.addf %37, %36 : vector<2x64xf32>
    %39 = arith.divf %37, %38 : vector<2x64xf32>
    %40 = arith.mulf %31, %11 : vector<2x64xf32>
    %41 = arith.mulf %25, %33 : vector<2x64xf32>
    %42 = arith.addf %40, %41 : vector<2x64xf32>
    %43 = math.tanh %42 : vector<2x64xf32>
    %44 = arith.mulf %39, %43 : vector<2x64xf32>
    %c0_19 = arith.constant 0 : index
    %c0_20 = arith.constant 0 : index
    %45 = vector.load %arg5[%c0_19, %c0_20] : memref<64x256xf32, #tpu.memory_space<vmem>>, vector<64x256xf32>
    %cst_21 = arith.constant dense<0.000000e+00> : vector<2x256xf32>
    %46 = tpu.matmul %8, %45, %cst_21 {dimension_numbers = #tpu.dot_dimension_numbers<[1], [0], [0], [1], [0, 0, 1, 1], [], []>} : vector<2x64xf32>, vector<64x256xf32>, vector<2x256xf32> -> vector<2x256xf32>
    %c0_22 = arith.constant 0 : index
    %c0_23 = arith.constant 0 : index
    %47 = vector.load %arg4[%c0_22, %c0_23] : memref<64x256xf32, #tpu.memory_space<vmem>>, vector<64x256xf32>
    %cst_24 = arith.constant dense<0.000000e+00> : vector<2x256xf32>
    %48 = tpu.matmul %44, %47, %cst_24 {dimension_numbers = #tpu.dot_dimension_numbers<[1], [0], [0], [1], [0, 0, 1, 1], [], []>} : vector<2x64xf32>, vector<64x256xf32>, vector<2x256xf32> -> vector<2x256xf32>
    %49 = arith.addf %48, %46 : vector<2x256xf32>
    %c0_25 = arith.constant 0 : index
    %c0_26 = arith.constant 0 : index
    %50 = vector.load %arg6[%c0_25, %c0_26] : memref<1x256xf32, #tpu.memory_space<vmem>>, vector<1x256xf32>
    %51 = vector.broadcast %50 : vector<1x256xf32> to vector<2x256xf32>
    %52 = arith.addf %49, %51 : vector<2x256xf32>
    %53 = vector.extract_strided_slice %52 {offsets = [0, 0], sizes = [2, 64], strides = [1, 1]} : vector<2x256xf32> to vector<2x64xf32>
    %54 = arith.negf %53 : vector<2x64xf32>
    %55 = math.exp %54 : vector<2x64xf32>
    %cst_27 = arith.constant 1.000000e+00 : f32
    %56 = vector.broadcast %cst_27 : f32 to vector<2x64xf32>
    %57 = arith.addf %56, %55 : vector<2x64xf32>
    %58 = arith.divf %56, %57 : vector<2x64xf32>
    %59 = vector.extract_strided_slice %52 {offsets = [0, 64], sizes = [2, 64], strides = [1, 1]} : vector<2x256xf32> to vector<2x64xf32>
    %60 = arith.negf %59 : vector<2x64xf32>
    %61 = math.exp %60 : vector<2x64xf32>
    %cst_28 = arith.constant 1.000000e+00 : f32
    %62 = vector.broadcast %cst_28 : f32 to vector<2x64xf32>
    %63 = arith.addf %62, %61 : vector<2x64xf32>
    %64 = arith.divf %62, %63 : vector<2x64xf32>
    %65 = vector.extract_strided_slice %52 {offsets = [0, 128], sizes = [2, 64], strides = [1, 1]} : vector<2x256xf32> to vector<2x64xf32>
    %66 = math.tanh %65 : vector<2x64xf32>
    %67 = vector.extract_strided_slice %52 {offsets = [0, 192], sizes = [2, 64], strides = [1, 1]} : vector<2x256xf32> to vector<2x64xf32>
    %68 = arith.negf %67 : vector<2x64xf32>
    %69 = math.exp %68 : vector<2x64xf32>
    %cst_29 = arith.constant 1.000000e+00 : f32
    %70 = vector.broadcast %cst_29 : f32 to vector<2x64xf32>
    %71 = arith.addf %70, %69 : vector<2x64xf32>
    %72 = arith.divf %70, %71 : vector<2x64xf32>
    %73 = arith.mulf %64, %12 : vector<2x64xf32>
    %74 = arith.mulf %58, %66 : vector<2x64xf32>
    %75 = arith.addf %73, %74 : vector<2x64xf32>
    %76 = math.tanh %75 : vector<2x64xf32>
    %77 = arith.mulf %72, %76 : vector<2x64xf32>
    %c0_30 = arith.constant 0 : index
    %c0_31 = arith.constant 0 : index
    %78 = vector.load %arg2[%c0_30, %c0_31] : memref<64x256xf32, #tpu.memory_space<vmem>>, vector<64x256xf32>
    %cst_32 = arith.constant dense<0.000000e+00> : vector<2x256xf32>
    %79 = tpu.matmul %44, %78, %cst_32 {dimension_numbers = #tpu.dot_dimension_numbers<[1], [0], [0], [1], [0, 0, 1, 1], [], []>} : vector<2x64xf32>, vector<64x256xf32>, vector<2x256xf32> -> vector<2x256xf32>
    %80 = vector.extract_strided_slice %6 {offsets = [0, 1, 0], sizes = [2, 1, 256], strides = [1, 1, 1]} : vector<2x8x256xf32> to vector<2x1x256xf32>
    %81 = vector.shape_cast %80 : vector<2x1x256xf32> to vector<2x256xf32>
    %82 = arith.addf %81, %79 : vector<2x256xf32>
    %83 = vector.extract_strided_slice %82 {offsets = [0, 0], sizes = [2, 64], strides = [1, 1]} : vector<2x256xf32> to vector<2x64xf32>
    %84 = arith.negf %83 : vector<2x64xf32>
    %85 = math.exp %84 : vector<2x64xf32>
    %cst_33 = arith.constant 1.000000e+00 : f32
    %86 = vector.broadcast %cst_33 : f32 to vector<2x64xf32>
    %87 = arith.addf %86, %85 : vector<2x64xf32>
    %88 = arith.divf %86, %87 : vector<2x64xf32>
    %89 = vector.extract_strided_slice %82 {offsets = [0, 64], sizes = [2, 64], strides = [1, 1]} : vector<2x256xf32> to vector<2x64xf32>
    %90 = arith.negf %89 : vector<2x64xf32>
    %91 = math.exp %90 : vector<2x64xf32>
    %cst_34 = arith.constant 1.000000e+00 : f32
    %92 = vector.broadcast %cst_34 : f32 to vector<2x64xf32>
    %93 = arith.addf %92, %91 : vector<2x64xf32>
    %94 = arith.divf %92, %93 : vector<2x64xf32>
    %95 = vector.extract_strided_slice %82 {offsets = [0, 128], sizes = [2, 64], strides = [1, 1]} : vector<2x256xf32> to vector<2x64xf32>
    %96 = math.tanh %95 : vector<2x64xf32>
    %97 = vector.extract_strided_slice %82 {offsets = [0, 192], sizes = [2, 64], strides = [1, 1]} : vector<2x256xf32> to vector<2x64xf32>
    %98 = arith.negf %97 : vector<2x64xf32>
    %99 = math.exp %98 : vector<2x64xf32>
    %cst_35 = arith.constant 1.000000e+00 : f32
    %100 = vector.broadcast %cst_35 : f32 to vector<2x64xf32>
    %101 = arith.addf %100, %99 : vector<2x64xf32>
    %102 = arith.divf %100, %101 : vector<2x64xf32>
    %103 = arith.mulf %94, %42 : vector<2x64xf32>
    %104 = arith.mulf %88, %96 : vector<2x64xf32>
    %105 = arith.addf %103, %104 : vector<2x64xf32>
    %106 = math.tanh %105 : vector<2x64xf32>
    %107 = arith.mulf %102, %106 : vector<2x64xf32>
    %c0_36 = arith.constant 0 : index
    %c0_37 = arith.constant 0 : index
    %108 = vector.load %arg8[%c0_36, %c0_37] : memref<32x128xf32, #tpu.memory_space<vmem>>, vector<32x128xf32>
    %cst_38 = arith.constant dense<0.000000e+00> : vector<2x128xf32>
    %109 = tpu.matmul %9, %108, %cst_38 {dimension_numbers = #tpu.dot_dimension_numbers<[1], [0], [0], [1], [0, 0, 1, 1], [], []>} : vector<2x32xf32>, vector<32x128xf32>, vector<2x128xf32> -> vector<2x128xf32>
    %c0_39 = arith.constant 0 : index
    %c0_40 = arith.constant 0 : index
    %110 = vector.load %arg7[%c0_39, %c0_40] : memref<64x128xf32, #tpu.memory_space<vmem>>, vector<64x128xf32>
    %cst_41 = arith.constant dense<0.000000e+00> : vector<2x128xf32>
    %111 = tpu.matmul %77, %110, %cst_41 {dimension_numbers = #tpu.dot_dimension_numbers<[1], [0], [0], [1], [0, 0, 1, 1], [], []>} : vector<2x64xf32>, vector<64x128xf32>, vector<2x128xf32> -> vector<2x128xf32>
    %112 = arith.addf %111, %109 : vector<2x128xf32>
    %c0_42 = arith.constant 0 : index
    %c0_43 = arith.constant 0 : index
    %113 = vector.load %arg9[%c0_42, %c0_43] : memref<1x128xf32, #tpu.memory_space<vmem>>, vector<1x128xf32>
    %114 = vector.broadcast %113 : vector<1x128xf32> to vector<2x128xf32>
    %115 = arith.addf %112, %114 : vector<2x128xf32>
    %116 = vector.extract_strided_slice %115 {offsets = [0, 0], sizes = [2, 32], strides = [1, 1]} : vector<2x128xf32> to vector<2x32xf32>
    %117 = arith.negf %116 : vector<2x32xf32>
    %118 = math.exp %117 : vector<2x32xf32>
    %cst_44 = arith.constant 1.000000e+00 : f32
    %119 = vector.broadcast %cst_44 : f32 to vector<2x32xf32>
    %120 = arith.addf %119, %118 : vector<2x32xf32>
    %121 = arith.divf %119, %120 : vector<2x32xf32>
    %122 = vector.extract_strided_slice %115 {offsets = [0, 32], sizes = [2, 32], strides = [1, 1]} : vector<2x128xf32> to vector<2x32xf32>
    %123 = arith.negf %122 : vector<2x32xf32>
    %124 = math.exp %123 : vector<2x32xf32>
    %cst_45 = arith.constant 1.000000e+00 : f32
    %125 = vector.broadcast %cst_45 : f32 to vector<2x32xf32>
    %126 = arith.addf %125, %124 : vector<2x32xf32>
    %127 = arith.divf %125, %126 : vector<2x32xf32>
    %128 = vector.extract_strided_slice %115 {offsets = [0, 64], sizes = [2, 32], strides = [1, 1]} : vector<2x128xf32> to vector<2x32xf32>
    %129 = math.tanh %128 : vector<2x32xf32>
    %130 = vector.extract_strided_slice %115 {offsets = [0, 96], sizes = [2, 32], strides = [1, 1]} : vector<2x128xf32> to vector<2x32xf32>
    %131 = arith.negf %130 : vector<2x32xf32>
    %132 = math.exp %131 : vector<2x32xf32>
    %cst_46 = arith.constant 1.000000e+00 : f32
    %133 = vector.broadcast %cst_46 : f32 to vector<2x32xf32>
    %134 = arith.addf %133, %132 : vector<2x32xf32>
    %135 = arith.divf %133, %134 : vector<2x32xf32>
    %136 = arith.mulf %127, %13 : vector<2x32xf32>
    %137 = arith.mulf %121, %129 : vector<2x32xf32>
    %138 = arith.addf %136, %137 : vector<2x32xf32>
    %139 = math.tanh %138 : vector<2x32xf32>
    %140 = arith.mulf %135, %139 : vector<2x32xf32>
    %c0_47 = arith.constant 0 : index
    %c0_48 = arith.constant 0 : index
    %141 = vector.load %arg5[%c0_47, %c0_48] : memref<64x256xf32, #tpu.memory_space<vmem>>, vector<64x256xf32>
    %cst_49 = arith.constant dense<0.000000e+00> : vector<2x256xf32>
    %142 = tpu.matmul %77, %141, %cst_49 {dimension_numbers = #tpu.dot_dimension_numbers<[1], [0], [0], [1], [0, 0, 1, 1], [], []>} : vector<2x64xf32>, vector<64x256xf32>, vector<2x256xf32> -> vector<2x256xf32>
    %c0_50 = arith.constant 0 : index
    %c0_51 = arith.constant 0 : index
    %143 = vector.load %arg4[%c0_50, %c0_51] : memref<64x256xf32, #tpu.memory_space<vmem>>, vector<64x256xf32>
    %cst_52 = arith.constant dense<0.000000e+00> : vector<2x256xf32>
    %144 = tpu.matmul %107, %143, %cst_52 {dimension_numbers = #tpu.dot_dimension_numbers<[1], [0], [0], [1], [0, 0, 1, 1], [], []>} : vector<2x64xf32>, vector<64x256xf32>, vector<2x256xf32> -> vector<2x256xf32>
    %145 = arith.addf %144, %142 : vector<2x256xf32>
    %c0_53 = arith.constant 0 : index
    %c0_54 = arith.constant 0 : index
    %146 = vector.load %arg6[%c0_53, %c0_54] : memref<1x256xf32, #tpu.memory_space<vmem>>, vector<1x256xf32>
    %147 = vector.broadcast %146 : vector<1x256xf32> to vector<2x256xf32>
    %148 = arith.addf %145, %147 : vector<2x256xf32>
    %149 = vector.extract_strided_slice %148 {offsets = [0, 0], sizes = [2, 64], strides = [1, 1]} : vector<2x256xf32> to vector<2x64xf32>
    %150 = arith.negf %149 : vector<2x64xf32>
    %151 = math.exp %150 : vector<2x64xf32>
    %cst_55 = arith.constant 1.000000e+00 : f32
    %152 = vector.broadcast %cst_55 : f32 to vector<2x64xf32>
    %153 = arith.addf %152, %151 : vector<2x64xf32>
    %154 = arith.divf %152, %153 : vector<2x64xf32>
    %155 = vector.extract_strided_slice %148 {offsets = [0, 64], sizes = [2, 64], strides = [1, 1]} : vector<2x256xf32> to vector<2x64xf32>
    %156 = arith.negf %155 : vector<2x64xf32>
    %157 = math.exp %156 : vector<2x64xf32>
    %cst_56 = arith.constant 1.000000e+00 : f32
    %158 = vector.broadcast %cst_56 : f32 to vector<2x64xf32>
    %159 = arith.addf %158, %157 : vector<2x64xf32>
    %160 = arith.divf %158, %159 : vector<2x64xf32>
    %161 = vector.extract_strided_slice %148 {offsets = [0, 128], sizes = [2, 64], strides = [1, 1]} : vector<2x256xf32> to vector<2x64xf32>
    %162 = math.tanh %161 : vector<2x64xf32>
    %163 = vector.extract_strided_slice %148 {offsets = [0, 192], sizes = [2, 64], strides = [1, 1]} : vector<2x256xf32> to vector<2x64xf32>
    %164 = arith.negf %163 : vector<2x64xf32>
    %165 = math.exp %164 : vector<2x64xf32>
    %cst_57 = arith.constant 1.000000e+00 : f32
    %166 = vector.broadcast %cst_57 : f32 to vector<2x64xf32>
    %167 = arith.addf %166, %165 : vector<2x64xf32>
    %168 = arith.divf %166, %167 : vector<2x64xf32>
    %169 = arith.mulf %160, %75 : vector<2x64xf32>
    %170 = arith.mulf %154, %162 : vector<2x64xf32>
    %171 = arith.addf %169, %170 : vector<2x64xf32>
    %172 = math.tanh %171 : vector<2x64xf32>
    %173 = arith.mulf %168, %172 : vector<2x64xf32>
    %c0_58 = arith.constant 0 : index
    %c0_59 = arith.constant 0 : index
    %174 = vector.load %arg2[%c0_58, %c0_59] : memref<64x256xf32, #tpu.memory_space<vmem>>, vector<64x256xf32>
    %cst_60 = arith.constant dense<0.000000e+00> : vector<2x256xf32>
    %175 = tpu.matmul %107, %174, %cst_60 {dimension_numbers = #tpu.dot_dimension_numbers<[1], [0], [0], [1], [0, 0, 1, 1], [], []>} : vector<2x64xf32>, vector<64x256xf32>, vector<2x256xf32> -> vector<2x256xf32>
    %176 = vector.extract_strided_slice %6 {offsets = [0, 2, 0], sizes = [2, 1, 256], strides = [1, 1, 1]} : vector<2x8x256xf32> to vector<2x1x256xf32>
    %177 = vector.shape_cast %176 : vector<2x1x256xf32> to vector<2x256xf32>
    %178 = arith.addf %177, %175 : vector<2x256xf32>
    %179 = vector.extract_strided_slice %178 {offsets = [0, 0], sizes = [2, 64], strides = [1, 1]} : vector<2x256xf32> to vector<2x64xf32>
    %180 = arith.negf %179 : vector<2x64xf32>
    %181 = math.exp %180 : vector<2x64xf32>
    %cst_61 = arith.constant 1.000000e+00 : f32
    %182 = vector.broadcast %cst_61 : f32 to vector<2x64xf32>
    %183 = arith.addf %182, %181 : vector<2x64xf32>
    %184 = arith.divf %182, %183 : vector<2x64xf32>
    %185 = vector.extract_strided_slice %178 {offsets = [0, 64], sizes = [2, 64], strides = [1, 1]} : vector<2x256xf32> to vector<2x64xf32>
    %186 = arith.negf %185 : vector<2x64xf32>
    %187 = math.exp %186 : vector<2x64xf32>
    %cst_62 = arith.constant 1.000000e+00 : f32
    %188 = vector.broadcast %cst_62 : f32 to vector<2x64xf32>
    %189 = arith.addf %188, %187 : vector<2x64xf32>
    %190 = arith.divf %188, %189 : vector<2x64xf32>
    %191 = vector.extract_strided_slice %178 {offsets = [0, 128], sizes = [2, 64], strides = [1, 1]} : vector<2x256xf32> to vector<2x64xf32>
    %192 = math.tanh %191 : vector<2x64xf32>
    %193 = vector.extract_strided_slice %178 {offsets = [0, 192], sizes = [2, 64], strides = [1, 1]} : vector<2x256xf32> to vector<2x64xf32>
    %194 = arith.negf %193 : vector<2x64xf32>
    %195 = math.exp %194 : vector<2x64xf32>
    %cst_63 = arith.constant 1.000000e+00 : f32
    %196 = vector.broadcast %cst_63 : f32 to vector<2x64xf32>
    %197 = arith.addf %196, %195 : vector<2x64xf32>
    %198 = arith.divf %196, %197 : vector<2x64xf32>
    %199 = arith.mulf %190, %105 : vector<2x64xf32>
    %200 = arith.mulf %184, %192 : vector<2x64xf32>
    %201 = arith.addf %199, %200 : vector<2x64xf32>
    %202 = math.tanh %201 : vector<2x64xf32>
    %203 = arith.mulf %198, %202 : vector<2x64xf32>
    %c0_64 = arith.constant 0 : index
    %c0_65 = arith.constant 0 : index
    %204 = vector.load %arg11[%c0_64, %c0_65] : memref<32x128xf32, #tpu.memory_space<vmem>>, vector<32x128xf32>
    %cst_66 = arith.constant dense<0.000000e+00> : vector<2x128xf32>
    %205 = tpu.matmul %10, %204, %cst_66 {dimension_numbers = #tpu.dot_dimension_numbers<[1], [0], [0], [1], [0, 0, 1, 1], [], []>} : vector<2x32xf32>, vector<32x128xf32>, vector<2x128xf32> -> vector<2x128xf32>
    %c0_67 = arith.constant 0 : index
    %c0_68 = arith.constant 0 : index
    %206 = vector.load %arg10[%c0_67, %c0_68] : memref<32x128xf32, #tpu.memory_space<vmem>>, vector<32x128xf32>
    %cst_69 = arith.constant dense<0.000000e+00> : vector<2x128xf32>
    %207 = tpu.matmul %140, %206, %cst_69 {dimension_numbers = #tpu.dot_dimension_numbers<[1], [0], [0], [1], [0, 0, 1, 1], [], []>} : vector<2x32xf32>, vector<32x128xf32>, vector<2x128xf32> -> vector<2x128xf32>
    %208 = arith.addf %207, %205 : vector<2x128xf32>
    %c0_70 = arith.constant 0 : index
    %c0_71 = arith.constant 0 : index
    %209 = vector.load %arg12[%c0_70, %c0_71] : memref<1x128xf32, #tpu.memory_space<vmem>>, vector<1x128xf32>
    %210 = vector.broadcast %209 : vector<1x128xf32> to vector<2x128xf32>
    %211 = arith.addf %208, %210 : vector<2x128xf32>
    %212 = vector.extract_strided_slice %211 {offsets = [0, 0], sizes = [2, 32], strides = [1, 1]} : vector<2x128xf32> to vector<2x32xf32>
    %213 = arith.negf %212 : vector<2x32xf32>
    %214 = math.exp %213 : vector<2x32xf32>
    %cst_72 = arith.constant 1.000000e+00 : f32
    %215 = vector.broadcast %cst_72 : f32 to vector<2x32xf32>
    %216 = arith.addf %215, %214 : vector<2x32xf32>
    %217 = arith.divf %215, %216 : vector<2x32xf32>
    %218 = vector.extract_strided_slice %211 {offsets = [0, 32], sizes = [2, 32], strides = [1, 1]} : vector<2x128xf32> to vector<2x32xf32>
    %219 = arith.negf %218 : vector<2x32xf32>
    %220 = math.exp %219 : vector<2x32xf32>
    %cst_73 = arith.constant 1.000000e+00 : f32
    %221 = vector.broadcast %cst_73 : f32 to vector<2x32xf32>
    %222 = arith.addf %221, %220 : vector<2x32xf32>
    %223 = arith.divf %221, %222 : vector<2x32xf32>
    %224 = vector.extract_strided_slice %211 {offsets = [0, 64], sizes = [2, 32], strides = [1, 1]} : vector<2x128xf32> to vector<2x32xf32>
    %225 = math.tanh %224 : vector<2x32xf32>
    %226 = vector.extract_strided_slice %211 {offsets = [0, 96], sizes = [2, 32], strides = [1, 1]} : vector<2x128xf32> to vector<2x32xf32>
    %227 = arith.negf %226 : vector<2x32xf32>
    %228 = math.exp %227 : vector<2x32xf32>
    %cst_74 = arith.constant 1.000000e+00 : f32
    %229 = vector.broadcast %cst_74 : f32 to vector<2x32xf32>
    %230 = arith.addf %229, %228 : vector<2x32xf32>
    %231 = arith.divf %229, %230 : vector<2x32xf32>
    %232 = arith.mulf %223, %14 : vector<2x32xf32>
    %233 = arith.mulf %217, %225 : vector<2x32xf32>
    %234 = arith.addf %232, %233 : vector<2x32xf32>
    %235 = math.tanh %234 : vector<2x32xf32>
    %236 = arith.mulf %231, %235 : vector<2x32xf32>
    %c0_75 = arith.constant 0 : index
    %c0_76 = arith.constant 0 : index
    %c0_77 = arith.constant 0 : index
    %237 = vector.load %arg16[%c0_75, %c0_76, %c0_77] : memref<2x8x32xf32, #tpu.memory_space<vmem>>, vector<2x1x32xf32>
    %238 = vector.shape_cast %237 : vector<2x1x32xf32> to vector<2x32xf32>
    %239 = vector.shape_cast %236 : vector<2x32xf32> to vector<2x1x32xf32>
    tpu.vector_store %arg16[%c0_75, %c0_76, %c0_77], %239 {strides = array<i32>} : memref<2x8x32xf32, #tpu.memory_space<vmem>>, vector<2x1x32xf32>,
    %c0_78 = arith.constant 0 : index
    %c0_79 = arith.constant 0 : index
    %240 = vector.load %arg8[%c0_78, %c0_79] : memref<32x128xf32, #tpu.memory_space<vmem>>, vector<32x128xf32>
    %cst_80 = arith.constant dense<0.000000e+00> : vector<2x128xf32>
    %241 = tpu.matmul %140, %240, %cst_80 {dimension_numbers = #tpu.dot_dimension_numbers<[1], [0], [0], [1], [0, 0, 1, 1], [], []>} : vector<2x32xf32>, vector<32x128xf32>, vector<2x128xf32> -> vector<2x128xf32>
    %c0_81 = arith.constant 0 : index
    %c0_82 = arith.constant 0 : index
    %242 = vector.load %arg7[%c0_81, %c0_82] : memref<64x128xf32, #tpu.memory_space<vmem>>, vector<64x128xf32>
    %cst_83 = arith.constant dense<0.000000e+00> : vector<2x128xf32>
    %243 = tpu.matmul %173, %242, %cst_83 {dimension_numbers = #tpu.dot_dimension_numbers<[1], [0], [0], [1], [0, 0, 1, 1], [], []>} : vector<2x64xf32>, vector<64x128xf32>, vector<2x128xf32> -> vector<2x128xf32>
    %244 = arith.addf %243, %241 : vector<2x128xf32>
    %c0_84 = arith.constant 0 : index
    %c0_85 = arith.constant 0 : index
    %245 = vector.load %arg9[%c0_84, %c0_85] : memref<1x128xf32, #tpu.memory_space<vmem>>, vector<1x128xf32>
    %246 = vector.broadcast %245 : vector<1x128xf32> to vector<2x128xf32>
    %247 = arith.addf %244, %246 : vector<2x128xf32>
    %248 = vector.extract_strided_slice %247 {offsets = [0, 0], sizes = [2, 32], strides = [1, 1]} : vector<2x128xf32> to vector<2x32xf32>
    %249 = arith.negf %248 : vector<2x32xf32>
    %250 = math.exp %249 : vector<2x32xf32>
    %cst_86 = arith.constant 1.000000e+00 : f32
    %251 = vector.broadcast %cst_86 : f32 to vector<2x32xf32>
    %252 = arith.addf %251, %250 : vector<2x32xf32>
    %253 = arith.divf %251, %252 : vector<2x32xf32>
    %254 = vector.extract_strided_slice %247 {offsets = [0, 32], sizes = [2, 32], strides = [1, 1]} : vector<2x128xf32> to vector<2x32xf32>
    %255 = arith.negf %254 : vector<2x32xf32>
    %256 = math.exp %255 : vector<2x32xf32>
    %cst_87 = arith.constant 1.000000e+00 : f32
    %257 = vector.broadcast %cst_87 : f32 to vector<2x32xf32>
    %258 = arith.addf %257, %256 : vector<2x32xf32>
    %259 = arith.divf %257, %258 : vector<2x32xf32>
    %260 = vector.extract_strided_slice %247 {offsets = [0, 64], sizes = [2, 32], strides = [1, 1]} : vector<2x128xf32> to vector<2x32xf32>
    %261 = math.tanh %260 : vector<2x32xf32>
    %262 = vector.extract_strided_slice %247 {offsets = [0, 96], sizes = [2, 32], strides = [1, 1]} : vector<2x128xf32> to vector<2x32xf32>
    %263 = arith.negf %262 : vector<2x32xf32>
    %264 = math.exp %263 : vector<2x32xf32>
    %cst_88 = arith.constant 1.000000e+00 : f32
    %265 = vector.broadcast %cst_88 : f32 to vector<2x32xf32>
    %266 = arith.addf %265, %264 : vector<2x32xf32>
    %267 = arith.divf %265, %266 : vector<2x32xf32>
    %268 = arith.mulf %259, %138 : vector<2x32xf32>
    %269 = arith.mulf %253, %261 : vector<2x32xf32>
    %270 = arith.addf %268, %269 : vector<2x32xf32>
    %271 = math.tanh %270 : vector<2x32xf32>
    %272 = arith.mulf %267, %271 : vector<2x32xf32>
    %c0_89 = arith.constant 0 : index
    %c0_90 = arith.constant 0 : index
    %273 = vector.load %arg5[%c0_89, %c0_90] : memref<64x256xf32, #tpu.memory_space<vmem>>, vector<64x256xf32>
    %cst_91 = arith.constant dense<0.000000e+00> : vector<2x256xf32>
    %274 = tpu.matmul %173, %273, %cst_91 {dimension_numbers = #tpu.dot_dimension_numbers<[1], [0], [0], [1], [0, 0, 1, 1], [], []>} : vector<2x64xf32>, vector<64x256xf32>, vector<2x256xf32> -> vector<2x256xf32>
    %c0_92 = arith.constant 0 : index
    %c0_93 = arith.constant 0 : index
    %275 = vector.load %arg4[%c0_92, %c0_93] : memref<64x256xf32, #tpu.memory_space<vmem>>, vector<64x256xf32>
    %cst_94 = arith.constant dense<0.000000e+00> : vector<2x256xf32>
    %276 = tpu.matmul %203, %275, %cst_94 {dimension_numbers = #tpu.dot_dimension_numbers<[1], [0], [0], [1], [0, 0, 1, 1], [], []>} : vector<2x64xf32>, vector<64x256xf32>, vector<2x256xf32> -> vector<2x256xf32>
    %277 = arith.addf %276, %274 : vector<2x256xf32>
    %c0_95 = arith.constant 0 : index
    %c0_96 = arith.constant 0 : index
    %278 = vector.load %arg6[%c0_95, %c0_96] : memref<1x256xf32, #tpu.memory_space<vmem>>, vector<1x256xf32>
    %279 = vector.broadcast %278 : vector<1x256xf32> to vector<2x256xf32>
    %280 = arith.addf %277, %279 : vector<2x256xf32>
    %281 = vector.extract_strided_slice %280 {offsets = [0, 0], sizes = [2, 64], strides = [1, 1]} : vector<2x256xf32> to vector<2x64xf32>
    %282 = arith.negf %281 : vector<2x64xf32>
    %283 = math.exp %282 : vector<2x64xf32>
    %cst_97 = arith.constant 1.000000e+00 : f32
    %284 = vector.broadcast %cst_97 : f32 to vector<2x64xf32>
    %285 = arith.addf %284, %283 : vector<2x64xf32>
    %286 = arith.divf %284, %285 : vector<2x64xf32>
    %287 = vector.extract_strided_slice %280 {offsets = [0, 64], sizes = [2, 64], strides = [1, 1]} : vector<2x256xf32> to vector<2x64xf32>
    %288 = arith.negf %287 : vector<2x64xf32>
    %289 = math.exp %288 : vector<2x64xf32>
    %cst_98 = arith.constant 1.000000e+00 : f32
    %290 = vector.broadcast %cst_98 : f32 to vector<2x64xf32>
    %291 = arith.addf %290, %289 : vector<2x64xf32>
    %292 = arith.divf %290, %291 : vector<2x64xf32>
    %293 = vector.extract_strided_slice %280 {offsets = [0, 128], sizes = [2, 64], strides = [1, 1]} : vector<2x256xf32> to vector<2x64xf32>
    %294 = math.tanh %293 : vector<2x64xf32>
    %295 = vector.extract_strided_slice %280 {offsets = [0, 192], sizes = [2, 64], strides = [1, 1]} : vector<2x256xf32> to vector<2x64xf32>
    %296 = arith.negf %295 : vector<2x64xf32>
    %297 = math.exp %296 : vector<2x64xf32>
    %cst_99 = arith.constant 1.000000e+00 : f32
    %298 = vector.broadcast %cst_99 : f32 to vector<2x64xf32>
    %299 = arith.addf %298, %297 : vector<2x64xf32>
    %300 = arith.divf %298, %299 : vector<2x64xf32>
    %301 = arith.mulf %292, %171 : vector<2x64xf32>
    %302 = arith.mulf %286, %294 : vector<2x64xf32>
    %303 = arith.addf %301, %302 : vector<2x64xf32>
    %304 = math.tanh %303 : vector<2x64xf32>
    %305 = arith.mulf %300, %304 : vector<2x64xf32>
    %c0_100 = arith.constant 0 : index
    %c0_101 = arith.constant 0 : index
    %306 = vector.load %arg2[%c0_100, %c0_101] : memref<64x256xf32, #tpu.memory_space<vmem>>, vector<64x256xf32>
    %cst_102 = arith.constant dense<0.000000e+00> : vector<2x256xf32>
    %307 = tpu.matmul %203, %306, %cst_102 {dimension_numbers = #tpu.dot_dimension_numbers<[1], [0], [0], [1], [0, 0, 1, 1], [], []>} : vector<2x64xf32>, vector<64x256xf32>, vector<2x256xf32> -> vector<2x256xf32>
    %308 = vector.extract_strided_slice %6 {offsets = [0, 3, 0], sizes = [2, 1, 256], strides = [1, 1, 1]} : vector<2x8x256xf32> to vector<2x1x256xf32>
    %309 = vector.shape_cast %308 : vector<2x1x256xf32> to vector<2x256xf32>
    %310 = arith.addf %309, %307 : vector<2x256xf32>
    %311 = vector.extract_strided_slice %310 {offsets = [0, 0], sizes = [2, 64], strides = [1, 1]} : vector<2x256xf32> to vector<2x64xf32>
    %312 = arith.negf %311 : vector<2x64xf32>
    %313 = math.exp %312 : vector<2x64xf32>
    %cst_103 = arith.constant 1.000000e+00 : f32
    %314 = vector.broadcast %cst_103 : f32 to vector<2x64xf32>
    %315 = arith.addf %314, %313 : vector<2x64xf32>
    %316 = arith.divf %314, %315 : vector<2x64xf32>
    %317 = vector.extract_strided_slice %310 {offsets = [0, 64], sizes = [2, 64], strides = [1, 1]} : vector<2x256xf32> to vector<2x64xf32>
    %318 = arith.negf %317 : vector<2x64xf32>
    %319 = math.exp %318 : vector<2x64xf32>
    %cst_104 = arith.constant 1.000000e+00 : f32
    %320 = vector.broadcast %cst_104 : f32 to vector<2x64xf32>
    %321 = arith.addf %320, %319 : vector<2x64xf32>
    %322 = arith.divf %320, %321 : vector<2x64xf32>
    %323 = vector.extract_strided_slice %310 {offsets = [0, 128], sizes = [2, 64], strides = [1, 1]} : vector<2x256xf32> to vector<2x64xf32>
    %324 = math.tanh %323 : vector<2x64xf32>
    %325 = vector.extract_strided_slice %310 {offsets = [0, 192], sizes = [2, 64], strides = [1, 1]} : vector<2x256xf32> to vector<2x64xf32>
    %326 = arith.negf %325 : vector<2x64xf32>
    %327 = math.exp %326 : vector<2x64xf32>
    %cst_105 = arith.constant 1.000000e+00 : f32
    %328 = vector.broadcast %cst_105 : f32 to vector<2x64xf32>
    %329 = arith.addf %328, %327 : vector<2x64xf32>
    %330 = arith.divf %328, %329 : vector<2x64xf32>
    %331 = arith.mulf %322, %201 : vector<2x64xf32>
    %332 = arith.mulf %316, %324 : vector<2x64xf32>
    %333 = arith.addf %331, %332 : vector<2x64xf32>
    %334 = math.tanh %333 : vector<2x64xf32>
    %335 = arith.mulf %330, %334 : vector<2x64xf32>
    %c0_106 = arith.constant 0 : index
    %c0_107 = arith.constant 0 : index
    %336 = vector.load %arg11[%c0_106, %c0_107] : memref<32x128xf32, #tpu.memory_space<vmem>>, vector<32x128xf32>
    %cst_108 = arith.constant dense<0.000000e+00> : vector<2x128xf32>
    %337 = tpu.matmul %236, %336, %cst_108 {dimension_numbers = #tpu.dot_dimension_numbers<[1], [0], [0], [1], [0, 0, 1, 1], [], []>} : vector<2x32xf32>, vector<32x128xf32>, vector<2x128xf32> -> vector<2x128xf32>
    %c0_109 = arith.constant 0 : index
    %c0_110 = arith.constant 0 : index
    %338 = vector.load %arg10[%c0_109, %c0_110] : memref<32x128xf32, #tpu.memory_space<vmem>>, vector<32x128xf32>
    %cst_111 = arith.constant dense<0.000000e+00> : vector<2x128xf32>
    %339 = tpu.matmul %272, %338, %cst_111 {dimension_numbers = #tpu.dot_dimension_numbers<[1], [0], [0], [1], [0, 0, 1, 1], [], []>} : vector<2x32xf32>, vector<32x128xf32>, vector<2x128xf32> -> vector<2x128xf32>
    %340 = arith.addf %339, %337 : vector<2x128xf32>
    %c0_112 = arith.constant 0 : index
    %c0_113 = arith.constant 0 : index
    %341 = vector.load %arg12[%c0_112, %c0_113] : memref<1x128xf32, #tpu.memory_space<vmem>>, vector<1x128xf32>
    %342 = vector.broadcast %341 : vector<1x128xf32> to vector<2x128xf32>
    %343 = arith.addf %340, %342 : vector<2x128xf32>
    %344 = vector.extract_strided_slice %343 {offsets = [0, 0], sizes = [2, 32], strides = [1, 1]} : vector<2x128xf32> to vector<2x32xf32>
    %345 = arith.negf %344 : vector<2x32xf32>
    %346 = math.exp %345 : vector<2x32xf32>
    %cst_114 = arith.constant 1.000000e+00 : f32
    %347 = vector.broadcast %cst_114 : f32 to vector<2x32xf32>
    %348 = arith.addf %347, %346 : vector<2x32xf32>
    %349 = arith.divf %347, %348 : vector<2x32xf32>
    %350 = vector.extract_strided_slice %343 {offsets = [0, 32], sizes = [2, 32], strides = [1, 1]} : vector<2x128xf32> to vector<2x32xf32>
    %351 = arith.negf %350 : vector<2x32xf32>
    %352 = math.exp %351 : vector<2x32xf32>
    %cst_115 = arith.constant 1.000000e+00 : f32
    %353 = vector.broadcast %cst_115 : f32 to vector<2x32xf32>
    %354 = arith.addf %353, %352 : vector<2x32xf32>
    %355 = arith.divf %353, %354 : vector<2x32xf32>
    %356 = vector.extract_strided_slice %343 {offsets = [0, 64], sizes = [2, 32], strides = [1, 1]} : vector<2x128xf32> to vector<2x32xf32>
    %357 = math.tanh %356 : vector<2x32xf32>
    %358 = vector.extract_strided_slice %343 {offsets = [0, 96], sizes = [2, 32], strides = [1, 1]} : vector<2x128xf32> to vector<2x32xf32>
    %359 = arith.negf %358 : vector<2x32xf32>
    %360 = math.exp %359 : vector<2x32xf32>
    %cst_116 = arith.constant 1.000000e+00 : f32
    %361 = vector.broadcast %cst_116 : f32 to vector<2x32xf32>
    %362 = arith.addf %361, %360 : vector<2x32xf32>
    %363 = arith.divf %361, %362 : vector<2x32xf32>
    %364 = arith.mulf %355, %234 : vector<2x32xf32>
    %365 = arith.mulf %349, %357 : vector<2x32xf32>
    %366 = arith.addf %364, %365 : vector<2x32xf32>
    %367 = math.tanh %366 : vector<2x32xf32>
    %368 = arith.mulf %363, %367 : vector<2x32xf32>
    %c0_117 = arith.constant 0 : index
    %c1 = arith.constant 1 : index
    %c0_118 = arith.constant 0 : index
    %369 = vector.load %arg16[%c0_117, %c1, %c0_118] : memref<2x8x32xf32, #tpu.memory_space<vmem>>, vector<2x1x32xf32>
    %370 = vector.shape_cast %369 : vector<2x1x32xf32> to vector<2x32xf32>
    %371 = vector.shape_cast %368 : vector<2x32xf32> to vector<2x1x32xf32>
    tpu.vector_store %arg16[%c0_117, %c1, %c0_118], %371 {strides = array<i32>} : memref<2x8x32xf32, #tpu.memory_space<vmem>>, vector<2x1x32xf32>,
    %c0_119 = arith.constant 0 : index
    %c0_120 = arith.constant 0 : index
    %372 = vector.load %arg8[%c0_119, %c0_120] : memref<32x128xf32, #tpu.memory_space<vmem>>, vector<32x128xf32>
    %cst_121 = arith.constant dense<0.000000e+00> : vector<2x128xf32>
    %373 = tpu.matmul %272, %372, %cst_121 {dimension_numbers = #tpu.dot_dimension_numbers<[1], [0], [0], [1], [0, 0, 1, 1], [], []>} : vector<2x32xf32>, vector<32x128xf32>, vector<2x128xf32> -> vector<2x128xf32>
    %c0_122 = arith.constant 0 : index
    %c0_123 = arith.constant 0 : index
    %374 = vector.load %arg7[%c0_122, %c0_123] : memref<64x128xf32, #tpu.memory_space<vmem>>, vector<64x128xf32>
    %cst_124 = arith.constant dense<0.000000e+00> : vector<2x128xf32>
    %375 = tpu.matmul %305, %374, %cst_124 {dimension_numbers = #tpu.dot_dimension_numbers<[1], [0], [0], [1], [0, 0, 1, 1], [], []>} : vector<2x64xf32>, vector<64x128xf32>, vector<2x128xf32> -> vector<2x128xf32>
    %376 = arith.addf %375, %373 : vector<2x128xf32>
    %c0_125 = arith.constant 0 : index
    %c0_126 = arith.constant 0 : index
    %377 = vector.load %arg9[%c0_125, %c0_126] : memref<1x128xf32, #tpu.memory_space<vmem>>, vector<1x128xf32>
    %378 = vector.broadcast %377 : vector<1x128xf32> to vector<2x128xf32>
    %379 = arith.addf %376, %378 : vector<2x128xf32>
    %380 = vector.extract_strided_slice %379 {offsets = [0, 0], sizes = [2, 32], strides = [1, 1]} : vector<2x128xf32> to vector<2x32xf32>
    %381 = arith.negf %380 : vector<2x32xf32>
    %382 = math.exp %381 : vector<2x32xf32>
    %cst_127 = arith.constant 1.000000e+00 : f32
    %383 = vector.broadcast %cst_127 : f32 to vector<2x32xf32>
    %384 = arith.addf %383, %382 : vector<2x32xf32>
    %385 = arith.divf %383, %384 : vector<2x32xf32>
    %386 = vector.extract_strided_slice %379 {offsets = [0, 32], sizes = [2, 32], strides = [1, 1]} : vector<2x128xf32> to vector<2x32xf32>
    %387 = arith.negf %386 : vector<2x32xf32>
    %388 = math.exp %387 : vector<2x32xf32>
    %cst_128 = arith.constant 1.000000e+00 : f32
    %389 = vector.broadcast %cst_128 : f32 to vector<2x32xf32>
    %390 = arith.addf %389, %388 : vector<2x32xf32>
    %391 = arith.divf %389, %390 : vector<2x32xf32>
    %392 = vector.extract_strided_slice %379 {offsets = [0, 64], sizes = [2, 32], strides = [1, 1]} : vector<2x128xf32> to vector<2x32xf32>
    %393 = math.tanh %392 : vector<2x32xf32>
    %394 = vector.extract_strided_slice %379 {offsets = [0, 96], sizes = [2, 32], strides = [1, 1]} : vector<2x128xf32> to vector<2x32xf32>
    %395 = arith.negf %394 : vector<2x32xf32>
    %396 = math.exp %395 : vector<2x32xf32>
    %cst_129 = arith.constant 1.000000e+00 : f32
    %397 = vector.broadcast %cst_129 : f32 to vector<2x32xf32>
    %398 = arith.addf %397, %396 : vector<2x32xf32>
    %399 = arith.divf %397, %398 : vector<2x32xf32>
    %400 = arith.mulf %391, %270 : vector<2x32xf32>
    %401 = arith.mulf %385, %393 : vector<2x32xf32>
    %402 = arith.addf %400, %401 : vector<2x32xf32>
    %403 = math.tanh %402 : vector<2x32xf32>
    %404 = arith.mulf %399, %403 : vector<2x32xf32>
    %c0_130 = arith.constant 0 : index
    %c0_131 = arith.constant 0 : index
    %405 = vector.load %arg5[%c0_130, %c0_131] : memref<64x256xf32, #tpu.memory_space<vmem>>, vector<64x256xf32>
    %cst_132 = arith.constant dense<0.000000e+00> : vector<2x256xf32>
    %406 = tpu.matmul %305, %405, %cst_132 {dimension_numbers = #tpu.dot_dimension_numbers<[1], [0], [0], [1], [0, 0, 1, 1], [], []>} : vector<2x64xf32>, vector<64x256xf32>, vector<2x256xf32> -> vector<2x256xf32>
    %c0_133 = arith.constant 0 : index
    %c0_134 = arith.constant 0 : index
    %407 = vector.load %arg4[%c0_133, %c0_134] : memref<64x256xf32, #tpu.memory_space<vmem>>, vector<64x256xf32>
    %cst_135 = arith.constant dense<0.000000e+00> : vector<2x256xf32>
    %408 = tpu.matmul %335, %407, %cst_135 {dimension_numbers = #tpu.dot_dimension_numbers<[1], [0], [0], [1], [0, 0, 1, 1], [], []>} : vector<2x64xf32>, vector<64x256xf32>, vector<2x256xf32> -> vector<2x256xf32>
    %409 = arith.addf %408, %406 : vector<2x256xf32>
    %c0_136 = arith.constant 0 : index
    %c0_137 = arith.constant 0 : index
    %410 = vector.load %arg6[%c0_136, %c0_137] : memref<1x256xf32, #tpu.memory_space<vmem>>, vector<1x256xf32>
    %411 = vector.broadcast %410 : vector<1x256xf32> to vector<2x256xf32>
    %412 = arith.addf %409, %411 : vector<2x256xf32>
    %413 = vector.extract_strided_slice %412 {offsets = [0, 0], sizes = [2, 64], strides = [1, 1]} : vector<2x256xf32> to vector<2x64xf32>
    %414 = arith.negf %413 : vector<2x64xf32>
    %415 = math.exp %414 : vector<2x64xf32>
    %cst_138 = arith.constant 1.000000e+00 : f32
    %416 = vector.broadcast %cst_138 : f32 to vector<2x64xf32>
    %417 = arith.addf %416, %415 : vector<2x64xf32>
    %418 = arith.divf %416, %417 : vector<2x64xf32>
    %419 = vector.extract_strided_slice %412 {offsets = [0, 64], sizes = [2, 64], strides = [1, 1]} : vector<2x256xf32> to vector<2x64xf32>
    %420 = arith.negf %419 : vector<2x64xf32>
    %421 = math.exp %420 : vector<2x64xf32>
    %cst_139 = arith.constant 1.000000e+00 : f32
    %422 = vector.broadcast %cst_139 : f32 to vector<2x64xf32>
    %423 = arith.addf %422, %421 : vector<2x64xf32>
    %424 = arith.divf %422, %423 : vector<2x64xf32>
    %425 = vector.extract_strided_slice %412 {offsets = [0, 128], sizes = [2, 64], strides = [1, 1]} : vector<2x256xf32> to vector<2x64xf32>
    %426 = math.tanh %425 : vector<2x64xf32>
    %427 = vector.extract_strided_slice %412 {offsets = [0, 192], sizes = [2, 64], strides = [1, 1]} : vector<2x256xf32> to vector<2x64xf32>
    %428 = arith.negf %427 : vector<2x64xf32>
    %429 = math.exp %428 : vector<2x64xf32>
    %cst_140 = arith.constant 1.000000e+00 : f32
    %430 = vector.broadcast %cst_140 : f32 to vector<2x64xf32>
    %431 = arith.addf %430, %429 : vector<2x64xf32>
    %432 = arith.divf %430, %431 : vector<2x64xf32>
    %433 = arith.mulf %424, %303 : vector<2x64xf32>
    %434 = arith.mulf %418, %426 : vector<2x64xf32>
    %435 = arith.addf %433, %434 : vector<2x64xf32>
    %436 = math.tanh %435 : vector<2x64xf32>
    %437 = arith.mulf %432, %436 : vector<2x64xf32>
    %c0_141 = arith.constant 0 : index
    %c0_142 = arith.constant 0 : index
    %438 = vector.load %arg2[%c0_141, %c0_142] : memref<64x256xf32, #tpu.memory_space<vmem>>, vector<64x256xf32>
    %cst_143 = arith.constant dense<0.000000e+00> : vector<2x256xf32>
    %439 = tpu.matmul %335, %438, %cst_143 {dimension_numbers = #tpu.dot_dimension_numbers<[1], [0], [0], [1], [0, 0, 1, 1], [], []>} : vector<2x64xf32>, vector<64x256xf32>, vector<2x256xf32> -> vector<2x256xf32>
    %440 = vector.extract_strided_slice %6 {offsets = [0, 4, 0], sizes = [2, 1, 256], strides = [1, 1, 1]} : vector<2x8x256xf32> to vector<2x1x256xf32>
    %441 = vector.shape_cast %440 : vector<2x1x256xf32> to vector<2x256xf32>
    %442 = arith.addf %441, %439 : vector<2x256xf32>
    %443 = vector.extract_strided_slice %442 {offsets = [0, 0], sizes = [2, 64], strides = [1, 1]} : vector<2x256xf32> to vector<2x64xf32>
    %444 = arith.negf %443 : vector<2x64xf32>
    %445 = math.exp %444 : vector<2x64xf32>
    %cst_144 = arith.constant 1.000000e+00 : f32
    %446 = vector.broadcast %cst_144 : f32 to vector<2x64xf32>
    %447 = arith.addf %446, %445 : vector<2x64xf32>
    %448 = arith.divf %446, %447 : vector<2x64xf32>
    %449 = vector.extract_strided_slice %442 {offsets = [0, 64], sizes = [2, 64], strides = [1, 1]} : vector<2x256xf32> to vector<2x64xf32>
    %450 = arith.negf %449 : vector<2x64xf32>
    %451 = math.exp %450 : vector<2x64xf32>
    %cst_145 = arith.constant 1.000000e+00 : f32
    %452 = vector.broadcast %cst_145 : f32 to vector<2x64xf32>
    %453 = arith.addf %452, %451 : vector<2x64xf32>
    %454 = arith.divf %452, %453 : vector<2x64xf32>
    %455 = vector.extract_strided_slice %442 {offsets = [0, 128], sizes = [2, 64], strides = [1, 1]} : vector<2x256xf32> to vector<2x64xf32>
    %456 = math.tanh %455 : vector<2x64xf32>
    %457 = vector.extract_strided_slice %442 {offsets = [0, 192], sizes = [2, 64], strides = [1, 1]} : vector<2x256xf32> to vector<2x64xf32>
    %458 = arith.negf %457 : vector<2x64xf32>
    %459 = math.exp %458 : vector<2x64xf32>
    %cst_146 = arith.constant 1.000000e+00 : f32
    %460 = vector.broadcast %cst_146 : f32 to vector<2x64xf32>
    %461 = arith.addf %460, %459 : vector<2x64xf32>
    %462 = arith.divf %460, %461 : vector<2x64xf32>
    %463 = arith.mulf %454, %333 : vector<2x64xf32>
    %464 = arith.mulf %448, %456 : vector<2x64xf32>
    %465 = arith.addf %463, %464 : vector<2x64xf32>
    %466 = math.tanh %465 : vector<2x64xf32>
    %467 = arith.mulf %462, %466 : vector<2x64xf32>
    %c0_147 = arith.constant 0 : index
    %c0_148 = arith.constant 0 : index
    %468 = vector.load %arg11[%c0_147, %c0_148] : memref<32x128xf32, #tpu.memory_space<vmem>>, vector<32x128xf32>
    %cst_149 = arith.constant dense<0.000000e+00> : vector<2x128xf32>
    %469 = tpu.matmul %368, %468, %cst_149 {dimension_numbers = #tpu.dot_dimension_numbers<[1], [0], [0], [1], [0, 0, 1, 1], [], []>} : vector<2x32xf32>, vector<32x128xf32>, vector<2x128xf32> -> vector<2x128xf32>
    %c0_150 = arith.constant 0 : index
    %c0_151 = arith.constant 0 : index
    %470 = vector.load %arg10[%c0_150, %c0_151] : memref<32x128xf32, #tpu.memory_space<vmem>>, vector<32x128xf32>
    %cst_152 = arith.constant dense<0.000000e+00> : vector<2x128xf32>
    %471 = tpu.matmul %404, %470, %cst_152 {dimension_numbers = #tpu.dot_dimension_numbers<[1], [0], [0], [1], [0, 0, 1, 1], [], []>} : vector<2x32xf32>, vector<32x128xf32>, vector<2x128xf32> -> vector<2x128xf32>
    %472 = arith.addf %471, %469 : vector<2x128xf32>
    %c0_153 = arith.constant 0 : index
    %c0_154 = arith.constant 0 : index
    %473 = vector.load %arg12[%c0_153, %c0_154] : memref<1x128xf32, #tpu.memory_space<vmem>>, vector<1x128xf32>
    %474 = vector.broadcast %473 : vector<1x128xf32> to vector<2x128xf32>
    %475 = arith.addf %472, %474 : vector<2x128xf32>
    %476 = vector.extract_strided_slice %475 {offsets = [0, 0], sizes = [2, 32], strides = [1, 1]} : vector<2x128xf32> to vector<2x32xf32>
    %477 = arith.negf %476 : vector<2x32xf32>
    %478 = math.exp %477 : vector<2x32xf32>
    %cst_155 = arith.constant 1.000000e+00 : f32
    %479 = vector.broadcast %cst_155 : f32 to vector<2x32xf32>
    %480 = arith.addf %479, %478 : vector<2x32xf32>
    %481 = arith.divf %479, %480 : vector<2x32xf32>
    %482 = vector.extract_strided_slice %475 {offsets = [0, 32], sizes = [2, 32], strides = [1, 1]} : vector<2x128xf32> to vector<2x32xf32>
    %483 = arith.negf %482 : vector<2x32xf32>
    %484 = math.exp %483 : vector<2x32xf32>
    %cst_156 = arith.constant 1.000000e+00 : f32
    %485 = vector.broadcast %cst_156 : f32 to vector<2x32xf32>
    %486 = arith.addf %485, %484 : vector<2x32xf32>
    %487 = arith.divf %485, %486 : vector<2x32xf32>
    %488 = vector.extract_strided_slice %475 {offsets = [0, 64], sizes = [2, 32], strides = [1, 1]} : vector<2x128xf32> to vector<2x32xf32>
    %489 = math.tanh %488 : vector<2x32xf32>
    %490 = vector.extract_strided_slice %475 {offsets = [0, 96], sizes = [2, 32], strides = [1, 1]} : vector<2x128xf32> to vector<2x32xf32>
    %491 = arith.negf %490 : vector<2x32xf32>
    %492 = math.exp %491 : vector<2x32xf32>
    %cst_157 = arith.constant 1.000000e+00 : f32
    %493 = vector.broadcast %cst_157 : f32 to vector<2x32xf32>
    %494 = arith.addf %493, %492 : vector<2x32xf32>
    %495 = arith.divf %493, %494 : vector<2x32xf32>
    %496 = arith.mulf %487, %366 : vector<2x32xf32>
    %497 = arith.mulf %481, %489 : vector<2x32xf32>
    %498 = arith.addf %496, %497 : vector<2x32xf32>
    %499 = math.tanh %498 : vector<2x32xf32>
    %500 = arith.mulf %495, %499 : vector<2x32xf32>
    %c0_158 = arith.constant 0 : index
    %c2 = arith.constant 2 : index
    %c0_159 = arith.constant 0 : index
    %501 = vector.load %arg16[%c0_158, %c2, %c0_159] : memref<2x8x32xf32, #tpu.memory_space<vmem>>, vector<2x1x32xf32>
    %502 = vector.shape_cast %501 : vector<2x1x32xf32> to vector<2x32xf32>
    %503 = vector.shape_cast %500 : vector<2x32xf32> to vector<2x1x32xf32>
    tpu.vector_store %arg16[%c0_158, %c2, %c0_159], %503 {strides = array<i32>} : memref<2x8x32xf32, #tpu.memory_space<vmem>>, vector<2x1x32xf32>,
    %c0_160 = arith.constant 0 : index
    %c0_161 = arith.constant 0 : index
    %504 = vector.load %arg8[%c0_160, %c0_161] : memref<32x128xf32, #tpu.memory_space<vmem>>, vector<32x128xf32>
    %cst_162 = arith.constant dense<0.000000e+00> : vector<2x128xf32>
    %505 = tpu.matmul %404, %504, %cst_162 {dimension_numbers = #tpu.dot_dimension_numbers<[1], [0], [0], [1], [0, 0, 1, 1], [], []>} : vector<2x32xf32>, vector<32x128xf32>, vector<2x128xf32> -> vector<2x128xf32>
    %c0_163 = arith.constant 0 : index
    %c0_164 = arith.constant 0 : index
    %506 = vector.load %arg7[%c0_163, %c0_164] : memref<64x128xf32, #tpu.memory_space<vmem>>, vector<64x128xf32>
    %cst_165 = arith.constant dense<0.000000e+00> : vector<2x128xf32>
    %507 = tpu.matmul %437, %506, %cst_165 {dimension_numbers = #tpu.dot_dimension_numbers<[1], [0], [0], [1], [0, 0, 1, 1], [], []>} : vector<2x64xf32>, vector<64x128xf32>, vector<2x128xf32> -> vector<2x128xf32>
    %508 = arith.addf %507, %505 : vector<2x128xf32>
    %c0_166 = arith.constant 0 : index
    %c0_167 = arith.constant 0 : index
    %509 = vector.load %arg9[%c0_166, %c0_167] : memref<1x128xf32, #tpu.memory_space<vmem>>, vector<1x128xf32>
    %510 = vector.broadcast %509 : vector<1x128xf32> to vector<2x128xf32>
    %511 = arith.addf %508, %510 : vector<2x128xf32>
    %512 = vector.extract_strided_slice %511 {offsets = [0, 0], sizes = [2, 32], strides = [1, 1]} : vector<2x128xf32> to vector<2x32xf32>
    %513 = arith.negf %512 : vector<2x32xf32>
    %514 = math.exp %513 : vector<2x32xf32>
    %cst_168 = arith.constant 1.000000e+00 : f32
    %515 = vector.broadcast %cst_168 : f32 to vector<2x32xf32>
    %516 = arith.addf %515, %514 : vector<2x32xf32>
    %517 = arith.divf %515, %516 : vector<2x32xf32>
    %518 = vector.extract_strided_slice %511 {offsets = [0, 32], sizes = [2, 32], strides = [1, 1]} : vector<2x128xf32> to vector<2x32xf32>
    %519 = arith.negf %518 : vector<2x32xf32>
    %520 = math.exp %519 : vector<2x32xf32>
    %cst_169 = arith.constant 1.000000e+00 : f32
    %521 = vector.broadcast %cst_169 : f32 to vector<2x32xf32>
    %522 = arith.addf %521, %520 : vector<2x32xf32>
    %523 = arith.divf %521, %522 : vector<2x32xf32>
    %524 = vector.extract_strided_slice %511 {offsets = [0, 64], sizes = [2, 32], strides = [1, 1]} : vector<2x128xf32> to vector<2x32xf32>
    %525 = math.tanh %524 : vector<2x32xf32>
    %526 = vector.extract_strided_slice %511 {offsets = [0, 96], sizes = [2, 32], strides = [1, 1]} : vector<2x128xf32> to vector<2x32xf32>
    %527 = arith.negf %526 : vector<2x32xf32>
    %528 = math.exp %527 : vector<2x32xf32>
    %cst_170 = arith.constant 1.000000e+00 : f32
    %529 = vector.broadcast %cst_170 : f32 to vector<2x32xf32>
    %530 = arith.addf %529, %528 : vector<2x32xf32>
    %531 = arith.divf %529, %530 : vector<2x32xf32>
    %532 = arith.mulf %523, %402 : vector<2x32xf32>
    %533 = arith.mulf %517, %525 : vector<2x32xf32>
    %534 = arith.addf %532, %533 : vector<2x32xf32>
    %535 = math.tanh %534 : vector<2x32xf32>
    %536 = arith.mulf %531, %535 : vector<2x32xf32>
    %c0_171 = arith.constant 0 : index
    %c0_172 = arith.constant 0 : index
    %537 = vector.load %arg5[%c0_171, %c0_172] : memref<64x256xf32, #tpu.memory_space<vmem>>, vector<64x256xf32>
    %cst_173 = arith.constant dense<0.000000e+00> : vector<2x256xf32>
    %538 = tpu.matmul %437, %537, %cst_173 {dimension_numbers = #tpu.dot_dimension_numbers<[1], [0], [0], [1], [0, 0, 1, 1], [], []>} : vector<2x64xf32>, vector<64x256xf32>, vector<2x256xf32> -> vector<2x256xf32>
    %c0_174 = arith.constant 0 : index
    %c0_175 = arith.constant 0 : index
    %539 = vector.load %arg4[%c0_174, %c0_175] : memref<64x256xf32, #tpu.memory_space<vmem>>, vector<64x256xf32>
    %cst_176 = arith.constant dense<0.000000e+00> : vector<2x256xf32>
    %540 = tpu.matmul %467, %539, %cst_176 {dimension_numbers = #tpu.dot_dimension_numbers<[1], [0], [0], [1], [0, 0, 1, 1], [], []>} : vector<2x64xf32>, vector<64x256xf32>, vector<2x256xf32> -> vector<2x256xf32>
    %541 = arith.addf %540, %538 : vector<2x256xf32>
    %c0_177 = arith.constant 0 : index
    %c0_178 = arith.constant 0 : index
    %542 = vector.load %arg6[%c0_177, %c0_178] : memref<1x256xf32, #tpu.memory_space<vmem>>, vector<1x256xf32>
    %543 = vector.broadcast %542 : vector<1x256xf32> to vector<2x256xf32>
    %544 = arith.addf %541, %543 : vector<2x256xf32>
    %545 = vector.extract_strided_slice %544 {offsets = [0, 0], sizes = [2, 64], strides = [1, 1]} : vector<2x256xf32> to vector<2x64xf32>
    %546 = arith.negf %545 : vector<2x64xf32>
    %547 = math.exp %546 : vector<2x64xf32>
    %cst_179 = arith.constant 1.000000e+00 : f32
    %548 = vector.broadcast %cst_179 : f32 to vector<2x64xf32>
    %549 = arith.addf %548, %547 : vector<2x64xf32>
    %550 = arith.divf %548, %549 : vector<2x64xf32>
    %551 = vector.extract_strided_slice %544 {offsets = [0, 64], sizes = [2, 64], strides = [1, 1]} : vector<2x256xf32> to vector<2x64xf32>
    %552 = arith.negf %551 : vector<2x64xf32>
    %553 = math.exp %552 : vector<2x64xf32>
    %cst_180 = arith.constant 1.000000e+00 : f32
    %554 = vector.broadcast %cst_180 : f32 to vector<2x64xf32>
    %555 = arith.addf %554, %553 : vector<2x64xf32>
    %556 = arith.divf %554, %555 : vector<2x64xf32>
    %557 = vector.extract_strided_slice %544 {offsets = [0, 128], sizes = [2, 64], strides = [1, 1]} : vector<2x256xf32> to vector<2x64xf32>
    %558 = math.tanh %557 : vector<2x64xf32>
    %559 = vector.extract_strided_slice %544 {offsets = [0, 192], sizes = [2, 64], strides = [1, 1]} : vector<2x256xf32> to vector<2x64xf32>
    %560 = arith.negf %559 : vector<2x64xf32>
    %561 = math.exp %560 : vector<2x64xf32>
    %cst_181 = arith.constant 1.000000e+00 : f32
    %562 = vector.broadcast %cst_181 : f32 to vector<2x64xf32>
    %563 = arith.addf %562, %561 : vector<2x64xf32>
    %564 = arith.divf %562, %563 : vector<2x64xf32>
    %565 = arith.mulf %556, %435 : vector<2x64xf32>
    %566 = arith.mulf %550, %558 : vector<2x64xf32>
    %567 = arith.addf %565, %566 : vector<2x64xf32>
    %568 = math.tanh %567 : vector<2x64xf32>
    %569 = arith.mulf %564, %568 : vector<2x64xf32>
    %c0_182 = arith.constant 0 : index
    %c0_183 = arith.constant 0 : index
    %570 = vector.load %arg2[%c0_182, %c0_183] : memref<64x256xf32, #tpu.memory_space<vmem>>, vector<64x256xf32>
    %cst_184 = arith.constant dense<0.000000e+00> : vector<2x256xf32>
    %571 = tpu.matmul %467, %570, %cst_184 {dimension_numbers = #tpu.dot_dimension_numbers<[1], [0], [0], [1], [0, 0, 1, 1], [], []>} : vector<2x64xf32>, vector<64x256xf32>, vector<2x256xf32> -> vector<2x256xf32>
    %572 = vector.extract_strided_slice %6 {offsets = [0, 5, 0], sizes = [2, 1, 256], strides = [1, 1, 1]} : vector<2x8x256xf32> to vector<2x1x256xf32>
    %573 = vector.shape_cast %572 : vector<2x1x256xf32> to vector<2x256xf32>
    %574 = arith.addf %573, %571 : vector<2x256xf32>
    %575 = vector.extract_strided_slice %574 {offsets = [0, 0], sizes = [2, 64], strides = [1, 1]} : vector<2x256xf32> to vector<2x64xf32>
    %576 = arith.negf %575 : vector<2x64xf32>
    %577 = math.exp %576 : vector<2x64xf32>
    %cst_185 = arith.constant 1.000000e+00 : f32
    %578 = vector.broadcast %cst_185 : f32 to vector<2x64xf32>
    %579 = arith.addf %578, %577 : vector<2x64xf32>
    %580 = arith.divf %578, %579 : vector<2x64xf32>
    %581 = vector.extract_strided_slice %574 {offsets = [0, 64], sizes = [2, 64], strides = [1, 1]} : vector<2x256xf32> to vector<2x64xf32>
    %582 = arith.negf %581 : vector<2x64xf32>
    %583 = math.exp %582 : vector<2x64xf32>
    %cst_186 = arith.constant 1.000000e+00 : f32
    %584 = vector.broadcast %cst_186 : f32 to vector<2x64xf32>
    %585 = arith.addf %584, %583 : vector<2x64xf32>
    %586 = arith.divf %584, %585 : vector<2x64xf32>
    %587 = vector.extract_strided_slice %574 {offsets = [0, 128], sizes = [2, 64], strides = [1, 1]} : vector<2x256xf32> to vector<2x64xf32>
    %588 = math.tanh %587 : vector<2x64xf32>
    %589 = vector.extract_strided_slice %574 {offsets = [0, 192], sizes = [2, 64], strides = [1, 1]} : vector<2x256xf32> to vector<2x64xf32>
    %590 = arith.negf %589 : vector<2x64xf32>
    %591 = math.exp %590 : vector<2x64xf32>
    %cst_187 = arith.constant 1.000000e+00 : f32
    %592 = vector.broadcast %cst_187 : f32 to vector<2x64xf32>
    %593 = arith.addf %592, %591 : vector<2x64xf32>
    %594 = arith.divf %592, %593 : vector<2x64xf32>
    %595 = arith.mulf %586, %465 : vector<2x64xf32>
    %596 = arith.mulf %580, %588 : vector<2x64xf32>
    %597 = arith.addf %595, %596 : vector<2x64xf32>
    %598 = math.tanh %597 : vector<2x64xf32>
    %599 = arith.mulf %594, %598 : vector<2x64xf32>
    %c0_188 = arith.constant 0 : index
    %c0_189 = arith.constant 0 : index
    %600 = vector.load %arg11[%c0_188, %c0_189] : memref<32x128xf32, #tpu.memory_space<vmem>>, vector<32x128xf32>
    %cst_190 = arith.constant dense<0.000000e+00> : vector<2x128xf32>
    %601 = tpu.matmul %500, %600, %cst_190 {dimension_numbers = #tpu.dot_dimension_numbers<[1], [0], [0], [1], [0, 0, 1, 1], [], []>} : vector<2x32xf32>, vector<32x128xf32>, vector<2x128xf32> -> vector<2x128xf32>
    %c0_191 = arith.constant 0 : index
    %c0_192 = arith.constant 0 : index
    %602 = vector.load %arg10[%c0_191, %c0_192] : memref<32x128xf32, #tpu.memory_space<vmem>>, vector<32x128xf32>
    %cst_193 = arith.constant dense<0.000000e+00> : vector<2x128xf32>
    %603 = tpu.matmul %536, %602, %cst_193 {dimension_numbers = #tpu.dot_dimension_numbers<[1], [0], [0], [1], [0, 0, 1, 1], [], []>} : vector<2x32xf32>, vector<32x128xf32>, vector<2x128xf32> -> vector<2x128xf32>
    %604 = arith.addf %603, %601 : vector<2x128xf32>
    %c0_194 = arith.constant 0 : index
    %c0_195 = arith.constant 0 : index
    %605 = vector.load %arg12[%c0_194, %c0_195] : memref<1x128xf32, #tpu.memory_space<vmem>>, vector<1x128xf32>
    %606 = vector.broadcast %605 : vector<1x128xf32> to vector<2x128xf32>
    %607 = arith.addf %604, %606 : vector<2x128xf32>
    %608 = vector.extract_strided_slice %607 {offsets = [0, 0], sizes = [2, 32], strides = [1, 1]} : vector<2x128xf32> to vector<2x32xf32>
    %609 = arith.negf %608 : vector<2x32xf32>
    %610 = math.exp %609 : vector<2x32xf32>
    %cst_196 = arith.constant 1.000000e+00 : f32
    %611 = vector.broadcast %cst_196 : f32 to vector<2x32xf32>
    %612 = arith.addf %611, %610 : vector<2x32xf32>
    %613 = arith.divf %611, %612 : vector<2x32xf32>
    %614 = vector.extract_strided_slice %607 {offsets = [0, 32], sizes = [2, 32], strides = [1, 1]} : vector<2x128xf32> to vector<2x32xf32>
    %615 = arith.negf %614 : vector<2x32xf32>
    %616 = math.exp %615 : vector<2x32xf32>
    %cst_197 = arith.constant 1.000000e+00 : f32
    %617 = vector.broadcast %cst_197 : f32 to vector<2x32xf32>
    %618 = arith.addf %617, %616 : vector<2x32xf32>
    %619 = arith.divf %617, %618 : vector<2x32xf32>
    %620 = vector.extract_strided_slice %607 {offsets = [0, 64], sizes = [2, 32], strides = [1, 1]} : vector<2x128xf32> to vector<2x32xf32>
    %621 = math.tanh %620 : vector<2x32xf32>
    %622 = vector.extract_strided_slice %607 {offsets = [0, 96], sizes = [2, 32], strides = [1, 1]} : vector<2x128xf32> to vector<2x32xf32>
    %623 = arith.negf %622 : vector<2x32xf32>
    %624 = math.exp %623 : vector<2x32xf32>
    %cst_198 = arith.constant 1.000000e+00 : f32
    %625 = vector.broadcast %cst_198 : f32 to vector<2x32xf32>
    %626 = arith.addf %625, %624 : vector<2x32xf32>
    %627 = arith.divf %625, %626 : vector<2x32xf32>
    %628 = arith.mulf %619, %498 : vector<2x32xf32>
    %629 = arith.mulf %613, %621 : vector<2x32xf32>
    %630 = arith.addf %628, %629 : vector<2x32xf32>
    %631 = math.tanh %630 : vector<2x32xf32>
    %632 = arith.mulf %627, %631 : vector<2x32xf32>
    %c0_199 = arith.constant 0 : index
    %c3 = arith.constant 3 : index
    %c0_200 = arith.constant 0 : index
    %633 = vector.load %arg16[%c0_199, %c3, %c0_200] : memref<2x8x32xf32, #tpu.memory_space<vmem>>, vector<2x1x32xf32>
    %634 = vector.shape_cast %633 : vector<2x1x32xf32> to vector<2x32xf32>
    %635 = vector.shape_cast %632 : vector<2x32xf32> to vector<2x1x32xf32>
    tpu.vector_store %arg16[%c0_199, %c3, %c0_200], %635 {strides = array<i32>} : memref<2x8x32xf32, #tpu.memory_space<vmem>>, vector<2x1x32xf32>,
    %c0_201 = arith.constant 0 : index
    %c0_202 = arith.constant 0 : index
    %636 = vector.load %arg8[%c0_201, %c0_202] : memref<32x128xf32, #tpu.memory_space<vmem>>, vector<32x128xf32>
    %cst_203 = arith.constant dense<0.000000e+00> : vector<2x128xf32>
    %637 = tpu.matmul %536, %636, %cst_203 {dimension_numbers = #tpu.dot_dimension_numbers<[1], [0], [0], [1], [0, 0, 1, 1], [], []>} : vector<2x32xf32>, vector<32x128xf32>, vector<2x128xf32> -> vector<2x128xf32>
    %c0_204 = arith.constant 0 : index
    %c0_205 = arith.constant 0 : index
    %638 = vector.load %arg7[%c0_204, %c0_205] : memref<64x128xf32, #tpu.memory_space<vmem>>, vector<64x128xf32>
    %cst_206 = arith.constant dense<0.000000e+00> : vector<2x128xf32>
    %639 = tpu.matmul %569, %638, %cst_206 {dimension_numbers = #tpu.dot_dimension_numbers<[1], [0], [0], [1], [0, 0, 1, 1], [], []>} : vector<2x64xf32>, vector<64x128xf32>, vector<2x128xf32> -> vector<2x128xf32>
    %640 = arith.addf %639, %637 : vector<2x128xf32>
    %c0_207 = arith.constant 0 : index
    %c0_208 = arith.constant 0 : index
    %641 = vector.load %arg9[%c0_207, %c0_208] : memref<1x128xf32, #tpu.memory_space<vmem>>, vector<1x128xf32>
    %642 = vector.broadcast %641 : vector<1x128xf32> to vector<2x128xf32>
    %643 = arith.addf %640, %642 : vector<2x128xf32>
    %644 = vector.extract_strided_slice %643 {offsets = [0, 0], sizes = [2, 32], strides = [1, 1]} : vector<2x128xf32> to vector<2x32xf32>
    %645 = arith.negf %644 : vector<2x32xf32>
    %646 = math.exp %645 : vector<2x32xf32>
    %cst_209 = arith.constant 1.000000e+00 : f32
    %647 = vector.broadcast %cst_209 : f32 to vector<2x32xf32>
    %648 = arith.addf %647, %646 : vector<2x32xf32>
    %649 = arith.divf %647, %648 : vector<2x32xf32>
    %650 = vector.extract_strided_slice %643 {offsets = [0, 32], sizes = [2, 32], strides = [1, 1]} : vector<2x128xf32> to vector<2x32xf32>
    %651 = arith.negf %650 : vector<2x32xf32>
    %652 = math.exp %651 : vector<2x32xf32>
    %cst_210 = arith.constant 1.000000e+00 : f32
    %653 = vector.broadcast %cst_210 : f32 to vector<2x32xf32>
    %654 = arith.addf %653, %652 : vector<2x32xf32>
    %655 = arith.divf %653, %654 : vector<2x32xf32>
    %656 = vector.extract_strided_slice %643 {offsets = [0, 64], sizes = [2, 32], strides = [1, 1]} : vector<2x128xf32> to vector<2x32xf32>
    %657 = math.tanh %656 : vector<2x32xf32>
    %658 = vector.extract_strided_slice %643 {offsets = [0, 96], sizes = [2, 32], strides = [1, 1]} : vector<2x128xf32> to vector<2x32xf32>
    %659 = arith.negf %658 : vector<2x32xf32>
    %660 = math.exp %659 : vector<2x32xf32>
    %cst_211 = arith.constant 1.000000e+00 : f32
    %661 = vector.broadcast %cst_211 : f32 to vector<2x32xf32>
    %662 = arith.addf %661, %660 : vector<2x32xf32>
    %663 = arith.divf %661, %662 : vector<2x32xf32>
    %664 = arith.mulf %655, %534 : vector<2x32xf32>
    %665 = arith.mulf %649, %657 : vector<2x32xf32>
    %666 = arith.addf %664, %665 : vector<2x32xf32>
    %667 = math.tanh %666 : vector<2x32xf32>
    %668 = arith.mulf %663, %667 : vector<2x32xf32>
    %c0_212 = arith.constant 0 : index
    %c0_213 = arith.constant 0 : index
    %669 = vector.load %arg5[%c0_212, %c0_213] : memref<64x256xf32, #tpu.memory_space<vmem>>, vector<64x256xf32>
    %cst_214 = arith.constant dense<0.000000e+00> : vector<2x256xf32>
    %670 = tpu.matmul %569, %669, %cst_214 {dimension_numbers = #tpu.dot_dimension_numbers<[1], [0], [0], [1], [0, 0, 1, 1], [], []>} : vector<2x64xf32>, vector<64x256xf32>, vector<2x256xf32> -> vector<2x256xf32>
    %c0_215 = arith.constant 0 : index
    %c0_216 = arith.constant 0 : index
    %671 = vector.load %arg4[%c0_215, %c0_216] : memref<64x256xf32, #tpu.memory_space<vmem>>, vector<64x256xf32>
    %cst_217 = arith.constant dense<0.000000e+00> : vector<2x256xf32>
    %672 = tpu.matmul %599, %671, %cst_217 {dimension_numbers = #tpu.dot_dimension_numbers<[1], [0], [0], [1], [0, 0, 1, 1], [], []>} : vector<2x64xf32>, vector<64x256xf32>, vector<2x256xf32> -> vector<2x256xf32>
    %673 = arith.addf %672, %670 : vector<2x256xf32>
    %c0_218 = arith.constant 0 : index
    %c0_219 = arith.constant 0 : index
    %674 = vector.load %arg6[%c0_218, %c0_219] : memref<1x256xf32, #tpu.memory_space<vmem>>, vector<1x256xf32>
    %675 = vector.broadcast %674 : vector<1x256xf32> to vector<2x256xf32>
    %676 = arith.addf %673, %675 : vector<2x256xf32>
    %677 = vector.extract_strided_slice %676 {offsets = [0, 0], sizes = [2, 64], strides = [1, 1]} : vector<2x256xf32> to vector<2x64xf32>
    %678 = arith.negf %677 : vector<2x64xf32>
    %679 = math.exp %678 : vector<2x64xf32>
    %cst_220 = arith.constant 1.000000e+00 : f32
    %680 = vector.broadcast %cst_220 : f32 to vector<2x64xf32>
    %681 = arith.addf %680, %679 : vector<2x64xf32>
    %682 = arith.divf %680, %681 : vector<2x64xf32>
    %683 = vector.extract_strided_slice %676 {offsets = [0, 64], sizes = [2, 64], strides = [1, 1]} : vector<2x256xf32> to vector<2x64xf32>
    %684 = arith.negf %683 : vector<2x64xf32>
    %685 = math.exp %684 : vector<2x64xf32>
    %cst_221 = arith.constant 1.000000e+00 : f32
    %686 = vector.broadcast %cst_221 : f32 to vector<2x64xf32>
    %687 = arith.addf %686, %685 : vector<2x64xf32>
    %688 = arith.divf %686, %687 : vector<2x64xf32>
    %689 = vector.extract_strided_slice %676 {offsets = [0, 128], sizes = [2, 64], strides = [1, 1]} : vector<2x256xf32> to vector<2x64xf32>
    %690 = math.tanh %689 : vector<2x64xf32>
    %691 = vector.extract_strided_slice %676 {offsets = [0, 192], sizes = [2, 64], strides = [1, 1]} : vector<2x256xf32> to vector<2x64xf32>
    %692 = arith.negf %691 : vector<2x64xf32>
    %693 = math.exp %692 : vector<2x64xf32>
    %cst_222 = arith.constant 1.000000e+00 : f32
    %694 = vector.broadcast %cst_222 : f32 to vector<2x64xf32>
    %695 = arith.addf %694, %693 : vector<2x64xf32>
    %696 = arith.divf %694, %695 : vector<2x64xf32>
    %697 = arith.mulf %688, %567 : vector<2x64xf32>
    %698 = arith.mulf %682, %690 : vector<2x64xf32>
    %699 = arith.addf %697, %698 : vector<2x64xf32>
    %700 = math.tanh %699 : vector<2x64xf32>
    %701 = arith.mulf %696, %700 : vector<2x64xf32>
    %c0_223 = arith.constant 0 : index
    %c0_224 = arith.constant 0 : index
    %702 = vector.load %arg2[%c0_223, %c0_224] : memref<64x256xf32, #tpu.memory_space<vmem>>, vector<64x256xf32>
    %cst_225 = arith.constant dense<0.000000e+00> : vector<2x256xf32>
    %703 = tpu.matmul %599, %702, %cst_225 {dimension_numbers = #tpu.dot_dimension_numbers<[1], [0], [0], [1], [0, 0, 1, 1], [], []>} : vector<2x64xf32>, vector<64x256xf32>, vector<2x256xf32> -> vector<2x256xf32>
    %704 = vector.extract_strided_slice %6 {offsets = [0, 6, 0], sizes = [2, 1, 256], strides = [1, 1, 1]} : vector<2x8x256xf32> to vector<2x1x256xf32>
    %705 = vector.shape_cast %704 : vector<2x1x256xf32> to vector<2x256xf32>
    %706 = arith.addf %705, %703 : vector<2x256xf32>
    %707 = vector.extract_strided_slice %706 {offsets = [0, 0], sizes = [2, 64], strides = [1, 1]} : vector<2x256xf32> to vector<2x64xf32>
    %708 = arith.negf %707 : vector<2x64xf32>
    %709 = math.exp %708 : vector<2x64xf32>
    %cst_226 = arith.constant 1.000000e+00 : f32
    %710 = vector.broadcast %cst_226 : f32 to vector<2x64xf32>
    %711 = arith.addf %710, %709 : vector<2x64xf32>
    %712 = arith.divf %710, %711 : vector<2x64xf32>
    %713 = vector.extract_strided_slice %706 {offsets = [0, 64], sizes = [2, 64], strides = [1, 1]} : vector<2x256xf32> to vector<2x64xf32>
    %714 = arith.negf %713 : vector<2x64xf32>
    %715 = math.exp %714 : vector<2x64xf32>
    %cst_227 = arith.constant 1.000000e+00 : f32
    %716 = vector.broadcast %cst_227 : f32 to vector<2x64xf32>
    %717 = arith.addf %716, %715 : vector<2x64xf32>
    %718 = arith.divf %716, %717 : vector<2x64xf32>
    %719 = vector.extract_strided_slice %706 {offsets = [0, 128], sizes = [2, 64], strides = [1, 1]} : vector<2x256xf32> to vector<2x64xf32>
    %720 = math.tanh %719 : vector<2x64xf32>
    %721 = vector.extract_strided_slice %706 {offsets = [0, 192], sizes = [2, 64], strides = [1, 1]} : vector<2x256xf32> to vector<2x64xf32>
    %722 = arith.negf %721 : vector<2x64xf32>
    %723 = math.exp %722 : vector<2x64xf32>
    %cst_228 = arith.constant 1.000000e+00 : f32
    %724 = vector.broadcast %cst_228 : f32 to vector<2x64xf32>
    %725 = arith.addf %724, %723 : vector<2x64xf32>
    %726 = arith.divf %724, %725 : vector<2x64xf32>
    %727 = arith.mulf %718, %597 : vector<2x64xf32>
    %728 = arith.mulf %712, %720 : vector<2x64xf32>
    %729 = arith.addf %727, %728 : vector<2x64xf32>
    %730 = math.tanh %729 : vector<2x64xf32>
    %731 = arith.mulf %726, %730 : vector<2x64xf32>
    %c0_229 = arith.constant 0 : index
    %c0_230 = arith.constant 0 : index
    %732 = vector.load %arg11[%c0_229, %c0_230] : memref<32x128xf32, #tpu.memory_space<vmem>>, vector<32x128xf32>
    %cst_231 = arith.constant dense<0.000000e+00> : vector<2x128xf32>
    %733 = tpu.matmul %632, %732, %cst_231 {dimension_numbers = #tpu.dot_dimension_numbers<[1], [0], [0], [1], [0, 0, 1, 1], [], []>} : vector<2x32xf32>, vector<32x128xf32>, vector<2x128xf32> -> vector<2x128xf32>
    %c0_232 = arith.constant 0 : index
    %c0_233 = arith.constant 0 : index
    %734 = vector.load %arg10[%c0_232, %c0_233] : memref<32x128xf32, #tpu.memory_space<vmem>>, vector<32x128xf32>
    %cst_234 = arith.constant dense<0.000000e+00> : vector<2x128xf32>
    %735 = tpu.matmul %668, %734, %cst_234 {dimension_numbers = #tpu.dot_dimension_numbers<[1], [0], [0], [1], [0, 0, 1, 1], [], []>} : vector<2x32xf32>, vector<32x128xf32>, vector<2x128xf32> -> vector<2x128xf32>
    %736 = arith.addf %735, %733 : vector<2x128xf32>
    %c0_235 = arith.constant 0 : index
    %c0_236 = arith.constant 0 : index
    %737 = vector.load %arg12[%c0_235, %c0_236] : memref<1x128xf32, #tpu.memory_space<vmem>>, vector<1x128xf32>
    %738 = vector.broadcast %737 : vector<1x128xf32> to vector<2x128xf32>
    %739 = arith.addf %736, %738 : vector<2x128xf32>
    %740 = vector.extract_strided_slice %739 {offsets = [0, 0], sizes = [2, 32], strides = [1, 1]} : vector<2x128xf32> to vector<2x32xf32>
    %741 = arith.negf %740 : vector<2x32xf32>
    %742 = math.exp %741 : vector<2x32xf32>
    %cst_237 = arith.constant 1.000000e+00 : f32
    %743 = vector.broadcast %cst_237 : f32 to vector<2x32xf32>
    %744 = arith.addf %743, %742 : vector<2x32xf32>
    %745 = arith.divf %743, %744 : vector<2x32xf32>
    %746 = vector.extract_strided_slice %739 {offsets = [0, 32], sizes = [2, 32], strides = [1, 1]} : vector<2x128xf32> to vector<2x32xf32>
    %747 = arith.negf %746 : vector<2x32xf32>
    %748 = math.exp %747 : vector<2x32xf32>
    %cst_238 = arith.constant 1.000000e+00 : f32
    %749 = vector.broadcast %cst_238 : f32 to vector<2x32xf32>
    %750 = arith.addf %749, %748 : vector<2x32xf32>
    %751 = arith.divf %749, %750 : vector<2x32xf32>
    %752 = vector.extract_strided_slice %739 {offsets = [0, 64], sizes = [2, 32], strides = [1, 1]} : vector<2x128xf32> to vector<2x32xf32>
    %753 = math.tanh %752 : vector<2x32xf32>
    %754 = vector.extract_strided_slice %739 {offsets = [0, 96], sizes = [2, 32], strides = [1, 1]} : vector<2x128xf32> to vector<2x32xf32>
    %755 = arith.negf %754 : vector<2x32xf32>
    %756 = math.exp %755 : vector<2x32xf32>
    %cst_239 = arith.constant 1.000000e+00 : f32
    %757 = vector.broadcast %cst_239 : f32 to vector<2x32xf32>
    %758 = arith.addf %757, %756 : vector<2x32xf32>
    %759 = arith.divf %757, %758 : vector<2x32xf32>
    %760 = arith.mulf %751, %630 : vector<2x32xf32>
    %761 = arith.mulf %745, %753 : vector<2x32xf32>
    %762 = arith.addf %760, %761 : vector<2x32xf32>
    %763 = math.tanh %762 : vector<2x32xf32>
    %764 = arith.mulf %759, %763 : vector<2x32xf32>
    %c0_240 = arith.constant 0 : index
    %c4 = arith.constant 4 : index
    %c0_241 = arith.constant 0 : index
    %765 = vector.load %arg16[%c0_240, %c4, %c0_241] : memref<2x8x32xf32, #tpu.memory_space<vmem>>, vector<2x1x32xf32>
    %766 = vector.shape_cast %765 : vector<2x1x32xf32> to vector<2x32xf32>
    %767 = vector.shape_cast %764 : vector<2x32xf32> to vector<2x1x32xf32>
    tpu.vector_store %arg16[%c0_240, %c4, %c0_241], %767 {strides = array<i32>} : memref<2x8x32xf32, #tpu.memory_space<vmem>>, vector<2x1x32xf32>,
    %c0_242 = arith.constant 0 : index
    %c0_243 = arith.constant 0 : index
    %768 = vector.load %arg8[%c0_242, %c0_243] : memref<32x128xf32, #tpu.memory_space<vmem>>, vector<32x128xf32>
    %cst_244 = arith.constant dense<0.000000e+00> : vector<2x128xf32>
    %769 = tpu.matmul %668, %768, %cst_244 {dimension_numbers = #tpu.dot_dimension_numbers<[1], [0], [0], [1], [0, 0, 1, 1], [], []>} : vector<2x32xf32>, vector<32x128xf32>, vector<2x128xf32> -> vector<2x128xf32>
    %c0_245 = arith.constant 0 : index
    %c0_246 = arith.constant 0 : index
    %770 = vector.load %arg7[%c0_245, %c0_246] : memref<64x128xf32, #tpu.memory_space<vmem>>, vector<64x128xf32>
    %cst_247 = arith.constant dense<0.000000e+00> : vector<2x128xf32>
    %771 = tpu.matmul %701, %770, %cst_247 {dimension_numbers = #tpu.dot_dimension_numbers<[1], [0], [0], [1], [0, 0, 1, 1], [], []>} : vector<2x64xf32>, vector<64x128xf32>, vector<2x128xf32> -> vector<2x128xf32>
    %772 = arith.addf %771, %769 : vector<2x128xf32>
    %c0_248 = arith.constant 0 : index
    %c0_249 = arith.constant 0 : index
    %773 = vector.load %arg9[%c0_248, %c0_249] : memref<1x128xf32, #tpu.memory_space<vmem>>, vector<1x128xf32>
    %774 = vector.broadcast %773 : vector<1x128xf32> to vector<2x128xf32>
    %775 = arith.addf %772, %774 : vector<2x128xf32>
    %776 = vector.extract_strided_slice %775 {offsets = [0, 0], sizes = [2, 32], strides = [1, 1]} : vector<2x128xf32> to vector<2x32xf32>
    %777 = arith.negf %776 : vector<2x32xf32>
    %778 = math.exp %777 : vector<2x32xf32>
    %cst_250 = arith.constant 1.000000e+00 : f32
    %779 = vector.broadcast %cst_250 : f32 to vector<2x32xf32>
    %780 = arith.addf %779, %778 : vector<2x32xf32>
    %781 = arith.divf %779, %780 : vector<2x32xf32>
    %782 = vector.extract_strided_slice %775 {offsets = [0, 32], sizes = [2, 32], strides = [1, 1]} : vector<2x128xf32> to vector<2x32xf32>
    %783 = arith.negf %782 : vector<2x32xf32>
    %784 = math.exp %783 : vector<2x32xf32>
    %cst_251 = arith.constant 1.000000e+00 : f32
    %785 = vector.broadcast %cst_251 : f32 to vector<2x32xf32>
    %786 = arith.addf %785, %784 : vector<2x32xf32>
    %787 = arith.divf %785, %786 : vector<2x32xf32>
    %788 = vector.extract_strided_slice %775 {offsets = [0, 64], sizes = [2, 32], strides = [1, 1]} : vector<2x128xf32> to vector<2x32xf32>
    %789 = math.tanh %788 : vector<2x32xf32>
    %790 = vector.extract_strided_slice %775 {offsets = [0, 96], sizes = [2, 32], strides = [1, 1]} : vector<2x128xf32> to vector<2x32xf32>
    %791 = arith.negf %790 : vector<2x32xf32>
    %792 = math.exp %791 : vector<2x32xf32>
    %cst_252 = arith.constant 1.000000e+00 : f32
    %793 = vector.broadcast %cst_252 : f32 to vector<2x32xf32>
    %794 = arith.addf %793, %792 : vector<2x32xf32>
    %795 = arith.divf %793, %794 : vector<2x32xf32>
    %796 = arith.mulf %787, %666 : vector<2x32xf32>
    %797 = arith.mulf %781, %789 : vector<2x32xf32>
    %798 = arith.addf %796, %797 : vector<2x32xf32>
    %799 = math.tanh %798 : vector<2x32xf32>
    %800 = arith.mulf %795, %799 : vector<2x32xf32>
    %c0_253 = arith.constant 0 : index
    %c0_254 = arith.constant 0 : index
    %801 = vector.load %arg5[%c0_253, %c0_254] : memref<64x256xf32, #tpu.memory_space<vmem>>, vector<64x256xf32>
    %cst_255 = arith.constant dense<0.000000e+00> : vector<2x256xf32>
    %802 = tpu.matmul %701, %801, %cst_255 {dimension_numbers = #tpu.dot_dimension_numbers<[1], [0], [0], [1], [0, 0, 1, 1], [], []>} : vector<2x64xf32>, vector<64x256xf32>, vector<2x256xf32> -> vector<2x256xf32>
    %c0_256 = arith.constant 0 : index
    %c0_257 = arith.constant 0 : index
    %803 = vector.load %arg4[%c0_256, %c0_257] : memref<64x256xf32, #tpu.memory_space<vmem>>, vector<64x256xf32>
    %cst_258 = arith.constant dense<0.000000e+00> : vector<2x256xf32>
    %804 = tpu.matmul %731, %803, %cst_258 {dimension_numbers = #tpu.dot_dimension_numbers<[1], [0], [0], [1], [0, 0, 1, 1], [], []>} : vector<2x64xf32>, vector<64x256xf32>, vector<2x256xf32> -> vector<2x256xf32>
    %805 = arith.addf %804, %802 : vector<2x256xf32>
    %c0_259 = arith.constant 0 : index
    %c0_260 = arith.constant 0 : index
    %806 = vector.load %arg6[%c0_259, %c0_260] : memref<1x256xf32, #tpu.memory_space<vmem>>, vector<1x256xf32>
    %807 = vector.broadcast %806 : vector<1x256xf32> to vector<2x256xf32>
    %808 = arith.addf %805, %807 : vector<2x256xf32>
    %809 = vector.extract_strided_slice %808 {offsets = [0, 0], sizes = [2, 64], strides = [1, 1]} : vector<2x256xf32> to vector<2x64xf32>
    %810 = arith.negf %809 : vector<2x64xf32>
    %811 = math.exp %810 : vector<2x64xf32>
    %cst_261 = arith.constant 1.000000e+00 : f32
    %812 = vector.broadcast %cst_261 : f32 to vector<2x64xf32>
    %813 = arith.addf %812, %811 : vector<2x64xf32>
    %814 = arith.divf %812, %813 : vector<2x64xf32>
    %815 = vector.extract_strided_slice %808 {offsets = [0, 64], sizes = [2, 64], strides = [1, 1]} : vector<2x256xf32> to vector<2x64xf32>
    %816 = arith.negf %815 : vector<2x64xf32>
    %817 = math.exp %816 : vector<2x64xf32>
    %cst_262 = arith.constant 1.000000e+00 : f32
    %818 = vector.broadcast %cst_262 : f32 to vector<2x64xf32>
    %819 = arith.addf %818, %817 : vector<2x64xf32>
    %820 = arith.divf %818, %819 : vector<2x64xf32>
    %821 = vector.extract_strided_slice %808 {offsets = [0, 128], sizes = [2, 64], strides = [1, 1]} : vector<2x256xf32> to vector<2x64xf32>
    %822 = math.tanh %821 : vector<2x64xf32>
    %823 = vector.extract_strided_slice %808 {offsets = [0, 192], sizes = [2, 64], strides = [1, 1]} : vector<2x256xf32> to vector<2x64xf32>
    %824 = arith.negf %823 : vector<2x64xf32>
    %825 = math.exp %824 : vector<2x64xf32>
    %cst_263 = arith.constant 1.000000e+00 : f32
    %826 = vector.broadcast %cst_263 : f32 to vector<2x64xf32>
    %827 = arith.addf %826, %825 : vector<2x64xf32>
    %828 = arith.divf %826, %827 : vector<2x64xf32>
    %829 = arith.mulf %820, %699 : vector<2x64xf32>
    %830 = arith.mulf %814, %822 : vector<2x64xf32>
    %831 = arith.addf %829, %830 : vector<2x64xf32>
    %832 = math.tanh %831 : vector<2x64xf32>
    %833 = arith.mulf %828, %832 : vector<2x64xf32>
    %c0_264 = arith.constant 0 : index
    %c0_265 = arith.constant 0 : index
    %834 = vector.load %arg2[%c0_264, %c0_265] : memref<64x256xf32, #tpu.memory_space<vmem>>, vector<64x256xf32>
    %cst_266 = arith.constant dense<0.000000e+00> : vector<2x256xf32>
    %835 = tpu.matmul %731, %834, %cst_266 {dimension_numbers = #tpu.dot_dimension_numbers<[1], [0], [0], [1], [0, 0, 1, 1], [], []>} : vector<2x64xf32>, vector<64x256xf32>, vector<2x256xf32> -> vector<2x256xf32>
    %836 = vector.extract_strided_slice %6 {offsets = [0, 7, 0], sizes = [2, 1, 256], strides = [1, 1, 1]} : vector<2x8x256xf32> to vector<2x1x256xf32>
    %837 = vector.shape_cast %836 : vector<2x1x256xf32> to vector<2x256xf32>
    %838 = arith.addf %837, %835 : vector<2x256xf32>
    %839 = vector.extract_strided_slice %838 {offsets = [0, 0], sizes = [2, 64], strides = [1, 1]} : vector<2x256xf32> to vector<2x64xf32>
    %840 = arith.negf %839 : vector<2x64xf32>
    %841 = math.exp %840 : vector<2x64xf32>
    %cst_267 = arith.constant 1.000000e+00 : f32
    %842 = vector.broadcast %cst_267 : f32 to vector<2x64xf32>
    %843 = arith.addf %842, %841 : vector<2x64xf32>
    %844 = arith.divf %842, %843 : vector<2x64xf32>
    %845 = vector.extract_strided_slice %838 {offsets = [0, 64], sizes = [2, 64], strides = [1, 1]} : vector<2x256xf32> to vector<2x64xf32>
    %846 = arith.negf %845 : vector<2x64xf32>
    %847 = math.exp %846 : vector<2x64xf32>
    %cst_268 = arith.constant 1.000000e+00 : f32
    %848 = vector.broadcast %cst_268 : f32 to vector<2x64xf32>
    %849 = arith.addf %848, %847 : vector<2x64xf32>
    %850 = arith.divf %848, %849 : vector<2x64xf32>
    %851 = vector.extract_strided_slice %838 {offsets = [0, 128], sizes = [2, 64], strides = [1, 1]} : vector<2x256xf32> to vector<2x64xf32>
    %852 = math.tanh %851 : vector<2x64xf32>
    %853 = vector.extract_strided_slice %838 {offsets = [0, 192], sizes = [2, 64], strides = [1, 1]} : vector<2x256xf32> to vector<2x64xf32>
    %854 = arith.negf %853 : vector<2x64xf32>
    %855 = math.exp %854 : vector<2x64xf32>
    %cst_269 = arith.constant 1.000000e+00 : f32
    %856 = vector.broadcast %cst_269 : f32 to vector<2x64xf32>
    %857 = arith.addf %856, %855 : vector<2x64xf32>
    %858 = arith.divf %856, %857 : vector<2x64xf32>
    %859 = arith.mulf %850, %729 : vector<2x64xf32>
    %860 = arith.mulf %844, %852 : vector<2x64xf32>
    %861 = arith.addf %859, %860 : vector<2x64xf32>
    %862 = math.tanh %861 : vector<2x64xf32>
    %863 = arith.mulf %858, %862 : vector<2x64xf32>
    %c0_270 = arith.constant 0 : index
    %c0_271 = arith.constant 0 : index
    %864 = vector.load %arg11[%c0_270, %c0_271] : memref<32x128xf32, #tpu.memory_space<vmem>>, vector<32x128xf32>
    %cst_272 = arith.constant dense<0.000000e+00> : vector<2x128xf32>
    %865 = tpu.matmul %764, %864, %cst_272 {dimension_numbers = #tpu.dot_dimension_numbers<[1], [0], [0], [1], [0, 0, 1, 1], [], []>} : vector<2x32xf32>, vector<32x128xf32>, vector<2x128xf32> -> vector<2x128xf32>
    %c0_273 = arith.constant 0 : index
    %c0_274 = arith.constant 0 : index
    %866 = vector.load %arg10[%c0_273, %c0_274] : memref<32x128xf32, #tpu.memory_space<vmem>>, vector<32x128xf32>
    %cst_275 = arith.constant dense<0.000000e+00> : vector<2x128xf32>
    %867 = tpu.matmul %800, %866, %cst_275 {dimension_numbers = #tpu.dot_dimension_numbers<[1], [0], [0], [1], [0, 0, 1, 1], [], []>} : vector<2x32xf32>, vector<32x128xf32>, vector<2x128xf32> -> vector<2x128xf32>
    %868 = arith.addf %867, %865 : vector<2x128xf32>
    %c0_276 = arith.constant 0 : index
    %c0_277 = arith.constant 0 : index
    %869 = vector.load %arg12[%c0_276, %c0_277] : memref<1x128xf32, #tpu.memory_space<vmem>>, vector<1x128xf32>
    %870 = vector.broadcast %869 : vector<1x128xf32> to vector<2x128xf32>
    %871 = arith.addf %868, %870 : vector<2x128xf32>
    %872 = vector.extract_strided_slice %871 {offsets = [0, 0], sizes = [2, 32], strides = [1, 1]} : vector<2x128xf32> to vector<2x32xf32>
    %873 = arith.negf %872 : vector<2x32xf32>
    %874 = math.exp %873 : vector<2x32xf32>
    %cst_278 = arith.constant 1.000000e+00 : f32
    %875 = vector.broadcast %cst_278 : f32 to vector<2x32xf32>
    %876 = arith.addf %875, %874 : vector<2x32xf32>
    %877 = arith.divf %875, %876 : vector<2x32xf32>
    %878 = vector.extract_strided_slice %871 {offsets = [0, 32], sizes = [2, 32], strides = [1, 1]} : vector<2x128xf32> to vector<2x32xf32>
    %879 = arith.negf %878 : vector<2x32xf32>
    %880 = math.exp %879 : vector<2x32xf32>
    %cst_279 = arith.constant 1.000000e+00 : f32
    %881 = vector.broadcast %cst_279 : f32 to vector<2x32xf32>
    %882 = arith.addf %881, %880 : vector<2x32xf32>
    %883 = arith.divf %881, %882 : vector<2x32xf32>
    %884 = vector.extract_strided_slice %871 {offsets = [0, 64], sizes = [2, 32], strides = [1, 1]} : vector<2x128xf32> to vector<2x32xf32>
    %885 = math.tanh %884 : vector<2x32xf32>
    %886 = vector.extract_strided_slice %871 {offsets = [0, 96], sizes = [2, 32], strides = [1, 1]} : vector<2x128xf32> to vector<2x32xf32>
    %887 = arith.negf %886 : vector<2x32xf32>
    %888 = math.exp %887 : vector<2x32xf32>
    %cst_280 = arith.constant 1.000000e+00 : f32
    %889 = vector.broadcast %cst_280 : f32 to vector<2x32xf32>
    %890 = arith.addf %889, %888 : vector<2x32xf32>
    %891 = arith.divf %889, %890 : vector<2x32xf32>
    %892 = arith.mulf %883, %762 : vector<2x32xf32>
    %893 = arith.mulf %877, %885 : vector<2x32xf32>
    %894 = arith.addf %892, %893 : vector<2x32xf32>
    %895 = math.tanh %894 : vector<2x32xf32>
    %896 = arith.mulf %891, %895 : vector<2x32xf32>
    %c0_281 = arith.constant 0 : index
    %c5 = arith.constant 5 : index
    %c0_282 = arith.constant 0 : index
    %897 = vector.load %arg16[%c0_281, %c5, %c0_282] : memref<2x8x32xf32, #tpu.memory_space<vmem>>, vector<2x1x32xf32>
    %898 = vector.shape_cast %897 : vector<2x1x32xf32> to vector<2x32xf32>
    %899 = vector.shape_cast %896 : vector<2x32xf32> to vector<2x1x32xf32>
    tpu.vector_store %arg16[%c0_281, %c5, %c0_282], %899 {strides = array<i32>} : memref<2x8x32xf32, #tpu.memory_space<vmem>>, vector<2x1x32xf32>,
    %c0_283 = arith.constant 0 : index
    %c0_284 = arith.constant 0 : index
    %900 = vector.load %arg8[%c0_283, %c0_284] : memref<32x128xf32, #tpu.memory_space<vmem>>, vector<32x128xf32>
    %cst_285 = arith.constant dense<0.000000e+00> : vector<2x128xf32>
    %901 = tpu.matmul %800, %900, %cst_285 {dimension_numbers = #tpu.dot_dimension_numbers<[1], [0], [0], [1], [0, 0, 1, 1], [], []>} : vector<2x32xf32>, vector<32x128xf32>, vector<2x128xf32> -> vector<2x128xf32>
    %c0_286 = arith.constant 0 : index
    %c0_287 = arith.constant 0 : index
    %902 = vector.load %arg7[%c0_286, %c0_287] : memref<64x128xf32, #tpu.memory_space<vmem>>, vector<64x128xf32>
    %cst_288 = arith.constant dense<0.000000e+00> : vector<2x128xf32>
    %903 = tpu.matmul %833, %902, %cst_288 {dimension_numbers = #tpu.dot_dimension_numbers<[1], [0], [0], [1], [0, 0, 1, 1], [], []>} : vector<2x64xf32>, vector<64x128xf32>, vector<2x128xf32> -> vector<2x128xf32>
    %904 = arith.addf %903, %901 : vector<2x128xf32>
    %c0_289 = arith.constant 0 : index
    %c0_290 = arith.constant 0 : index
    %905 = vector.load %arg9[%c0_289, %c0_290] : memref<1x128xf32, #tpu.memory_space<vmem>>, vector<1x128xf32>
    %906 = vector.broadcast %905 : vector<1x128xf32> to vector<2x128xf32>
    %907 = arith.addf %904, %906 : vector<2x128xf32>
    %908 = vector.extract_strided_slice %907 {offsets = [0, 0], sizes = [2, 32], strides = [1, 1]} : vector<2x128xf32> to vector<2x32xf32>
    %909 = arith.negf %908 : vector<2x32xf32>
    %910 = math.exp %909 : vector<2x32xf32>
    %cst_291 = arith.constant 1.000000e+00 : f32
    %911 = vector.broadcast %cst_291 : f32 to vector<2x32xf32>
    %912 = arith.addf %911, %910 : vector<2x32xf32>
    %913 = arith.divf %911, %912 : vector<2x32xf32>
    %914 = vector.extract_strided_slice %907 {offsets = [0, 32], sizes = [2, 32], strides = [1, 1]} : vector<2x128xf32> to vector<2x32xf32>
    %915 = arith.negf %914 : vector<2x32xf32>
    %916 = math.exp %915 : vector<2x32xf32>
    %cst_292 = arith.constant 1.000000e+00 : f32
    %917 = vector.broadcast %cst_292 : f32 to vector<2x32xf32>
    %918 = arith.addf %917, %916 : vector<2x32xf32>
    %919 = arith.divf %917, %918 : vector<2x32xf32>
    %920 = vector.extract_strided_slice %907 {offsets = [0, 64], sizes = [2, 32], strides = [1, 1]} : vector<2x128xf32> to vector<2x32xf32>
    %921 = math.tanh %920 : vector<2x32xf32>
    %922 = vector.extract_strided_slice %907 {offsets = [0, 96], sizes = [2, 32], strides = [1, 1]} : vector<2x128xf32> to vector<2x32xf32>
    %923 = arith.negf %922 : vector<2x32xf32>
    %924 = math.exp %923 : vector<2x32xf32>
    %cst_293 = arith.constant 1.000000e+00 : f32
    %925 = vector.broadcast %cst_293 : f32 to vector<2x32xf32>
    %926 = arith.addf %925, %924 : vector<2x32xf32>
    %927 = arith.divf %925, %926 : vector<2x32xf32>
    %928 = arith.mulf %919, %798 : vector<2x32xf32>
    %929 = arith.mulf %913, %921 : vector<2x32xf32>
    %930 = arith.addf %928, %929 : vector<2x32xf32>
    %931 = math.tanh %930 : vector<2x32xf32>
    %932 = arith.mulf %927, %931 : vector<2x32xf32>
    %c0_294 = arith.constant 0 : index
    %c0_295 = arith.constant 0 : index
    %933 = vector.load %arg5[%c0_294, %c0_295] : memref<64x256xf32, #tpu.memory_space<vmem>>, vector<64x256xf32>
    %cst_296 = arith.constant dense<0.000000e+00> : vector<2x256xf32>
    %934 = tpu.matmul %833, %933, %cst_296 {dimension_numbers = #tpu.dot_dimension_numbers<[1], [0], [0], [1], [0, 0, 1, 1], [], []>} : vector<2x64xf32>, vector<64x256xf32>, vector<2x256xf32> -> vector<2x256xf32>
    %c0_297 = arith.constant 0 : index
    %c0_298 = arith.constant 0 : index
    %935 = vector.load %arg4[%c0_297, %c0_298] : memref<64x256xf32, #tpu.memory_space<vmem>>, vector<64x256xf32>
    %cst_299 = arith.constant dense<0.000000e+00> : vector<2x256xf32>
    %936 = tpu.matmul %863, %935, %cst_299 {dimension_numbers = #tpu.dot_dimension_numbers<[1], [0], [0], [1], [0, 0, 1, 1], [], []>} : vector<2x64xf32>, vector<64x256xf32>, vector<2x256xf32> -> vector<2x256xf32>
    %937 = arith.addf %936, %934 : vector<2x256xf32>
    %c0_300 = arith.constant 0 : index
    %c0_301 = arith.constant 0 : index
    %938 = vector.load %arg6[%c0_300, %c0_301] : memref<1x256xf32, #tpu.memory_space<vmem>>, vector<1x256xf32>
    %939 = vector.broadcast %938 : vector<1x256xf32> to vector<2x256xf32>
    %940 = arith.addf %937, %939 : vector<2x256xf32>
    %941 = vector.extract_strided_slice %940 {offsets = [0, 0], sizes = [2, 64], strides = [1, 1]} : vector<2x256xf32> to vector<2x64xf32>
    %942 = arith.negf %941 : vector<2x64xf32>
    %943 = math.exp %942 : vector<2x64xf32>
    %cst_302 = arith.constant 1.000000e+00 : f32
    %944 = vector.broadcast %cst_302 : f32 to vector<2x64xf32>
    %945 = arith.addf %944, %943 : vector<2x64xf32>
    %946 = arith.divf %944, %945 : vector<2x64xf32>
    %947 = vector.extract_strided_slice %940 {offsets = [0, 64], sizes = [2, 64], strides = [1, 1]} : vector<2x256xf32> to vector<2x64xf32>
    %948 = arith.negf %947 : vector<2x64xf32>
    %949 = math.exp %948 : vector<2x64xf32>
    %cst_303 = arith.constant 1.000000e+00 : f32
    %950 = vector.broadcast %cst_303 : f32 to vector<2x64xf32>
    %951 = arith.addf %950, %949 : vector<2x64xf32>
    %952 = arith.divf %950, %951 : vector<2x64xf32>
    %953 = vector.extract_strided_slice %940 {offsets = [0, 128], sizes = [2, 64], strides = [1, 1]} : vector<2x256xf32> to vector<2x64xf32>
    %954 = math.tanh %953 : vector<2x64xf32>
    %955 = vector.extract_strided_slice %940 {offsets = [0, 192], sizes = [2, 64], strides = [1, 1]} : vector<2x256xf32> to vector<2x64xf32>
    %956 = arith.negf %955 : vector<2x64xf32>
    %957 = math.exp %956 : vector<2x64xf32>
    %cst_304 = arith.constant 1.000000e+00 : f32
    %958 = vector.broadcast %cst_304 : f32 to vector<2x64xf32>
    %959 = arith.addf %958, %957 : vector<2x64xf32>
    %960 = arith.divf %958, %959 : vector<2x64xf32>
    %961 = arith.mulf %952, %831 : vector<2x64xf32>
    %962 = arith.mulf %946, %954 : vector<2x64xf32>
    %963 = arith.addf %961, %962 : vector<2x64xf32>
    %964 = math.tanh %963 : vector<2x64xf32>
    %965 = arith.mulf %960, %964 : vector<2x64xf32>
    %c0_305 = arith.constant 0 : index
    %c0_306 = arith.constant 0 : index
    %966 = vector.load %arg11[%c0_305, %c0_306] : memref<32x128xf32, #tpu.memory_space<vmem>>, vector<32x128xf32>
    %cst_307 = arith.constant dense<0.000000e+00> : vector<2x128xf32>
    %967 = tpu.matmul %896, %966, %cst_307 {dimension_numbers = #tpu.dot_dimension_numbers<[1], [0], [0], [1], [0, 0, 1, 1], [], []>} : vector<2x32xf32>, vector<32x128xf32>, vector<2x128xf32> -> vector<2x128xf32>
    %c0_308 = arith.constant 0 : index
    %c0_309 = arith.constant 0 : index
    %968 = vector.load %arg10[%c0_308, %c0_309] : memref<32x128xf32, #tpu.memory_space<vmem>>, vector<32x128xf32>
    %cst_310 = arith.constant dense<0.000000e+00> : vector<2x128xf32>
    %969 = tpu.matmul %932, %968, %cst_310 {dimension_numbers = #tpu.dot_dimension_numbers<[1], [0], [0], [1], [0, 0, 1, 1], [], []>} : vector<2x32xf32>, vector<32x128xf32>, vector<2x128xf32> -> vector<2x128xf32>
    %970 = arith.addf %969, %967 : vector<2x128xf32>
    %c0_311 = arith.constant 0 : index
    %c0_312 = arith.constant 0 : index
    %971 = vector.load %arg12[%c0_311, %c0_312] : memref<1x128xf32, #tpu.memory_space<vmem>>, vector<1x128xf32>
    %972 = vector.broadcast %971 : vector<1x128xf32> to vector<2x128xf32>
    %973 = arith.addf %970, %972 : vector<2x128xf32>
    %974 = vector.extract_strided_slice %973 {offsets = [0, 0], sizes = [2, 32], strides = [1, 1]} : vector<2x128xf32> to vector<2x32xf32>
    %975 = arith.negf %974 : vector<2x32xf32>
    %976 = math.exp %975 : vector<2x32xf32>
    %cst_313 = arith.constant 1.000000e+00 : f32
    %977 = vector.broadcast %cst_313 : f32 to vector<2x32xf32>
    %978 = arith.addf %977, %976 : vector<2x32xf32>
    %979 = arith.divf %977, %978 : vector<2x32xf32>
    %980 = vector.extract_strided_slice %973 {offsets = [0, 32], sizes = [2, 32], strides = [1, 1]} : vector<2x128xf32> to vector<2x32xf32>
    %981 = arith.negf %980 : vector<2x32xf32>
    %982 = math.exp %981 : vector<2x32xf32>
    %cst_314 = arith.constant 1.000000e+00 : f32
    %983 = vector.broadcast %cst_314 : f32 to vector<2x32xf32>
    %984 = arith.addf %983, %982 : vector<2x32xf32>
    %985 = arith.divf %983, %984 : vector<2x32xf32>
    %986 = vector.extract_strided_slice %973 {offsets = [0, 64], sizes = [2, 32], strides = [1, 1]} : vector<2x128xf32> to vector<2x32xf32>
    %987 = math.tanh %986 : vector<2x32xf32>
    %988 = vector.extract_strided_slice %973 {offsets = [0, 96], sizes = [2, 32], strides = [1, 1]} : vector<2x128xf32> to vector<2x32xf32>
    %989 = arith.negf %988 : vector<2x32xf32>
    %990 = math.exp %989 : vector<2x32xf32>
    %cst_315 = arith.constant 1.000000e+00 : f32
    %991 = vector.broadcast %cst_315 : f32 to vector<2x32xf32>
    %992 = arith.addf %991, %990 : vector<2x32xf32>
    %993 = arith.divf %991, %992 : vector<2x32xf32>
    %994 = arith.mulf %985, %894 : vector<2x32xf32>
    %995 = arith.mulf %979, %987 : vector<2x32xf32>
    %996 = arith.addf %994, %995 : vector<2x32xf32>
    %997 = math.tanh %996 : vector<2x32xf32>
    %998 = arith.mulf %993, %997 : vector<2x32xf32>
    %c0_316 = arith.constant 0 : index
    %c6 = arith.constant 6 : index
    %c0_317 = arith.constant 0 : index
    %999 = vector.load %arg16[%c0_316, %c6, %c0_317] : memref<2x8x32xf32, #tpu.memory_space<vmem>>, vector<2x1x32xf32>
    %1000 = vector.shape_cast %999 : vector<2x1x32xf32> to vector<2x32xf32>
    %1001 = vector.shape_cast %998 : vector<2x32xf32> to vector<2x1x32xf32>
    tpu.vector_store %arg16[%c0_316, %c6, %c0_317], %1001 {strides = array<i32>} : memref<2x8x32xf32, #tpu.memory_space<vmem>>, vector<2x1x32xf32>,
    %c0_318 = arith.constant 0 : index
    %c0_319 = arith.constant 0 : index
    %1002 = vector.load %arg8[%c0_318, %c0_319] : memref<32x128xf32, #tpu.memory_space<vmem>>, vector<32x128xf32>
    %cst_320 = arith.constant dense<0.000000e+00> : vector<2x128xf32>
    %1003 = tpu.matmul %932, %1002, %cst_320 {dimension_numbers = #tpu.dot_dimension_numbers<[1], [0], [0], [1], [0, 0, 1, 1], [], []>} : vector<2x32xf32>, vector<32x128xf32>, vector<2x128xf32> -> vector<2x128xf32>
    %c0_321 = arith.constant 0 : index
    %c0_322 = arith.constant 0 : index
    %1004 = vector.load %arg7[%c0_321, %c0_322] : memref<64x128xf32, #tpu.memory_space<vmem>>, vector<64x128xf32>
    %cst_323 = arith.constant dense<0.000000e+00> : vector<2x128xf32>
    %1005 = tpu.matmul %965, %1004, %cst_323 {dimension_numbers = #tpu.dot_dimension_numbers<[1], [0], [0], [1], [0, 0, 1, 1], [], []>} : vector<2x64xf32>, vector<64x128xf32>, vector<2x128xf32> -> vector<2x128xf32>
    %1006 = arith.addf %1005, %1003 : vector<2x128xf32>
    %c0_324 = arith.constant 0 : index
    %c0_325 = arith.constant 0 : index
    %1007 = vector.load %arg9[%c0_324, %c0_325] : memref<1x128xf32, #tpu.memory_space<vmem>>, vector<1x128xf32>
    %1008 = vector.broadcast %1007 : vector<1x128xf32> to vector<2x128xf32>
    %1009 = arith.addf %1006, %1008 : vector<2x128xf32>
    %1010 = vector.extract_strided_slice %1009 {offsets = [0, 0], sizes = [2, 32], strides = [1, 1]} : vector<2x128xf32> to vector<2x32xf32>
    %1011 = arith.negf %1010 : vector<2x32xf32>
    %1012 = math.exp %1011 : vector<2x32xf32>
    %cst_326 = arith.constant 1.000000e+00 : f32
    %1013 = vector.broadcast %cst_326 : f32 to vector<2x32xf32>
    %1014 = arith.addf %1013, %1012 : vector<2x32xf32>
    %1015 = arith.divf %1013, %1014 : vector<2x32xf32>
    %1016 = vector.extract_strided_slice %1009 {offsets = [0, 32], sizes = [2, 32], strides = [1, 1]} : vector<2x128xf32> to vector<2x32xf32>
    %1017 = arith.negf %1016 : vector<2x32xf32>
    %1018 = math.exp %1017 : vector<2x32xf32>
    %cst_327 = arith.constant 1.000000e+00 : f32
    %1019 = vector.broadcast %cst_327 : f32 to vector<2x32xf32>
    %1020 = arith.addf %1019, %1018 : vector<2x32xf32>
    %1021 = arith.divf %1019, %1020 : vector<2x32xf32>
    %1022 = vector.extract_strided_slice %1009 {offsets = [0, 64], sizes = [2, 32], strides = [1, 1]} : vector<2x128xf32> to vector<2x32xf32>
    %1023 = math.tanh %1022 : vector<2x32xf32>
    %1024 = vector.extract_strided_slice %1009 {offsets = [0, 96], sizes = [2, 32], strides = [1, 1]} : vector<2x128xf32> to vector<2x32xf32>
    %1025 = arith.negf %1024 : vector<2x32xf32>
    %1026 = math.exp %1025 : vector<2x32xf32>
    %cst_328 = arith.constant 1.000000e+00 : f32
    %1027 = vector.broadcast %cst_328 : f32 to vector<2x32xf32>
    %1028 = arith.addf %1027, %1026 : vector<2x32xf32>
    %1029 = arith.divf %1027, %1028 : vector<2x32xf32>
    %1030 = arith.mulf %1021, %930 : vector<2x32xf32>
    %1031 = arith.mulf %1015, %1023 : vector<2x32xf32>
    %1032 = arith.addf %1030, %1031 : vector<2x32xf32>
    %1033 = math.tanh %1032 : vector<2x32xf32>
    %1034 = arith.mulf %1029, %1033 : vector<2x32xf32>
    %c0_329 = arith.constant 0 : index
    %c0_330 = arith.constant 0 : index
    %1035 = vector.load %arg11[%c0_329, %c0_330] : memref<32x128xf32, #tpu.memory_space<vmem>>, vector<32x128xf32>
    %cst_331 = arith.constant dense<0.000000e+00> : vector<2x128xf32>
    %1036 = tpu.matmul %998, %1035, %cst_331 {dimension_numbers = #tpu.dot_dimension_numbers<[1], [0], [0], [1], [0, 0, 1, 1], [], []>} : vector<2x32xf32>, vector<32x128xf32>, vector<2x128xf32> -> vector<2x128xf32>
    %c0_332 = arith.constant 0 : index
    %c0_333 = arith.constant 0 : index
    %1037 = vector.load %arg10[%c0_332, %c0_333] : memref<32x128xf32, #tpu.memory_space<vmem>>, vector<32x128xf32>
    %cst_334 = arith.constant dense<0.000000e+00> : vector<2x128xf32>
    %1038 = tpu.matmul %1034, %1037, %cst_334 {dimension_numbers = #tpu.dot_dimension_numbers<[1], [0], [0], [1], [0, 0, 1, 1], [], []>} : vector<2x32xf32>, vector<32x128xf32>, vector<2x128xf32> -> vector<2x128xf32>
    %1039 = arith.addf %1038, %1036 : vector<2x128xf32>
    %c0_335 = arith.constant 0 : index
    %c0_336 = arith.constant 0 : index
    %1040 = vector.load %arg12[%c0_335, %c0_336] : memref<1x128xf32, #tpu.memory_space<vmem>>, vector<1x128xf32>
    %1041 = vector.broadcast %1040 : vector<1x128xf32> to vector<2x128xf32>
    %1042 = arith.addf %1039, %1041 : vector<2x128xf32>
    %1043 = vector.extract_strided_slice %1042 {offsets = [0, 0], sizes = [2, 32], strides = [1, 1]} : vector<2x128xf32> to vector<2x32xf32>
    %1044 = arith.negf %1043 : vector<2x32xf32>
    %1045 = math.exp %1044 : vector<2x32xf32>
    %cst_337 = arith.constant 1.000000e+00 : f32
    %1046 = vector.broadcast %cst_337 : f32 to vector<2x32xf32>
    %1047 = arith.addf %1046, %1045 : vector<2x32xf32>
    %1048 = arith.divf %1046, %1047 : vector<2x32xf32>
    %1049 = vector.extract_strided_slice %1042 {offsets = [0, 32], sizes = [2, 32], strides = [1, 1]} : vector<2x128xf32> to vector<2x32xf32>
    %1050 = arith.negf %1049 : vector<2x32xf32>
    %1051 = math.exp %1050 : vector<2x32xf32>
    %cst_338 = arith.constant 1.000000e+00 : f32
    %1052 = vector.broadcast %cst_338 : f32 to vector<2x32xf32>
    %1053 = arith.addf %1052, %1051 : vector<2x32xf32>
    %1054 = arith.divf %1052, %1053 : vector<2x32xf32>
    %1055 = vector.extract_strided_slice %1042 {offsets = [0, 64], sizes = [2, 32], strides = [1, 1]} : vector<2x128xf32> to vector<2x32xf32>
    %1056 = math.tanh %1055 : vector<2x32xf32>
    %1057 = vector.extract_strided_slice %1042 {offsets = [0, 96], sizes = [2, 32], strides = [1, 1]} : vector<2x128xf32> to vector<2x32xf32>
    %1058 = arith.negf %1057 : vector<2x32xf32>
    %1059 = math.exp %1058 : vector<2x32xf32>
    %cst_339 = arith.constant 1.000000e+00 : f32
    %1060 = vector.broadcast %cst_339 : f32 to vector<2x32xf32>
    %1061 = arith.addf %1060, %1059 : vector<2x32xf32>
    %1062 = arith.divf %1060, %1061 : vector<2x32xf32>
    %1063 = arith.mulf %1054, %996 : vector<2x32xf32>
    %1064 = arith.mulf %1048, %1056 : vector<2x32xf32>
    %1065 = arith.addf %1063, %1064 : vector<2x32xf32>
    %1066 = math.tanh %1065 : vector<2x32xf32>
    %1067 = arith.mulf %1062, %1066 : vector<2x32xf32>
    %c0_340 = arith.constant 0 : index
    %c7 = arith.constant 7 : index
    %c0_341 = arith.constant 0 : index
    %1068 = vector.load %arg16[%c0_340, %c7, %c0_341] : memref<2x8x32xf32, #tpu.memory_space<vmem>>, vector<2x1x32xf32>
    %1069 = vector.shape_cast %1068 : vector<2x1x32xf32> to vector<2x32xf32>
    %1070 = vector.shape_cast %1067 : vector<2x32xf32> to vector<2x1x32xf32>
    tpu.vector_store %arg16[%c0_340, %c7, %c0_341], %1070 {strides = array<i32>} : memref<2x8x32xf32, #tpu.memory_space<vmem>>, vector<2x1x32xf32>,
    %c0_342 = arith.constant 0 : index
    %c0_343 = arith.constant 0 : index
    %c0_344 = arith.constant 0 : index
    %1071 = vector.load %arg16[%c0_342, %c0_343, %c0_344] : memref<2x8x32xf32, #tpu.memory_space<vmem>>, vector<1x8x32xf32>
    %1072 = vector.shape_cast %1071 : vector<1x8x32xf32> to vector<8x32xf32>
    %c0_345 = arith.constant 0 : index
    %c0_346 = arith.constant 0 : index
    %1073 = vector.load %arg13[%c0_345, %c0_346] : memref<32x128xf32, #tpu.memory_space<vmem>>, vector<32x128xf32>
    %cst_347 = arith.constant dense<0.000000e+00> : vector<8x128xf32>
    %1074 = tpu.matmul %1072, %1073, %cst_347 {dimension_numbers = #tpu.dot_dimension_numbers<[1], [0], [0], [1], [0, 0, 1, 1], [], []>} : vector<8x32xf32>, vector<32x128xf32>, vector<8x128xf32> -> vector<8x128xf32>
    %c0_348 = arith.constant 0 : index
    %c0_349 = arith.constant 0 : index
    %1075 = vector.load %arg14[%c0_348, %c0_349] : memref<1x128xf32, #tpu.memory_space<vmem>>, vector<1x128xf32>
    %1076 = vector.broadcast %1075 : vector<1x128xf32> to vector<8x128xf32>
    %1077 = arith.addf %1074, %1076 : vector<8x128xf32>
    %c0_350 = arith.constant 0 : index
    %c0_351 = arith.constant 0 : index
    %1078 = vector.load %arg15[%c0_350, %c0_351] : memref<16x128xf32, #tpu.memory_space<vmem>>, vector<8x128xf32>
    tpu.vector_store %arg15[%c0_350, %c0_351], %1077 {strides = array<i32>} : memref<16x128xf32, #tpu.memory_space<vmem>>, vector<8x128xf32>,
    %c1_352 = arith.constant 1 : index
    %c0_353 = arith.constant 0 : index
    %c0_354 = arith.constant 0 : index
    %1079 = vector.load %arg16[%c1_352, %c0_353, %c0_354] : memref<2x8x32xf32, #tpu.memory_space<vmem>>, vector<1x8x32xf32>
    %1080 = vector.shape_cast %1079 : vector<1x8x32xf32> to vector<8x32xf32>
    %c0_355 = arith.constant 0 : index
    %c0_356 = arith.constant 0 : index
    %1081 = vector.load %arg13[%c0_355, %c0_356] : memref<32x128xf32, #tpu.memory_space<vmem>>, vector<32x128xf32>
    %cst_357 = arith.constant dense<0.000000e+00> : vector<8x128xf32>
    %1082 = tpu.matmul %1080, %1081, %cst_357 {dimension_numbers = #tpu.dot_dimension_numbers<[1], [0], [0], [1], [0, 0, 1, 1], [], []>} : vector<8x32xf32>, vector<32x128xf32>, vector<8x128xf32> -> vector<8x128xf32>
    %c0_358 = arith.constant 0 : index
    %c0_359 = arith.constant 0 : index
    %1083 = vector.load %arg14[%c0_358, %c0_359] : memref<1x128xf32, #tpu.memory_space<vmem>>, vector<1x128xf32>
    %1084 = vector.broadcast %1083 : vector<1x128xf32> to vector<8x128xf32>
    %1085 = arith.addf %1082, %1084 : vector<8x128xf32>
    %c8 = arith.constant 8 : index
    %c0_360 = arith.constant 0 : index
    %1086 = vector.load %arg15[%c8, %c0_360] : memref<16x128xf32, #tpu.memory_space<vmem>>, vector<8x128xf32>
    tpu.vector_store %arg15[%c8, %c0_360], %1085 {strides = array<i32>} : memref<16x128xf32, #tpu.memory_space<vmem>>, vector<8x128xf32>,
    return
  }
}

</mosaic_0001>

<llo_original>
// kernel: model2_forward.1
$region0: #{model2_forward.1}
  #allocation0 [shape = 'u32[]', space=smem, size = 0x4, offset = 0x4, fixed_abs, tag = 'smem constant byte address 0x4 - core index']
  #allocation1 [shape = 'u32[144,128]{1,0:T(1,128)}', space=vmem, size = 0x12000, scoped, tag = 'internal scratch']
  #allocation2 [shape = 'f32[2,8,32]{2,1,0:T(8,128)}', space=vmem, size = 0x2000, scoped, tag = 'scratch operand']
  %s0 = inlined_call_operand.hbm [shape: f32[16,512], index: 0, kind: input, shape index: {}]
  %s1 = inlined_call_operand.hbm [shape: f32[512,256], index: 1, kind: input, shape index: {}]
  %s2 = inlined_call_operand.hbm [shape: f32[64,256], index: 2, kind: input, shape index: {}]
  %s3 = inlined_call_operand.vmem [shape: f32[1,256], index: 3, kind: input, shape index: {}]
  %s4 = inlined_call_operand.hbm [shape: f32[64,256], index: 4, kind: input, shape index: {}]
  %s5 = inlined_call_operand.hbm [shape: f32[64,256], index: 5, kind: input, shape index: {}]
  %s6 = inlined_call_operand.hbm [shape: f32[1,256], index: 6, kind: input, shape index: {}]
  %s7 = inlined_call_operand.hbm [shape: f32[64,128], index: 7, kind: input, shape index: {}]
  %s8 = inlined_call_operand.vmem [shape: f32[32,128], index: 8, kind: input, shape index: {}]
  %s9 = inlined_call_operand.vmem [shape: f32[1,128], index: 9, kind: input, shape index: {}]
  %s10 = inlined_call_operand.hbm [shape: f32[32,128], index: 10, kind: input, shape index: {}]
  %s11 = inlined_call_operand.hbm [shape: f32[32,128], index: 11, kind: input, shape index: {}]
  %s12 = inlined_call_operand.vmem [shape: f32[1,128], index: 12, kind: input, shape index: {}]
  %s13 = inlined_call_operand.hbm [shape: f32[32,128], index: 13, kind: input, shape index: {}]
  %s14 = inlined_call_operand.vmem [shape: f32[1,128], index: 14, kind: input, shape index: {}]
  %s15 = inlined_call_operand.vmem [shape: f32[16,128], index: 15, kind: output, shape index: {}]
  %s16 = sld [smem:[#allocation0]]
  $region110: #{model2_forward.1} parent=0
    _
  %s18 = ssub.s32 1, %s16
  %s19 = scalar_select 0, %s18, %s16
  $region1: #{model2_forward.1} parent=0
    #allocation3 [shape = 'u8[32768]{0}', space=vmem, size = 0x8000, scoped, tag = 'input window, operand 0, single buffered']
    #allocation4 [shape = 's32[1]{0}', space=sflag, size = 0x4, scoped, tag = 'scoped memory for model2_forward.1']
    #allocation5 [shape = 'u8[524288]{0}', space=vmem, size = 0x80000, scoped, tag = 'input window, operand 1, single buffered']
    #allocation6 [shape = 's32[1]{0}', space=sflag, size = 0x4, scoped, tag = 'scoped memory for model2_forward.1']
    #allocation7 [shape = 'u8[65536]{0}', space=vmem, size = 0x10000, scoped, tag = 'input window, operand 2, single buffered']
    #allocation8 [shape = 'u8[65536]{0}', space=vmem, size = 0x10000, scoped, tag = 'input window, operand 4, single buffered']
    #allocation9 [shape = 's32[1]{0}', space=sflag, size = 0x4, scoped, tag = 'scoped memory for model2_forward.1']
    #allocation10 [shape = 'u8[65536]{0}', space=vmem, size = 0x10000, scoped, tag = 'input window, operand 5, single buffered']
    #allocation11 [shape = 'u8[1024]{0}', space=vmem, size = 0x400, scoped, tag = 'input window, operand 6, single buffered']
    #allocation12 [shape = 's32[1]{0}', space=sflag, size = 0x4, scoped, tag = 'scoped memory for model2_forward.1']
    #allocation13 [shape = 'u8[32768]{0}', space=vmem, size = 0x8000, scoped, tag = 'input window, operand 7, single buffered']
    #allocation14 [shape = 'u8[16384]{0}', space=vmem, size = 0x4000, scoped, tag = 'input window, operand 10, single buffered']
    #allocation15 [shape = 's32[1]{0}', space=sflag, size = 0x4, scoped, tag = 'scoped memory for model2_forward.1']
    #allocation16 [shape = 'u8[16384]{0}', space=vmem, size = 0x4000, scoped, tag = 'input window, operand 11, single buffered']
    #allocation17 [shape = 'u8[16384]{0}', space=vmem, size = 0x4000, scoped, tag = 'input window, operand 13, single buffered']
    #allocation18 [shape = 's32[1]{0}', space=sflag, size = 0x4, scoped, tag = 'scoped memory for model2_forward.1']
    %20 = vsyncpa [#allocation4], 0
    %21 = vsyncpa [#allocation6], 0
    %22 = vsyncpa [#allocation9], 0
    %23 = vsyncpa [#allocation12], 0
    %24 = vsyncpa [#allocation15], 0
    %25 = vsyncpa [#allocation18], 0
    // Predicated region
    $region2: #{model2_forward.1} parent=1 // pred_check
      _
    $region3: #{model2_forward.1} parent=1 // pred_check_branch
      %27 = sbr.rel (0) target = $region5
    $region4: #{model2_forward.1} parent=1 // pred_region
      %s29 = ssub.s32 1024, 1024
      %30 = vsyncadd [#allocation4], %s29
      %s31 = sshll.u32 [#allocation3], 4
      %s32 = int_to_ptr.vmem [resolvable:$true] %s31
      %37 = dma.hbm_to_vmem [thread:$0]  %s0, 1024, %s32, [#allocation4], 512, 512, 32
    $region5: #{model2_forward.1} parent=1 // pred_fallthru
      _
    // Predicated region
    $region6: #{model2_forward.1} parent=1 // pred_check
      _
    $region7: #{model2_forward.1} parent=1 // pred_check_branch
      %39 = sbr.rel (0) target = $region9
    $region8: #{model2_forward.1} parent=1 // pred_region
      %s41 = ssub.s32 16384, 16384
      %42 = vsyncadd [#allocation6], %s41
      %s43 = sshll.u32 [#allocation5], 4
      %s44 = int_to_ptr.vmem [resolvable:$true] %s43
      %49 = dma.hbm_to_vmem [thread:$0]  %s1, 16384, %s44, [#allocation6], 256, 256, 16
    $region9: #{model2_forward.1} parent=1 // pred_fallthru
      _
    // Predicated region
    $region10: #{model2_forward.1} parent=1 // pred_check
      _
    $region11: #{model2_forward.1} parent=1 // pred_check_branch
      %51 = sbr.rel (0) target = $region13
    $region12: #{model2_forward.1} parent=1 // pred_region
      %s53 = ssub.s32 2048, 2048
      %54 = vsyncadd [#allocation6], %s53
      %s55 = sshll.u32 [#allocation7], 4
      %s56 = int_to_ptr.vmem [resolvable:$true] %s55
      %61 = dma.hbm_to_vmem [thread:$0]  %s2, 2048, %s56, [#allocation6], 256, 256, 16
    $region13: #{model2_forward.1} parent=1 // pred_fallthru
      _
    // Predicated region
    $region14: #{model2_forward.1} parent=1 // pred_check
      _
    $region15: #{model2_forward.1} parent=1 // pred_check_branch
      %63 = sbr.rel (0) target = $region17
    $region16: #{model2_forward.1} parent=1 // pred_region
      _
    $region17: #{model2_forward.1} parent=1 // pred_fallthru
      _
    // Predicated region
    $region18: #{model2_forward.1} parent=1 // pred_check
      _
    $region19: #{model2_forward.1} parent=1 // pred_check_branch
      %65 = sbr.rel (0) target = $region21
    $region20: #{model2_forward.1} parent=1 // pred_region
      %s67 = ssub.s32 2048, 2048
      %68 = vsyncadd [#allocation9], %s67
      %s69 = sshll.u32 [#allocation8], 4
      %s70 = int_to_ptr.vmem [resolvable:$true] %s69
      %75 = dma.hbm_to_vmem [thread:$0]  %s4, 2048, %s70, [#allocation9], 256, 256, 16
    $region21: #{model2_forward.1} parent=1 // pred_fallthru
      _
    // Predicated region
    $region22: #{model2_forward.1} parent=1 // pred_check
      _
    $region23: #{model2_forward.1} parent=1 // pred_check_branch
      %77 = sbr.rel (0) target = $region25
    $region24: #{model2_forward.1} parent=1 // pred_region
      %s79 = ssub.s32 2048, 2048
      %80 = vsyncadd [#allocation9], %s79
      %s81 = sshll.u32 [#allocation10], 4
      %s82 = int_to_ptr.vmem [resolvable:$true] %s81
      %87 = dma.hbm_to_vmem [thread:$0]  %s5, 2048, %s82, [#allocation9], 256, 256, 16
    $region25: #{model2_forward.1} parent=1 // pred_fallthru
      _
    // Predicated region
    $region26: #{model2_forward.1} parent=1 // pred_check
      _
    $region27: #{model2_forward.1} parent=1 // pred_check_branch
      %89 = sbr.rel (0) target = $region29
    $region28: #{model2_forward.1} parent=1 // pred_region
      %s91 = ssub.s32 32, 32
      %92 = vsyncadd [#allocation12], %s91
      %s94 = sshll.u32 [#allocation11], 4
      %s95 = int_to_ptr.vmem [resolvable:$true] %s94
      %97 = dma.hbm_to_vmem [thread:$0]  %s6, 32, %s95, [#allocation12]
    $region29: #{model2_forward.1} parent=1 // pred_fallthru
      _
    // Predicated region
    $region30: #{model2_forward.1} parent=1 // pred_check
      _
    $region31: #{model2_forward.1} parent=1 // pred_check_branch
      %99 = sbr.rel (0) target = $region33
    $region32: #{model2_forward.1} parent=1 // pred_region
      %s101 = ssub.s32 1024, 1024
      %102 = vsyncadd [#allocation12], %s101
      %s103 = sshll.u32 [#allocation13], 4
      %s104 = int_to_ptr.vmem [resolvable:$true] %s103
      %109 = dma.hbm_to_vmem [thread:$0]  %s7, 1024, %s104, [#allocation12], 128, 128, 8
    $region33: #{model2_forward.1} parent=1 // pred_fallthru
      _
    // Predicated region
    $region34: #{model2_forward.1} parent=1 // pred_check
      _
    $region35: #{model2_forward.1} parent=1 // pred_check_branch
      %111 = sbr.rel (0) target = $region37
    $region36: #{model2_forward.1} parent=1 // pred_region
      _
    $region37: #{model2_forward.1} parent=1 // pred_fallthru
      _
    // Predicated region
    $region38: #{model2_forward.1} parent=1 // pred_check
      _
    $region39: #{model2_forward.1} parent=1 // pred_check_branch
      %113 = sbr.rel (0) target = $region41
    $region40: #{model2_forward.1} parent=1 // pred_region
      _
    $region41: #{model2_forward.1} parent=1 // pred_fallthru
      _
    // Predicated region
    $region42: #{model2_forward.1} parent=1 // pred_check
      _
    $region43: #{model2_forward.1} parent=1 // pred_check_branch
      %115 = sbr.rel (0) target = $region45
    $region44: #{model2_forward.1} parent=1 // pred_region
      %s117 = ssub.s32 512, 512
      %118 = vsyncadd [#allocation15], %s117
      %s119 = sshll.u32 [#allocation14], 4
      %s120 = int_to_ptr.vmem [resolvable:$true] %s119
      %125 = dma.hbm_to_vmem [thread:$0]  %s10, 512, %s120, [#allocation15], 128, 128, 8
    $region45: #{model2_forward.1} parent=1 // pred_fallthru
      _
    // Predicated region
    $region46: #{model2_forward.1} parent=1 // pred_check
      _
    $region47: #{model2_forward.1} parent=1 // pred_check_branch
      %127 = sbr.rel (0) target = $region49
    $region48: #{model2_forward.1} parent=1 // pred_region
      %s129 = ssub.s32 512, 512
      %130 = vsyncadd [#allocation15], %s129
      %s131 = sshll.u32 [#allocation16], 4
      %s132 = int_to_ptr.vmem [resolvable:$true] %s131
      %137 = dma.hbm_to_vmem [thread:$0]  %s11, 512, %s132, [#allocation15], 128, 128, 8
    $region49: #{model2_forward.1} parent=1 // pred_fallthru
      _
    // Predicated region
    $region50: #{model2_forward.1} parent=1 // pred_check
      _
    $region51: #{model2_forward.1} parent=1 // pred_check_branch
      %139 = sbr.rel (0) target = $region53
    $region52: #{model2_forward.1} parent=1 // pred_region
      _
    $region53: #{model2_forward.1} parent=1 // pred_fallthru
      _
    // Predicated region
    $region54: #{model2_forward.1} parent=1 // pred_check
      _
    $region55: #{model2_forward.1} parent=1 // pred_check_branch
      %141 = sbr.rel (0) target = $region57
    $region56: #{model2_forward.1} parent=1 // pred_region
      %s143 = ssub.s32 512, 512
      %144 = vsyncadd [#allocation18], %s143
      %s145 = sshll.u32 [#allocation17], 4
      %s146 = int_to_ptr.vmem [resolvable:$true] %s145
      %151 = dma.hbm_to_vmem [thread:$0]  %s13, 512, %s146, [#allocation18], 128, 128, 8
    $region57: #{model2_forward.1} parent=1 // pred_fallthru
      _
    // Predicated region
    $region58: #{model2_forward.1} parent=1 // pred_check
      _
    $region59: #{model2_forward.1} parent=1 // pred_check_branch
      %153 = sbr.rel (0) target = $region61
    $region60: #{model2_forward.1} parent=1 // pred_region
      _
    $region61: #{model2_forward.1} parent=1 // pred_fallthru
      _
    // Predicated region
    $region62: #{model2_forward.1} parent=1 // pred_check
      _
    $region63: #{model2_forward.1} parent=1 // pred_check_branch
      %155 = sbr.rel (0) target = $region65
    $region64: #{model2_forward.1} parent=1 // pred_region
      %156 = dma.done [#allocation4], 1024
    $region65: #{model2_forward.1} parent=1 // pred_fallthru
      _
    // Predicated region
    $region66: #{model2_forward.1} parent=1 // pred_check
      _
    $region67: #{model2_forward.1} parent=1 // pred_check_branch
      %158 = sbr.rel (0) target = $region69
    $region68: #{model2_forward.1} parent=1 // pred_region
      %159 = dma.done [#allocation6], 16384
    $region69: #{model2_forward.1} parent=1 // pred_fallthru
      _
    // Predicated region
    $region70: #{model2_forward.1} parent=1 // pred_check
      _
    $region71: #{model2_forward.1} parent=1 // pred_check_branch
      %161 = sbr.rel (0) target = $region73
    $region72: #{model2_forward.1} parent=1 // pred_region
      %162 = dma.done [#allocation6], 2048
    $region73: #{model2_forward.1} parent=1 // pred_fallthru
      _
    // Predicated region
    $region74: #{model2_forward.1} parent=1 // pred_check
      _
    $region75: #{model2_forward.1} parent=1 // pred_check_branch
      %164 = sbr.rel (0) target = $region77
    $region76: #{model2_forward.1} parent=1 // pred_region
      %165 = dma.done [#allocation9], 2048
    $region77: #{model2_forward.1} parent=1 // pred_fallthru
      _
    // Predicated region
    $region78: #{model2_forward.1} parent=1 // pred_check
      _
    $region79: #{model2_forward.1} parent=1 // pred_check_branch
      %167 = sbr.rel (0) target = $region81
    $region80: #{model2_forward.1} parent=1 // pred_region
      %168 = dma.done [#allocation9], 2048
    $region81: #{model2_forward.1} parent=1 // pred_fallthru
      _
    // Predicated region
    $region82: #{model2_forward.1} parent=1 // pred_check
      _
    $region83: #{model2_forward.1} parent=1 // pred_check_branch
      %170 = sbr.rel (0) target = $region85
    $region84: #{model2_forward.1} parent=1 // pred_region
      %171 = dma.done [#allocation12], 32
    $region85: #{model2_forward.1} parent=1 // pred_fallthru
      _
    // Predicated region
    $region86: #{model2_forward.1} parent=1 // pred_check
      _
    $region87: #{model2_forward.1} parent=1 // pred_check_branch
      %173 = sbr.rel (0) target = $region89
    $region88: #{model2_forward.1} parent=1 // pred_region
      %174 = dma.done [#allocation12], 1024
    $region89: #{model2_forward.1} parent=1 // pred_fallthru
      _
    // Predicated region
    $region90: #{model2_forward.1} parent=1 // pred_check
      _
    $region91: #{model2_forward.1} parent=1 // pred_check_branch
      %176 = sbr.rel (0) target = $region93
    $region92: #{model2_forward.1} parent=1 // pred_region
      %177 = dma.done [#allocation15], 512
    $region93: #{model2_forward.1} parent=1 // pred_fallthru
      _
    // Predicated region
    $region94: #{model2_forward.1} parent=1 // pred_check
      _
    $region95: #{model2_forward.1} parent=1 // pred_check_branch
      %179 = sbr.rel (0) target = $region97
    $region96: #{model2_forward.1} parent=1 // pred_region
      %180 = dma.done [#allocation15], 512
    $region97: #{model2_forward.1} parent=1 // pred_fallthru
      _
    // Predicated region
    $region98: #{model2_forward.1} parent=1 // pred_check
      _
    $region99: #{model2_forward.1} parent=1 // pred_check_branch
      %182 = sbr.rel (0) target = $region101
    $region100: #{model2_forward.1} parent=1 // pred_region
      %183 = dma.done [#allocation18], 512
    $region101: #{model2_forward.1} parent=1 // pred_fallthru
      _
    %v184 = vld [vmem:[#allocation3] sm:$0xff]
    %v185 = vld [vmem:[#allocation3 + $0x8] sm:$0xff]
    %v186 = vld [vmem:[#allocation3 + $0x10] sm:$0xff]
    %v187 = vld [vmem:[#allocation3 + $0x18] sm:$0xff]
    %v188 = vld [vmem:[#allocation3 + $0x20] sm:$0xff]
    %v189 = vld [vmem:[#allocation3 + $0x28] sm:$0xff]
    %v190 = vld [vmem:[#allocation3 + $0x30] sm:$0xff]
    %v191 = vld [vmem:[#allocation3 + $0x38] sm:$0xff]
    %v192 = vld [vmem:[#allocation5] sm:$0xff]
    %v193 = vld [vmem:[#allocation5 + $0x8] sm:$0xff]
    %v194 = vld [vmem:[#allocation5 + $0x10] sm:$0xff]
    %v195 = vld [vmem:[#allocation5 + $0x18] sm:$0xff]
    %v196 = vld [vmem:[#allocation5 + $0x20] sm:$0xff]
    %v197 = vld [vmem:[#allocation5 + $0x28] sm:$0xff]
    %v198 = vld [vmem:[#allocation5 + $0x30] sm:$0xff]
    %v199 = vld [vmem:[#allocation5 + $0x38] sm:$0xff]
    %v200 = vld [vmem:[#allocation5 + $0x40] sm:$0xff]
    %v201 = vld [vmem:[#allocation5 + $0x48] sm:$0xff]
    %v202 = vld [vmem:[#allocation5 + $0x50] sm:$0xff]
    %v203 = vld [vmem:[#allocation5 + $0x58] sm:$0xff]
    %v204 = vld [vmem:[#allocation5 + $0x60] sm:$0xff]
    %v205 = vld [vmem:[#allocation5 + $0x68] sm:$0xff]
    %v206 = vld [vmem:[#allocation5 + $0x70] sm:$0xff]
    %v207 = vld [vmem:[#allocation5 + $0x78] sm:$0xff]
    %v208 = vld [vmem:[#allocation5 + $0x80] sm:$0xff]
    %v209 = vld [vmem:[#allocation5 + $0x88] sm:$0xff]
    %v210 = vld [vmem:[#allocation5 + $0x90] sm:$0xff]
    %v211 = vld [vmem:[#allocation5 + $0x98] sm:$0xff]
    %v212 = vld [vmem:[#allocation5 + $0xa0] sm:$0xff]
    %v213 = vld [vmem:[#allocation5 + $0xa8] sm:$0xff]
    %v214 = vld [vmem:[#allocation5 + $0xb0] sm:$0xff]
    %v215 = vld [vmem:[#allocation5 + $0xb8] sm:$0xff]
    %v216 = vld [vmem:[#allocation5 + $0xc0] sm:$0xff]
    %v217 = vld [vmem:[#allocation5 + $0xc8] sm:$0xff]
    %v218 = vld [vmem:[#allocation5 + $0xd0] sm:$0xff]
    %v219 = vld [vmem:[#allocation5 + $0xd8] sm:$0xff]
    %v220 = vld [vmem:[#allocation5 + $0xe0] sm:$0xff]
    %v221 = vld [vmem:[#allocation5 + $0xe8] sm:$0xff]
    %v222 = vld [vmem:[#allocation5 + $0xf0] sm:$0xff]
    %v223 = vld [vmem:[#allocation5 + $0xf8] sm:$0xff]
    %v224 = vld [vmem:[#allocation5 + $0x100] sm:$0xff]
    %v225 = vld [vmem:[#allocation5 + $0x108] sm:$0xff]
    %v226 = vld [vmem:[#allocation5 + $0x110] sm:$0xff]
    %v227 = vld [vmem:[#allocation5 + $0x118] sm:$0xff]
    %v228 = vld [vmem:[#allocation5 + $0x120] sm:$0xff]
    %v229 = vld [vmem:[#allocation5 + $0x128] sm:$0xff]
    %v230 = vld [vmem:[#allocation5 + $0x130] sm:$0xff]
    %v231 = vld [vmem:[#allocation5 + $0x138] sm:$0xff]
    %v232 = vld [vmem:[#allocation5 + $0x140] sm:$0xff]
    %v233 = vld [vmem:[#allocation5 + $0x148] sm:$0xff]
    %v234 = vld [vmem:[#allocation5 + $0x150] sm:$0xff]
    %v235 = vld [vmem:[#allocation5 + $0x158] sm:$0xff]
    %v236 = vld [vmem:[#allocation5 + $0x160] sm:$0xff]
    %v237 = vld [vmem:[#allocation5 + $0x168] sm:$0xff]
    %v238 = vld [vmem:[#allocation5 + $0x170] sm:$0xff]
    %v239 = vld [vmem:[#allocation5 + $0x178] sm:$0xff]
    %v240 = vld [vmem:[#allocation5 + $0x180] sm:$0xff]
    %v241 = vld [vmem:[#allocation5 + $0x188] sm:$0xff]
    %v242 = vld [vmem:[#allocation5 + $0x190] sm:$0xff]
    %v243 = vld [vmem:[#allocation5 + $0x198] sm:$0xff]
    %v244 = vld [vmem:[#allocation5 + $0x1a0] sm:$0xff]
    %v245 = vld [vmem:[#allocation5 + $0x1a8] sm:$0xff]
    %v246 = vld [vmem:[#allocation5 + $0x1b0] sm:$0xff]
    %v247 = vld [vmem:[#allocation5 + $0x1b8] sm:$0xff]
    %v248 = vld [vmem:[#allocation5 + $0x1c0] sm:$0xff]
    %v249 = vld [vmem:[#allocation5 + $0x1c8] sm:$0xff]
    %v250 = vld [vmem:[#allocation5 + $0x1d0] sm:$0xff]
    %v251 = vld [vmem:[#allocation5 + $0x1d8] sm:$0xff]
    %v252 = vld [vmem:[#allocation5 + $0x1e0] sm:$0xff]
    %v253 = vld [vmem:[#allocation5 + $0x1e8] sm:$0xff]
    %v254 = vld [vmem:[#allocation5 + $0x1f0] sm:$0xff]
    %v255 = vld [vmem:[#allocation5 + $0x1f8] sm:$0xff]
    %v256 = vld [vmem:[#allocation5 + $0x200] sm:$0xff]
    %v257 = vld [vmem:[#allocation5 + $0x208] sm:$0xff]
    %v258 = vld [vmem:[#allocation5 + $0x210] sm:$0xff]
    %v259 = vld [vmem:[#allocation5 + $0x218] sm:$0xff]
    %v260 = vld [vmem:[#allocation5 + $0x220] sm:$0xff]
    %v261 = vld [vmem:[#allocation5 + $0x228] sm:$0xff]
    %v262 = vld [vmem:[#allocation5 + $0x230] sm:$0xff]
    %v263 = vld [vmem:[#allocation5 + $0x238] sm:$0xff]
    %v264 = vld [vmem:[#allocation5 + $0x240] sm:$0xff]
    %v265 = vld [vmem:[#allocation5 + $0x248] sm:$0xff]
    %v266 = vld [vmem:[#allocation5 + $0x250] sm:$0xff]
    %v267 = vld [vmem:[#allocation5 + $0x258] sm:$0xff]
    %v268 = vld [vmem:[#allocation5 + $0x260] sm:$0xff]
    %v269 = vld [vmem:[#allocation5 + $0x268] sm:$0xff]
    %v270 = vld [vmem:[#allocation5 + $0x270] sm:$0xff]
    %v271 = vld [vmem:[#allocation5 + $0x278] sm:$0xff]
    %v272 = vld [vmem:[#allocation5 + $0x280] sm:$0xff]
    %v273 = vld [vmem:[#allocation5 + $0x288] sm:$0xff]
    %v274 = vld [vmem:[#allocation5 + $0x290] sm:$0xff]
    %v275 = vld [vmem:[#allocation5 + $0x298] sm:$0xff]
    %v276 = vld [vmem:[#allocation5 + $0x2a0] sm:$0xff]
    %v277 = vld [vmem:[#allocation5 + $0x2a8] sm:$0xff]
    %v278 = vld [vmem:[#allocation5 + $0x2b0] sm:$0xff]
    %v279 = vld [vmem:[#allocation5 + $0x2b8] sm:$0xff]
    %v280 = vld [vmem:[#allocation5 + $0x2c0] sm:$0xff]
    %v281 = vld [vmem:[#allocation5 + $0x2c8] sm:$0xff]
    %v282 = vld [vmem:[#allocation5 + $0x2d0] sm:$0xff]
    %v283 = vld [vmem:[#allocation5 + $0x2d8] sm:$0xff]
    %v284 = vld [vmem:[#allocation5 + $0x2e0] sm:$0xff]
    %v285 = vld [vmem:[#allocation5 + $0x2e8] sm:$0xff]
    %v286 = vld [vmem:[#allocation5 + $0x2f0] sm:$0xff]
    %v287 = vld [vmem:[#allocation5 + $0x2f8] sm:$0xff]
    %v288 = vld [vmem:[#allocation5 + $0x300] sm:$0xff]
    %v289 = vld [vmem:[#allocation5 + $0x308] sm:$0xff]
    %v290 = vld [vmem:[#allocation5 + $0x310] sm:$0xff]
    %v291 = vld [vmem:[#allocation5 + $0x318] sm:$0xff]
    %v292 = vld [vmem:[#allocation5 + $0x320] sm:$0xff]
    %v293 = vld [vmem:[#allocation5 + $0x328] sm:$0xff]
    %v294 = vld [vmem:[#allocation5 + $0x330] sm:$0xff]
    %v295 = vld [vmem:[#allocation5 + $0x338] sm:$0xff]
    %v296 = vld [vmem:[#allocation5 + $0x340] sm:$0xff]
    %v297 = vld [vmem:[#allocation5 + $0x348] sm:$0xff]
    %v298 = vld [vmem:[#allocation5 + $0x350] sm:$0xff]
    %v299 = vld [vmem:[#allocation5 + $0x358] sm:$0xff]
    %v300 = vld [vmem:[#allocation5 + $0x360] sm:$0xff]
    %v301 = vld [vmem:[#allocation5 + $0x368] sm:$0xff]
    %v302 = vld [vmem:[#allocation5 + $0x370] sm:$0xff]
    %v303 = vld [vmem:[#allocation5 + $0x378] sm:$0xff]
    %v304 = vld [vmem:[#allocation5 + $0x380] sm:$0xff]
    %v305 = vld [vmem:[#allocation5 + $0x388] sm:$0xff]
    %v306 = vld [vmem:[#allocation5 + $0x390] sm:$0xff]
    %v307 = vld [vmem:[#allocation5 + $0x398] sm:$0xff]
    %v308 = vld [vmem:[#allocation5 + $0x3a0] sm:$0xff]
    %v309 = vld [vmem:[#allocation5 + $0x3a8] sm:$0xff]
    %v310 = vld [vmem:[#allocation5 + $0x3b0] sm:$0xff]
    %v311 = vld [vmem:[#allocation5 + $0x3b8] sm:$0xff]
    %v312 = vld [vmem:[#allocation5 + $0x3c0] sm:$0xff]
    %v313 = vld [vmem:[#allocation5 + $0x3c8] sm:$0xff]
    %v314 = vld [vmem:[#allocation5 + $0x3d0] sm:$0xff]
    %v315 = vld [vmem:[#allocation5 + $0x3d8] sm:$0xff]
    %v316 = vld [vmem:[#allocation5 + $0x3e0] sm:$0xff]
    %v317 = vld [vmem:[#allocation5 + $0x3e8] sm:$0xff]
    %v318 = vld [vmem:[#allocation5 + $0x3f0] sm:$0xff]
    %v319 = vld [vmem:[#allocation5 + $0x3f8] sm:$0xff]
    %v320 = vld [vmem:[%s3] sm:$0x3]
    %v322 = vlaneseq
    %v323 = vshrl.u32 %v322, 7
    %v324 = vsub.s32 0, %v323
    %v325 = vrot.slane %v320, %v324
    %v326 = vlaneseq
    %v327 = vshrl.u32 %v326, 7
    %v328 = vsub.s32 1, %v327
    %v329 = vrot.slane %v320, %v328
    %332 = vmatprep.subr.mxu0 %v193
    %333 = vmatpush1.msra.mxu0 %v192
    %334 = vmatprep.subr.mxu0 %v195
    %335 = vmatpush1.msra.mxu0 %v194
    %336 = vmatprep.subr.mxu0 %v197
    %337 = vmatpush1.msra.mxu0 %v196
    %338 = vmatprep.subr.mxu0 %v199
    %339 = vmatpush1.msra.mxu0 %v198
    %340 = vmatprep.subr.mxu0 %v201
    %341 = vmatpush1.msra.mxu0 %v200
    %342 = vmatprep.subr.mxu0 %v203
    %343 = vmatpush1.msra.mxu0 %v202
    %344 = vmatprep.subr.mxu0 %v205
    %345 = vmatpush1.msra.mxu0 %v204
    %346 = vmatprep.subr.mxu0 %v207
    %347 = vmatpush1.msra.mxu0 %v206
    %348 = vmatprep.subr.mxu0 %v209
    %349 = vmatpush1.msra.mxu0 %v208
    %350 = vmatprep.subr.mxu0 %v211
    %351 = vmatpush1.msra.mxu0 %v210
    %352 = vmatprep.subr.mxu0 %v213
    %353 = vmatpush1.msra.mxu0 %v212
    %354 = vmatprep.subr.mxu0 %v215
    %355 = vmatpush1.msra.mxu0 %v214
    %356 = vmatprep.subr.mxu0 %v217
    %357 = vmatpush1.msra.mxu0 %v216
    %358 = vmatprep.subr.mxu0 %v219
    %359 = vmatpush1.msra.mxu0 %v218
    %360 = vmatprep.subr.mxu0 %v221
    %361 = vmatpush1.msra.mxu0 %v220
    %362 = vmatprep.subr.mxu0 %v223
    %363 = vmatpush1.msra.mxu0 %v222
    %364 = vmatprep.subr.mxu0 %v225
    %365 = vmatpush1.msra.mxu0 %v224
    %366 = vmatprep.subr.mxu0 %v227
    %367 = vmatpush1.msra.mxu0 %v226
    %368 = vmatprep.subr.mxu0 %v229
    %369 = vmatpush1.msra.mxu0 %v228
    %370 = vmatprep.subr.mxu0 %v231
    %371 = vmatpush1.msra.mxu0 %v230
    %372 = vmatprep.subr.mxu0 %v233
    %373 = vmatpush1.msra.mxu0 %v232
    %374 = vmatprep.subr.mxu0 %v235
    %375 = vmatpush1.msra.mxu0 %v234
    %376 = vmatprep.subr.mxu0 %v237
    %377 = vmatpush1.msra.mxu0 %v236
    %378 = vmatprep.subr.mxu0 %v239
    %379 = vmatpush1.msra.mxu0 %v238
    %380 = vmatprep.subr.mxu0 %v241
    %381 = vmatpush1.msra.mxu0 %v240
    %382 = vmatprep.subr.mxu0 %v243
    %383 = vmatpush1.msra.mxu0 %v242
    %384 = vmatprep.subr.mxu0 %v245
    %385 = vmatpush1.msra.mxu0 %v244
    %386 = vmatprep.subr.mxu0 %v247
    %387 = vmatpush1.msra.mxu0 %v246
    %388 = vmatprep.subr.mxu0 %v249
    %389 = vmatpush1.msra.mxu0 %v248
    %390 = vmatprep.subr.mxu0 %v251
    %391 = vmatpush1.msra.mxu0 %v250
    %392 = vmatprep.subr.mxu0 %v253
    %393 = vmatpush1.msra.mxu0 %v252
    %394 = vmatprep.subr.mxu0 %v255
    %395 = vmatpush1.msra.mxu0 %v254
    %396 = vmatprep.mubr.f32.mxu0 %v185
    %397 = vmatmul.mubr.f32.gmra.mrb[0].mxu0 %v184
    %v398 = vpop.f32.mrb[0].mxu0
    %v399 = vadd.f32 %v325, %v398
    %v400 = vpop.f32.mrb[0].mxu0
    %v401 = vadd.f32 %v329, %v400
    %402 = vmatprep.mubr.f32.mxu0 %v189
    %403 = vmatmul.mubr.f32.gmra.mrb[0].mxu0 %v188
    %v404 = vpop.f32.mrb[0].mxu0
    %v405 = vadd.f32 %v325, %v404
    %v406 = vpop.f32.mrb[0].mxu0
    %v407 = vadd.f32 %v329, %v406
    %408 = vdwg.mxu0
    %409 = vmatprep.subr.mxu0 %v257
    %410 = vmatpush1.msra.mxu0 %v256
    %411 = vmatprep.subr.mxu0 %v259
    %412 = vmatpush1.msra.mxu0 %v258
    %413 = vmatprep.subr.mxu0 %v261
    %414 = vmatpush1.msra.mxu0 %v260
    %415 = vmatprep.subr.mxu0 %v263
    %416 = vmatpush1.msra.mxu0 %v262
    %417 = vmatprep.subr.mxu0 %v265
    %418 = vmatpush1.msra.mxu0 %v264
    %419 = vmatprep.subr.mxu0 %v267
    %420 = vmatpush1.msra.mxu0 %v266
    %421 = vmatprep.subr.mxu0 %v269
    %422 = vmatpush1.msra.mxu0 %v268
    %423 = vmatprep.subr.mxu0 %v271
    %424 = vmatpush1.msra.mxu0 %v270
    %425 = vmatprep.subr.mxu0 %v273
    %426 = vmatpush1.msra.mxu0 %v272
    %427 = vmatprep.subr.mxu0 %v275
    %428 = vmatpush1.msra.mxu0 %v274
    %429 = vmatprep.subr.mxu0 %v277
    %430 = vmatpush1.msra.mxu0 %v276
    %431 = vmatprep.subr.mxu0 %v279
    %432 = vmatpush1.msra.mxu0 %v278
    %433 = vmatprep.subr.mxu0 %v281
    %434 = vmatpush1.msra.mxu0 %v280
    %435 = vmatprep.subr.mxu0 %v283
    %436 = vmatpush1.msra.mxu0 %v282
    %437 = vmatprep.subr.mxu0 %v285
    %438 = vmatpush1.msra.mxu0 %v284
    %439 = vmatprep.subr.mxu0 %v287
    %440 = vmatpush1.msra.mxu0 %v286
    %441 = vmatprep.subr.mxu0 %v289
    %442 = vmatpush1.msra.mxu0 %v288
    %443 = vmatprep.subr.mxu0 %v291
    %444 = vmatpush1.msra.mxu0 %v290
    %445 = vmatprep.subr.mxu0 %v293
    %446 = vmatpush1.msra.mxu0 %v292
    %447 = vmatprep.subr.mxu0 %v295
    %448 = vmatpush1.msra.mxu0 %v294
    %449 = vmatprep.subr.mxu0 %v297
    %450 = vmatpush1.msra.mxu0 %v296
    %451 = vmatprep.subr.mxu0 %v299
    %452 = vmatpush1.msra.mxu0 %v298
    %453 = vmatprep.subr.mxu0 %v301
    %454 = vmatpush1.msra.mxu0 %v300
    %455 = vmatprep.subr.mxu0 %v303
    %456 = vmatpush1.msra.mxu0 %v302
    %457 = vmatprep.subr.mxu0 %v305
    %458 = vmatpush1.msra.mxu0 %v304
    %459 = vmatprep.subr.mxu0 %v307
    %460 = vmatpush1.msra.mxu0 %v306
    %461 = vmatprep.subr.mxu0 %v309
    %462 = vmatpush1.msra.mxu0 %v308
    %463 = vmatprep.subr.mxu0 %v311
    %464 = vmatpush1.msra.mxu0 %v310
    %465 = vmatprep.subr.mxu0 %v313
    %466 = vmatpush1.msra.mxu0 %v312
    %467 = vmatprep.subr.mxu0 %v315
    %468 = vmatpush1.msra.mxu0 %v314
    %469 = vmatprep.subr.mxu0 %v317
    %470 = vmatpush1.msra.mxu0 %v316
    %471 = vmatprep.subr.mxu0 %v319
    %472 = vmatpush1.msra.mxu0 %v318
    %473 = vmatprep.mubr.f32.mxu0 %v187
    %474 = vmatmul.mubr.f32.gmra.mrb[0].mxu0 %v186
    %v475 = vpop.f32.mrb[0].mxu0
    %v476 = vadd.f32 %v399, %v475
    %v477 = vpop.f32.mrb[0].mxu0
    %v478 = vadd.f32 %v401, %v477
    %479 = vmatprep.mubr.f32.mxu0 %v191
    %480 = vmatmul.mubr.f32.gmra.mrb[0].mxu0 %v190
    %v481 = vpop.f32.mrb[0].mxu0
    %v482 = vadd.f32 %v405, %v481
    %v483 = vpop.f32.mrb[0].mxu0
    %v484 = vadd.f32 %v407, %v483
    %485 = vdwg.mxu0
    %v486 = vld [vmem:[#allocation7] sm:$0xff]
    %v487 = vld [vmem:[#allocation7 + $0x8] sm:$0xff]
    %v488 = vld [vmem:[#allocation7 + $0x10] sm:$0xff]
    %v489 = vld [vmem:[#allocation7 + $0x18] sm:$0xff]
    %v490 = vld [vmem:[#allocation7 + $0x20] sm:$0xff]
    %v491 = vld [vmem:[#allocation7 + $0x28] sm:$0xff]
    %v492 = vld [vmem:[#allocation7 + $0x30] sm:$0xff]
    %v493 = vld [vmem:[#allocation7 + $0x38] sm:$0xff]
    %v494 = vld [vmem:[#allocation7 + $0x40] sm:$0xff]
    %v495 = vld [vmem:[#allocation7 + $0x48] sm:$0xff]
    %v496 = vld [vmem:[#allocation7 + $0x50] sm:$0xff]
    %v497 = vld [vmem:[#allocation7 + $0x58] sm:$0xff]
    %v498 = vld [vmem:[#allocation7 + $0x60] sm:$0xff]
    %v499 = vld [vmem:[#allocation7 + $0x68] sm:$0xff]
    %v500 = vld [vmem:[#allocation7 + $0x70] sm:$0xff]
    %v501 = vld [vmem:[#allocation7 + $0x78] sm:$0xff]
    %vm502 = vcmask 523264
    %v504 = vsel %vm502, 0.0, 0
    %506 = vmatprep.subr.mxu0 %v487
    %507 = vmatpush1.msra.mxu0 %v486
    %508 = vmatprep.subr.mxu0 %v489
    %509 = vmatpush1.msra.mxu0 %v488
    %510 = vmatprep.subr.mxu0 %v491
    %511 = vmatpush1.msra.mxu0 %v490
    %512 = vmatprep.subr.mxu0 %v493
    %513 = vmatpush1.msra.mxu0 %v492
    %514 = vmatprep.subr.mxu0 %v495
    %515 = vmatpush1.msra.mxu0 %v494
    %516 = vmatprep.subr.mxu0 %v497
    %517 = vmatpush1.msra.mxu0 %v496
    %518 = vmatprep.subr.mxu0 %v499
    %519 = vmatpush1.msra.mxu0 %v498
    %520 = vmatprep.subr.mxu0 %v501
    %521 = vmatpush1.msra.mxu0 %v500
    %522 = vmatprep.subr.mxu0 0.0
    %523 = vmatpush1.msra.mxu0 0.0
    %524 = vmatprep.subr.mxu0 0.0
    %525 = vmatpush1.msra.mxu0 0.0
    %526 = vmatprep.subr.mxu0 0.0
    %527 = vmatpush1.msra.mxu0 0.0
    %528 = vmatprep.subr.mxu0 0.0
    %529 = vmatpush1.msra.mxu0 0.0
    %530 = vmatprep.subr.mxu0 0.0
    %531 = vmatpush1.msra.mxu0 0.0
    %532 = vmatprep.subr.mxu0 0.0
    %533 = vmatpush1.msra.mxu0 0.0
    %534 = vmatprep.subr.mxu0 0.0
    %535 = vmatpush1.msra.mxu0 0.0
    %536 = vmatprep.subr.mxu0 0.0
    %537 = vmatpush1.msra.mxu0 0.0
    %538 = vmatprep.subr.mxu0 0.0
    %539 = vmatpush1.msra.mxu0 0.0
    %540 = vmatprep.subr.mxu0 0.0
    %541 = vmatpush1.msra.mxu0 0.0
    %542 = vmatprep.subr.mxu0 0.0
    %543 = vmatpush1.msra.mxu0 0.0
    %544 = vmatprep.subr.mxu0 0.0
    %545 = vmatpush1.msra.mxu0 0.0
    %546 = vmatprep.subr.mxu0 0.0
    %547 = vmatpush1.msra.mxu0 0.0
    %548 = vmatprep.subr.mxu0 0.0
    %549 = vmatpush1.msra.mxu0 0.0
    %550 = vmatprep.subr.mxu0 0.0
    %551 = vmatpush1.msra.mxu0 0.0
    %552 = vmatprep.subr.mxu0 0.0
    %553 = vmatpush1.msra.mxu0 0.0
    %554 = vmatprep.subr.mxu0 0.0
    %555 = vmatpush1.msra.mxu0 0.0
    %556 = vmatprep.subr.mxu0 0.0
    %557 = vmatpush1.msra.mxu0 0.0
    %558 = vmatprep.subr.mxu0 0.0
    %559 = vmatpush1.msra.mxu0 0.0
    %560 = vmatprep.subr.mxu0 0.0
    %561 = vmatpush1.msra.mxu0 0.0
    %562 = vmatprep.subr.mxu0 0.0
    %563 = vmatpush1.msra.mxu0 0.0
    %564 = vmatprep.subr.mxu0 0.0
    %565 = vmatpush1.msra.mxu0 0.0
    %566 = vmatprep.subr.mxu0 0.0
    %567 = vmatpush1.msra.mxu0 0.0
    %568 = vmatprep.subr.mxu0 0.0
    %569 = vmatpush1.msra.mxu0 0.0
    %570 = vmatprep.mubr.f32.mxu0 0.0
    %571 = vmatmul.mubr.f32.gmra.mrb[0].mxu0 %v504
    %v572 = vpop.f32.mrb[0].mxu0
    %v573 = vadd.f32 0.0, %v572
    %v574 = vpop.f32.mrb[0].mxu0
    %v575 = vadd.f32 0.0, %v574
    %576 = vdwg.mxu0
    %v579 = vrot.slane %v573, 1
    %v580 = vrot.slane %v575, 1
    %v585 = vadd.f32 %v476, %v573
    %v586 = vadd.f32 %v478, %v575
    %v587 = vadd.f32 %v482, %v579
    %v588 = vadd.f32 %v484, %v580
    %v589 = vxor.u32 %v585, 2147483648
    %v590 = vxor.u32 %v587, 2147483648
    %v591 = vmul.f32 %v589, 1.442695
    %v592 = vpow.pop %v591
    %v593 = vmul.f32 %v590, 1.442695
    %v594 = vpow.pop %v593
    %v595 = vadd.f32 %v592, 1.0
    %v596 = vadd.f32 %v594, 1.0
    %v597 = vrcp.pop %v595
    %v598 = vmul.f32 1.0, %v597
    %v599 = vrcp.pop %v596
    %v600 = vmul.f32 1.0, %v599
    %v601 = vtanh.pop %v586
    %v602 = vtanh.pop %v588
    %v603 = vxor.u32 %v586, 2147483648
    %v604 = vxor.u32 %v588, 2147483648
    %v605 = vmul.f32 %v603, 1.442695
    %v606 = vpow.pop %v605
    %v607 = vmul.f32 %v604, 1.442695
    %v608 = vpow.pop %v607
    %v609 = vadd.f32 %v606, 1.0
    %v610 = vadd.f32 %v608, 1.0
    %v611 = vrcp.pop %v609
    %v612 = vmul.f32 1.0, %v611
    %v613 = vrcp.pop %v610
    %v614 = vmul.f32 1.0, %v613
    %v615 = vmul.f32 %v598, 0.0
    %v616 = vmul.f32 %v600, 0.0
    %v617 = vmul.f32 %v598, %v601
    %v618 = vmul.f32 %v600, %v602
    %621 = vrot.lane.b32.xlu0 %v617, 64
    %v622 = vpop.permute.xlu0 %621
    %623 = vrot.lane.b32.xlu0 %v618, 64
    %v624 = vpop.permute.xlu0 %623
    %v627 = vadd.f32 %v615, %v622
    %v628 = vadd.f32 %v616, %v624
    %v629 = vtanh.pop %v627
    %v630 = vtanh.pop %v628
    %v631 = vmul.f32 %v612, %v629
    %v632 = vmul.f32 %v614, %v630
    %v633 = vld [vmem:[#allocation10] sm:$0xff]
    %v634 = vld [vmem:[#allocation10 + $0x8] sm:$0xff]
    %v635 = vld [vmem:[#allocation10 + $0x10] sm:$0xff]
    %v636 = vld [vmem:[#allocation10 + $0x18] sm:$0xff]
    %v637 = vld [vmem:[#allocation10 + $0x20] sm:$0xff]
    %v638 = vld [vmem:[#allocation10 + $0x28] sm:$0xff]
    %v639 = vld [vmem:[#allocation10 + $0x30] sm:$0xff]
    %v640 = vld [vmem:[#allocation10 + $0x38] sm:$0xff]
    %v641 = vld [vmem:[#allocation10 + $0x40] sm:$0xff]
    %v642 = vld [vmem:[#allocation10 + $0x48] sm:$0xff]
    %v643 = vld [vmem:[#allocation10 + $0x50] sm:$0xff]
    %v644 = vld [vmem:[#allocation10 + $0x58] sm:$0xff]
    %v645 = vld [vmem:[#allocation10 + $0x60] sm:$0xff]
    %v646 = vld [vmem:[#allocation10 + $0x68] sm:$0xff]
    %v647 = vld [vmem:[#allocation10 + $0x70] sm:$0xff]
    %v648 = vld [vmem:[#allocation10 + $0x78] sm:$0xff]
    %649 = vmatprep.subr.mxu0 %v634
    %650 = vmatpush1.msra.mxu0 %v633
    %651 = vmatprep.subr.mxu0 %v636
    %652 = vmatpush1.msra.mxu0 %v635
    %653 = vmatprep.subr.mxu0 %v638
    %654 = vmatpush1.msra.mxu0 %v637
    %655 = vmatprep.subr.mxu0 %v640
    %656 = vmatpush1.msra.mxu0 %v639
    %657 = vmatprep.subr.mxu0 %v642
    %658 = vmatpush1.msra.mxu0 %v641
    %659 = vmatprep.subr.mxu0 %v644
    %660 = vmatpush1.msra.mxu0 %v643
    %661 = vmatprep.subr.mxu0 %v646
    %662 = vmatpush1.msra.mxu0 %v645
    %663 = vmatprep.subr.mxu0 %v648
    %664 = vmatpush1.msra.mxu0 %v647
    %665 = vmatprep.subr.mxu0 0.0
    %666 = vmatpush1.msra.mxu0 0.0
    %667 = vmatprep.subr.mxu0 0.0
    %668 = vmatpush1.msra.mxu0 0.0
    %669 = vmatprep.subr.mxu0 0.0
    %670 = vmatpush1.msra.mxu0 0.0
    %671 = vmatprep.subr.mxu0 0.0
    %672 = vmatpush1.msra.mxu0 0.0
    %673 = vmatprep.subr.mxu0 0.0
    %674 = vmatpush1.msra.mxu0 0.0
    %675 = vmatprep.subr.mxu0 0.0
    %676 = vmatpush1.msra.mxu0 0.0
    %677 = vmatprep.subr.mxu0 0.0
    %678 = vmatpush1.msra.mxu0 0.0
    %679 = vmatprep.subr.mxu0 0.0
    %680 = vmatpush1.msra.mxu0 0.0
    %681 = vmatprep.subr.mxu0 0.0
    %682 = vmatpush1.msra.mxu0 0.0
    %683 = vmatprep.subr.mxu0 0.0
    %684 = vmatpush1.msra.mxu0 0.0
    %685 = vmatprep.subr.mxu0 0.0
    %686 = vmatpush1.msra.mxu0 0.0
    %687 = vmatprep.subr.mxu0 0.0
    %688 = vmatpush1.msra.mxu0 0.0
    %689 = vmatprep.subr.mxu0 0.0
    %690 = vmatpush1.msra.mxu0 0.0
    %691 = vmatprep.subr.mxu0 0.0
    %692 = vmatpush1.msra.mxu0 0.0
    %693 = vmatprep.subr.mxu0 0.0
    %694 = vmatpush1.msra.mxu0 0.0
    %695 = vmatprep.subr.mxu0 0.0
    %696 = vmatpush1.msra.mxu0 0.0
    %697 = vmatprep.subr.mxu0 0.0
    %698 = vmatpush1.msra.mxu0 0.0
    %699 = vmatprep.subr.mxu0 0.0
    %700 = vmatpush1.msra.mxu0 0.0
    %701 = vmatprep.subr.mxu0 0.0
    %702 = vmatpush1.msra.mxu0 0.0
    %703 = vmatprep.subr.mxu0 0.0
    %704 = vmatpush1.msra.mxu0 0.0
    %705 = vmatprep.subr.mxu0 0.0
    %706 = vmatpush1.msra.mxu0 0.0
    %707 = vmatprep.subr.mxu0 0.0
    %708 = vmatpush1.msra.mxu0 0.0
    %709 = vmatprep.subr.mxu0 0.0
    %710 = vmatpush1.msra.mxu0 0.0
    %711 = vmatprep.subr.mxu0 0.0
    %712 = vmatpush1.msra.mxu0 0.0
    %713 = vmatprep.mubr.f32.mxu0 0.0
    %714 = vmatmul.mubr.f32.gmra.mrb[0].mxu0 %v504
    %v715 = vpop.f32.mrb[0].mxu0
    %v716 = vadd.f32 0.0, %v715
    %v717 = vpop.f32.mrb[0].mxu0
    %v718 = vadd.f32 0.0, %v717
    %719 = vdwg.mxu0
    %v720 = vld [vmem:[#allocation8] sm:$0xff]
    %v721 = vld [vmem:[#allocation8 + $0x8] sm:$0xff]
    %v722 = vld [vmem:[#allocation8 + $0x10] sm:$0xff]
    %v723 = vld [vmem:[#allocation8 + $0x18] sm:$0xff]
    %v724 = vld [vmem:[#allocation8 + $0x20] sm:$0xff]
    %v725 = vld [vmem:[#allocation8 + $0x28] sm:$0xff]
    %v726 = vld [vmem:[#allocation8 + $0x30] sm:$0xff]
    %v727 = vld [vmem:[#allocation8 + $0x38] sm:$0xff]
    %v728 = vld [vmem:[#allocation8 + $0x40] sm:$0xff]
    %v729 = vld [vmem:[#allocation8 + $0x48] sm:$0xff]
    %v730 = vld [vmem:[#allocation8 + $0x50] sm:$0xff]
    %v731 = vld [vmem:[#allocation8 + $0x58] sm:$0xff]
    %v732 = vld [vmem:[#allocation8 + $0x60] sm:$0xff]
    %v733 = vld [vmem:[#allocation8 + $0x68] sm:$0xff]
    %v734 = vld [vmem:[#allocation8 + $0x70] sm:$0xff]
    %v735 = vld [vmem:[#allocation8 + $0x78] sm:$0xff]
    %v738 = vrot.slane %v632, 7
    %vm739 = vcmask 1041409
    %v740 = vsel %vm739, %v738, %v631
    %741 = vrot.lane.b32.xlu0 %v740, 64
    %v742 = vpop.permute.xlu0 %741
    %v743 = vsel %vm502, %v742, 0
    %745 = vmatprep.subr.mxu0 %v721
    %746 = vmatpush1.msra.mxu0 %v720
    %747 = vmatprep.subr.mxu0 %v723
    %748 = vmatpush1.msra.mxu0 %v722
    %749 = vmatprep.subr.mxu0 %v725
    %750 = vmatpush1.msra.mxu0 %v724
    %751 = vmatprep.subr.mxu0 %v727
    %752 = vmatpush1.msra.mxu0 %v726
    %753 = vmatprep.subr.mxu0 %v729
    %754 = vmatpush1.msra.mxu0 %v728
    %755 = vmatprep.subr.mxu0 %v731
    %756 = vmatpush1.msra.mxu0 %v730
    %757 = vmatprep.subr.mxu0 %v733
    %758 = vmatpush1.msra.mxu0 %v732
    %759 = vmatprep.subr.mxu0 %v735
    %760 = vmatpush1.msra.mxu0 %v734
    %761 = vmatprep.subr.mxu0 0.0
    %762 = vmatpush1.msra.mxu0 0.0
    %763 = vmatprep.subr.mxu0 0.0
    %764 = vmatpush1.msra.mxu0 0.0
    %765 = vmatprep.subr.mxu0 0.0
    %766 = vmatpush1.msra.mxu0 0.0
    %767 = vmatprep.subr.mxu0 0.0
    %768 = vmatpush1.msra.mxu0 0.0
    %769 = vmatprep.subr.mxu0 0.0
    %770 = vmatpush1.msra.mxu0 0.0
    %771 = vmatprep.subr.mxu0 0.0
    %772 = vmatpush1.msra.mxu0 0.0
    %773 = vmatprep.subr.mxu0 0.0
    %774 = vmatpush1.msra.mxu0 0.0
    %775 = vmatprep.subr.mxu0 0.0
    %776 = vmatpush1.msra.mxu0 0.0
    %777 = vmatprep.subr.mxu0 0.0
    %778 = vmatpush1.msra.mxu0 0.0
    %779 = vmatprep.subr.mxu0 0.0
    %780 = vmatpush1.msra.mxu0 0.0
    %781 = vmatprep.subr.mxu0 0.0
    %782 = vmatpush1.msra.mxu0 0.0
    %783 = vmatprep.subr.mxu0 0.0
    %784 = vmatpush1.msra.mxu0 0.0
    %785 = vmatprep.subr.mxu0 0.0
    %786 = vmatpush1.msra.mxu0 0.0
    %787 = vmatprep.subr.mxu0 0.0
    %788 = vmatpush1.msra.mxu0 0.0
    %789 = vmatprep.subr.mxu0 0.0
    %790 = vmatpush1.msra.mxu0 0.0
    %791 = vmatprep.subr.mxu0 0.0
    %792 = vmatpush1.msra.mxu0 0.0
    %793 = vmatprep.subr.mxu0 0.0
    %794 = vmatpush1.msra.mxu0 0.0
    %795 = vmatprep.subr.mxu0 0.0
    %796 = vmatpush1.msra.mxu0 0.0
    %797 = vmatprep.subr.mxu0 0.0
    %798 = vmatpush1.msra.mxu0 0.0
    %799 = vmatprep.subr.mxu0 0.0
    %800 = vmatpush1.msra.mxu0 0.0
    %801 = vmatprep.subr.mxu0 0.0
    %802 = vmatpush1.msra.mxu0 0.0
    %803 = vmatprep.subr.mxu0 0.0
    %804 = vmatpush1.msra.mxu0 0.0
    %805 = vmatprep.subr.mxu0 0.0
    %806 = vmatpush1.msra.mxu0 0.0
    %807 = vmatprep.subr.mxu0 0.0
    %808 = vmatpush1.msra.mxu0 0.0
    %809 = vmatprep.mubr.f32.mxu0 0.0
    %810 = vmatmul.mubr.f32.gmra.mrb[0].mxu0 %v743
    %v811 = vpop.f32.mrb[0].mxu0
    %v812 = vadd.f32 %v716, %v811
    %v813 = vpop.f32.mrb[0].mxu0
    %v814 = vadd.f32 %v718, %v813
    %815 = vdwg.mxu0
    %v816 = vld [vmem:[#allocation11] sm:$0x3]
    %v818 = vlaneseq
    %v819 = vshrl.u32 %v818, 7
    %v820 = vsub.s32 0, %v819
    %v821 = vrot.slane %v816, %v820
    %v822 = vlaneseq
    %v823 = vshrl.u32 %v822, 7
    %v824 = vsub.s32 1, %v823
    %v825 = vrot.slane %v816, %v824
    %v828 = vadd.f32 %v812, %v821
    %v829 = vadd.f32 %v814, %v825
    %v830 = vxor.u32 %v828, 2147483648
    %v831 = vmul.f32 %v830, 1.442695
    %v832 = vpow.pop %v831
    %v833 = vadd.f32 %v832, 1.0
    %v834 = vrcp.pop %v833
    %v835 = vmul.f32 1.0, %v834
    %v836 = vtanh.pop %v829
    %v837 = vxor.u32 %v829, 2147483648
    %v838 = vmul.f32 %v837, 1.442695
    %v839 = vpow.pop %v838
    %v840 = vadd.f32 %v839, 1.0
    %v841 = vrcp.pop %v840
    %v842 = vmul.f32 1.0, %v841
    %v843 = vmul.f32 %v835, 0.0
    %v844 = vmul.f32 %v835, %v836
    %846 = vrot.lane.b32.xlu0 %v844, 64
    %v847 = vpop.permute.xlu0 %846
    %v849 = vadd.f32 %v843, %v847
    %v850 = vtanh.pop %v849
    %v851 = vmul.f32 %v842, %v850
    %852 = vmatprep.subr.mxu0 %v487
    %853 = vmatpush1.msra.mxu0 %v486
    %854 = vmatprep.subr.mxu0 %v489
    %855 = vmatpush1.msra.mxu0 %v488
    %856 = vmatprep.subr.mxu0 %v491
    %857 = vmatpush1.msra.mxu0 %v490
    %858 = vmatprep.subr.mxu0 %v493
    %859 = vmatpush1.msra.mxu0 %v492
    %860 = vmatprep.subr.mxu0 %v495
    %861 = vmatpush1.msra.mxu0 %v494
    %862 = vmatprep.subr.mxu0 %v497
    %863 = vmatpush1.msra.mxu0 %v496
    %864 = vmatprep.subr.mxu0 %v499
    %865 = vmatpush1.msra.mxu0 %v498
    %866 = vmatprep.subr.mxu0 %v501
    %867 = vmatpush1.msra.mxu0 %v500
    %868 = vmatprep.subr.mxu0 0.0
    %869 = vmatpush1.msra.mxu0 0.0
    %870 = vmatprep.subr.mxu0 0.0
    %871 = vmatpush1.msra.mxu0 0.0
    %872 = vmatprep.subr.mxu0 0.0
    %873 = vmatpush1.msra.mxu0 0.0
    %874 = vmatprep.subr.mxu0 0.0
    %875 = vmatpush1.msra.mxu0 0.0
    %876 = vmatprep.subr.mxu0 0.0
    %877 = vmatpush1.msra.mxu0 0.0
    %878 = vmatprep.subr.mxu0 0.0
    %879 = vmatpush1.msra.mxu0 0.0
    %880 = vmatprep.subr.mxu0 0.0
    %881 = vmatpush1.msra.mxu0 0.0
    %882 = vmatprep.subr.mxu0 0.0
    %883 = vmatpush1.msra.mxu0 0.0
    %884 = vmatprep.subr.mxu0 0.0
    %885 = vmatpush1.msra.mxu0 0.0
    %886 = vmatprep.subr.mxu0 0.0
    %887 = vmatpush1.msra.mxu0 0.0
    %888 = vmatprep.subr.mxu0 0.0
    %889 = vmatpush1.msra.mxu0 0.0
    %890 = vmatprep.subr.mxu0 0.0
    %891 = vmatpush1.msra.mxu0 0.0
    %892 = vmatprep.subr.mxu0 0.0
    %893 = vmatpush1.msra.mxu0 0.0
    %894 = vmatprep.subr.mxu0 0.0
    %895 = vmatpush1.msra.mxu0 0.0
    %896 = vmatprep.subr.mxu0 0.0
    %897 = vmatpush1.msra.mxu0 0.0
    %898 = vmatprep.subr.mxu0 0.0
    %899 = vmatpush1.msra.mxu0 0.0
    %900 = vmatprep.subr.mxu0 0.0
    %901 = vmatpush1.msra.mxu0 0.0
    %902 = vmatprep.subr.mxu0 0.0
    %903 = vmatpush1.msra.mxu0 0.0
    %904 = vmatprep.subr.mxu0 0.0
    %905 = vmatpush1.msra.mxu0 0.0
    %906 = vmatprep.subr.mxu0 0.0
    %907 = vmatpush1.msra.mxu0 0.0
    %908 = vmatprep.subr.mxu0 0.0
    %909 = vmatpush1.msra.mxu0 0.0
    %910 = vmatprep.subr.mxu0 0.0
    %911 = vmatpush1.msra.mxu0 0.0
    %912 = vmatprep.subr.mxu0 0.0
    %913 = vmatpush1.msra.mxu0 0.0
    %914 = vmatprep.subr.mxu0 0.0
    %915 = vmatpush1.msra.mxu0 0.0
    %916 = vmatprep.mubr.f32.mxu0 0.0
    %917 = vmatmul.mubr.f32.gmra.mrb[0].mxu0 %v743
    %v918 = vpop.f32.mrb[0].mxu0
    %v919 = vadd.f32 0.0, %v918
    %v920 = vpop.f32.mrb[0].mxu0
    %v921 = vadd.f32 0.0, %v920
    %922 = vdwg.mxu0
    %v925 = vrot.slane %v919, 7
    %v926 = vrot.slane %v921, 7
    %v931 = vadd.f32 %v476, %v925
    %v932 = vadd.f32 %v478, %v926
    %v933 = vadd.f32 %v482, %v919
    %v934 = vadd.f32 %v484, %v921
    %v935 = vxor.u32 %v931, 2147483648
    %v936 = vxor.u32 %v933, 2147483648
    %v937 = vmul.f32 %v935, 1.442695
    %v938 = vpow.pop %v937
    %v939 = vmul.f32 %v936, 1.442695
    %v940 = vpow.pop %v939
    %v941 = vadd.f32 %v938, 1.0
    %v942 = vadd.f32 %v940, 1.0
    %v943 = vrcp.pop %v941
    %v944 = vmul.f32 1.0, %v943
    %v945 = vrcp.pop %v942
    %v946 = vmul.f32 1.0, %v945
    %v947 = vtanh.pop %v932
    %v948 = vtanh.pop %v934
    %v949 = vxor.u32 %v932, 2147483648
    %v950 = vxor.u32 %v934, 2147483648
    %v951 = vmul.f32 %v949, 1.442695
    %v952 = vpow.pop %v951
    %v953 = vmul.f32 %v950, 1.442695
    %v954 = vpow.pop %v953
    %v955 = vadd.f32 %v952, 1.0
    %v956 = vadd.f32 %v954, 1.0
    %v957 = vrcp.pop %v955
    %v958 = vmul.f32 1.0, %v957
    %v959 = vrcp.pop %v956
    %v960 = vmul.f32 1.0, %v959
    %v963 = vrot.slane %v627, 7
    %v964 = vrot.slane %v628, 7
    %v967 = vmul.f32 %v944, %v963
    %v968 = vmul.f32 %v946, %v964
    %v969 = vmul.f32 %v944, %v947
    %v970 = vmul.f32 %v946, %v948
    %973 = vrot.lane.b32.xlu0 %v969, 64
    %v974 = vpop.permute.xlu0 %973
    %975 = vrot.lane.b32.xlu0 %v970, 64
    %v976 = vpop.permute.xlu0 %975
    %v979 = vadd.f32 %v967, %v974
    %v980 = vadd.f32 %v968, %v976
    %v981 = vtanh.pop %v979
    %v982 = vtanh.pop %v980
    %v983 = vmul.f32 %v958, %v981
    %v984 = vmul.f32 %v960, %v982
    %v985 = vld [vmem:[%s8] sm:$0xff]
    %v986 = vld [vmem:[%s8 + $0x8] sm:$0xff]
    %v987 = vld [vmem:[%s8 + $0x10] sm:$0xff]
    %v988 = vld [vmem:[%s8 + $0x18] sm:$0xff]
    %vm989 = vcmask 261120
    %v990 = vsel %vm989, 0.0, 0
    %992 = vmatprep.subr.mxu0 0.0
    %993 = vmatpush1.msra.mxu0 %v985
    %994 = vmatprep.subr.mxu0 0.0
    %995 = vmatpush1.msra.mxu0 %v986
    %996 = vmatprep.subr.mxu0 0.0
    %997 = vmatpush1.msra.mxu0 %v987
    %998 = vmatprep.subr.mxu0 0.0
    %999 = vmatpush1.msra.mxu0 %v988
    %1000 = vmatprep.subr.mxu0 0.0
    %1001 = vmatpush1.msra.mxu0 0.0
    %1002 = vmatprep.subr.mxu0 0.0
    %1003 = vmatpush1.msra.mxu0 0.0
    %1004 = vmatprep.subr.mxu0 0.0
    %1005 = vmatpush1.msra.mxu0 0.0
    %1006 = vmatprep.subr.mxu0 0.0
    %1007 = vmatpush1.msra.mxu0 0.0
    %1008 = vmatprep.subr.mxu0 0.0
    %1009 = vmatpush1.msra.mxu0 0.0
    %1010 = vmatprep.subr.mxu0 0.0
    %1011 = vmatpush1.msra.mxu0 0.0
    %1012 = vmatprep.subr.mxu0 0.0
    %1013 = vmatpush1.msra.mxu0 0.0
    %1014 = vmatprep.subr.mxu0 0.0
    %1015 = vmatpush1.msra.mxu0 0.0
    %1016 = vmatprep.subr.mxu0 0.0
    %1017 = vmatpush1.msra.mxu0 0.0
    %1018 = vmatprep.subr.mxu0 0.0
    %1019 = vmatpush1.msra.mxu0 0.0
    %1020 = vmatprep.subr.mxu0 0.0
    %1021 = vmatpush1.msra.mxu0 0.0
    %1022 = vmatprep.subr.mxu0 0.0
    %1023 = vmatpush1.msra.mxu0 0.0
    %1024 = vmatprep.subr.mxu0 0.0
    %1025 = vmatpush1.msra.mxu0 0.0
    %1026 = vmatprep.subr.mxu0 0.0
    %1027 = vmatpush1.msra.mxu0 0.0
    %1028 = vmatprep.subr.mxu0 0.0
    %1029 = vmatpush1.msra.mxu0 0.0
    %1030 = vmatprep.subr.mxu0 0.0
    %1031 = vmatpush1.msra.mxu0 0.0
    %1032 = vmatprep.subr.mxu0 0.0
    %1033 = vmatpush1.msra.mxu0 0.0
    %1034 = vmatprep.subr.mxu0 0.0
    %1035 = vmatpush1.msra.mxu0 0.0
    %1036 = vmatprep.subr.mxu0 0.0
    %1037 = vmatpush1.msra.mxu0 0.0
    %1038 = vmatprep.subr.mxu0 0.0
    %1039 = vmatpush1.msra.mxu0 0.0
    %1040 = vmatprep.subr.mxu0 0.0
    %1041 = vmatpush1.msra.mxu0 0.0
    %1042 = vmatprep.subr.mxu0 0.0
    %1043 = vmatpush1.msra.mxu0 0.0
    %1044 = vmatprep.subr.mxu0 0.0
    %1045 = vmatpush1.msra.mxu0 0.0
    %1046 = vmatprep.subr.mxu0 0.0
    %1047 = vmatpush1.msra.mxu0 0.0
    %1048 = vmatprep.subr.mxu0 0.0
    %1049 = vmatpush1.msra.mxu0 0.0
    %1050 = vmatprep.subr.mxu0 0.0
    %1051 = vmatpush1.msra.mxu0 0.0
    %1052 = vmatprep.subr.mxu0 0.0
    %1053 = vmatpush1.msra.mxu0 0.0
    %1054 = vmatprep.subr.mxu0 0.0
    %1055 = vmatpush1.msra.mxu0 0.0
    %1056 = vmatprep.mubr.f32.mxu0 0.0
    %1057 = vmatmul.mubr.f32.gmra.mrb[0].mxu0 %v990
    %v1058 = vpop.f32.mrb[0].mxu0
    %v1059 = vadd.f32 0.0, %v1058
    %v1060 = vpop.f32.mrb[0].mxu0
    %1061 = vdwg.mxu0
    %v1062 = vld [vmem:[#allocation13] sm:$0xff]
    %v1063 = vld [vmem:[#allocation13 + $0x8] sm:$0xff]
    %v1064 = vld [vmem:[#allocation13 + $0x10] sm:$0xff]
    %v1065 = vld [vmem:[#allocation13 + $0x18] sm:$0xff]
    %v1066 = vld [vmem:[#allocation13 + $0x20] sm:$0xff]
    %v1067 = vld [vmem:[#allocation13 + $0x28] sm:$0xff]
    %v1068 = vld [vmem:[#allocation13 + $0x30] sm:$0xff]
    %v1069 = vld [vmem:[#allocation13 + $0x38] sm:$0xff]
    %1071 = vrot.lane.b32.xlu0 %v851, 64
    %v1072 = vpop.permute.xlu0 %1071
    %v1073 = vsel %vm502, %v1072, 0
    %1075 = vmatprep.subr.mxu0 0.0
    %1076 = vmatpush1.msra.mxu0 %v1062
    %1077 = vmatprep.subr.mxu0 0.0
    %1078 = vmatpush1.msra.mxu0 %v1063
    %1079 = vmatprep.subr.mxu0 0.0
    %1080 = vmatpush1.msra.mxu0 %v1064
    %1081 = vmatprep.subr.mxu0 0.0
    %1082 = vmatpush1.msra.mxu0 %v1065
    %1083 = vmatprep.subr.mxu0 0.0
    %1084 = vmatpush1.msra.mxu0 %v1066
    %1085 = vmatprep.subr.mxu0 0.0
    %1086 = vmatpush1.msra.mxu0 %v1067
    %1087 = vmatprep.subr.mxu0 0.0
    %1088 = vmatpush1.msra.mxu0 %v1068
    %1089 = vmatprep.subr.mxu0 0.0
    %1090 = vmatpush1.msra.mxu0 %v1069
    %1091 = vmatprep.subr.mxu0 0.0
    %1092 = vmatpush1.msra.mxu0 0.0
    %1093 = vmatprep.subr.mxu0 0.0
    %1094 = vmatpush1.msra.mxu0 0.0
    %1095 = vmatprep.subr.mxu0 0.0
    %1096 = vmatpush1.msra.mxu0 0.0
    %1097 = vmatprep.subr.mxu0 0.0
    %1098 = vmatpush1.msra.mxu0 0.0
    %1099 = vmatprep.subr.mxu0 0.0
    %1100 = vmatpush1.msra.mxu0 0.0
    %1101 = vmatprep.subr.mxu0 0.0
    %1102 = vmatpush1.msra.mxu0 0.0
    %1103 = vmatprep.subr.mxu0 0.0
    %1104 = vmatpush1.msra.mxu0 0.0
    %1105 = vmatprep.subr.mxu0 0.0
    %1106 = vmatpush1.msra.mxu0 0.0
    %1107 = vmatprep.subr.mxu0 0.0
    %1108 = vmatpush1.msra.mxu0 0.0
    %1109 = vmatprep.subr.mxu0 0.0
    %1110 = vmatpush1.msra.mxu0 0.0
    %1111 = vmatprep.subr.mxu0 0.0
    %1112 = vmatpush1.msra.mxu0 0.0
    %1113 = vmatprep.subr.mxu0 0.0
    %1114 = vmatpush1.msra.mxu0 0.0
    %1115 = vmatprep.subr.mxu0 0.0
    %1116 = vmatpush1.msra.mxu0 0.0
    %1117 = vmatprep.subr.mxu0 0.0
    %1118 = vmatpush1.msra.mxu0 0.0
    %1119 = vmatprep.subr.mxu0 0.0
    %1120 = vmatpush1.msra.mxu0 0.0
    %1121 = vmatprep.subr.mxu0 0.0
    %1122 = vmatpush1.msra.mxu0 0.0
    %1123 = vmatprep.subr.mxu0 0.0
    %1124 = vmatpush1.msra.mxu0 0.0
    %1125 = vmatprep.subr.mxu0 0.0
    %1126 = vmatpush1.msra.mxu0 0.0
    %1127 = vmatprep.subr.mxu0 0.0
    %1128 = vmatpush1.msra.mxu0 0.0
    %1129 = vmatprep.subr.mxu0 0.0
    %1130 = vmatpush1.msra.mxu0 0.0
    %1131 = vmatprep.subr.mxu0 0.0
    %1132 = vmatpush1.msra.mxu0 0.0
    %1133 = vmatprep.subr.mxu0 0.0
    %1134 = vmatpush1.msra.mxu0 0.0
    %1135 = vmatprep.subr.mxu0 0.0
    %1136 = vmatpush1.msra.mxu0 0.0
    %1137 = vmatprep.subr.mxu0 0.0
    %1138 = vmatpush1.msra.mxu0 0.0
    %1139 = vmatprep.mubr.f32.mxu0 0.0
    %1140 = vmatmul.mubr.f32.gmra.mrb[0].mxu0 %v1073
    %v1141 = vpop.f32.mrb[0].mxu0
    %v1142 = vadd.f32 %v1059, %v1141
    %v1143 = vpop.f32.mrb[0].mxu0
    %1144 = vdwg.mxu0
    %v1145 = vld [vmem:[%s9] sm:$0x1]
    %v1147 = vlaneseq
    %v1148 = vshrl.u32 %v1147, 7
    %v1149 = vsub.s32 0, %v1148
    %v1150 = vrot.slane %v1145, %v1149
    %v1152 = vadd.f32 %v1142, %v1150
    %v1153 = vxor.u32 %v1152, 2147483648
    %v1154 = vmul.f32 %v1153, 1.442695
    %v1155 = vpow.pop %v1154
    %v1156 = vadd.f32 %v1155, 1.0
    %v1157 = vrcp.pop %v1156
    %v1158 = vmul.f32 1.0, %v1157
    %v1159 = vtanh.pop %v1152
    %v1160 = vmul.f32 %v1158, 0.0
    %1162 = vrot.lane.b32.xlu0 %v1159, 64
    %v1163 = vpop.permute.xlu0 %1162
    %v1165 = vmul.f32 %v1158, %v1163
    %1167 = vrot.lane.b32.xlu0 %v1165, 32
    %v1168 = vpop.permute.xlu0 %1167
    %v1170 = vadd.f32 %v1160, %v1168
    %v1171 = vtanh.pop %v1170
    %1173 = vrot.lane.b32.xlu0 %v1171, 64
    %v1174 = vpop.permute.xlu0 %1173
    %v1176 = vmul.f32 %v1158, %v1174
    %1177 = vmatprep.subr.mxu0 %v634
    %1178 = vmatpush1.msra.mxu0 %v633
    %1179 = vmatprep.subr.mxu0 %v636
    %1180 = vmatpush1.msra.mxu0 %v635
    %1181 = vmatprep.subr.mxu0 %v638
    %1182 = vmatpush1.msra.mxu0 %v637
    %1183 = vmatprep.subr.mxu0 %v640
    %1184 = vmatpush1.msra.mxu0 %v639
    %1185 = vmatprep.subr.mxu0 %v642
    %1186 = vmatpush1.msra.mxu0 %v641
    %1187 = vmatprep.subr.mxu0 %v644
    %1188 = vmatpush1.msra.mxu0 %v643
    %1189 = vmatprep.subr.mxu0 %v646
    %1190 = vmatpush1.msra.mxu0 %v645
    %1191 = vmatprep.subr.mxu0 %v648
    %1192 = vmatpush1.msra.mxu0 %v647
    %1193 = vmatprep.subr.mxu0 0.0
    %1194 = vmatpush1.msra.mxu0 0.0
    %1195 = vmatprep.subr.mxu0 0.0
    %1196 = vmatpush1.msra.mxu0 0.0
    %1197 = vmatprep.subr.mxu0 0.0
    %1198 = vmatpush1.msra.mxu0 0.0
    %1199 = vmatprep.subr.mxu0 0.0
    %1200 = vmatpush1.msra.mxu0 0.0
    %1201 = vmatprep.subr.mxu0 0.0
    %1202 = vmatpush1.msra.mxu0 0.0
    %1203 = vmatprep.subr.mxu0 0.0
    %1204 = vmatpush1.msra.mxu0 0.0
    %1205 = vmatprep.subr.mxu0 0.0
    %1206 = vmatpush1.msra.mxu0 0.0
    %1207 = vmatprep.subr.mxu0 0.0
    %1208 = vmatpush1.msra.mxu0 0.0
    %1209 = vmatprep.subr.mxu0 0.0
    %1210 = vmatpush1.msra.mxu0 0.0
    %1211 = vmatprep.subr.mxu0 0.0
    %1212 = vmatpush1.msra.mxu0 0.0
    %1213 = vmatprep.subr.mxu0 0.0
    %1214 = vmatpush1.msra.mxu0 0.0
    %1215 = vmatprep.subr.mxu0 0.0
    %1216 = vmatpush1.msra.mxu0 0.0
    %1217 = vmatprep.subr.mxu0 0.0
    %1218 = vmatpush1.msra.mxu0 0.0
    %1219 = vmatprep.subr.mxu0 0.0
    %1220 = vmatpush1.msra.mxu0 0.0
    %1221 = vmatprep.subr.mxu0 0.0
    %1222 = vmatpush1.msra.mxu0 0.0
    %1223 = vmatprep.subr.mxu0 0.0
    %1224 = vmatpush1.msra.mxu0 0.0
    %1225 = vmatprep.subr.mxu0 0.0
    %1226 = vmatpush1.msra.mxu0 0.0
    %1227 = vmatprep.subr.mxu0 0.0
    %1228 = vmatpush1.msra.mxu0 0.0
    %1229 = vmatprep.subr.mxu0 0.0
    %1230 = vmatpush1.msra.mxu0 0.0
    %1231 = vmatprep.subr.mxu0 0.0
    %1232 = vmatpush1.msra.mxu0 0.0
    %1233 = vmatprep.subr.mxu0 0.0
    %1234 = vmatpush1.msra.mxu0 0.0
    %1235 = vmatprep.subr.mxu0 0.0
    %1236 = vmatpush1.msra.mxu0 0.0
    %1237 = vmatprep.subr.mxu0 0.0
    %1238 = vmatpush1.msra.mxu0 0.0
    %1239 = vmatprep.subr.mxu0 0.0
    %1240 = vmatpush1.msra.mxu0 0.0
    %1241 = vmatprep.mubr.f32.mxu0 0.0
    %1242 = vmatmul.mubr.f32.gmra.mrb[0].mxu0 %v1073
    %v1243 = vpop.f32.mrb[0].mxu0
    %v1244 = vadd.f32 0.0, %v1243
    %v1245 = vpop.f32.mrb[0].mxu0
    %v1246 = vadd.f32 0.0, %v1245
    %1247 = vdwg.mxu0
    %v1250 = vrot.slane %v983, 1
    %v1251 = vsel %vm739, %v984, %v1250
    %1252 = vrot.lane.b32.xlu0 %v1251, 64
    %v1253 = vpop.permute.xlu0 %1252
    %v1254 = vsel %vm502, %v1253, 0
    %1256 = vmatprep.subr.mxu0 %v721
    %1257 = vmatpush1.msra.mxu0 %v720
    %1258 = vmatprep.subr.mxu0 %v723
    %1259 = vmatpush1.msra.mxu0 %v722
    %1260 = vmatprep.subr.mxu0 %v725
    %1261 = vmatpush1.msra.mxu0 %v724
    %1262 = vmatprep.subr.mxu0 %v727
    %1263 = vmatpush1.msra.mxu0 %v726
    %1264 = vmatprep.subr.mxu0 %v729
    %1265 = vmatpush1.msra.mxu0 %v728
    %1266 = vmatprep.subr.mxu0 %v731
    %1267 = vmatpush1.msra.mxu0 %v730
    %1268 = vmatprep.subr.mxu0 %v733
    %1269 = vmatpush1.msra.mxu0 %v732
    %1270 = vmatprep.subr.mxu0 %v735
    %1271 = vmatpush1.msra.mxu0 %v734
    %1272 = vmatprep.subr.mxu0 0.0
    %1273 = vmatpush1.msra.mxu0 0.0
    %1274 = vmatprep.subr.mxu0 0.0
    %1275 = vmatpush1.msra.mxu0 0.0
    %1276 = vmatprep.subr.mxu0 0.0
    %1277 = vmatpush1.msra.mxu0 0.0
    %1278 = vmatprep.subr.mxu0 0.0
    %1279 = vmatpush1.msra.mxu0 0.0
    %1280 = vmatprep.subr.mxu0 0.0
    %1281 = vmatpush1.msra.mxu0 0.0
    %1282 = vmatprep.subr.mxu0 0.0
    %1283 = vmatpush1.msra.mxu0 0.0
    %1284 = vmatprep.subr.mxu0 0.0
    %1285 = vmatpush1.msra.mxu0 0.0
    %1286 = vmatprep.subr.mxu0 0.0
    %1287 = vmatpush1.msra.mxu0 0.0
    %1288 = vmatprep.subr.mxu0 0.0
    %1289 = vmatpush1.msra.mxu0 0.0
    %1290 = vmatprep.subr.mxu0 0.0
    %1291 = vmatpush1.msra.mxu0 0.0
    %1292 = vmatprep.subr.mxu0 0.0
    %1293 = vmatpush1.msra.mxu0 0.0
    %1294 = vmatprep.subr.mxu0 0.0
    %1295 = vmatpush1.msra.mxu0 0.0
    %1296 = vmatprep.subr.mxu0 0.0
    %1297 = vmatpush1.msra.mxu0 0.0
    %1298 = vmatprep.subr.mxu0 0.0
    %1299 = vmatpush1.msra.mxu0 0.0
    %1300 = vmatprep.subr.mxu0 0.0
    %1301 = vmatpush1.msra.mxu0 0.0
    %1302 = vmatprep.subr.mxu0 0.0
    %1303 = vmatpush1.msra.mxu0 0.0
    %1304 = vmatprep.subr.mxu0 0.0
    %1305 = vmatpush1.msra.mxu0 0.0
    %1306 = vmatprep.subr.mxu0 0.0
    %1307 = vmatpush1.msra.mxu0 0.0
    %1308 = vmatprep.subr.mxu0 0.0
    %1309 = vmatpush1.msra.mxu0 0.0
    %1310 = vmatprep.subr.mxu0 0.0
    %1311 = vmatpush1.msra.mxu0 0.0
    %1312 = vmatprep.subr.mxu0 0.0
    %1313 = vmatpush1.msra.mxu0 0.0
    %1314 = vmatprep.subr.mxu0 0.0
    %1315 = vmatpush1.msra.mxu0 0.0
    %1316 = vmatprep.subr.mxu0 0.0
    %1317 = vmatpush1.msra.mxu0 0.0
    %1318 = vmatprep.subr.mxu0 0.0
    %1319 = vmatpush1.msra.mxu0 0.0
    %1320 = vmatprep.mubr.f32.mxu0 0.0
    %1321 = vmatmul.mubr.f32.gmra.mrb[0].mxu0 %v1254
    %v1322 = vpop.f32.mrb[0].mxu0
    %v1323 = vadd.f32 %v1244, %v1322
    %v1324 = vpop.f32.mrb[0].mxu0
    %v1325 = vadd.f32 %v1246, %v1324
    %1326 = vdwg.mxu0
    %v1327 = vadd.f32 %v1323, %v821
    %v1328 = vadd.f32 %v1325, %v825
    %v1329 = vxor.u32 %v1327, 2147483648
    %v1330 = vmul.f32 %v1329, 1.442695
    %v1331 = vpow.pop %v1330
    %v1332 = vadd.f32 %v1331, 1.0
    %v1333 = vrcp.pop %v1332
    %v1334 = vmul.f32 1.0, %v1333
    %v1335 = vtanh.pop %v1328
    %v1336 = vxor.u32 %v1328, 2147483648
    %v1337 = vmul.f32 %v1336, 1.442695
    %v1338 = vpow.pop %v1337
    %v1339 = vadd.f32 %v1338, 1.0
    %v1340 = vrcp.pop %v1339
    %v1341 = vmul.f32 1.0, %v1340
    %v1342 = vmul.f32 %v1334, %v849
    %v1343 = vmul.f32 %v1334, %v1335
    %1345 = vrot.lane.b32.xlu0 %v1343, 64
    %v1346 = vpop.permute.xlu0 %1345
    %v1348 = vadd.f32 %v1342, %v1346
    %v1349 = vtanh.pop %v1348
    %v1350 = vmul.f32 %v1341, %v1349
    %1351 = vmatprep.subr.mxu0 %v487
    %1352 = vmatpush1.msra.mxu0 %v486
    %1353 = vmatprep.subr.mxu0 %v489
    %1354 = vmatpush1.msra.mxu0 %v488
    %1355 = vmatprep.subr.mxu0 %v491
    %1356 = vmatpush1.msra.mxu0 %v490
    %1357 = vmatprep.subr.mxu0 %v493
    %1358 = vmatpush1.msra.mxu0 %v492
    %1359 = vmatprep.subr.mxu0 %v495
    %1360 = vmatpush1.msra.mxu0 %v494
    %1361 = vmatprep.subr.mxu0 %v497
    %1362 = vmatpush1.msra.mxu0 %v496
    %1363 = vmatprep.subr.mxu0 %v499
    %1364 = vmatpush1.msra.mxu0 %v498
    %1365 = vmatprep.subr.mxu0 %v501
    %1366 = vmatpush1.msra.mxu0 %v500
    %1367 = vmatprep.subr.mxu0 0.0
    %1368 = vmatpush1.msra.mxu0 0.0
    %1369 = vmatprep.subr.mxu0 0.0
    %1370 = vmatpush1.msra.mxu0 0.0
    %1371 = vmatprep.subr.mxu0 0.0
    %1372 = vmatpush1.msra.mxu0 0.0
    %1373 = vmatprep.subr.mxu0 0.0
    %1374 = vmatpush1.msra.mxu0 0.0
    %1375 = vmatprep.subr.mxu0 0.0
    %1376 = vmatpush1.msra.mxu0 0.0
    %1377 = vmatprep.subr.mxu0 0.0
    %1378 = vmatpush1.msra.mxu0 0.0
    %1379 = vmatprep.subr.mxu0 0.0
    %1380 = vmatpush1.msra.mxu0 0.0
    %1381 = vmatprep.subr.mxu0 0.0
    %1382 = vmatpush1.msra.mxu0 0.0
    %1383 = vmatprep.subr.mxu0 0.0
    %1384 = vmatpush1.msra.mxu0 0.0
    %1385 = vmatprep.subr.mxu0 0.0
    %1386 = vmatpush1.msra.mxu0 0.0
    %1387 = vmatprep.subr.mxu0 0.0
    %1388 = vmatpush1.msra.mxu0 0.0
    %1389 = vmatprep.subr.mxu0 0.0
    %1390 = vmatpush1.msra.mxu0 0.0
    %1391 = vmatprep.subr.mxu0 0.0
    %1392 = vmatpush1.msra.mxu0 0.0
    %1393 = vmatprep.subr.mxu0 0.0
    %1394 = vmatpush1.msra.mxu0 0.0
    %1395 = vmatprep.subr.mxu0 0.0
    %1396 = vmatpush1.msra.mxu0 0.0
    %1397 = vmatprep.subr.mxu0 0.0
    %1398 = vmatpush1.msra.mxu0 0.0
    %1399 = vmatprep.subr.mxu0 0.0
    %1400 = vmatpush1.msra.mxu0 0.0
    %1401 = vmatprep.subr.mxu0 0.0
    %1402 = vmatpush1.msra.mxu0 0.0
    %1403 = vmatprep.subr.mxu0 0.0
    %1404 = vmatpush1.msra.mxu0 0.0
    %1405 = vmatprep.subr.mxu0 0.0
    %1406 = vmatpush1.msra.mxu0 0.0
    %1407 = vmatprep.subr.mxu0 0.0
    %1408 = vmatpush1.msra.mxu0 0.0
    %1409 = vmatprep.subr.mxu0 0.0
    %1410 = vmatpush1.msra.mxu0 0.0
    %1411 = vmatprep.subr.mxu0 0.0
    %1412 = vmatpush1.msra.mxu0 0.0
    %1413 = vmatprep.subr.mxu0 0.0
    %1414 = vmatpush1.msra.mxu0 0.0
    %1415 = vmatprep.mubr.f32.mxu0 0.0
    %1416 = vmatmul.mubr.f32.gmra.mrb[0].mxu0 %v1254
    %v1417 = vpop.f32.mrb[0].mxu0
    %v1418 = vadd.f32 0.0, %v1417
    %v1419 = vpop.f32.mrb[0].mxu0
    %v1420 = vadd.f32 0.0, %v1419
    %1421 = vdwg.mxu0
    %v1424 = vrot.slane %v1418, 6
    %v1425 = vrot.slane %v1420, 6
    %v1426 = vrot.slane %v1418, 7
    %v1427 = vrot.slane %v1420, 7
    %v1432 = vadd.f32 %v476, %v1424
    %v1433 = vadd.f32 %v478, %v1425
    %v1434 = vadd.f32 %v482, %v1426
    %v1435 = vadd.f32 %v484, %v1427
    %v1436 = vxor.u32 %v1432, 2147483648
    %v1437 = vxor.u32 %v1434, 2147483648
    %v1438 = vmul.f32 %v1436, 1.442695
    %v1439 = vpow.pop %v1438
    %v1440 = vmul.f32 %v1437, 1.442695
    %v1441 = vpow.pop %v1440
    %v1442 = vadd.f32 %v1439, 1.0
    %v1443 = vadd.f32 %v1441, 1.0
    %v1444 = vrcp.pop %v1442
    %v1445 = vmul.f32 1.0, %v1444
    %v1446 = vrcp.pop %v1443
    %v1447 = vmul.f32 1.0, %v1446
    %v1448 = vtanh.pop %v1433
    %v1449 = vtanh.pop %v1435
    %v1450 = vxor.u32 %v1433, 2147483648
    %v1451 = vxor.u32 %v1435, 2147483648
    %v1452 = vmul.f32 %v1450, 1.442695
    %v1453 = vpow.pop %v1452
    %v1454 = vmul.f32 %v1451, 1.442695
    %v1455 = vpow.pop %v1454
    %v1456 = vadd.f32 %v1453, 1.0
    %v1457 = vadd.f32 %v1455, 1.0
    %v1458 = vrcp.pop %v1456
    %v1459 = vmul.f32 1.0, %v1458
    %v1460 = vrcp.pop %v1457
    %v1461 = vmul.f32 1.0, %v1460
    %v1464 = vrot.slane %v979, 7
    %v1465 = vrot.slane %v980, 7
    %v1468 = vmul.f32 %v1445, %v1464
    %v1469 = vmul.f32 %v1447, %v1465
    %v1470 = vmul.f32 %v1445, %v1448
    %v1471 = vmul.f32 %v1447, %v1449
    %1474 = vrot.lane.b32.xlu0 %v1470, 64
    %v1475 = vpop.permute.xlu0 %1474
    %1476 = vrot.lane.b32.xlu0 %v1471, 64
    %v1477 = vpop.permute.xlu0 %1476
    %v1480 = vadd.f32 %v1468, %v1475
    %v1481 = vadd.f32 %v1469, %v1477
    %v1482 = vtanh.pop %v1480
    %v1483 = vtanh.pop %v1481
    %v1484 = vmul.f32 %v1459, %v1482
    %v1485 = vmul.f32 %v1461, %v1483
    %v1486 = vld [vmem:[#allocation16] sm:$0xff]
    %v1487 = vld [vmem:[#allocation16 + $0x8] sm:$0xff]
    %v1488 = vld [vmem:[#allocation16 + $0x10] sm:$0xff]
    %v1489 = vld [vmem:[#allocation16 + $0x18] sm:$0xff]
    %1490 = vmatprep.subr.mxu0 0.0
    %1491 = vmatpush1.msra.mxu0 %v1486
    %1492 = vmatprep.subr.mxu0 0.0
    %1493 = vmatpush1.msra.mxu0 %v1487
    %1494 = vmatprep.subr.mxu0 0.0
    %1495 = vmatpush1.msra.mxu0 %v1488
    %1496 = vmatprep.subr.mxu0 0.0
    %1497 = vmatpush1.msra.mxu0 %v1489
    %1498 = vmatprep.subr.mxu0 0.0
    %1499 = vmatpush1.msra.mxu0 0.0
    %1500 = vmatprep.subr.mxu0 0.0
    %1501 = vmatpush1.msra.mxu0 0.0
    %1502 = vmatprep.subr.mxu0 0.0
    %1503 = vmatpush1.msra.mxu0 0.0
    %1504 = vmatprep.subr.mxu0 0.0
    %1505 = vmatpush1.msra.mxu0 0.0
    %1506 = vmatprep.subr.mxu0 0.0
    %1507 = vmatpush1.msra.mxu0 0.0
    %1508 = vmatprep.subr.mxu0 0.0
    %1509 = vmatpush1.msra.mxu0 0.0
    %1510 = vmatprep.subr.mxu0 0.0
    %1511 = vmatpush1.msra.mxu0 0.0
    %1512 = vmatprep.subr.mxu0 0.0
    %1513 = vmatpush1.msra.mxu0 0.0
    %1514 = vmatprep.subr.mxu0 0.0
    %1515 = vmatpush1.msra.mxu0 0.0
    %1516 = vmatprep.subr.mxu0 0.0
    %1517 = vmatpush1.msra.mxu0 0.0
    %1518 = vmatprep.subr.mxu0 0.0
    %1519 = vmatpush1.msra.mxu0 0.0
    %1520 = vmatprep.subr.mxu0 0.0
    %1521 = vmatpush1.msra.mxu0 0.0
    %1522 = vmatprep.subr.mxu0 0.0
    %1523 = vmatpush1.msra.mxu0 0.0
    %1524 = vmatprep.subr.mxu0 0.0
    %1525 = vmatpush1.msra.mxu0 0.0
    %1526 = vmatprep.subr.mxu0 0.0
    %1527 = vmatpush1.msra.mxu0 0.0
    %1528 = vmatprep.subr.mxu0 0.0
    %1529 = vmatpush1.msra.mxu0 0.0
    %1530 = vmatprep.subr.mxu0 0.0
    %1531 = vmatpush1.msra.mxu0 0.0
    %1532 = vmatprep.subr.mxu0 0.0
    %1533 = vmatpush1.msra.mxu0 0.0
    %1534 = vmatprep.subr.mxu0 0.0
    %1535 = vmatpush1.msra.mxu0 0.0
    %1536 = vmatprep.subr.mxu0 0.0
    %1537 = vmatpush1.msra.mxu0 0.0
    %1538 = vmatprep.subr.mxu0 0.0
    %1539 = vmatpush1.msra.mxu0 0.0
    %1540 = vmatprep.subr.mxu0 0.0
    %1541 = vmatpush1.msra.mxu0 0.0
    %1542 = vmatprep.subr.mxu0 0.0
    %1543 = vmatpush1.msra.mxu0 0.0
    %1544 = vmatprep.subr.mxu0 0.0
    %1545 = vmatpush1.msra.mxu0 0.0
    %1546 = vmatprep.subr.mxu0 0.0
    %1547 = vmatpush1.msra.mxu0 0.0
    %1548 = vmatprep.subr.mxu0 0.0
    %1549 = vmatpush1.msra.mxu0 0.0
    %1550 = vmatprep.subr.mxu0 0.0
    %1551 = vmatpush1.msra.mxu0 0.0
    %1552 = vmatprep.subr.mxu0 0.0
    %1553 = vmatpush1.msra.mxu0 0.0
    %1554 = vmatprep.mubr.f32.mxu0 0.0
    %1555 = vmatmul.mubr.f32.gmra.mrb[0].mxu0 %v990
    %v1556 = vpop.f32.mrb[0].mxu0
    %v1557 = vadd.f32 0.0, %v1556
    %v1558 = vpop.f32.mrb[0].mxu0
    %1559 = vdwg.mxu0
    %v1560 = vld [vmem:[#allocation14] sm:$0xff]
    %v1561 = vld [vmem:[#allocation14 + $0x8] sm:$0xff]
    %v1562 = vld [vmem:[#allocation14 + $0x10] sm:$0xff]
    %v1563 = vld [vmem:[#allocation14 + $0x18] sm:$0xff]
    %1565 = vrot.lane.b32.xlu0 %v1176, 32
    %v1566 = vpop.permute.xlu0 %1565
    %v1567 = vsel %vm989, %v1566, 0
    %1569 = vmatprep.subr.mxu0 0.0
    %1570 = vmatpush1.msra.mxu0 %v1560
    %1571 = vmatprep.subr.mxu0 0.0
    %1572 = vmatpush1.msra.mxu0 %v1561
    %1573 = vmatprep.subr.mxu0 0.0
    %1574 = vmatpush1.msra.mxu0 %v1562
    %1575 = vmatprep.subr.mxu0 0.0
    %1576 = vmatpush1.msra.mxu0 %v1563
    %1577 = vmatprep.subr.mxu0 0.0
    %1578 = vmatpush1.msra.mxu0 0.0
    %1579 = vmatprep.subr.mxu0 0.0
    %1580 = vmatpush1.msra.mxu0 0.0
    %1581 = vmatprep.subr.mxu0 0.0
    %1582 = vmatpush1.msra.mxu0 0.0
    %1583 = vmatprep.subr.mxu0 0.0
    %1584 = vmatpush1.msra.mxu0 0.0
    %1585 = vmatprep.subr.mxu0 0.0
    %1586 = vmatpush1.msra.mxu0 0.0
    %1587 = vmatprep.subr.mxu0 0.0
    %1588 = vmatpush1.msra.mxu0 0.0
    %1589 = vmatprep.subr.mxu0 0.0
    %1590 = vmatpush1.msra.mxu0 0.0
    %1591 = vmatprep.subr.mxu0 0.0
    %1592 = vmatpush1.msra.mxu0 0.0
    %1593 = vmatprep.subr.mxu0 0.0
    %1594 = vmatpush1.msra.mxu0 0.0
    %1595 = vmatprep.subr.mxu0 0.0
    %1596 = vmatpush1.msra.mxu0 0.0
    %1597 = vmatprep.subr.mxu0 0.0
    %1598 = vmatpush1.msra.mxu0 0.0
    %1599 = vmatprep.subr.mxu0 0.0
    %1600 = vmatpush1.msra.mxu0 0.0
    %1601 = vmatprep.subr.mxu0 0.0
    %1602 = vmatpush1.msra.mxu0 0.0
    %1603 = vmatprep.subr.mxu0 0.0
    %1604 = vmatpush1.msra.mxu0 0.0
    %1605 = vmatprep.subr.mxu0 0.0
    %1606 = vmatpush1.msra.mxu0 0.0
    %1607 = vmatprep.subr.mxu0 0.0
    %1608 = vmatpush1.msra.mxu0 0.0
    %1609 = vmatprep.subr.mxu0 0.0
    %1610 = vmatpush1.msra.mxu0 0.0
    %1611 = vmatprep.subr.mxu0 0.0
    %1612 = vmatpush1.msra.mxu0 0.0
    %1613 = vmatprep.subr.mxu0 0.0
    %1614 = vmatpush1.msra.mxu0 0.0
    %1615 = vmatprep.subr.mxu0 0.0
    %1616 = vmatpush1.msra.mxu0 0.0
    %1617 = vmatprep.subr.mxu0 0.0
    %1618 = vmatpush1.msra.mxu0 0.0
    %1619 = vmatprep.subr.mxu0 0.0
    %1620 = vmatpush1.msra.mxu0 0.0
    %1621 = vmatprep.subr.mxu0 0.0
    %1622 = vmatpush1.msra.mxu0 0.0
    %1623 = vmatprep.subr.mxu0 0.0
    %1624 = vmatpush1.msra.mxu0 0.0
    %1625 = vmatprep.subr.mxu0 0.0
    %1626 = vmatpush1.msra.mxu0 0.0
    %1627 = vmatprep.subr.mxu0 0.0
    %1628 = vmatpush1.msra.mxu0 0.0
    %1629 = vmatprep.subr.mxu0 0.0
    %1630 = vmatpush1.msra.mxu0 0.0
    %1631 = vmatprep.subr.mxu0 0.0
    %1632 = vmatpush1.msra.mxu0 0.0
    %1633 = vmatprep.mubr.f32.mxu0 0.0
    %1634 = vmatmul.mubr.f32.gmra.mrb[0].mxu0 %v1567
    %v1635 = vpop.f32.mrb[0].mxu0
    %v1636 = vadd.f32 %v1557, %v1635
    %v1637 = vpop.f32.mrb[0].mxu0
    %1638 = vdwg.mxu0
    %v1639 = vld [vmem:[%s12] sm:$0x1]
    %v1641 = vlaneseq
    %v1642 = vshrl.u32 %v1641, 7
    %v1643 = vsub.s32 0, %v1642
    %v1644 = vrot.slane %v1639, %v1643
    %v1646 = vadd.f32 %v1636, %v1644
    %v1647 = vxor.u32 %v1646, 2147483648
    %v1648 = vmul.f32 %v1647, 1.442695
    %v1649 = vpow.pop %v1648
    %v1650 = vadd.f32 %v1649, 1.0
    %v1651 = vrcp.pop %v1650
    %v1652 = vmul.f32 1.0, %v1651
    %v1653 = vtanh.pop %v1646
    %v1654 = vmul.f32 %v1652, 0.0
    %1656 = vrot.lane.b32.xlu0 %v1653, 64
    %v1657 = vpop.permute.xlu0 %1656
    %v1659 = vmul.f32 %v1652, %v1657
    %1661 = vrot.lane.b32.xlu0 %v1659, 32
    %v1662 = vpop.permute.xlu0 %1661
    %v1664 = vadd.f32 %v1654, %v1662
    %v1665 = vtanh.pop %v1664
    %1667 = vrot.lane.b32.xlu0 %v1665, 64
    %v1668 = vpop.permute.xlu0 %1667
    %v1670 = vmul.f32 %v1652, %v1668
    %v1673 = vunpack.c.l.s4 1966171168
    %v1674 = vunpack.c.0.s8 %v1673
    %v1675 = vlaneseq
    %v1676 = vshrl.u32 %v1675, 7
    %v1677 = vsub.s32 %v1674, %v1676
    %v1678 = vrot.slane %v1670, %v1677
    %v1679 = vcombine.high %v1678, %v1678
    %v1681 = vunpack.c.l.s4 1966171168
    %v1682 = vunpack.c.0.s8 %v1681
    %v1683 = vlaneseq
    %v1684 = vshrl.u32 %v1683, 7
    %v1685 = vsub.s32 %v1682, %v1684
    %v1686 = vrot.slane %v1678, %v1685
    %v1688 = vunpack.c.l.s4 1966171168
    %v1689 = vunpack.c.0.s8 %v1688
    %v1690 = vlaneseq
    %v1691 = vshrl.u32 %v1690, 7
    %v1692 = vsub.s32 %v1689, %v1691
    %v1693 = vrot.slane %v1679, %v1692
    %v1694 = vlaneseq
    %v1695 = vshrl.u32 %v1694, 7
    %v1696 = vsub.s32 0, %v1695
    %v1697 = vrot.slane %v1686, %v1696
    %v1698 = vlaneseq
    %v1699 = vshrl.u32 %v1698, 7
    %v1700 = vsub.s32 0, %v1699
    %v1701 = vrot.slane %v1693, %v1700
    %1702 = vrot.lane.b32.xlu0 %v1697, 32
    %v1703 = vpop.permute.xlu0 %1702
    %1704 = vrot.lane.b32.xlu0 %v1701, 32
    %v1705 = vpop.permute.xlu0 %1704
    %vm1708 = vcmask 253952
    %1709 = vst.msk [vmem:[#allocation2] sm:$0x1] %vm1708, %v1703
    %1710 = vst.msk [vmem:[#allocation2 + $0x8] sm:$0x1] %vm1708, %v1705
    %v1711 = vld [vmem:[%s8] sm:$0xff]
    %v1712 = vld [vmem:[%s8 + $0x8] sm:$0xff]
    %v1713 = vld [vmem:[%s8 + $0x10] sm:$0xff]
    %v1714 = vld [vmem:[%s8 + $0x18] sm:$0xff]
    %1715 = vmatprep.subr.mxu0 0.0
    %1716 = vmatpush1.msra.mxu0 %v1711
    %1717 = vmatprep.subr.mxu0 0.0
    %1718 = vmatpush1.msra.mxu0 %v1712
    %1719 = vmatprep.subr.mxu0 0.0
    %1720 = vmatpush1.msra.mxu0 %v1713
    %1721 = vmatprep.subr.mxu0 0.0
    %1722 = vmatpush1.msra.mxu0 %v1714
    %1723 = vmatprep.subr.mxu0 0.0
    %1724 = vmatpush1.msra.mxu0 0.0
    %1725 = vmatprep.subr.mxu0 0.0
    %1726 = vmatpush1.msra.mxu0 0.0
    %1727 = vmatprep.subr.mxu0 0.0
    %1728 = vmatpush1.msra.mxu0 0.0
    %1729 = vmatprep.subr.mxu0 0.0
    %1730 = vmatpush1.msra.mxu0 0.0
    %1731 = vmatprep.subr.mxu0 0.0
    %1732 = vmatpush1.msra.mxu0 0.0
    %1733 = vmatprep.subr.mxu0 0.0
    %1734 = vmatpush1.msra.mxu0 0.0
    %1735 = vmatprep.subr.mxu0 0.0
    %1736 = vmatpush1.msra.mxu0 0.0
    %1737 = vmatprep.subr.mxu0 0.0
    %1738 = vmatpush1.msra.mxu0 0.0
    %1739 = vmatprep.subr.mxu0 0.0
    %1740 = vmatpush1.msra.mxu0 0.0
    %1741 = vmatprep.subr.mxu0 0.0
    %1742 = vmatpush1.msra.mxu0 0.0
    %1743 = vmatprep.subr.mxu0 0.0
    %1744 = vmatpush1.msra.mxu0 0.0
    %1745 = vmatprep.subr.mxu0 0.0
    %1746 = vmatpush1.msra.mxu0 0.0
    %1747 = vmatprep.subr.mxu0 0.0
    %1748 = vmatpush1.msra.mxu0 0.0
    %1749 = vmatprep.subr.mxu0 0.0
    %1750 = vmatpush1.msra.mxu0 0.0
    %1751 = vmatprep.subr.mxu0 0.0
    %1752 = vmatpush1.msra.mxu0 0.0
    %1753 = vmatprep.subr.mxu0 0.0
    %1754 = vmatpush1.msra.mxu0 0.0
    %1755 = vmatprep.subr.mxu0 0.0
    %1756 = vmatpush1.msra.mxu0 0.0
    %1757 = vmatprep.subr.mxu0 0.0
    %1758 = vmatpush1.msra.mxu0 0.0
    %1759 = vmatprep.subr.mxu0 0.0
    %1760 = vmatpush1.msra.mxu0 0.0
    %1761 = vmatprep.subr.mxu0 0.0
    %1762 = vmatpush1.msra.mxu0 0.0
    %1763 = vmatprep.subr.mxu0 0.0
    %1764 = vmatpush1.msra.mxu0 0.0
    %1765 = vmatprep.subr.mxu0 0.0
    %1766 = vmatpush1.msra.mxu0 0.0
    %1767 = vmatprep.subr.mxu0 0.0
    %1768 = vmatpush1.msra.mxu0 0.0
    %1769 = vmatprep.subr.mxu0 0.0
    %1770 = vmatpush1.msra.mxu0 0.0
    %1771 = vmatprep.subr.mxu0 0.0
    %1772 = vmatpush1.msra.mxu0 0.0
    %1773 = vmatprep.subr.mxu0 0.0
    %1774 = vmatpush1.msra.mxu0 0.0
    %1775 = vmatprep.subr.mxu0 0.0
    %1776 = vmatpush1.msra.mxu0 0.0
    %1777 = vmatprep.subr.mxu0 0.0
    %1778 = vmatpush1.msra.mxu0 0.0
    %1779 = vmatprep.mubr.f32.mxu0 0.0
    %1780 = vmatmul.mubr.f32.gmra.mrb[0].mxu0 %v1567
    %v1781 = vpop.f32.mrb[0].mxu0
    %v1782 = vadd.f32 0.0, %v1781
    %v1783 = vpop.f32.mrb[0].mxu0
    %1784 = vdwg.mxu0
    %v1785 = vld [vmem:[#allocation13] sm:$0xff]
    %v1786 = vld [vmem:[#allocation13 + $0x8] sm:$0xff]
    %v1787 = vld [vmem:[#allocation13 + $0x10] sm:$0xff]
    %v1788 = vld [vmem:[#allocation13 + $0x18] sm:$0xff]
    %v1789 = vld [vmem:[#allocation13 + $0x20] sm:$0xff]
    %v1790 = vld [vmem:[#allocation13 + $0x28] sm:$0xff]
    %v1791 = vld [vmem:[#allocation13 + $0x30] sm:$0xff]
    %v1792 = vld [vmem:[#allocation13 + $0x38] sm:$0xff]
    %1794 = vrot.lane.b32.xlu0 %v1350, 64
    %v1795 = vpop.permute.xlu0 %1794
    %v1796 = vsel %vm502, %v1795, 0
    %1798 = vmatprep.subr.mxu0 0.0
    %1799 = vmatpush1.msra.mxu0 %v1785
    %1800 = vmatprep.subr.mxu0 0.0
    %1801 = vmatpush1.msra.mxu0 %v1786
    %1802 = vmatprep.subr.mxu0 0.0
    %1803 = vmatpush1.msra.mxu0 %v1787
    %1804 = vmatprep.subr.mxu0 0.0
    %1805 = vmatpush1.msra.mxu0 %v1788
    %1806 = vmatprep.subr.mxu0 0.0
    %1807 = vmatpush1.msra.mxu0 %v1789
    %1808 = vmatprep.subr.mxu0 0.0
    %1809 = vmatpush1.msra.mxu0 %v1790
    %1810 = vmatprep.subr.mxu0 0.0
    %1811 = vmatpush1.msra.mxu0 %v1791
    %1812 = vmatprep.subr.mxu0 0.0
    %1813 = vmatpush1.msra.mxu0 %v1792
    %1814 = vmatprep.subr.mxu0 0.0
    %1815 = vmatpush1.msra.mxu0 0.0
    %1816 = vmatprep.subr.mxu0 0.0
    %1817 = vmatpush1.msra.mxu0 0.0
    %1818 = vmatprep.subr.mxu0 0.0
    %1819 = vmatpush1.msra.mxu0 0.0
    %1820 = vmatprep.subr.mxu0 0.0
    %1821 = vmatpush1.msra.mxu0 0.0
    %1822 = vmatprep.subr.mxu0 0.0
    %1823 = vmatpush1.msra.mxu0 0.0
    %1824 = vmatprep.subr.mxu0 0.0
    %1825 = vmatpush1.msra.mxu0 0.0
    %1826 = vmatprep.subr.mxu0 0.0
    %1827 = vmatpush1.msra.mxu0 0.0
    %1828 = vmatprep.subr.mxu0 0.0
    %1829 = vmatpush1.msra.mxu0 0.0
    %1830 = vmatprep.subr.mxu0 0.0
    %1831 = vmatpush1.msra.mxu0 0.0
    %1832 = vmatprep.subr.mxu0 0.0
    %1833 = vmatpush1.msra.mxu0 0.0
    %1834 = vmatprep.subr.mxu0 0.0
    %1835 = vmatpush1.msra.mxu0 0.0
    %1836 = vmatprep.subr.mxu0 0.0
    %1837 = vmatpush1.msra.mxu0 0.0
    %1838 = vmatprep.subr.mxu0 0.0
    %1839 = vmatpush1.msra.mxu0 0.0
    %1840 = vmatprep.subr.mxu0 0.0
    %1841 = vmatpush1.msra.mxu0 0.0
    %1842 = vmatprep.subr.mxu0 0.0
    %1843 = vmatpush1.msra.mxu0 0.0
    %1844 = vmatprep.subr.mxu0 0.0
    %1845 = vmatpush1.msra.mxu0 0.0
    %1846 = vmatprep.subr.mxu0 0.0
    %1847 = vmatpush1.msra.mxu0 0.0
    %1848 = vmatprep.subr.mxu0 0.0
    %1849 = vmatpush1.msra.mxu0 0.0
    %1850 = vmatprep.subr.mxu0 0.0
    %1851 = vmatpush1.msra.mxu0 0.0
    %1852 = vmatprep.subr.mxu0 0.0
    %1853 = vmatpush1.msra.mxu0 0.0
    %1854 = vmatprep.subr.mxu0 0.0
    %1855 = vmatpush1.msra.mxu0 0.0
    %1856 = vmatprep.subr.mxu0 0.0
    %1857 = vmatpush1.msra.mxu0 0.0
    %1858 = vmatprep.subr.mxu0 0.0
    %1859 = vmatpush1.msra.mxu0 0.0
    %1860 = vmatprep.subr.mxu0 0.0
    %1861 = vmatpush1.msra.mxu0 0.0
    %1862 = vmatprep.mubr.f32.mxu0 0.0
    %1863 = vmatmul.mubr.f32.gmra.mrb[0].mxu0 %v1796
    %v1864 = vpop.f32.mrb[0].mxu0
    %v1865 = vadd.f32 %v1782, %v1864
    %v1866 = vpop.f32.mrb[0].mxu0
    %1867 = vdwg.mxu0
    %v1868 = vld [vmem:[%s9] sm:$0x1]
    %v1870 = vlaneseq
    %v1871 = vshrl.u32 %v1870, 7
    %v1872 = vsub.s32 0, %v1871
    %v1873 = vrot.slane %v1868, %v1872
    %v1875 = vadd.f32 %v1865, %v1873
    %v1876 = vxor.u32 %v1875, 2147483648
    %v1877 = vmul.f32 %v1876, 1.442695
    %v1878 = vpow.pop %v1877
    %v1879 = vadd.f32 %v1878, 1.0
    %v1880 = vrcp.pop %v1879
    %v1881 = vmul.f32 1.0, %v1880
    %v1882 = vtanh.pop %v1875
    %v1883 = vmul.f32 %v1881, %v1170
    %1885 = vrot.lane.b32.xlu0 %v1882, 64
    %v1886 = vpop.permute.xlu0 %1885
    %v1888 = vmul.f32 %v1881, %v1886
    %1890 = vrot.lane.b32.xlu0 %v1888, 32
    %v1891 = vpop.permute.xlu0 %1890
    %v1893 = vadd.f32 %v1883, %v1891
    %v1894 = vtanh.pop %v1893
    %1896 = vrot.lane.b32.xlu0 %v1894, 64
    %v1897 = vpop.permute.xlu0 %1896
    %v1899 = vmul.f32 %v1881, %v1897
    %v1900 = vld [vmem:[#allocation10] sm:$0xff]
    %v1901 = vld [vmem:[#allocation10 + $0x8] sm:$0xff]
    %v1902 = vld [vmem:[#allocation10 + $0x10] sm:$0xff]
    %v1903 = vld [vmem:[#allocation10 + $0x18] sm:$0xff]
    %v1904 = vld [vmem:[#allocation10 + $0x20] sm:$0xff]
    %v1905 = vld [vmem:[#allocation10 + $0x28] sm:$0xff]
    %v1906 = vld [vmem:[#allocation10 + $0x30] sm:$0xff]
    %v1907 = vld [vmem:[#allocation10 + $0x38] sm:$0xff]
    %v1908 = vld [vmem:[#allocation10 + $0x40] sm:$0xff]
    %v1909 = vld [vmem:[#allocation10 + $0x48] sm:$0xff]
    %v1910 = vld [vmem:[#allocation10 + $0x50] sm:$0xff]
    %v1911 = vld [vmem:[#allocation10 + $0x58] sm:$0xff]
    %v1912 = vld [vmem:[#allocation10 + $0x60] sm:$0xff]
    %v1913 = vld [vmem:[#allocation10 + $0x68] sm:$0xff]
    %v1914 = vld [vmem:[#allocation10 + $0x70] sm:$0xff]
    %v1915 = vld [vmem:[#allocation10 + $0x78] sm:$0xff]
    %1916 = vmatprep.subr.mxu0 %v1901
    %1917 = vmatpush1.msra.mxu0 %v1900
    %1918 = vmatprep.subr.mxu0 %v1903
    %1919 = vmatpush1.msra.mxu0 %v1902
    %1920 = vmatprep.subr.mxu0 %v1905
    %1921 = vmatpush1.msra.mxu0 %v1904
    %1922 = vmatprep.subr.mxu0 %v1907
    %1923 = vmatpush1.msra.mxu0 %v1906
    %1924 = vmatprep.subr.mxu0 %v1909
    %1925 = vmatpush1.msra.mxu0 %v1908
    %1926 = vmatprep.subr.mxu0 %v1911
    %1927 = vmatpush1.msra.mxu0 %v1910
    %1928 = vmatprep.subr.mxu0 %v1913
    %1929 = vmatpush1.msra.mxu0 %v1912
    %1930 = vmatprep.subr.mxu0 %v1915
    %1931 = vmatpush1.msra.mxu0 %v1914
    %1932 = vmatprep.subr.mxu0 0.0
    %1933 = vmatpush1.msra.mxu0 0.0
    %1934 = vmatprep.subr.mxu0 0.0
    %1935 = vmatpush1.msra.mxu0 0.0
    %1936 = vmatprep.subr.mxu0 0.0
    %1937 = vmatpush1.msra.mxu0 0.0
    %1938 = vmatprep.subr.mxu0 0.0
    %1939 = vmatpush1.msra.mxu0 0.0
    %1940 = vmatprep.subr.mxu0 0.0
    %1941 = vmatpush1.msra.mxu0 0.0
    %1942 = vmatprep.subr.mxu0 0.0
    %1943 = vmatpush1.msra.mxu0 0.0
    %1944 = vmatprep.subr.mxu0 0.0
    %1945 = vmatpush1.msra.mxu0 0.0
    %1946 = vmatprep.subr.mxu0 0.0
    %1947 = vmatpush1.msra.mxu0 0.0
    %1948 = vmatprep.subr.mxu0 0.0
    %1949 = vmatpush1.msra.mxu0 0.0
    %1950 = vmatprep.subr.mxu0 0.0
    %1951 = vmatpush1.msra.mxu0 0.0
    %1952 = vmatprep.subr.mxu0 0.0
    %1953 = vmatpush1.msra.mxu0 0.0
    %1954 = vmatprep.subr.mxu0 0.0
    %1955 = vmatpush1.msra.mxu0 0.0
    %1956 = vmatprep.subr.mxu0 0.0
    %1957 = vmatpush1.msra.mxu0 0.0
    %1958 = vmatprep.subr.mxu0 0.0
    %1959 = vmatpush1.msra.mxu0 0.0
    %1960 = vmatprep.subr.mxu0 0.0
    %1961 = vmatpush1.msra.mxu0 0.0
    %1962 = vmatprep.subr.mxu0 0.0
    %1963 = vmatpush1.msra.mxu0 0.0
    %1964 = vmatprep.subr.mxu0 0.0
    %1965 = vmatpush1.msra.mxu0 0.0
    %1966 = vmatprep.subr.mxu0 0.0
    %1967 = vmatpush1.msra.mxu0 0.0
    %1968 = vmatprep.subr.mxu0 0.0
    %1969 = vmatpush1.msra.mxu0 0.0
    %1970 = vmatprep.subr.mxu0 0.0
    %1971 = vmatpush1.msra.mxu0 0.0
    %1972 = vmatprep.subr.mxu0 0.0
    %1973 = vmatpush1.msra.mxu0 0.0
    %1974 = vmatprep.subr.mxu0 0.0
    %1975 = vmatpush1.msra.mxu0 0.0
    %1976 = vmatprep.subr.mxu0 0.0
    %1977 = vmatpush1.msra.mxu0 0.0
    %1978 = vmatprep.subr.mxu0 0.0
    %1979 = vmatpush1.msra.mxu0 0.0
    %1980 = vmatprep.mubr.f32.mxu0 0.0
    %1981 = vmatmul.mubr.f32.gmra.mrb[0].mxu0 %v1796
    %v1982 = vpop.f32.mrb[0].mxu0
    %v1983 = vadd.f32 0.0, %v1982
    %v1984 = vpop.f32.mrb[0].mxu0
    %v1985 = vadd.f32 0.0, %v1984
    %1986 = vdwg.mxu0
    %v1987 = vld [vmem:[#allocation8] sm:$0xff]
    %v1988 = vld [vmem:[#allocation8 + $0x8] sm:$0xff]
    %v1989 = vld [vmem:[#allocation8 + $0x10] sm:$0xff]
    %v1990 = vld [vmem:[#allocation8 + $0x18] sm:$0xff]
    %v1991 = vld [vmem:[#allocation8 + $0x20] sm:$0xff]
    %v1992 = vld [vmem:[#allocation8 + $0x28] sm:$0xff]
    %v1993 = vld [vmem:[#allocation8 + $0x30] sm:$0xff]
    %v1994 = vld [vmem:[#allocation8 + $0x38] sm:$0xff]
    %v1995 = vld [vmem:[#allocation8 + $0x40] sm:$0xff]
    %v1996 = vld [vmem:[#allocation8 + $0x48] sm:$0xff]
    %v1997 = vld [vmem:[#allocation8 + $0x50] sm:$0xff]
    %v1998 = vld [vmem:[#allocation8 + $0x58] sm:$0xff]
    %v1999 = vld [vmem:[#allocation8 + $0x60] sm:$0xff]
    %v2000 = vld [vmem:[#allocation8 + $0x68] sm:$0xff]
    %v2001 = vld [vmem:[#allocation8 + $0x70] sm:$0xff]
    %v2002 = vld [vmem:[#allocation8 + $0x78] sm:$0xff]
    %v2005 = vrot.slane %v1484, 2
    %v2006 = vrot.slane %v1485, 1
    %v2007 = vsel %vm739, %v2006, %v2005
    %2008 = vrot.lane.b32.xlu0 %v2007, 64
    %v2009 = vpop.permute.xlu0 %2008
    %v2010 = vsel %vm502, %v2009, 0
    %2012 = vmatprep.subr.mxu0 %v1988
    %2013 = vmatpush1.msra.mxu0 %v1987
    %2014 = vmatprep.subr.mxu0 %v1990
    %2015 = vmatpush1.msra.mxu0 %v1989
    %2016 = vmatprep.subr.mxu0 %v1992
    %2017 = vmatpush1.msra.mxu0 %v1991
    %2018 = vmatprep.subr.mxu0 %v1994
    %2019 = vmatpush1.msra.mxu0 %v1993
    %2020 = vmatprep.subr.mxu0 %v1996
    %2021 = vmatpush1.msra.mxu0 %v1995
    %2022 = vmatprep.subr.mxu0 %v1998
    %2023 = vmatpush1.msra.mxu0 %v1997
    %2024 = vmatprep.subr.mxu0 %v2000
    %2025 = vmatpush1.msra.mxu0 %v1999
    %2026 = vmatprep.subr.mxu0 %v2002
    %2027 = vmatpush1.msra.mxu0 %v2001
    %2028 = vmatprep.subr.mxu0 0.0
    %2029 = vmatpush1.msra.mxu0 0.0
    %2030 = vmatprep.subr.mxu0 0.0
    %2031 = vmatpush1.msra.mxu0 0.0
    %2032 = vmatprep.subr.mxu0 0.0
    %2033 = vmatpush1.msra.mxu0 0.0
    %2034 = vmatprep.subr.mxu0 0.0
    %2035 = vmatpush1.msra.mxu0 0.0
    %2036 = vmatprep.subr.mxu0 0.0
    %2037 = vmatpush1.msra.mxu0 0.0
    %2038 = vmatprep.subr.mxu0 0.0
    %2039 = vmatpush1.msra.mxu0 0.0
    %2040 = vmatprep.subr.mxu0 0.0
    %2041 = vmatpush1.msra.mxu0 0.0
    %2042 = vmatprep.subr.mxu0 0.0
    %2043 = vmatpush1.msra.mxu0 0.0
    %2044 = vmatprep.subr.mxu0 0.0
    %2045 = vmatpush1.msra.mxu0 0.0
    %2046 = vmatprep.subr.mxu0 0.0
    %2047 = vmatpush1.msra.mxu0 0.0
    %2048 = vmatprep.subr.mxu0 0.0
    %2049 = vmatpush1.msra.mxu0 0.0
    %2050 = vmatprep.subr.mxu0 0.0
    %2051 = vmatpush1.msra.mxu0 0.0
    %2052 = vmatprep.subr.mxu0 0.0
    %2053 = vmatpush1.msra.mxu0 0.0
    %2054 = vmatprep.subr.mxu0 0.0
    %2055 = vmatpush1.msra.mxu0 0.0
    %2056 = vmatprep.subr.mxu0 0.0
    %2057 = vmatpush1.msra.mxu0 0.0
    %2058 = vmatprep.subr.mxu0 0.0
    %2059 = vmatpush1.msra.mxu0 0.0
    %2060 = vmatprep.subr.mxu0 0.0
    %2061 = vmatpush1.msra.mxu0 0.0
    %2062 = vmatprep.subr.mxu0 0.0
    %2063 = vmatpush1.msra.mxu0 0.0
    %2064 = vmatprep.subr.mxu0 0.0
    %2065 = vmatpush1.msra.mxu0 0.0
    %2066 = vmatprep.subr.mxu0 0.0
    %2067 = vmatpush1.msra.mxu0 0.0
    %2068 = vmatprep.subr.mxu0 0.0
    %2069 = vmatpush1.msra.mxu0 0.0
    %2070 = vmatprep.subr.mxu0 0.0
    %2071 = vmatpush1.msra.mxu0 0.0
    %2072 = vmatprep.subr.mxu0 0.0
    %2073 = vmatpush1.msra.mxu0 0.0
    %2074 = vmatprep.subr.mxu0 0.0
    %2075 = vmatpush1.msra.mxu0 0.0
    %2076 = vmatprep.mubr.f32.mxu0 0.0
    %2077 = vmatmul.mubr.f32.gmra.mrb[0].mxu0 %v2010
    %v2078 = vpop.f32.mrb[0].mxu0
    %v2079 = vadd.f32 %v1983, %v2078
    %v2080 = vpop.f32.mrb[0].mxu0
    %v2081 = vadd.f32 %v1985, %v2080
    %2082 = vdwg.mxu0
    %v2083 = vld [vmem:[#allocation11] sm:$0x3]
    %v2085 = vlaneseq
    %v2086 = vshrl.u32 %v2085, 7
    %v2087 = vsub.s32 0, %v2086
    %v2088 = vrot.slane %v2083, %v2087
    %v2089 = vlaneseq
    %v2090 = vshrl.u32 %v2089, 7
    %v2091 = vsub.s32 1, %v2090
    %v2092 = vrot.slane %v2083, %v2091
    %v2095 = vadd.f32 %v2079, %v2088
    %v2096 = vadd.f32 %v2081, %v2092
    %v2097 = vxor.u32 %v2095, 2147483648
    %v2098 = vmul.f32 %v2097, 1.442695
    %v2099 = vpow.pop %v2098
    %v2100 = vadd.f32 %v2099, 1.0
    %v2101 = vrcp.pop %v2100
    %v2102 = vmul.f32 1.0, %v2101
    %v2103 = vtanh.pop %v2096
    %v2104 = vxor.u32 %v2096, 2147483648
    %v2105 = vmul.f32 %v2104, 1.442695
    %v2106 = vpow.pop %v2105
    %v2107 = vadd.f32 %v2106, 1.0
    %v2108 = vrcp.pop %v2107
    %v2109 = vmul.f32 1.0, %v2108
    %v2110 = vmul.f32 %v2102, %v1348
    %v2111 = vmul.f32 %v2102, %v2103
    %2113 = vrot.lane.b32.xlu0 %v2111, 64
    %v2114 = vpop.permute.xlu0 %2113
    %v2116 = vadd.f32 %v2110, %v2114
    %v2117 = vtanh.pop %v2116
    %v2118 = vmul.f32 %v2109, %v2117
    %v2119 = vld [vmem:[#allocation7] sm:$0xff]
    %v2120 = vld [vmem:[#allocation7 + $0x8] sm:$0xff]
    %v2121 = vld [vmem:[#allocation7 + $0x10] sm:$0xff]
    %v2122 = vld [vmem:[#allocation7 + $0x18] sm:$0xff]
    %v2123 = vld [vmem:[#allocation7 + $0x20] sm:$0xff]
    %v2124 = vld [vmem:[#allocation7 + $0x28] sm:$0xff]
    %v2125 = vld [vmem:[#allocation7 + $0x30] sm:$0xff]
    %v2126 = vld [vmem:[#allocation7 + $0x38] sm:$0xff]
    %v2127 = vld [vmem:[#allocation7 + $0x40] sm:$0xff]
    %v2128 = vld [vmem:[#allocation7 + $0x48] sm:$0xff]
    %v2129 = vld [vmem:[#allocation7 + $0x50] sm:$0xff]
    %v2130 = vld [vmem:[#allocation7 + $0x58] sm:$0xff]
    %v2131 = vld [vmem:[#allocation7 + $0x60] sm:$0xff]
    %v2132 = vld [vmem:[#allocation7 + $0x68] sm:$0xff]
    %v2133 = vld [vmem:[#allocation7 + $0x70] sm:$0xff]
    %v2134 = vld [vmem:[#allocation7 + $0x78] sm:$0xff]
    %2135 = vmatprep.subr.mxu0 %v2120
    %2136 = vmatpush1.msra.mxu0 %v2119
    %2137 = vmatprep.subr.mxu0 %v2122
    %2138 = vmatpush1.msra.mxu0 %v2121
    %2139 = vmatprep.subr.mxu0 %v2124
    %2140 = vmatpush1.msra.mxu0 %v2123
    %2141 = vmatprep.subr.mxu0 %v2126
    %2142 = vmatpush1.msra.mxu0 %v2125
    %2143 = vmatprep.subr.mxu0 %v2128
    %2144 = vmatpush1.msra.mxu0 %v2127
    %2145 = vmatprep.subr.mxu0 %v2130
    %2146 = vmatpush1.msra.mxu0 %v2129
    %2147 = vmatprep.subr.mxu0 %v2132
    %2148 = vmatpush1.msra.mxu0 %v2131
    %2149 = vmatprep.subr.mxu0 %v2134
    %2150 = vmatpush1.msra.mxu0 %v2133
    %2151 = vmatprep.subr.mxu0 0.0
    %2152 = vmatpush1.msra.mxu0 0.0
    %2153 = vmatprep.subr.mxu0 0.0
    %2154 = vmatpush1.msra.mxu0 0.0
    %2155 = vmatprep.subr.mxu0 0.0
    %2156 = vmatpush1.msra.mxu0 0.0
    %2157 = vmatprep.subr.mxu0 0.0
    %2158 = vmatpush1.msra.mxu0 0.0
    %2159 = vmatprep.subr.mxu0 0.0
    %2160 = vmatpush1.msra.mxu0 0.0
    %2161 = vmatprep.subr.mxu0 0.0
    %2162 = vmatpush1.msra.mxu0 0.0
    %2163 = vmatprep.subr.mxu0 0.0
    %2164 = vmatpush1.msra.mxu0 0.0
    %2165 = vmatprep.subr.mxu0 0.0
    %2166 = vmatpush1.msra.mxu0 0.0
    %2167 = vmatprep.subr.mxu0 0.0
    %2168 = vmatpush1.msra.mxu0 0.0
    %2169 = vmatprep.subr.mxu0 0.0
    %2170 = vmatpush1.msra.mxu0 0.0
    %2171 = vmatprep.subr.mxu0 0.0
    %2172 = vmatpush1.msra.mxu0 0.0
    %2173 = vmatprep.subr.mxu0 0.0
    %2174 = vmatpush1.msra.mxu0 0.0
    %2175 = vmatprep.subr.mxu0 0.0
    %2176 = vmatpush1.msra.mxu0 0.0
    %2177 = vmatprep.subr.mxu0 0.0
    %2178 = vmatpush1.msra.mxu0 0.0
    %2179 = vmatprep.subr.mxu0 0.0
    %2180 = vmatpush1.msra.mxu0 0.0
    %2181 = vmatprep.subr.mxu0 0.0
    %2182 = vmatpush1.msra.mxu0 0.0
    %2183 = vmatprep.subr.mxu0 0.0
    %2184 = vmatpush1.msra.mxu0 0.0
    %2185 = vmatprep.subr.mxu0 0.0
    %2186 = vmatpush1.msra.mxu0 0.0
    %2187 = vmatprep.subr.mxu0 0.0
    %2188 = vmatpush1.msra.mxu0 0.0
    %2189 = vmatprep.subr.mxu0 0.0
    %2190 = vmatpush1.msra.mxu0 0.0
    %2191 = vmatprep.subr.mxu0 0.0
    %2192 = vmatpush1.msra.mxu0 0.0
    %2193 = vmatprep.subr.mxu0 0.0
    %2194 = vmatpush1.msra.mxu0 0.0
    %2195 = vmatprep.subr.mxu0 0.0
    %2196 = vmatpush1.msra.mxu0 0.0
    %2197 = vmatprep.subr.mxu0 0.0
    %2198 = vmatpush1.msra.mxu0 0.0
    %2199 = vmatprep.mubr.f32.mxu0 0.0
    %2200 = vmatmul.mubr.f32.gmra.mrb[0].mxu0 %v2010
    %v2201 = vpop.f32.mrb[0].mxu0
    %v2202 = vadd.f32 0.0, %v2201
    %v2203 = vpop.f32.mrb[0].mxu0
    %v2204 = vadd.f32 0.0, %v2203
    %2205 = vdwg.mxu0
    %v2208 = vrot.slane %v2202, 5
    %v2209 = vrot.slane %v2204, 5
    %v2210 = vrot.slane %v2202, 6
    %v2211 = vrot.slane %v2204, 6
    %v2216 = vadd.f32 %v476, %v2208
    %v2217 = vadd.f32 %v478, %v2209
    %v2218 = vadd.f32 %v482, %v2210
    %v2219 = vadd.f32 %v484, %v2211
    %v2220 = vxor.u32 %v2216, 2147483648
    %v2221 = vxor.u32 %v2218, 2147483648
    %v2222 = vmul.f32 %v2220, 1.442695
    %v2223 = vpow.pop %v2222
    %v2224 = vmul.f32 %v2221, 1.442695
    %v2225 = vpow.pop %v2224
    %v2226 = vadd.f32 %v2223, 1.0
    %v2227 = vadd.f32 %v2225, 1.0
    %v2228 = vrcp.pop %v2226
    %v2229 = vmul.f32 1.0, %v2228
    %v2230 = vrcp.pop %v2227
    %v2231 = vmul.f32 1.0, %v2230
    %v2232 = vtanh.pop %v2217
    %v2233 = vtanh.pop %v2219
    %v2234 = vxor.u32 %v2217, 2147483648
    %v2235 = vxor.u32 %v2219, 2147483648
    %v2236 = vmul.f32 %v2234, 1.442695
    %v2237 = vpow.pop %v2236
    %v2238 = vmul.f32 %v2235, 1.442695
    %v2239 = vpow.pop %v2238
    %v2240 = vadd.f32 %v2237, 1.0
    %v2241 = vadd.f32 %v2239, 1.0
    %v2242 = vrcp.pop %v2240
    %v2243 = vmul.f32 1.0, %v2242
    %v2244 = vrcp.pop %v2241
    %v2245 = vmul.f32 1.0, %v2244
    %v2248 = vrot.slane %v1480, 7
    %v2249 = vrot.slane %v1481, 7
    %v2252 = vmul.f32 %v2229, %v2248
    %v2253 = vmul.f32 %v2231, %v2249
    %v2254 = vmul.f32 %v2229, %v2232
    %v2255 = vmul.f32 %v2231, %v2233
    %2258 = vrot.lane.b32.xlu0 %v2254, 64
    %v2259 = vpop.permute.xlu0 %2258
    %2260 = vrot.lane.b32.xlu0 %v2255, 64
    %v2261 = vpop.permute.xlu0 %2260
    %v2264 = vadd.f32 %v2252, %v2259
    %v2265 = vadd.f32 %v2253, %v2261
    %v2266 = vtanh.pop %v2264
    %v2267 = vtanh.pop %v2265
    %v2268 = vmul.f32 %v2243, %v2266
    %v2269 = vmul.f32 %v2245, %v2267
    %v2270 = vld [vmem:[#allocation16] sm:$0xff]
    %v2271 = vld [vmem:[#allocation16 + $0x8] sm:$0xff]
    %v2272 = vld [vmem:[#allocation16 + $0x10] sm:$0xff]
    %v2273 = vld [vmem:[#allocation16 + $0x18] sm:$0xff]
    %2274 = vrot.lane.b32.xlu0 %v1670, 32
    %v2275 = vpop.permute.xlu0 %2274
    %v2276 = vsel %vm989, %v2275, 0
    %2278 = vmatprep.subr.mxu0 0.0
    %2279 = vmatpush1.msra.mxu0 %v2270
    %2280 = vmatprep.subr.mxu0 0.0
    %2281 = vmatpush1.msra.mxu0 %v2271
    %2282 = vmatprep.subr.mxu0 0.0
    %2283 = vmatpush1.msra.mxu0 %v2272
    %2284 = vmatprep.subr.mxu0 0.0
    %2285 = vmatpush1.msra.mxu0 %v2273
    %2286 = vmatprep.subr.mxu0 0.0
    %2287 = vmatpush1.msra.mxu0 0.0
    %2288 = vmatprep.subr.mxu0 0.0
    %2289 = vmatpush1.msra.mxu0 0.0
    %2290 = vmatprep.subr.mxu0 0.0
    %2291 = vmatpush1.msra.mxu0 0.0
    %2292 = vmatprep.subr.mxu0 0.0
    %2293 = vmatpush1.msra.mxu0 0.0
    %2294 = vmatprep.subr.mxu0 0.0
    %2295 = vmatpush1.msra.mxu0 0.0
    %2296 = vmatprep.subr.mxu0 0.0
    %2297 = vmatpush1.msra.mxu0 0.0
    %2298 = vmatprep.subr.mxu0 0.0
    %2299 = vmatpush1.msra.mxu0 0.0
    %2300 = vmatprep.subr.mxu0 0.0
    %2301 = vmatpush1.msra.mxu0 0.0
    %2302 = vmatprep.subr.mxu0 0.0
    %2303 = vmatpush1.msra.mxu0 0.0
    %2304 = vmatprep.subr.mxu0 0.0
    %2305 = vmatpush1.msra.mxu0 0.0
    %2306 = vmatprep.subr.mxu0 0.0
    %2307 = vmatpush1.msra.mxu0 0.0
    %2308 = vmatprep.subr.mxu0 0.0
    %2309 = vmatpush1.msra.mxu0 0.0
    %2310 = vmatprep.subr.mxu0 0.0
    %2311 = vmatpush1.msra.mxu0 0.0
    %2312 = vmatprep.subr.mxu0 0.0
    %2313 = vmatpush1.msra.mxu0 0.0
    %2314 = vmatprep.subr.mxu0 0.0
    %2315 = vmatpush1.msra.mxu0 0.0
    %2316 = vmatprep.subr.mxu0 0.0
    %2317 = vmatpush1.msra.mxu0 0.0
    %2318 = vmatprep.subr.mxu0 0.0
    %2319 = vmatpush1.msra.mxu0 0.0
    %2320 = vmatprep.subr.mxu0 0.0
    %2321 = vmatpush1.msra.mxu0 0.0
    %2322 = vmatprep.subr.mxu0 0.0
    %2323 = vmatpush1.msra.mxu0 0.0
    %2324 = vmatprep.subr.mxu0 0.0
    %2325 = vmatpush1.msra.mxu0 0.0
    %2326 = vmatprep.subr.mxu0 0.0
    %2327 = vmatpush1.msra.mxu0 0.0
    %2328 = vmatprep.subr.mxu0 0.0
    %2329 = vmatpush1.msra.mxu0 0.0
    %2330 = vmatprep.subr.mxu0 0.0
    %2331 = vmatpush1.msra.mxu0 0.0
    %2332 = vmatprep.subr.mxu0 0.0
    %2333 = vmatpush1.msra.mxu0 0.0
    %2334 = vmatprep.subr.mxu0 0.0
    %2335 = vmatpush1.msra.mxu0 0.0
    %2336 = vmatprep.subr.mxu0 0.0
    %2337 = vmatpush1.msra.mxu0 0.0
    %2338 = vmatprep.subr.mxu0 0.0
    %2339 = vmatpush1.msra.mxu0 0.0
    %2340 = vmatprep.subr.mxu0 0.0
    %2341 = vmatpush1.msra.mxu0 0.0
    %2342 = vmatprep.mubr.f32.mxu0 0.0
    %2343 = vmatmul.mubr.f32.gmra.mrb[0].mxu0 %v2276
    %v2344 = vpop.f32.mrb[0].mxu0
    %v2345 = vadd.f32 0.0, %v2344
    %v2346 = vpop.f32.mrb[0].mxu0
    %2347 = vdwg.mxu0
    %v2348 = vld [vmem:[#allocation14] sm:$0xff]
    %v2349 = vld [vmem:[#allocation14 + $0x8] sm:$0xff]
    %v2350 = vld [vmem:[#allocation14 + $0x10] sm:$0xff]
    %v2351 = vld [vmem:[#allocation14 + $0x18] sm:$0xff]
    %2353 = vrot.lane.b32.xlu0 %v1899, 32
    %v2354 = vpop.permute.xlu0 %2353
    %v2355 = vsel %vm989, %v2354, 0
    %2357 = vmatprep.subr.mxu0 0.0
    %2358 = vmatpush1.msra.mxu0 %v2348
    %2359 = vmatprep.subr.mxu0 0.0
    %2360 = vmatpush1.msra.mxu0 %v2349
    %2361 = vmatprep.subr.mxu0 0.0
    %2362 = vmatpush1.msra.mxu0 %v2350
    %2363 = vmatprep.subr.mxu0 0.0
    %2364 = vmatpush1.msra.mxu0 %v2351
    %2365 = vmatprep.subr.mxu0 0.0
    %2366 = vmatpush1.msra.mxu0 0.0
    %2367 = vmatprep.subr.mxu0 0.0
    %2368 = vmatpush1.msra.mxu0 0.0
    %2369 = vmatprep.subr.mxu0 0.0
    %2370 = vmatpush1.msra.mxu0 0.0
    %2371 = vmatprep.subr.mxu0 0.0
    %2372 = vmatpush1.msra.mxu0 0.0
    %2373 = vmatprep.subr.mxu0 0.0
    %2374 = vmatpush1.msra.mxu0 0.0
    %2375 = vmatprep.subr.mxu0 0.0
    %2376 = vmatpush1.msra.mxu0 0.0
    %2377 = vmatprep.subr.mxu0 0.0
    %2378 = vmatpush1.msra.mxu0 0.0
    %2379 = vmatprep.subr.mxu0 0.0
    %2380 = vmatpush1.msra.mxu0 0.0
    %2381 = vmatprep.subr.mxu0 0.0
    %2382 = vmatpush1.msra.mxu0 0.0
    %2383 = vmatprep.subr.mxu0 0.0
    %2384 = vmatpush1.msra.mxu0 0.0
    %2385 = vmatprep.subr.mxu0 0.0
    %2386 = vmatpush1.msra.mxu0 0.0
    %2387 = vmatprep.subr.mxu0 0.0
    %2388 = vmatpush1.msra.mxu0 0.0
    %2389 = vmatprep.subr.mxu0 0.0
    %2390 = vmatpush1.msra.mxu0 0.0
    %2391 = vmatprep.subr.mxu0 0.0
    %2392 = vmatpush1.msra.mxu0 0.0
    %2393 = vmatprep.subr.mxu0 0.0
    %2394 = vmatpush1.msra.mxu0 0.0
    %2395 = vmatprep.subr.mxu0 0.0
    %2396 = vmatpush1.msra.mxu0 0.0
    %2397 = vmatprep.subr.mxu0 0.0
    %2398 = vmatpush1.msra.mxu0 0.0
    %2399 = vmatprep.subr.mxu0 0.0
    %2400 = vmatpush1.msra.mxu0 0.0
    %2401 = vmatprep.subr.mxu0 0.0
    %2402 = vmatpush1.msra.mxu0 0.0
    %2403 = vmatprep.subr.mxu0 0.0
    %2404 = vmatpush1.msra.mxu0 0.0
    %2405 = vmatprep.subr.mxu0 0.0
    %2406 = vmatpush1.msra.mxu0 0.0
    %2407 = vmatprep.subr.mxu0 0.0
    %2408 = vmatpush1.msra.mxu0 0.0
    %2409 = vmatprep.subr.mxu0 0.0
    %2410 = vmatpush1.msra.mxu0 0.0
    %2411 = vmatprep.subr.mxu0 0.0
    %2412 = vmatpush1.msra.mxu0 0.0
    %2413 = vmatprep.subr.mxu0 0.0
    %2414 = vmatpush1.msra.mxu0 0.0
    %2415 = vmatprep.subr.mxu0 0.0
    %2416 = vmatpush1.msra.mxu0 0.0
    %2417 = vmatprep.subr.mxu0 0.0
    %2418 = vmatpush1.msra.mxu0 0.0
    %2419 = vmatprep.subr.mxu0 0.0
    %2420 = vmatpush1.msra.mxu0 0.0
    %2421 = vmatprep.mubr.f32.mxu0 0.0
    %2422 = vmatmul.mubr.f32.gmra.mrb[0].mxu0 %v2355
    %v2423 = vpop.f32.mrb[0].mxu0
    %v2424 = vadd.f32 %v2345, %v2423
    %v2425 = vpop.f32.mrb[0].mxu0
    %2426 = vdwg.mxu0
    %v2427 = vld [vmem:[%s12] sm:$0x1]
    %v2429 = vlaneseq
    %v2430 = vshrl.u32 %v2429, 7
    %v2431 = vsub.s32 0, %v2430
    %v2432 = vrot.slane %v2427, %v2431
    %v2434 = vadd.f32 %v2424, %v2432
    %v2435 = vxor.u32 %v2434, 2147483648
    %v2436 = vmul.f32 %v2435, 1.442695
    %v2437 = vpow.pop %v2436
    %v2438 = vadd.f32 %v2437, 1.0
    %v2439 = vrcp.pop %v2438
    %v2440 = vmul.f32 1.0, %v2439
    %v2441 = vtanh.pop %v2434
    %v2442 = vmul.f32 %v2440, %v1664
    %2444 = vrot.lane.b32.xlu0 %v2441, 64
    %v2445 = vpop.permute.xlu0 %2444
    %v2447 = vmul.f32 %v2440, %v2445
    %2449 = vrot.lane.b32.xlu0 %v2447, 32
    %v2450 = vpop.permute.xlu0 %2449
    %v2452 = vadd.f32 %v2442, %v2450
    %v2453 = vtanh.pop %v2452
    %2455 = vrot.lane.b32.xlu0 %v2453, 64
    %v2456 = vpop.permute.xlu0 %2455
    %v2458 = vmul.f32 %v2440, %v2456
    %v2461 = vunpack.c.l.s4 1966171168
    %v2462 = vunpack.c.0.s8 %v2461
    %v2463 = vlaneseq
    %v2464 = vshrl.u32 %v2463, 7
    %v2465 = vsub.s32 %v2462, %v2464
    %v2466 = vrot.slane %v2458, %v2465
    %v2467 = vcombine.high %v2466, %v2466
    %v2469 = vunpack.c.l.s4 1966171168
    %v2470 = vunpack.c.0.s8 %v2469
    %v2471 = vlaneseq
    %v2472 = vshrl.u32 %v2471, 7
    %v2473 = vsub.s32 %v2470, %v2472
    %v2474 = vrot.slane %v2466, %v2473
    %v2476 = vunpack.c.l.s4 1966171168
    %v2477 = vunpack.c.0.s8 %v2476
    %v2478 = vlaneseq
    %v2479 = vshrl.u32 %v2478, 7
    %v2480 = vsub.s32 %v2477, %v2479
    %v2481 = vrot.slane %v2467, %v2480
    %v2482 = vlaneseq
    %v2483 = vshrl.u32 %v2482, 7
    %v2484 = vsub.s32 0, %v2483
    %v2485 = vrot.slane %v2474, %v2484
    %v2486 = vlaneseq
    %v2487 = vshrl.u32 %v2486, 7
    %v2488 = vsub.s32 0, %v2487
    %v2489 = vrot.slane %v2481, %v2488
    %2490 = vrot.lane.b32.xlu0 %v2485, 32
    %v2491 = vpop.permute.xlu0 %2490
    %2492 = vrot.lane.b32.xlu0 %v2489, 32
    %v2493 = vpop.permute.xlu0 %2492
    %2496 = vst.msk [vmem:[#allocation2 + $0x1] sm:$0x1] %vm1708, %v2491
    %2497 = vst.msk [vmem:[#allocation2 + $0x9] sm:$0x1] %vm1708, %v2493
    %v2498 = vld [vmem:[%s8] sm:$0xff]
    %v2499 = vld [vmem:[%s8 + $0x8] sm:$0xff]
    %v2500 = vld [vmem:[%s8 + $0x10] sm:$0xff]
    %v2501 = vld [vmem:[%s8 + $0x18] sm:$0xff]
    %2502 = vmatprep.subr.mxu0 0.0
    %2503 = vmatpush1.msra.mxu0 %v2498
    %2504 = vmatprep.subr.mxu0 0.0
    %2505 = vmatpush1.msra.mxu0 %v2499
    %2506 = vmatprep.subr.mxu0 0.0
    %2507 = vmatpush1.msra.mxu0 %v2500
    %2508 = vmatprep.subr.mxu0 0.0
    %2509 = vmatpush1.msra.mxu0 %v2501
    %2510 = vmatprep.subr.mxu0 0.0
    %2511 = vmatpush1.msra.mxu0 0.0
    %2512 = vmatprep.subr.mxu0 0.0
    %2513 = vmatpush1.msra.mxu0 0.0
    %2514 = vmatprep.subr.mxu0 0.0
    %2515 = vmatpush1.msra.mxu0 0.0
    %2516 = vmatprep.subr.mxu0 0.0
    %2517 = vmatpush1.msra.mxu0 0.0
    %2518 = vmatprep.subr.mxu0 0.0
    %2519 = vmatpush1.msra.mxu0 0.0
    %2520 = vmatprep.subr.mxu0 0.0
    %2521 = vmatpush1.msra.mxu0 0.0
    %2522 = vmatprep.subr.mxu0 0.0
    %2523 = vmatpush1.msra.mxu0 0.0
    %2524 = vmatprep.subr.mxu0 0.0
    %2525 = vmatpush1.msra.mxu0 0.0
    %2526 = vmatprep.subr.mxu0 0.0
    %2527 = vmatpush1.msra.mxu0 0.0
    %2528 = vmatprep.subr.mxu0 0.0
    %2529 = vmatpush1.msra.mxu0 0.0
    %2530 = vmatprep.subr.mxu0 0.0
    %2531 = vmatpush1.msra.mxu0 0.0
    %2532 = vmatprep.subr.mxu0 0.0
    %2533 = vmatpush1.msra.mxu0 0.0
    %2534 = vmatprep.subr.mxu0 0.0
    %2535 = vmatpush1.msra.mxu0 0.0
    %2536 = vmatprep.subr.mxu0 0.0
    %2537 = vmatpush1.msra.mxu0 0.0
    %2538 = vmatprep.subr.mxu0 0.0
    %2539 = vmatpush1.msra.mxu0 0.0
    %2540 = vmatprep.subr.mxu0 0.0
    %2541 = vmatpush1.msra.mxu0 0.0
    %2542 = vmatprep.subr.mxu0 0.0
    %2543 = vmatpush1.msra.mxu0 0.0
    %2544 = vmatprep.subr.mxu0 0.0
    %2545 = vmatpush1.msra.mxu0 0.0
    %2546 = vmatprep.subr.mxu0 0.0
    %2547 = vmatpush1.msra.mxu0 0.0
    %2548 = vmatprep.subr.mxu0 0.0
    %2549 = vmatpush1.msra.mxu0 0.0
    %2550 = vmatprep.subr.mxu0 0.0
    %2551 = vmatpush1.msra.mxu0 0.0
    %2552 = vmatprep.subr.mxu0 0.0
    %2553 = vmatpush1.msra.mxu0 0.0
    %2554 = vmatprep.subr.mxu0 0.0
    %2555 = vmatpush1.msra.mxu0 0.0
    %2556 = vmatprep.subr.mxu0 0.0
    %2557 = vmatpush1.msra.mxu0 0.0
    %2558 = vmatprep.subr.mxu0 0.0
    %2559 = vmatpush1.msra.mxu0 0.0
    %2560 = vmatprep.subr.mxu0 0.0
    %2561 = vmatpush1.msra.mxu0 0.0
    %2562 = vmatprep.subr.mxu0 0.0
    %2563 = vmatpush1.msra.mxu0 0.0
    %2564 = vmatprep.subr.mxu0 0.0
    %2565 = vmatpush1.msra.mxu0 0.0
    %2566 = vmatprep.mubr.f32.mxu0 0.0
    %2567 = vmatmul.mubr.f32.gmra.mrb[0].mxu0 %v2355
    %v2568 = vpop.f32.mrb[0].mxu0
    %v2569 = vadd.f32 0.0, %v2568
    %v2570 = vpop.f32.mrb[0].mxu0
    %2571 = vdwg.mxu0
    %v2572 = vld [vmem:[#allocation13] sm:$0xff]
    %v2573 = vld [vmem:[#allocation13 + $0x8] sm:$0xff]
    %v2574 = vld [vmem:[#allocation13 + $0x10] sm:$0xff]
    %v2575 = vld [vmem:[#allocation13 + $0x18] sm:$0xff]
    %v2576 = vld [vmem:[#allocation13 + $0x20] sm:$0xff]
    %v2577 = vld [vmem:[#allocation13 + $0x28] sm:$0xff]
    %v2578 = vld [vmem:[#allocation13 + $0x30] sm:$0xff]
    %v2579 = vld [vmem:[#allocation13 + $0x38] sm:$0xff]
    %2581 = vrot.lane.b32.xlu0 %v2118, 64
    %v2582 = vpop.permute.xlu0 %2581
    %v2583 = vsel %vm502, %v2582, 0
    %2585 = vmatprep.subr.mxu0 0.0
    %2586 = vmatpush1.msra.mxu0 %v2572
    %2587 = vmatprep.subr.mxu0 0.0
    %2588 = vmatpush1.msra.mxu0 %v2573
    %2589 = vmatprep.subr.mxu0 0.0
    %2590 = vmatpush1.msra.mxu0 %v2574
    %2591 = vmatprep.subr.mxu0 0.0
    %2592 = vmatpush1.msra.mxu0 %v2575
    %2593 = vmatprep.subr.mxu0 0.0
    %2594 = vmatpush1.msra.mxu0 %v2576
    %2595 = vmatprep.subr.mxu0 0.0
    %2596 = vmatpush1.msra.mxu0 %v2577
    %2597 = vmatprep.subr.mxu0 0.0
    %2598 = vmatpush1.msra.mxu0 %v2578
    %2599 = vmatprep.subr.mxu0 0.0
    %2600 = vmatpush1.msra.mxu0 %v2579
    %2601 = vmatprep.subr.mxu0 0.0
    %2602 = vmatpush1.msra.mxu0 0.0
    %2603 = vmatprep.subr.mxu0 0.0
    %2604 = vmatpush1.msra.mxu0 0.0
    %2605 = vmatprep.subr.mxu0 0.0
    %2606 = vmatpush1.msra.mxu0 0.0
    %2607 = vmatprep.subr.mxu0 0.0
    %2608 = vmatpush1.msra.mxu0 0.0
    %2609 = vmatprep.subr.mxu0 0.0
    %2610 = vmatpush1.msra.mxu0 0.0
    %2611 = vmatprep.subr.mxu0 0.0
    %2612 = vmatpush1.msra.mxu0 0.0
    %2613 = vmatprep.subr.mxu0 0.0
    %2614 = vmatpush1.msra.mxu0 0.0
    %2615 = vmatprep.subr.mxu0 0.0
    %2616 = vmatpush1.msra.mxu0 0.0
    %2617 = vmatprep.subr.mxu0 0.0
    %2618 = vmatpush1.msra.mxu0 0.0
    %2619 = vmatprep.subr.mxu0 0.0
    %2620 = vmatpush1.msra.mxu0 0.0
    %2621 = vmatprep.subr.mxu0 0.0
    %2622 = vmatpush1.msra.mxu0 0.0
    %2623 = vmatprep.subr.mxu0 0.0
    %2624 = vmatpush1.msra.mxu0 0.0
    %2625 = vmatprep.subr.mxu0 0.0
    %2626 = vmatpush1.msra.mxu0 0.0
    %2627 = vmatprep.subr.mxu0 0.0
    %2628 = vmatpush1.msra.mxu0 0.0
    %2629 = vmatprep.subr.mxu0 0.0
    %2630 = vmatpush1.msra.mxu0 0.0
    %2631 = vmatprep.subr.mxu0 0.0
    %2632 = vmatpush1.msra.mxu0 0.0
    %2633 = vmatprep.subr.mxu0 0.0
    %2634 = vmatpush1.msra.mxu0 0.0
    %2635 = vmatprep.subr.mxu0 0.0
    %2636 = vmatpush1.msra.mxu0 0.0
    %2637 = vmatprep.subr.mxu0 0.0
    %2638 = vmatpush1.msra.mxu0 0.0
    %2639 = vmatprep.subr.mxu0 0.0
    %2640 = vmatpush1.msra.mxu0 0.0
    %2641 = vmatprep.subr.mxu0 0.0
    %2642 = vmatpush1.msra.mxu0 0.0
    %2643 = vmatprep.subr.mxu0 0.0
    %2644 = vmatpush1.msra.mxu0 0.0
    %2645 = vmatprep.subr.mxu0 0.0
    %2646 = vmatpush1.msra.mxu0 0.0
    %2647 = vmatprep.subr.mxu0 0.0
    %2648 = vmatpush1.msra.mxu0 0.0
    %2649 = vmatprep.mubr.f32.mxu0 0.0
    %2650 = vmatmul.mubr.f32.gmra.mrb[0].mxu0 %v2583
    %v2651 = vpop.f32.mrb[0].mxu0
    %v2652 = vadd.f32 %v2569, %v2651
    %v2653 = vpop.f32.mrb[0].mxu0
    %2654 = vdwg.mxu0
    %v2655 = vld [vmem:[%s9] sm:$0x1]
    %v2657 = vlaneseq
    %v2658 = vshrl.u32 %v2657, 7
    %v2659 = vsub.s32 0, %v2658
    %v2660 = vrot.slane %v2655, %v2659
    %v2662 = vadd.f32 %v2652, %v2660
    %v2663 = vxor.u32 %v2662, 2147483648
    %v2664 = vmul.f32 %v2663, 1.442695
    %v2665 = vpow.pop %v2664
    %v2666 = vadd.f32 %v2665, 1.0
    %v2667 = vrcp.pop %v2666
    %v2668 = vmul.f32 1.0, %v2667
    %v2669 = vtanh.pop %v2662
    %v2670 = vmul.f32 %v2668, %v1893
    %2672 = vrot.lane.b32.xlu0 %v2669, 64
    %v2673 = vpop.permute.xlu0 %2672
    %v2675 = vmul.f32 %v2668, %v2673
    %2677 = vrot.lane.b32.xlu0 %v2675, 32
    %v2678 = vpop.permute.xlu0 %2677
    %v2680 = vadd.f32 %v2670, %v2678
    %v2681 = vtanh.pop %v2680
    %2683 = vrot.lane.b32.xlu0 %v2681, 64
    %v2684 = vpop.permute.xlu0 %2683
    %v2686 = vmul.f32 %v2668, %v2684
    %v2687 = vld [vmem:[#allocation10] sm:$0xff]
    %v2688 = vld [vmem:[#allocation10 + $0x8] sm:$0xff]
    %v2689 = vld [vmem:[#allocation10 + $0x10] sm:$0xff]
    %v2690 = vld [vmem:[#allocation10 + $0x18] sm:$0xff]
    %v2691 = vld [vmem:[#allocation10 + $0x20] sm:$0xff]
    %v2692 = vld [vmem:[#allocation10 + $0x28] sm:$0xff]
    %v2693 = vld [vmem:[#allocation10 + $0x30] sm:$0xff]
    %v2694 = vld [vmem:[#allocation10 + $0x38] sm:$0xff]
    %v2695 = vld [vmem:[#allocation10 + $0x40] sm:$0xff]
    %v2696 = vld [vmem:[#allocation10 + $0x48] sm:$0xff]
    %v2697 = vld [vmem:[#allocation10 + $0x50] sm:$0xff]
    %v2698 = vld [vmem:[#allocation10 + $0x58] sm:$0xff]
    %v2699 = vld [vmem:[#allocation10 + $0x60] sm:$0xff]
    %v2700 = vld [vmem:[#allocation10 + $0x68] sm:$0xff]
    %v2701 = vld [vmem:[#allocation10 + $0x70] sm:$0xff]
    %v2702 = vld [vmem:[#allocation10 + $0x78] sm:$0xff]
    %2703 = vmatprep.subr.mxu0 %v2688
    %2704 = vmatpush1.msra.mxu0 %v2687
    %2705 = vmatprep.subr.mxu0 %v2690
    %2706 = vmatpush1.msra.mxu0 %v2689
    %2707 = vmatprep.subr.mxu0 %v2692
    %2708 = vmatpush1.msra.mxu0 %v2691
    %2709 = vmatprep.subr.mxu0 %v2694
    %2710 = vmatpush1.msra.mxu0 %v2693
    %2711 = vmatprep.subr.mxu0 %v2696
    %2712 = vmatpush1.msra.mxu0 %v2695
    %2713 = vmatprep.subr.mxu0 %v2698
    %2714 = vmatpush1.msra.mxu0 %v2697
    %2715 = vmatprep.subr.mxu0 %v2700
    %2716 = vmatpush1.msra.mxu0 %v2699
    %2717 = vmatprep.subr.mxu0 %v2702
    %2718 = vmatpush1.msra.mxu0 %v2701
    %2719 = vmatprep.subr.mxu0 0.0
    %2720 = vmatpush1.msra.mxu0 0.0
    %2721 = vmatprep.subr.mxu0 0.0
    %2722 = vmatpush1.msra.mxu0 0.0
    %2723 = vmatprep.subr.mxu0 0.0
    %2724 = vmatpush1.msra.mxu0 0.0
    %2725 = vmatprep.subr.mxu0 0.0
    %2726 = vmatpush1.msra.mxu0 0.0
    %2727 = vmatprep.subr.mxu0 0.0
    %2728 = vmatpush1.msra.mxu0 0.0
    %2729 = vmatprep.subr.mxu0 0.0
    %2730 = vmatpush1.msra.mxu0 0.0
    %2731 = vmatprep.subr.mxu0 0.0
    %2732 = vmatpush1.msra.mxu0 0.0
    %2733 = vmatprep.subr.mxu0 0.0
    %2734 = vmatpush1.msra.mxu0 0.0
    %2735 = vmatprep.subr.mxu0 0.0
    %2736 = vmatpush1.msra.mxu0 0.0
    %2737 = vmatprep.subr.mxu0 0.0
    %2738 = vmatpush1.msra.mxu0 0.0
    %2739 = vmatprep.subr.mxu0 0.0
    %2740 = vmatpush1.msra.mxu0 0.0
    %2741 = vmatprep.subr.mxu0 0.0
    %2742 = vmatpush1.msra.mxu0 0.0
    %2743 = vmatprep.subr.mxu0 0.0
    %2744 = vmatpush1.msra.mxu0 0.0
    %2745 = vmatprep.subr.mxu0 0.0
    %2746 = vmatpush1.msra.mxu0 0.0
    %2747 = vmatprep.subr.mxu0 0.0
    %2748 = vmatpush1.msra.mxu0 0.0
    %2749 = vmatprep.subr.mxu0 0.0
    %2750 = vmatpush1.msra.mxu0 0.0
    %2751 = vmatprep.subr.mxu0 0.0
    %2752 = vmatpush1.msra.mxu0 0.0
    %2753 = vmatprep.subr.mxu0 0.0
    %2754 = vmatpush1.msra.mxu0 0.0
    %2755 = vmatprep.subr.mxu0 0.0
    %2756 = vmatpush1.msra.mxu0 0.0
    %2757 = vmatprep.subr.mxu0 0.0
    %2758 = vmatpush1.msra.mxu0 0.0
    %2759 = vmatprep.subr.mxu0 0.0
    %2760 = vmatpush1.msra.mxu0 0.0
    %2761 = vmatprep.subr.mxu0 0.0
    %2762 = vmatpush1.msra.mxu0 0.0
    %2763 = vmatprep.subr.mxu0 0.0
    %2764 = vmatpush1.msra.mxu0 0.0
    %2765 = vmatprep.subr.mxu0 0.0
    %2766 = vmatpush1.msra.mxu0 0.0
    %2767 = vmatprep.mubr.f32.mxu0 0.0
    %2768 = vmatmul.mubr.f32.gmra.mrb[0].mxu0 %v2583
    %v2769 = vpop.f32.mrb[0].mxu0
    %v2770 = vadd.f32 0.0, %v2769
    %v2771 = vpop.f32.mrb[0].mxu0
    %v2772 = vadd.f32 0.0, %v2771
    %2773 = vdwg.mxu0
    %v2774 = vld [vmem:[#allocation8] sm:$0xff]
    %v2775 = vld [vmem:[#allocation8 + $0x8] sm:$0xff]
    %v2776 = vld [vmem:[#allocation8 + $0x10] sm:$0xff]
    %v2777 = vld [vmem:[#allocation8 + $0x18] sm:$0xff]
    %v2778 = vld [vmem:[#allocation8 + $0x20] sm:$0xff]
    %v2779 = vld [vmem:[#allocation8 + $0x28] sm:$0xff]
    %v2780 = vld [vmem:[#allocation8 + $0x30] sm:$0xff]
    %v2781 = vld [vmem:[#allocation8 + $0x38] sm:$0xff]
    %v2782 = vld [vmem:[#allocation8 + $0x40] sm:$0xff]
    %v2783 = vld [vmem:[#allocation8 + $0x48] sm:$0xff]
    %v2784 = vld [vmem:[#allocation8 + $0x50] sm:$0xff]
    %v2785 = vld [vmem:[#allocation8 + $0x58] sm:$0xff]
    %v2786 = vld [vmem:[#allocation8 + $0x60] sm:$0xff]
    %v2787 = vld [vmem:[#allocation8 + $0x68] sm:$0xff]
    %v2788 = vld [vmem:[#allocation8 + $0x70] sm:$0xff]
    %v2789 = vld [vmem:[#allocation8 + $0x78] sm:$0xff]
    %v2792 = vrot.slane %v2268, 3
    %v2793 = vrot.slane %v2269, 2
    %v2794 = vsel %vm739, %v2793, %v2792
    %2795 = vrot.lane.b32.xlu0 %v2794, 64
    %v2796 = vpop.permute.xlu0 %2795
    %v2797 = vsel %vm502, %v2796, 0
    %2799 = vmatprep.subr.mxu0 %v2775
    %2800 = vmatpush1.msra.mxu0 %v2774
    %2801 = vmatprep.subr.mxu0 %v2777
    %2802 = vmatpush1.msra.mxu0 %v2776
    %2803 = vmatprep.subr.mxu0 %v2779
    %2804 = vmatpush1.msra.mxu0 %v2778
    %2805 = vmatprep.subr.mxu0 %v2781
    %2806 = vmatpush1.msra.mxu0 %v2780
    %2807 = vmatprep.subr.mxu0 %v2783
    %2808 = vmatpush1.msra.mxu0 %v2782
    %2809 = vmatprep.subr.mxu0 %v2785
    %2810 = vmatpush1.msra.mxu0 %v2784
    %2811 = vmatprep.subr.mxu0 %v2787
    %2812 = vmatpush1.msra.mxu0 %v2786
    %2813 = vmatprep.subr.mxu0 %v2789
    %2814 = vmatpush1.msra.mxu0 %v2788
    %2815 = vmatprep.subr.mxu0 0.0
    %2816 = vmatpush1.msra.mxu0 0.0
    %2817 = vmatprep.subr.mxu0 0.0
    %2818 = vmatpush1.msra.mxu0 0.0
    %2819 = vmatprep.subr.mxu0 0.0
    %2820 = vmatpush1.msra.mxu0 0.0
    %2821 = vmatprep.subr.mxu0 0.0
    %2822 = vmatpush1.msra.mxu0 0.0
    %2823 = vmatprep.subr.mxu0 0.0
    %2824 = vmatpush1.msra.mxu0 0.0
    %2825 = vmatprep.subr.mxu0 0.0
    %2826 = vmatpush1.msra.mxu0 0.0
    %2827 = vmatprep.subr.mxu0 0.0
    %2828 = vmatpush1.msra.mxu0 0.0
    %2829 = vmatprep.subr.mxu0 0.0
    %2830 = vmatpush1.msra.mxu0 0.0
    %2831 = vmatprep.subr.mxu0 0.0
    %2832 = vmatpush1.msra.mxu0 0.0
    %2833 = vmatprep.subr.mxu0 0.0
    %2834 = vmatpush1.msra.mxu0 0.0
    %2835 = vmatprep.subr.mxu0 0.0
    %2836 = vmatpush1.msra.mxu0 0.0
    %2837 = vmatprep.subr.mxu0 0.0
    %2838 = vmatpush1.msra.mxu0 0.0
    %2839 = vmatprep.subr.mxu0 0.0
    %2840 = vmatpush1.msra.mxu0 0.0
    %2841 = vmatprep.subr.mxu0 0.0
    %2842 = vmatpush1.msra.mxu0 0.0
    %2843 = vmatprep.subr.mxu0 0.0
    %2844 = vmatpush1.msra.mxu0 0.0
    %2845 = vmatprep.subr.mxu0 0.0
    %2846 = vmatpush1.msra.mxu0 0.0
    %2847 = vmatprep.subr.mxu0 0.0
    %2848 = vmatpush1.msra.mxu0 0.0
    %2849 = vmatprep.subr.mxu0 0.0
    %2850 = vmatpush1.msra.mxu0 0.0
    %2851 = vmatprep.subr.mxu0 0.0
    %2852 = vmatpush1.msra.mxu0 0.0
    %2853 = vmatprep.subr.mxu0 0.0
    %2854 = vmatpush1.msra.mxu0 0.0
    %2855 = vmatprep.subr.mxu0 0.0
    %2856 = vmatpush1.msra.mxu0 0.0
    %2857 = vmatprep.subr.mxu0 0.0
    %2858 = vmatpush1.msra.mxu0 0.0
    %2859 = vmatprep.subr.mxu0 0.0
    %2860 = vmatpush1.msra.mxu0 0.0
    %2861 = vmatprep.subr.mxu0 0.0
    %2862 = vmatpush1.msra.mxu0 0.0
    %2863 = vmatprep.mubr.f32.mxu0 0.0
    %2864 = vmatmul.mubr.f32.gmra.mrb[0].mxu0 %v2797
    %v2865 = vpop.f32.mrb[0].mxu0
    %v2866 = vadd.f32 %v2770, %v2865
    %v2867 = vpop.f32.mrb[0].mxu0
    %v2868 = vadd.f32 %v2772, %v2867
    %2869 = vdwg.mxu0
    %v2870 = vld [vmem:[#allocation11] sm:$0x3]
    %v2872 = vlaneseq
    %v2873 = vshrl.u32 %v2872, 7
    %v2874 = vsub.s32 0, %v2873
    %v2875 = vrot.slane %v2870, %v2874
    %v2876 = vlaneseq
    %v2877 = vshrl.u32 %v2876, 7
    %v2878 = vsub.s32 1, %v2877
    %v2879 = vrot.slane %v2870, %v2878
    %v2882 = vadd.f32 %v2866, %v2875
    %v2883 = vadd.f32 %v2868, %v2879
    %v2884 = vxor.u32 %v2882, 2147483648
    %v2885 = vmul.f32 %v2884, 1.442695
    %v2886 = vpow.pop %v2885
    %v2887 = vadd.f32 %v2886, 1.0
    %v2888 = vrcp.pop %v2887
    %v2889 = vmul.f32 1.0, %v2888
    %v2890 = vtanh.pop %v2883
    %v2891 = vxor.u32 %v2883, 2147483648
    %v2892 = vmul.f32 %v2891, 1.442695
    %v2893 = vpow.pop %v2892
    %v2894 = vadd.f32 %v2893, 1.0
    %v2895 = vrcp.pop %v2894
    %v2896 = vmul.f32 1.0, %v2895
    %v2897 = vmul.f32 %v2889, %v2116
    %v2898 = vmul.f32 %v2889, %v2890
    %2900 = vrot.lane.b32.xlu0 %v2898, 64
    %v2901 = vpop.permute.xlu0 %2900
    %v2903 = vadd.f32 %v2897, %v2901
    %v2904 = vtanh.pop %v2903
    %v2905 = vmul.f32 %v2896, %v2904
    %v2906 = vld [vmem:[#allocation7] sm:$0xff]
    %v2907 = vld [vmem:[#allocation7 + $0x8] sm:$0xff]
    %v2908 = vld [vmem:[#allocation7 + $0x10] sm:$0xff]
    %v2909 = vld [vmem:[#allocation7 + $0x18] sm:$0xff]
    %v2910 = vld [vmem:[#allocation7 + $0x20] sm:$0xff]
    %v2911 = vld [vmem:[#allocation7 + $0x28] sm:$0xff]
    %v2912 = vld [vmem:[#allocation7 + $0x30] sm:$0xff]
    %v2913 = vld [vmem:[#allocation7 + $0x38] sm:$0xff]
    %v2914 = vld [vmem:[#allocation7 + $0x40] sm:$0xff]
    %v2915 = vld [vmem:[#allocation7 + $0x48] sm:$0xff]
    %v2916 = vld [vmem:[#allocation7 + $0x50] sm:$0xff]
    %v2917 = vld [vmem:[#allocation7 + $0x58] sm:$0xff]
    %v2918 = vld [vmem:[#allocation7 + $0x60] sm:$0xff]
    %v2919 = vld [vmem:[#allocation7 + $0x68] sm:$0xff]
    %v2920 = vld [vmem:[#allocation7 + $0x70] sm:$0xff]
    %v2921 = vld [vmem:[#allocation7 + $0x78] sm:$0xff]
    %2922 = vmatprep.subr.mxu0 %v2907
    %2923 = vmatpush1.msra.mxu0 %v2906
    %2924 = vmatprep.subr.mxu0 %v2909
    %2925 = vmatpush1.msra.mxu0 %v2908
    %2926 = vmatprep.subr.mxu0 %v2911
    %2927 = vmatpush1.msra.mxu0 %v2910
    %2928 = vmatprep.subr.mxu0 %v2913
    %2929 = vmatpush1.msra.mxu0 %v2912
    %2930 = vmatprep.subr.mxu0 %v2915
    %2931 = vmatpush1.msra.mxu0 %v2914
    %2932 = vmatprep.subr.mxu0 %v2917
    %2933 = vmatpush1.msra.mxu0 %v2916
    %2934 = vmatprep.subr.mxu0 %v2919
    %2935 = vmatpush1.msra.mxu0 %v2918
    %2936 = vmatprep.subr.mxu0 %v2921
    %2937 = vmatpush1.msra.mxu0 %v2920
    %2938 = vmatprep.subr.mxu0 0.0
    %2939 = vmatpush1.msra.mxu0 0.0
    %2940 = vmatprep.subr.mxu0 0.0
    %2941 = vmatpush1.msra.mxu0 0.0
    %2942 = vmatprep.subr.mxu0 0.0
    %2943 = vmatpush1.msra.mxu0 0.0
    %2944 = vmatprep.subr.mxu0 0.0
    %2945 = vmatpush1.msra.mxu0 0.0
    %2946 = vmatprep.subr.mxu0 0.0
    %2947 = vmatpush1.msra.mxu0 0.0
    %2948 = vmatprep.subr.mxu0 0.0
    %2949 = vmatpush1.msra.mxu0 0.0
    %2950 = vmatprep.subr.mxu0 0.0
    %2951 = vmatpush1.msra.mxu0 0.0
    %2952 = vmatprep.subr.mxu0 0.0
    %2953 = vmatpush1.msra.mxu0 0.0
    %2954 = vmatprep.subr.mxu0 0.0
    %2955 = vmatpush1.msra.mxu0 0.0
    %2956 = vmatprep.subr.mxu0 0.0
    %2957 = vmatpush1.msra.mxu0 0.0
    %2958 = vmatprep.subr.mxu0 0.0
    %2959 = vmatpush1.msra.mxu0 0.0
    %2960 = vmatprep.subr.mxu0 0.0
    %2961 = vmatpush1.msra.mxu0 0.0
    %2962 = vmatprep.subr.mxu0 0.0
    %2963 = vmatpush1.msra.mxu0 0.0
    %2964 = vmatprep.subr.mxu0 0.0
    %2965 = vmatpush1.msra.mxu0 0.0
    %2966 = vmatprep.subr.mxu0 0.0
    %2967 = vmatpush1.msra.mxu0 0.0
    %2968 = vmatprep.subr.mxu0 0.0
    %2969 = vmatpush1.msra.mxu0 0.0
    %2970 = vmatprep.subr.mxu0 0.0
    %2971 = vmatpush1.msra.mxu0 0.0
    %2972 = vmatprep.subr.mxu0 0.0
    %2973 = vmatpush1.msra.mxu0 0.0
    %2974 = vmatprep.subr.mxu0 0.0
    %2975 = vmatpush1.msra.mxu0 0.0
    %2976 = vmatprep.subr.mxu0 0.0
    %2977 = vmatpush1.msra.mxu0 0.0
    %2978 = vmatprep.subr.mxu0 0.0
    %2979 = vmatpush1.msra.mxu0 0.0
    %2980 = vmatprep.subr.mxu0 0.0
    %2981 = vmatpush1.msra.mxu0 0.0
    %2982 = vmatprep.subr.mxu0 0.0
    %2983 = vmatpush1.msra.mxu0 0.0
    %2984 = vmatprep.subr.mxu0 0.0
    %2985 = vmatpush1.msra.mxu0 0.0
    %2986 = vmatprep.mubr.f32.mxu0 0.0
    %2987 = vmatmul.mubr.f32.gmra.mrb[0].mxu0 %v2797
    %v2988 = vpop.f32.mrb[0].mxu0
    %v2989 = vadd.f32 0.0, %v2988
    %v2990 = vpop.f32.mrb[0].mxu0
    %v2991 = vadd.f32 0.0, %v2990
    %2992 = vdwg.mxu0
    %v2995 = vrot.slane %v2989, 4
    %v2996 = vrot.slane %v2991, 4
    %v2997 = vrot.slane %v2989, 5
    %v2998 = vrot.slane %v2991, 5
    %v3003 = vadd.f32 %v476, %v2995
    %v3004 = vadd.f32 %v478, %v2996
    %v3005 = vadd.f32 %v482, %v2997
    %v3006 = vadd.f32 %v484, %v2998
    %v3007 = vxor.u32 %v3003, 2147483648
    %v3008 = vxor.u32 %v3005, 2147483648
    %v3009 = vmul.f32 %v3007, 1.442695
    %v3010 = vpow.pop %v3009
    %v3011 = vmul.f32 %v3008, 1.442695
    %v3012 = vpow.pop %v3011
    %v3013 = vadd.f32 %v3010, 1.0
    %v3014 = vadd.f32 %v3012, 1.0
    %v3015 = vrcp.pop %v3013
    %v3016 = vmul.f32 1.0, %v3015
    %v3017 = vrcp.pop %v3014
    %v3018 = vmul.f32 1.0, %v3017
    %v3019 = vtanh.pop %v3004
    %v3020 = vtanh.pop %v3006
    %v3021 = vxor.u32 %v3004, 2147483648
    %v3022 = vxor.u32 %v3006, 2147483648
    %v3023 = vmul.f32 %v3021, 1.442695
    %v3024 = vpow.pop %v3023
    %v3025 = vmul.f32 %v3022, 1.442695
    %v3026 = vpow.pop %v3025
    %v3027 = vadd.f32 %v3024, 1.0
    %v3028 = vadd.f32 %v3026, 1.0
    %v3029 = vrcp.pop %v3027
    %v3030 = vmul.f32 1.0, %v3029
    %v3031 = vrcp.pop %v3028
    %v3032 = vmul.f32 1.0, %v3031
    %v3035 = vrot.slane %v2264, 7
    %v3036 = vrot.slane %v2265, 7
    %v3039 = vmul.f32 %v3016, %v3035
    %v3040 = vmul.f32 %v3018, %v3036
    %v3041 = vmul.f32 %v3016, %v3019
    %v3042 = vmul.f32 %v3018, %v3020
    %3045 = vrot.lane.b32.xlu0 %v3041, 64
    %v3046 = vpop.permute.xlu0 %3045
    %3047 = vrot.lane.b32.xlu0 %v3042, 64
    %v3048 = vpop.permute.xlu0 %3047
    %v3051 = vadd.f32 %v3039, %v3046
    %v3052 = vadd.f32 %v3040, %v3048
    %v3053 = vtanh.pop %v3051
    %v3054 = vtanh.pop %v3052
    %v3055 = vmul.f32 %v3030, %v3053
    %v3056 = vmul.f32 %v3032, %v3054
    %v3057 = vld [vmem:[#allocation16] sm:$0xff]
    %v3058 = vld [vmem:[#allocation16 + $0x8] sm:$0xff]
    %v3059 = vld [vmem:[#allocation16 + $0x10] sm:$0xff]
    %v3060 = vld [vmem:[#allocation16 + $0x18] sm:$0xff]
    %3061 = vrot.lane.b32.xlu0 %v2458, 32
    %v3062 = vpop.permute.xlu0 %3061
    %v3063 = vsel %vm989, %v3062, 0
    %3065 = vmatprep.subr.mxu0 0.0
    %3066 = vmatpush1.msra.mxu0 %v3057
    %3067 = vmatprep.subr.mxu0 0.0
    %3068 = vmatpush1.msra.mxu0 %v3058
    %3069 = vmatprep.subr.mxu0 0.0
    %3070 = vmatpush1.msra.mxu0 %v3059
    %3071 = vmatprep.subr.mxu0 0.0
    %3072 = vmatpush1.msra.mxu0 %v3060
    %3073 = vmatprep.subr.mxu0 0.0
    %3074 = vmatpush1.msra.mxu0 0.0
    %3075 = vmatprep.subr.mxu0 0.0
    %3076 = vmatpush1.msra.mxu0 0.0
    %3077 = vmatprep.subr.mxu0 0.0
    %3078 = vmatpush1.msra.mxu0 0.0
    %3079 = vmatprep.subr.mxu0 0.0
    %3080 = vmatpush1.msra.mxu0 0.0
    %3081 = vmatprep.subr.mxu0 0.0
    %3082 = vmatpush1.msra.mxu0 0.0
    %3083 = vmatprep.subr.mxu0 0.0
    %3084 = vmatpush1.msra.mxu0 0.0
    %3085 = vmatprep.subr.mxu0 0.0
    %3086 = vmatpush1.msra.mxu0 0.0
    %3087 = vmatprep.subr.mxu0 0.0
    %3088 = vmatpush1.msra.mxu0 0.0
    %3089 = vmatprep.subr.mxu0 0.0
    %3090 = vmatpush1.msra.mxu0 0.0
    %3091 = vmatprep.subr.mxu0 0.0
    %3092 = vmatpush1.msra.mxu0 0.0
    %3093 = vmatprep.subr.mxu0 0.0
    %3094 = vmatpush1.msra.mxu0 0.0
    %3095 = vmatprep.subr.mxu0 0.0
    %3096 = vmatpush1.msra.mxu0 0.0
    %3097 = vmatprep.subr.mxu0 0.0
    %3098 = vmatpush1.msra.mxu0 0.0
    %3099 = vmatprep.subr.mxu0 0.0
    %3100 = vmatpush1.msra.mxu0 0.0
    %3101 = vmatprep.subr.mxu0 0.0
    %3102 = vmatpush1.msra.mxu0 0.0
    %3103 = vmatprep.subr.mxu0 0.0
    %3104 = vmatpush1.msra.mxu0 0.0
    %3105 = vmatprep.subr.mxu0 0.0
    %3106 = vmatpush1.msra.mxu0 0.0
    %3107 = vmatprep.subr.mxu0 0.0
    %3108 = vmatpush1.msra.mxu0 0.0
    %3109 = vmatprep.subr.mxu0 0.0
    %3110 = vmatpush1.msra.mxu0 0.0
    %3111 = vmatprep.subr.mxu0 0.0
    %3112 = vmatpush1.msra.mxu0 0.0
    %3113 = vmatprep.subr.mxu0 0.0
    %3114 = vmatpush1.msra.mxu0 0.0
    %3115 = vmatprep.subr.mxu0 0.0
    %3116 = vmatpush1.msra.mxu0 0.0
    %3117 = vmatprep.subr.mxu0 0.0
    %3118 = vmatpush1.msra.mxu0 0.0
    %3119 = vmatprep.subr.mxu0 0.0
    %3120 = vmatpush1.msra.mxu0 0.0
    %3121 = vmatprep.subr.mxu0 0.0
    %3122 = vmatpush1.msra.mxu0 0.0
    %3123 = vmatprep.subr.mxu0 0.0
    %3124 = vmatpush1.msra.mxu0 0.0
    %3125 = vmatprep.subr.mxu0 0.0
    %3126 = vmatpush1.msra.mxu0 0.0
    %3127 = vmatprep.subr.mxu0 0.0
    %3128 = vmatpush1.msra.mxu0 0.0
    %3129 = vmatprep.mubr.f32.mxu0 0.0
    %3130 = vmatmul.mubr.f32.gmra.mrb[0].mxu0 %v3063
    %v3131 = vpop.f32.mrb[0].mxu0
    %v3132 = vadd.f32 0.0, %v3131
    %v3133 = vpop.f32.mrb[0].mxu0
    %3134 = vdwg.mxu0
    %v3135 = vld [vmem:[#allocation14] sm:$0xff]
    %v3136 = vld [vmem:[#allocation14 + $0x8] sm:$0xff]
    %v3137 = vld [vmem:[#allocation14 + $0x10] sm:$0xff]
    %v3138 = vld [vmem:[#allocation14 + $0x18] sm:$0xff]
    %3140 = vrot.lane.b32.xlu0 %v2686, 32
    %v3141 = vpop.permute.xlu0 %3140
    %v3142 = vsel %vm989, %v3141, 0
    %3144 = vmatprep.subr.mxu0 0.0
    %3145 = vmatpush1.msra.mxu0 %v3135
    %3146 = vmatprep.subr.mxu0 0.0
    %3147 = vmatpush1.msra.mxu0 %v3136
    %3148 = vmatprep.subr.mxu0 0.0
    %3149 = vmatpush1.msra.mxu0 %v3137
    %3150 = vmatprep.subr.mxu0 0.0
    %3151 = vmatpush1.msra.mxu0 %v3138
    %3152 = vmatprep.subr.mxu0 0.0
    %3153 = vmatpush1.msra.mxu0 0.0
    %3154 = vmatprep.subr.mxu0 0.0
    %3155 = vmatpush1.msra.mxu0 0.0
    %3156 = vmatprep.subr.mxu0 0.0
    %3157 = vmatpush1.msra.mxu0 0.0
    %3158 = vmatprep.subr.mxu0 0.0
    %3159 = vmatpush1.msra.mxu0 0.0
    %3160 = vmatprep.subr.mxu0 0.0
    %3161 = vmatpush1.msra.mxu0 0.0
    %3162 = vmatprep.subr.mxu0 0.0
    %3163 = vmatpush1.msra.mxu0 0.0
    %3164 = vmatprep.subr.mxu0 0.0
    %3165 = vmatpush1.msra.mxu0 0.0
    %3166 = vmatprep.subr.mxu0 0.0
    %3167 = vmatpush1.msra.mxu0 0.0
    %3168 = vmatprep.subr.mxu0 0.0
    %3169 = vmatpush1.msra.mxu0 0.0
    %3170 = vmatprep.subr.mxu0 0.0
    %3171 = vmatpush1.msra.mxu0 0.0
    %3172 = vmatprep.subr.mxu0 0.0
    %3173 = vmatpush1.msra.mxu0 0.0
    %3174 = vmatprep.subr.mxu0 0.0
    %3175 = vmatpush1.msra.mxu0 0.0
    %3176 = vmatprep.subr.mxu0 0.0
    %3177 = vmatpush1.msra.mxu0 0.0
    %3178 = vmatprep.subr.mxu0 0.0
    %3179 = vmatpush1.msra.mxu0 0.0
    %3180 = vmatprep.subr.mxu0 0.0
    %3181 = vmatpush1.msra.mxu0 0.0
    %3182 = vmatprep.subr.mxu0 0.0
    %3183 = vmatpush1.msra.mxu0 0.0
    %3184 = vmatprep.subr.mxu0 0.0
    %3185 = vmatpush1.msra.mxu0 0.0
    %3186 = vmatprep.subr.mxu0 0.0
    %3187 = vmatpush1.msra.mxu0 0.0
    %3188 = vmatprep.subr.mxu0 0.0
    %3189 = vmatpush1.msra.mxu0 0.0
    %3190 = vmatprep.subr.mxu0 0.0
    %3191 = vmatpush1.msra.mxu0 0.0
    %3192 = vmatprep.subr.mxu0 0.0
    %3193 = vmatpush1.msra.mxu0 0.0
    %3194 = vmatprep.subr.mxu0 0.0
    %3195 = vmatpush1.msra.mxu0 0.0
    %3196 = vmatprep.subr.mxu0 0.0
    %3197 = vmatpush1.msra.mxu0 0.0
    %3198 = vmatprep.subr.mxu0 0.0
    %3199 = vmatpush1.msra.mxu0 0.0
    %3200 = vmatprep.subr.mxu0 0.0
    %3201 = vmatpush1.msra.mxu0 0.0
    %3202 = vmatprep.subr.mxu0 0.0
    %3203 = vmatpush1.msra.mxu0 0.0
    %3204 = vmatprep.subr.mxu0 0.0
    %3205 = vmatpush1.msra.mxu0 0.0
    %3206 = vmatprep.subr.mxu0 0.0
    %3207 = vmatpush1.msra.mxu0 0.0
    %3208 = vmatprep.mubr.f32.mxu0 0.0
    %3209 = vmatmul.mubr.f32.gmra.mrb[0].mxu0 %v3142
    %v3210 = vpop.f32.mrb[0].mxu0
    %v3211 = vadd.f32 %v3132, %v3210
    %v3212 = vpop.f32.mrb[0].mxu0
    %3213 = vdwg.mxu0
    %v3214 = vld [vmem:[%s12] sm:$0x1]
    %v3216 = vlaneseq
    %v3217 = vshrl.u32 %v3216, 7
    %v3218 = vsub.s32 0, %v3217
    %v3219 = vrot.slane %v3214, %v3218
    %v3221 = vadd.f32 %v3211, %v3219
    %v3222 = vxor.u32 %v3221, 2147483648
    %v3223 = vmul.f32 %v3222, 1.442695
    %v3224 = vpow.pop %v3223
    %v3225 = vadd.f32 %v3224, 1.0
    %v3226 = vrcp.pop %v3225
    %v3227 = vmul.f32 1.0, %v3226
    %v3228 = vtanh.pop %v3221
    %v3229 = vmul.f32 %v3227, %v2452
    %3231 = vrot.lane.b32.xlu0 %v3228, 64
    %v3232 = vpop.permute.xlu0 %3231
    %v3234 = vmul.f32 %v3227, %v3232
    %3236 = vrot.lane.b32.xlu0 %v3234, 32
    %v3237 = vpop.permute.xlu0 %3236
    %v3239 = vadd.f32 %v3229, %v3237
    %v3240 = vtanh.pop %v3239
    %3242 = vrot.lane.b32.xlu0 %v3240, 64
    %v3243 = vpop.permute.xlu0 %3242
    %v3245 = vmul.f32 %v3227, %v3243
    %v3248 = vunpack.c.l.s4 1966171168
    %v3249 = vunpack.c.0.s8 %v3248
    %v3250 = vlaneseq
    %v3251 = vshrl.u32 %v3250, 7
    %v3252 = vsub.s32 %v3249, %v3251
    %v3253 = vrot.slane %v3245, %v3252
    %v3254 = vcombine.high %v3253, %v3253
    %v3256 = vunpack.c.l.s4 1966171168
    %v3257 = vunpack.c.0.s8 %v3256
    %v3258 = vlaneseq
    %v3259 = vshrl.u32 %v3258, 7
    %v3260 = vsub.s32 %v3257, %v3259
    %v3261 = vrot.slane %v3253, %v3260
    %v3263 = vunpack.c.l.s4 1966171168
    %v3264 = vunpack.c.0.s8 %v3263
    %v3265 = vlaneseq
    %v3266 = vshrl.u32 %v3265, 7
    %v3267 = vsub.s32 %v3264, %v3266
    %v3268 = vrot.slane %v3254, %v3267
    %v3269 = vlaneseq
    %v3270 = vshrl.u32 %v3269, 7
    %v3271 = vsub.s32 0, %v3270
    %v3272 = vrot.slane %v3261, %v3271
    %v3273 = vlaneseq
    %v3274 = vshrl.u32 %v3273, 7
    %v3275 = vsub.s32 0, %v3274
    %v3276 = vrot.slane %v3268, %v3275
    %3277 = vrot.lane.b32.xlu0 %v3272, 32
    %v3278 = vpop.permute.xlu0 %3277
    %3279 = vrot.lane.b32.xlu0 %v3276, 32
    %v3280 = vpop.permute.xlu0 %3279
    %3283 = vst.msk [vmem:[#allocation2 + $0x2] sm:$0x1] %vm1708, %v3278
    %3284 = vst.msk [vmem:[#allocation2 + $0xa] sm:$0x1] %vm1708, %v3280
    %v3285 = vld [vmem:[%s8] sm:$0xff]
    %v3286 = vld [vmem:[%s8 + $0x8] sm:$0xff]
    %v3287 = vld [vmem:[%s8 + $0x10] sm:$0xff]
    %v3288 = vld [vmem:[%s8 + $0x18] sm:$0xff]
    %3289 = vmatprep.subr.mxu0 0.0
    %3290 = vmatpush1.msra.mxu0 %v3285
    %3291 = vmatprep.subr.mxu0 0.0
    %3292 = vmatpush1.msra.mxu0 %v3286
    %3293 = vmatprep.subr.mxu0 0.0
    %3294 = vmatpush1.msra.mxu0 %v3287
    %3295 = vmatprep.subr.mxu0 0.0
    %3296 = vmatpush1.msra.mxu0 %v3288
    %3297 = vmatprep.subr.mxu0 0.0
    %3298 = vmatpush1.msra.mxu0 0.0
    %3299 = vmatprep.subr.mxu0 0.0
    %3300 = vmatpush1.msra.mxu0 0.0
    %3301 = vmatprep.subr.mxu0 0.0
    %3302 = vmatpush1.msra.mxu0 0.0
    %3303 = vmatprep.subr.mxu0 0.0
    %3304 = vmatpush1.msra.mxu0 0.0
    %3305 = vmatprep.subr.mxu0 0.0
    %3306 = vmatpush1.msra.mxu0 0.0
    %3307 = vmatprep.subr.mxu0 0.0
    %3308 = vmatpush1.msra.mxu0 0.0
    %3309 = vmatprep.subr.mxu0 0.0
    %3310 = vmatpush1.msra.mxu0 0.0
    %3311 = vmatprep.subr.mxu0 0.0
    %3312 = vmatpush1.msra.mxu0 0.0
    %3313 = vmatprep.subr.mxu0 0.0
    %3314 = vmatpush1.msra.mxu0 0.0
    %3315 = vmatprep.subr.mxu0 0.0
    %3316 = vmatpush1.msra.mxu0 0.0
    %3317 = vmatprep.subr.mxu0 0.0
    %3318 = vmatpush1.msra.mxu0 0.0
    %3319 = vmatprep.subr.mxu0 0.0
    %3320 = vmatpush1.msra.mxu0 0.0
    %3321 = vmatprep.subr.mxu0 0.0
    %3322 = vmatpush1.msra.mxu0 0.0
    %3323 = vmatprep.subr.mxu0 0.0
    %3324 = vmatpush1.msra.mxu0 0.0
    %3325 = vmatprep.subr.mxu0 0.0
    %3326 = vmatpush1.msra.mxu0 0.0
    %3327 = vmatprep.subr.mxu0 0.0
    %3328 = vmatpush1.msra.mxu0 0.0
    %3329 = vmatprep.subr.mxu0 0.0
    %3330 = vmatpush1.msra.mxu0 0.0
    %3331 = vmatprep.subr.mxu0 0.0
    %3332 = vmatpush1.msra.mxu0 0.0
    %3333 = vmatprep.subr.mxu0 0.0
    %3334 = vmatpush1.msra.mxu0 0.0
    %3335 = vmatprep.subr.mxu0 0.0
    %3336 = vmatpush1.msra.mxu0 0.0
    %3337 = vmatprep.subr.mxu0 0.0
    %3338 = vmatpush1.msra.mxu0 0.0
    %3339 = vmatprep.subr.mxu0 0.0
    %3340 = vmatpush1.msra.mxu0 0.0
    %3341 = vmatprep.subr.mxu0 0.0
    %3342 = vmatpush1.msra.mxu0 0.0
    %3343 = vmatprep.subr.mxu0 0.0
    %3344 = vmatpush1.msra.mxu0 0.0
    %3345 = vmatprep.subr.mxu0 0.0
    %3346 = vmatpush1.msra.mxu0 0.0
    %3347 = vmatprep.subr.mxu0 0.0
    %3348 = vmatpush1.msra.mxu0 0.0
    %3349 = vmatprep.subr.mxu0 0.0
    %3350 = vmatpush1.msra.mxu0 0.0
    %3351 = vmatprep.subr.mxu0 0.0
    %3352 = vmatpush1.msra.mxu0 0.0
    %3353 = vmatprep.mubr.f32.mxu0 0.0
    %3354 = vmatmul.mubr.f32.gmra.mrb[0].mxu0 %v3142
    %v3355 = vpop.f32.mrb[0].mxu0
    %v3356 = vadd.f32 0.0, %v3355
    %v3357 = vpop.f32.mrb[0].mxu0
    %3358 = vdwg.mxu0
    %v3359 = vld [vmem:[#allocation13] sm:$0xff]
    %v3360 = vld [vmem:[#allocation13 + $0x8] sm:$0xff]
    %v3361 = vld [vmem:[#allocation13 + $0x10] sm:$0xff]
    %v3362 = vld [vmem:[#allocation13 + $0x18] sm:$0xff]
    %v3363 = vld [vmem:[#allocation13 + $0x20] sm:$0xff]
    %v3364 = vld [vmem:[#allocation13 + $0x28] sm:$0xff]
    %v3365 = vld [vmem:[#allocation13 + $0x30] sm:$0xff]
    %v3366 = vld [vmem:[#allocation13 + $0x38] sm:$0xff]
    %3368 = vrot.lane.b32.xlu0 %v2905, 64
    %v3369 = vpop.permute.xlu0 %3368
    %v3370 = vsel %vm502, %v3369, 0
    %3372 = vmatprep.subr.mxu0 0.0
    %3373 = vmatpush1.msra.mxu0 %v3359
    %3374 = vmatprep.subr.mxu0 0.0
    %3375 = vmatpush1.msra.mxu0 %v3360
    %3376 = vmatprep.subr.mxu0 0.0
    %3377 = vmatpush1.msra.mxu0 %v3361
    %3378 = vmatprep.subr.mxu0 0.0
    %3379 = vmatpush1.msra.mxu0 %v3362
    %3380 = vmatprep.subr.mxu0 0.0
    %3381 = vmatpush1.msra.mxu0 %v3363
    %3382 = vmatprep.subr.mxu0 0.0
    %3383 = vmatpush1.msra.mxu0 %v3364
    %3384 = vmatprep.subr.mxu0 0.0
    %3385 = vmatpush1.msra.mxu0 %v3365
    %3386 = vmatprep.subr.mxu0 0.0
    %3387 = vmatpush1.msra.mxu0 %v3366
    %3388 = vmatprep.subr.mxu0 0.0
    %3389 = vmatpush1.msra.mxu0 0.0
    %3390 = vmatprep.subr.mxu0 0.0
    %3391 = vmatpush1.msra.mxu0 0.0
    %3392 = vmatprep.subr.mxu0 0.0
    %3393 = vmatpush1.msra.mxu0 0.0
    %3394 = vmatprep.subr.mxu0 0.0
    %3395 = vmatpush1.msra.mxu0 0.0
    %3396 = vmatprep.subr.mxu0 0.0
    %3397 = vmatpush1.msra.mxu0 0.0
    %3398 = vmatprep.subr.mxu0 0.0
    %3399 = vmatpush1.msra.mxu0 0.0
    %3400 = vmatprep.subr.mxu0 0.0
    %3401 = vmatpush1.msra.mxu0 0.0
    %3402 = vmatprep.subr.mxu0 0.0
    %3403 = vmatpush1.msra.mxu0 0.0
    %3404 = vmatprep.subr.mxu0 0.0
    %3405 = vmatpush1.msra.mxu0 0.0
    %3406 = vmatprep.subr.mxu0 0.0
    %3407 = vmatpush1.msra.mxu0 0.0
    %3408 = vmatprep.subr.mxu0 0.0
    %3409 = vmatpush1.msra.mxu0 0.0
    %3410 = vmatprep.subr.mxu0 0.0
    %3411 = vmatpush1.msra.mxu0 0.0
    %3412 = vmatprep.subr.mxu0 0.0
    %3413 = vmatpush1.msra.mxu0 0.0
    %3414 = vmatprep.subr.mxu0 0.0
    %3415 = vmatpush1.msra.mxu0 0.0
    %3416 = vmatprep.subr.mxu0 0.0
    %3417 = vmatpush1.msra.mxu0 0.0
    %3418 = vmatprep.subr.mxu0 0.0
    %3419 = vmatpush1.msra.mxu0 0.0
    %3420 = vmatprep.subr.mxu0 0.0
    %3421 = vmatpush1.msra.mxu0 0.0
    %3422 = vmatprep.subr.mxu0 0.0
    %3423 = vmatpush1.msra.mxu0 0.0
    %3424 = vmatprep.subr.mxu0 0.0
    %3425 = vmatpush1.msra.mxu0 0.0
    %3426 = vmatprep.subr.mxu0 0.0
    %3427 = vmatpush1.msra.mxu0 0.0
    %3428 = vmatprep.subr.mxu0 0.0
    %3429 = vmatpush1.msra.mxu0 0.0
    %3430 = vmatprep.subr.mxu0 0.0
    %3431 = vmatpush1.msra.mxu0 0.0
    %3432 = vmatprep.subr.mxu0 0.0
    %3433 = vmatpush1.msra.mxu0 0.0
    %3434 = vmatprep.subr.mxu0 0.0
    %3435 = vmatpush1.msra.mxu0 0.0
    %3436 = vmatprep.mubr.f32.mxu0 0.0
    %3437 = vmatmul.mubr.f32.gmra.mrb[0].mxu0 %v3370
    %v3438 = vpop.f32.mrb[0].mxu0
    %v3439 = vadd.f32 %v3356, %v3438
    %v3440 = vpop.f32.mrb[0].mxu0
    %3441 = vdwg.mxu0
    %v3442 = vld [vmem:[%s9] sm:$0x1]
    %v3444 = vlaneseq
    %v3445 = vshrl.u32 %v3444, 7
    %v3446 = vsub.s32 0, %v3445
    %v3447 = vrot.slane %v3442, %v3446
    %v3449 = vadd.f32 %v3439, %v3447
    %v3450 = vxor.u32 %v3449, 2147483648
    %v3451 = vmul.f32 %v3450, 1.442695
    %v3452 = vpow.pop %v3451
    %v3453 = vadd.f32 %v3452, 1.0
    %v3454 = vrcp.pop %v3453
    %v3455 = vmul.f32 1.0, %v3454
    %v3456 = vtanh.pop %v3449
    %v3457 = vmul.f32 %v3455, %v2680
    %3459 = vrot.lane.b32.xlu0 %v3456, 64
    %v3460 = vpop.permute.xlu0 %3459
    %v3462 = vmul.f32 %v3455, %v3460
    %3464 = vrot.lane.b32.xlu0 %v3462, 32
    %v3465 = vpop.permute.xlu0 %3464
    %v3467 = vadd.f32 %v3457, %v3465
    %v3468 = vtanh.pop %v3467
    %3470 = vrot.lane.b32.xlu0 %v3468, 64
    %v3471 = vpop.permute.xlu0 %3470
    %v3473 = vmul.f32 %v3455, %v3471
    %v3474 = vld [vmem:[#allocation10] sm:$0xff]
    %v3475 = vld [vmem:[#allocation10 + $0x8] sm:$0xff]
    %v3476 = vld [vmem:[#allocation10 + $0x10] sm:$0xff]
    %v3477 = vld [vmem:[#allocation10 + $0x18] sm:$0xff]
    %v3478 = vld [vmem:[#allocation10 + $0x20] sm:$0xff]
    %v3479 = vld [vmem:[#allocation10 + $0x28] sm:$0xff]
    %v3480 = vld [vmem:[#allocation10 + $0x30] sm:$0xff]
    %v3481 = vld [vmem:[#allocation10 + $0x38] sm:$0xff]
    %v3482 = vld [vmem:[#allocation10 + $0x40] sm:$0xff]
    %v3483 = vld [vmem:[#allocation10 + $0x48] sm:$0xff]
    %v3484 = vld [vmem:[#allocation10 + $0x50] sm:$0xff]
    %v3485 = vld [vmem:[#allocation10 + $0x58] sm:$0xff]
    %v3486 = vld [vmem:[#allocation10 + $0x60] sm:$0xff]
    %v3487 = vld [vmem:[#allocation10 + $0x68] sm:$0xff]
    %v3488 = vld [vmem:[#allocation10 + $0x70] sm:$0xff]
    %v3489 = vld [vmem:[#allocation10 + $0x78] sm:$0xff]
    %3490 = vmatprep.subr.mxu0 %v3475
    %3491 = vmatpush1.msra.mxu0 %v3474
    %3492 = vmatprep.subr.mxu0 %v3477
    %3493 = vmatpush1.msra.mxu0 %v3476
    %3494 = vmatprep.subr.mxu0 %v3479
    %3495 = vmatpush1.msra.mxu0 %v3478
    %3496 = vmatprep.subr.mxu0 %v3481
    %3497 = vmatpush1.msra.mxu0 %v3480
    %3498 = vmatprep.subr.mxu0 %v3483
    %3499 = vmatpush1.msra.mxu0 %v3482
    %3500 = vmatprep.subr.mxu0 %v3485
    %3501 = vmatpush1.msra.mxu0 %v3484
    %3502 = vmatprep.subr.mxu0 %v3487
    %3503 = vmatpush1.msra.mxu0 %v3486
    %3504 = vmatprep.subr.mxu0 %v3489
    %3505 = vmatpush1.msra.mxu0 %v3488
    %3506 = vmatprep.subr.mxu0 0.0
    %3507 = vmatpush1.msra.mxu0 0.0
    %3508 = vmatprep.subr.mxu0 0.0
    %3509 = vmatpush1.msra.mxu0 0.0
    %3510 = vmatprep.subr.mxu0 0.0
    %3511 = vmatpush1.msra.mxu0 0.0
    %3512 = vmatprep.subr.mxu0 0.0
    %3513 = vmatpush1.msra.mxu0 0.0
    %3514 = vmatprep.subr.mxu0 0.0
    %3515 = vmatpush1.msra.mxu0 0.0
    %3516 = vmatprep.subr.mxu0 0.0
    %3517 = vmatpush1.msra.mxu0 0.0
    %3518 = vmatprep.subr.mxu0 0.0
    %3519 = vmatpush1.msra.mxu0 0.0
    %3520 = vmatprep.subr.mxu0 0.0
    %3521 = vmatpush1.msra.mxu0 0.0
    %3522 = vmatprep.subr.mxu0 0.0
    %3523 = vmatpush1.msra.mxu0 0.0
    %3524 = vmatprep.subr.mxu0 0.0
    %3525 = vmatpush1.msra.mxu0 0.0
    %3526 = vmatprep.subr.mxu0 0.0
    %3527 = vmatpush1.msra.mxu0 0.0
    %3528 = vmatprep.subr.mxu0 0.0
    %3529 = vmatpush1.msra.mxu0 0.0
    %3530 = vmatprep.subr.mxu0 0.0
    %3531 = vmatpush1.msra.mxu0 0.0
    %3532 = vmatprep.subr.mxu0 0.0
    %3533 = vmatpush1.msra.mxu0 0.0
    %3534 = vmatprep.subr.mxu0 0.0
    %3535 = vmatpush1.msra.mxu0 0.0
    %3536 = vmatprep.subr.mxu0 0.0
    %3537 = vmatpush1.msra.mxu0 0.0
    %3538 = vmatprep.subr.mxu0 0.0
    %3539 = vmatpush1.msra.mxu0 0.0
    %3540 = vmatprep.subr.mxu0 0.0
    %3541 = vmatpush1.msra.mxu0 0.0
    %3542 = vmatprep.subr.mxu0 0.0
    %3543 = vmatpush1.msra.mxu0 0.0
    %3544 = vmatprep.subr.mxu0 0.0
    %3545 = vmatpush1.msra.mxu0 0.0
    %3546 = vmatprep.subr.mxu0 0.0
    %3547 = vmatpush1.msra.mxu0 0.0
    %3548 = vmatprep.subr.mxu0 0.0
    %3549 = vmatpush1.msra.mxu0 0.0
    %3550 = vmatprep.subr.mxu0 0.0
    %3551 = vmatpush1.msra.mxu0 0.0
    %3552 = vmatprep.subr.mxu0 0.0
    %3553 = vmatpush1.msra.mxu0 0.0
    %3554 = vmatprep.mubr.f32.mxu0 0.0
    %3555 = vmatmul.mubr.f32.gmra.mrb[0].mxu0 %v3370
    %v3556 = vpop.f32.mrb[0].mxu0
    %v3557 = vadd.f32 0.0, %v3556
    %v3558 = vpop.f32.mrb[0].mxu0
    %v3559 = vadd.f32 0.0, %v3558
    %3560 = vdwg.mxu0
    %v3561 = vld [vmem:[#allocation8] sm:$0xff]
    %v3562 = vld [vmem:[#allocation8 + $0x8] sm:$0xff]
    %v3563 = vld [vmem:[#allocation8 + $0x10] sm:$0xff]
    %v3564 = vld [vmem:[#allocation8 + $0x18] sm:$0xff]
    %v3565 = vld [vmem:[#allocation8 + $0x20] sm:$0xff]
    %v3566 = vld [vmem:[#allocation8 + $0x28] sm:$0xff]
    %v3567 = vld [vmem:[#allocation8 + $0x30] sm:$0xff]
    %v3568 = vld [vmem:[#allocation8 + $0x38] sm:$0xff]
    %v3569 = vld [vmem:[#allocation8 + $0x40] sm:$0xff]
    %v3570 = vld [vmem:[#allocation8 + $0x48] sm:$0xff]
    %v3571 = vld [vmem:[#allocation8 + $0x50] sm:$0xff]
    %v3572 = vld [vmem:[#allocation8 + $0x58] sm:$0xff]
    %v3573 = vld [vmem:[#allocation8 + $0x60] sm:$0xff]
    %v3574 = vld [vmem:[#allocation8 + $0x68] sm:$0xff]
    %v3575 = vld [vmem:[#allocation8 + $0x70] sm:$0xff]
    %v3576 = vld [vmem:[#allocation8 + $0x78] sm:$0xff]
    %v3579 = vrot.slane %v3055, 4
    %v3580 = vrot.slane %v3056, 3
    %v3581 = vsel %vm739, %v3580, %v3579
    %3582 = vrot.lane.b32.xlu0 %v3581, 64
    %v3583 = vpop.permute.xlu0 %3582
    %v3584 = vsel %vm502, %v3583, 0
    %3586 = vmatprep.subr.mxu0 %v3562
    %3587 = vmatpush1.msra.mxu0 %v3561
    %3588 = vmatprep.subr.mxu0 %v3564
    %3589 = vmatpush1.msra.mxu0 %v3563
    %3590 = vmatprep.subr.mxu0 %v3566
    %3591 = vmatpush1.msra.mxu0 %v3565
    %3592 = vmatprep.subr.mxu0 %v3568
    %3593 = vmatpush1.msra.mxu0 %v3567
    %3594 = vmatprep.subr.mxu0 %v3570
    %3595 = vmatpush1.msra.mxu0 %v3569
    %3596 = vmatprep.subr.mxu0 %v3572
    %3597 = vmatpush1.msra.mxu0 %v3571
    %3598 = vmatprep.subr.mxu0 %v3574
    %3599 = vmatpush1.msra.mxu0 %v3573
    %3600 = vmatprep.subr.mxu0 %v3576
    %3601 = vmatpush1.msra.mxu0 %v3575
    %3602 = vmatprep.subr.mxu0 0.0
    %3603 = vmatpush1.msra.mxu0 0.0
    %3604 = vmatprep.subr.mxu0 0.0
    %3605 = vmatpush1.msra.mxu0 0.0
    %3606 = vmatprep.subr.mxu0 0.0
    %3607 = vmatpush1.msra.mxu0 0.0
    %3608 = vmatprep.subr.mxu0 0.0
    %3609 = vmatpush1.msra.mxu0 0.0
    %3610 = vmatprep.subr.mxu0 0.0
    %3611 = vmatpush1.msra.mxu0 0.0
    %3612 = vmatprep.subr.mxu0 0.0
    %3613 = vmatpush1.msra.mxu0 0.0
    %3614 = vmatprep.subr.mxu0 0.0
    %3615 = vmatpush1.msra.mxu0 0.0
    %3616 = vmatprep.subr.mxu0 0.0
    %3617 = vmatpush1.msra.mxu0 0.0
    %3618 = vmatprep.subr.mxu0 0.0
    %3619 = vmatpush1.msra.mxu0 0.0
    %3620 = vmatprep.subr.mxu0 0.0
    %3621 = vmatpush1.msra.mxu0 0.0
    %3622 = vmatprep.subr.mxu0 0.0
    %3623 = vmatpush1.msra.mxu0 0.0
    %3624 = vmatprep.subr.mxu0 0.0
    %3625 = vmatpush1.msra.mxu0 0.0
    %3626 = vmatprep.subr.mxu0 0.0
    %3627 = vmatpush1.msra.mxu0 0.0
    %3628 = vmatprep.subr.mxu0 0.0
    %3629 = vmatpush1.msra.mxu0 0.0
    %3630 = vmatprep.subr.mxu0 0.0
    %3631 = vmatpush1.msra.mxu0 0.0
    %3632 = vmatprep.subr.mxu0 0.0
    %3633 = vmatpush1.msra.mxu0 0.0
    %3634 = vmatprep.subr.mxu0 0.0
    %3635 = vmatpush1.msra.mxu0 0.0
    %3636 = vmatprep.subr.mxu0 0.0
    %3637 = vmatpush1.msra.mxu0 0.0
    %3638 = vmatprep.subr.mxu0 0.0
    %3639 = vmatpush1.msra.mxu0 0.0
    %3640 = vmatprep.subr.mxu0 0.0
    %3641 = vmatpush1.msra.mxu0 0.0
    %3642 = vmatprep.subr.mxu0 0.0
    %3643 = vmatpush1.msra.mxu0 0.0
    %3644 = vmatprep.subr.mxu0 0.0
    %3645 = vmatpush1.msra.mxu0 0.0
    %3646 = vmatprep.subr.mxu0 0.0
    %3647 = vmatpush1.msra.mxu0 0.0
    %3648 = vmatprep.subr.mxu0 0.0
    %3649 = vmatpush1.msra.mxu0 0.0
    %3650 = vmatprep.mubr.f32.mxu0 0.0
    %3651 = vmatmul.mubr.f32.gmra.mrb[0].mxu0 %v3584
    %v3652 = vpop.f32.mrb[0].mxu0
    %v3653 = vadd.f32 %v3557, %v3652
    %v3654 = vpop.f32.mrb[0].mxu0
    %v3655 = vadd.f32 %v3559, %v3654
    %3656 = vdwg.mxu0
    %v3657 = vld [vmem:[#allocation11] sm:$0x3]
    %v3659 = vlaneseq
    %v3660 = vshrl.u32 %v3659, 7
    %v3661 = vsub.s32 0, %v3660
    %v3662 = vrot.slane %v3657, %v3661
    %v3663 = vlaneseq
    %v3664 = vshrl.u32 %v3663, 7
    %v3665 = vsub.s32 1, %v3664
    %v3666 = vrot.slane %v3657, %v3665
    %v3669 = vadd.f32 %v3653, %v3662
    %v3670 = vadd.f32 %v3655, %v3666
    %v3671 = vxor.u32 %v3669, 2147483648
    %v3672 = vmul.f32 %v3671, 1.442695
    %v3673 = vpow.pop %v3672
    %v3674 = vadd.f32 %v3673, 1.0
    %v3675 = vrcp.pop %v3674
    %v3676 = vmul.f32 1.0, %v3675
    %v3677 = vtanh.pop %v3670
    %v3678 = vxor.u32 %v3670, 2147483648
    %v3679 = vmul.f32 %v3678, 1.442695
    %v3680 = vpow.pop %v3679
    %v3681 = vadd.f32 %v3680, 1.0
    %v3682 = vrcp.pop %v3681
    %v3683 = vmul.f32 1.0, %v3682
    %v3684 = vmul.f32 %v3676, %v2903
    %v3685 = vmul.f32 %v3676, %v3677
    %3687 = vrot.lane.b32.xlu0 %v3685, 64
    %v3688 = vpop.permute.xlu0 %3687
    %v3690 = vadd.f32 %v3684, %v3688
    %v3691 = vtanh.pop %v3690
    %v3692 = vmul.f32 %v3683, %v3691
    %v3693 = vld [vmem:[#allocation7] sm:$0xff]
    %v3694 = vld [vmem:[#allocation7 + $0x8] sm:$0xff]
    %v3695 = vld [vmem:[#allocation7 + $0x10] sm:$0xff]
    %v3696 = vld [vmem:[#allocation7 + $0x18] sm:$0xff]
    %v3697 = vld [vmem:[#allocation7 + $0x20] sm:$0xff]
    %v3698 = vld [vmem:[#allocation7 + $0x28] sm:$0xff]
    %v3699 = vld [vmem:[#allocation7 + $0x30] sm:$0xff]
    %v3700 = vld [vmem:[#allocation7 + $0x38] sm:$0xff]
    %v3701 = vld [vmem:[#allocation7 + $0x40] sm:$0xff]
    %v3702 = vld [vmem:[#allocation7 + $0x48] sm:$0xff]
    %v3703 = vld [vmem:[#allocation7 + $0x50] sm:$0xff]
    %v3704 = vld [vmem:[#allocation7 + $0x58] sm:$0xff]
    %v3705 = vld [vmem:[#allocation7 + $0x60] sm:$0xff]
    %v3706 = vld [vmem:[#allocation7 + $0x68] sm:$0xff]
    %v3707 = vld [vmem:[#allocation7 + $0x70] sm:$0xff]
    %v3708 = vld [vmem:[#allocation7 + $0x78] sm:$0xff]
    %3709 = vmatprep.subr.mxu0 %v3694
    %3710 = vmatpush1.msra.mxu0 %v3693
    %3711 = vmatprep.subr.mxu0 %v3696
    %3712 = vmatpush1.msra.mxu0 %v3695
    %3713 = vmatprep.subr.mxu0 %v3698
    %3714 = vmatpush1.msra.mxu0 %v3697
    %3715 = vmatprep.subr.mxu0 %v3700
    %3716 = vmatpush1.msra.mxu0 %v3699
    %3717 = vmatprep.subr.mxu0 %v3702
    %3718 = vmatpush1.msra.mxu0 %v3701
    %3719 = vmatprep.subr.mxu0 %v3704
    %3720 = vmatpush1.msra.mxu0 %v3703
    %3721 = vmatprep.subr.mxu0 %v3706
    %3722 = vmatpush1.msra.mxu0 %v3705
    %3723 = vmatprep.subr.mxu0 %v3708
    %3724 = vmatpush1.msra.mxu0 %v3707
    %3725 = vmatprep.subr.mxu0 0.0
    %3726 = vmatpush1.msra.mxu0 0.0
    %3727 = vmatprep.subr.mxu0 0.0
    %3728 = vmatpush1.msra.mxu0 0.0
    %3729 = vmatprep.subr.mxu0 0.0
    %3730 = vmatpush1.msra.mxu0 0.0
    %3731 = vmatprep.subr.mxu0 0.0
    %3732 = vmatpush1.msra.mxu0 0.0
    %3733 = vmatprep.subr.mxu0 0.0
    %3734 = vmatpush1.msra.mxu0 0.0
    %3735 = vmatprep.subr.mxu0 0.0
    %3736 = vmatpush1.msra.mxu0 0.0
    %3737 = vmatprep.subr.mxu0 0.0
    %3738 = vmatpush1.msra.mxu0 0.0
    %3739 = vmatprep.subr.mxu0 0.0
    %3740 = vmatpush1.msra.mxu0 0.0
    %3741 = vmatprep.subr.mxu0 0.0
    %3742 = vmatpush1.msra.mxu0 0.0
    %3743 = vmatprep.subr.mxu0 0.0
    %3744 = vmatpush1.msra.mxu0 0.0
    %3745 = vmatprep.subr.mxu0 0.0
    %3746 = vmatpush1.msra.mxu0 0.0
    %3747 = vmatprep.subr.mxu0 0.0
    %3748 = vmatpush1.msra.mxu0 0.0
    %3749 = vmatprep.subr.mxu0 0.0
    %3750 = vmatpush1.msra.mxu0 0.0
    %3751 = vmatprep.subr.mxu0 0.0
    %3752 = vmatpush1.msra.mxu0 0.0
    %3753 = vmatprep.subr.mxu0 0.0
    %3754 = vmatpush1.msra.mxu0 0.0
    %3755 = vmatprep.subr.mxu0 0.0
    %3756 = vmatpush1.msra.mxu0 0.0
    %3757 = vmatprep.subr.mxu0 0.0
    %3758 = vmatpush1.msra.mxu0 0.0
    %3759 = vmatprep.subr.mxu0 0.0
    %3760 = vmatpush1.msra.mxu0 0.0
    %3761 = vmatprep.subr.mxu0 0.0
    %3762 = vmatpush1.msra.mxu0 0.0
    %3763 = vmatprep.subr.mxu0 0.0
    %3764 = vmatpush1.msra.mxu0 0.0
    %3765 = vmatprep.subr.mxu0 0.0
    %3766 = vmatpush1.msra.mxu0 0.0
    %3767 = vmatprep.subr.mxu0 0.0
    %3768 = vmatpush1.msra.mxu0 0.0
    %3769 = vmatprep.subr.mxu0 0.0
    %3770 = vmatpush1.msra.mxu0 0.0
    %3771 = vmatprep.subr.mxu0 0.0
    %3772 = vmatpush1.msra.mxu0 0.0
    %3773 = vmatprep.mubr.f32.mxu0 0.0
    %3774 = vmatmul.mubr.f32.gmra.mrb[0].mxu0 %v3584
    %v3775 = vpop.f32.mrb[0].mxu0
    %v3776 = vadd.f32 0.0, %v3775
    %v3777 = vpop.f32.mrb[0].mxu0
    %v3778 = vadd.f32 0.0, %v3777
    %3779 = vdwg.mxu0
    %v3782 = vrot.slane %v3776, 3
    %v3783 = vrot.slane %v3778, 3
    %v3784 = vrot.slane %v3776, 4
    %v3785 = vrot.slane %v3778, 4
    %v3790 = vadd.f32 %v476, %v3782
    %v3791 = vadd.f32 %v478, %v3783
    %v3792 = vadd.f32 %v482, %v3784
    %v3793 = vadd.f32 %v484, %v3785
    %v3794 = vxor.u32 %v3790, 2147483648
    %v3795 = vxor.u32 %v3792, 2147483648
    %v3796 = vmul.f32 %v3794, 1.442695
    %v3797 = vpow.pop %v3796
    %v3798 = vmul.f32 %v3795, 1.442695
    %v3799 = vpow.pop %v3798
    %v3800 = vadd.f32 %v3797, 1.0
    %v3801 = vadd.f32 %v3799, 1.0
    %v3802 = vrcp.pop %v3800
    %v3803 = vmul.f32 1.0, %v3802
    %v3804 = vrcp.pop %v3801
    %v3805 = vmul.f32 1.0, %v3804
    %v3806 = vtanh.pop %v3791
    %v3807 = vtanh.pop %v3793
    %v3808 = vxor.u32 %v3791, 2147483648
    %v3809 = vxor.u32 %v3793, 2147483648
    %v3810 = vmul.f32 %v3808, 1.442695
    %v3811 = vpow.pop %v3810
    %v3812 = vmul.f32 %v3809, 1.442695
    %v3813 = vpow.pop %v3812
    %v3814 = vadd.f32 %v3811, 1.0
    %v3815 = vadd.f32 %v3813, 1.0
    %v3816 = vrcp.pop %v3814
    %v3817 = vmul.f32 1.0, %v3816
    %v3818 = vrcp.pop %v3815
    %v3819 = vmul.f32 1.0, %v3818
    %v3822 = vrot.slane %v3051, 7
    %v3823 = vrot.slane %v3052, 7
    %v3826 = vmul.f32 %v3803, %v3822
    %v3827 = vmul.f32 %v3805, %v3823
    %v3828 = vmul.f32 %v3803, %v3806
    %v3829 = vmul.f32 %v3805, %v3807
    %3832 = vrot.lane.b32.xlu0 %v3828, 64
    %v3833 = vpop.permute.xlu0 %3832
    %3834 = vrot.lane.b32.xlu0 %v3829, 64
    %v3835 = vpop.permute.xlu0 %3834
    %v3838 = vadd.f32 %v3826, %v3833
    %v3839 = vadd.f32 %v3827, %v3835
    %v3840 = vtanh.pop %v3838
    %v3841 = vtanh.pop %v3839
    %v3842 = vmul.f32 %v3817, %v3840
    %v3843 = vmul.f32 %v3819, %v3841
    %v3844 = vld [vmem:[#allocation16] sm:$0xff]
    %v3845 = vld [vmem:[#allocation16 + $0x8] sm:$0xff]
    %v3846 = vld [vmem:[#allocation16 + $0x10] sm:$0xff]
    %v3847 = vld [vmem:[#allocation16 + $0x18] sm:$0xff]
    %3848 = vrot.lane.b32.xlu0 %v3245, 32
    %v3849 = vpop.permute.xlu0 %3848
    %v3850 = vsel %vm989, %v3849, 0
    %3852 = vmatprep.subr.mxu0 0.0
    %3853 = vmatpush1.msra.mxu0 %v3844
    %3854 = vmatprep.subr.mxu0 0.0
    %3855 = vmatpush1.msra.mxu0 %v3845
    %3856 = vmatprep.subr.mxu0 0.0
    %3857 = vmatpush1.msra.mxu0 %v3846
    %3858 = vmatprep.subr.mxu0 0.0
    %3859 = vmatpush1.msra.mxu0 %v3847
    %3860 = vmatprep.subr.mxu0 0.0
    %3861 = vmatpush1.msra.mxu0 0.0
    %3862 = vmatprep.subr.mxu0 0.0
    %3863 = vmatpush1.msra.mxu0 0.0
    %3864 = vmatprep.subr.mxu0 0.0
    %3865 = vmatpush1.msra.mxu0 0.0
    %3866 = vmatprep.subr.mxu0 0.0
    %3867 = vmatpush1.msra.mxu0 0.0
    %3868 = vmatprep.subr.mxu0 0.0
    %3869 = vmatpush1.msra.mxu0 0.0
    %3870 = vmatprep.subr.mxu0 0.0
    %3871 = vmatpush1.msra.mxu0 0.0
    %3872 = vmatprep.subr.mxu0 0.0
    %3873 = vmatpush1.msra.mxu0 0.0
    %3874 = vmatprep.subr.mxu0 0.0
    %3875 = vmatpush1.msra.mxu0 0.0
    %3876 = vmatprep.subr.mxu0 0.0
    %3877 = vmatpush1.msra.mxu0 0.0
    %3878 = vmatprep.subr.mxu0 0.0
    %3879 = vmatpush1.msra.mxu0 0.0
    %3880 = vmatprep.subr.mxu0 0.0
    %3881 = vmatpush1.msra.mxu0 0.0
    %3882 = vmatprep.subr.mxu0 0.0
    %3883 = vmatpush1.msra.mxu0 0.0
    %3884 = vmatprep.subr.mxu0 0.0
    %3885 = vmatpush1.msra.mxu0 0.0
    %3886 = vmatprep.subr.mxu0 0.0
    %3887 = vmatpush1.msra.mxu0 0.0
    %3888 = vmatprep.subr.mxu0 0.0
    %3889 = vmatpush1.msra.mxu0 0.0
    %3890 = vmatprep.subr.mxu0 0.0
    %3891 = vmatpush1.msra.mxu0 0.0
    %3892 = vmatprep.subr.mxu0 0.0
    %3893 = vmatpush1.msra.mxu0 0.0
    %3894 = vmatprep.subr.mxu0 0.0
    %3895 = vmatpush1.msra.mxu0 0.0
    %3896 = vmatprep.subr.mxu0 0.0
    %3897 = vmatpush1.msra.mxu0 0.0
    %3898 = vmatprep.subr.mxu0 0.0
    %3899 = vmatpush1.msra.mxu0 0.0
    %3900 = vmatprep.subr.mxu0 0.0
    %3901 = vmatpush1.msra.mxu0 0.0
    %3902 = vmatprep.subr.mxu0 0.0
    %3903 = vmatpush1.msra.mxu0 0.0
    %3904 = vmatprep.subr.mxu0 0.0
    %3905 = vmatpush1.msra.mxu0 0.0
    %3906 = vmatprep.subr.mxu0 0.0
    %3907 = vmatpush1.msra.mxu0 0.0
    %3908 = vmatprep.subr.mxu0 0.0
    %3909 = vmatpush1.msra.mxu0 0.0
    %3910 = vmatprep.subr.mxu0 0.0
    %3911 = vmatpush1.msra.mxu0 0.0
    %3912 = vmatprep.subr.mxu0 0.0
    %3913 = vmatpush1.msra.mxu0 0.0
    %3914 = vmatprep.subr.mxu0 0.0
    %3915 = vmatpush1.msra.mxu0 0.0
    %3916 = vmatprep.mubr.f32.mxu0 0.0
    %3917 = vmatmul.mubr.f32.gmra.mrb[0].mxu0 %v3850
    %v3918 = vpop.f32.mrb[0].mxu0
    %v3919 = vadd.f32 0.0, %v3918
    %v3920 = vpop.f32.mrb[0].mxu0
    %3921 = vdwg.mxu0
    %v3922 = vld [vmem:[#allocation14] sm:$0xff]
    %v3923 = vld [vmem:[#allocation14 + $0x8] sm:$0xff]
    %v3924 = vld [vmem:[#allocation14 + $0x10] sm:$0xff]
    %v3925 = vld [vmem:[#allocation14 + $0x18] sm:$0xff]
    %3927 = vrot.lane.b32.xlu0 %v3473, 32
    %v3928 = vpop.permute.xlu0 %3927
    %v3929 = vsel %vm989, %v3928, 0
    %3931 = vmatprep.subr.mxu0 0.0
    %3932 = vmatpush1.msra.mxu0 %v3922
    %3933 = vmatprep.subr.mxu0 0.0
    %3934 = vmatpush1.msra.mxu0 %v3923
    %3935 = vmatprep.subr.mxu0 0.0
    %3936 = vmatpush1.msra.mxu0 %v3924
    %3937 = vmatprep.subr.mxu0 0.0
    %3938 = vmatpush1.msra.mxu0 %v3925
    %3939 = vmatprep.subr.mxu0 0.0
    %3940 = vmatpush1.msra.mxu0 0.0
    %3941 = vmatprep.subr.mxu0 0.0
    %3942 = vmatpush1.msra.mxu0 0.0
    %3943 = vmatprep.subr.mxu0 0.0
    %3944 = vmatpush1.msra.mxu0 0.0
    %3945 = vmatprep.subr.mxu0 0.0
    %3946 = vmatpush1.msra.mxu0 0.0
    %3947 = vmatprep.subr.mxu0 0.0
    %3948 = vmatpush1.msra.mxu0 0.0
    %3949 = vmatprep.subr.mxu0 0.0
    %3950 = vmatpush1.msra.mxu0 0.0
    %3951 = vmatprep.subr.mxu0 0.0
    %3952 = vmatpush1.msra.mxu0 0.0
    %3953 = vmatprep.subr.mxu0 0.0
    %3954 = vmatpush1.msra.mxu0 0.0
    %3955 = vmatprep.subr.mxu0 0.0
    %3956 = vmatpush1.msra.mxu0 0.0
    %3957 = vmatprep.subr.mxu0 0.0
    %3958 = vmatpush1.msra.mxu0 0.0
    %3959 = vmatprep.subr.mxu0 0.0
    %3960 = vmatpush1.msra.mxu0 0.0
    %3961 = vmatprep.subr.mxu0 0.0
    %3962 = vmatpush1.msra.mxu0 0.0
    %3963 = vmatprep.subr.mxu0 0.0
    %3964 = vmatpush1.msra.mxu0 0.0
    %3965 = vmatprep.subr.mxu0 0.0
    %3966 = vmatpush1.msra.mxu0 0.0
    %3967 = vmatprep.subr.mxu0 0.0
    %3968 = vmatpush1.msra.mxu0 0.0
    %3969 = vmatprep.subr.mxu0 0.0
    %3970 = vmatpush1.msra.mxu0 0.0
    %3971 = vmatprep.subr.mxu0 0.0
    %3972 = vmatpush1.msra.mxu0 0.0
    %3973 = vmatprep.subr.mxu0 0.0
    %3974 = vmatpush1.msra.mxu0 0.0
    %3975 = vmatprep.subr.mxu0 0.0
    %3976 = vmatpush1.msra.mxu0 0.0
    %3977 = vmatprep.subr.mxu0 0.0
    %3978 = vmatpush1.msra.mxu0 0.0
    %3979 = vmatprep.subr.mxu0 0.0
    %3980 = vmatpush1.msra.mxu0 0.0
    %3981 = vmatprep.subr.mxu0 0.0
    %3982 = vmatpush1.msra.mxu0 0.0
    %3983 = vmatprep.subr.mxu0 0.0
    %3984 = vmatpush1.msra.mxu0 0.0
    %3985 = vmatprep.subr.mxu0 0.0
    %3986 = vmatpush1.msra.mxu0 0.0
    %3987 = vmatprep.subr.mxu0 0.0
    %3988 = vmatpush1.msra.mxu0 0.0
    %3989 = vmatprep.subr.mxu0 0.0
    %3990 = vmatpush1.msra.mxu0 0.0
    %3991 = vmatprep.subr.mxu0 0.0
    %3992 = vmatpush1.msra.mxu0 0.0
    %3993 = vmatprep.subr.mxu0 0.0
    %3994 = vmatpush1.msra.mxu0 0.0
    %3995 = vmatprep.mubr.f32.mxu0 0.0
    %3996 = vmatmul.mubr.f32.gmra.mrb[0].mxu0 %v3929
    %v3997 = vpop.f32.mrb[0].mxu0
    %v3998 = vadd.f32 %v3919, %v3997
    %v3999 = vpop.f32.mrb[0].mxu0
    %4000 = vdwg.mxu0
    %v4001 = vld [vmem:[%s12] sm:$0x1]
    %v4003 = vlaneseq
    %v4004 = vshrl.u32 %v4003, 7
    %v4005 = vsub.s32 0, %v4004
    %v4006 = vrot.slane %v4001, %v4005
    %v4008 = vadd.f32 %v3998, %v4006
    %v4009 = vxor.u32 %v4008, 2147483648
    %v4010 = vmul.f32 %v4009, 1.442695
    %v4011 = vpow.pop %v4010
    %v4012 = vadd.f32 %v4011, 1.0
    %v4013 = vrcp.pop %v4012
    %v4014 = vmul.f32 1.0, %v4013
    %v4015 = vtanh.pop %v4008
    %v4016 = vmul.f32 %v4014, %v3239
    %4018 = vrot.lane.b32.xlu0 %v4015, 64
    %v4019 = vpop.permute.xlu0 %4018
    %v4021 = vmul.f32 %v4014, %v4019
    %4023 = vrot.lane.b32.xlu0 %v4021, 32
    %v4024 = vpop.permute.xlu0 %4023
    %v4026 = vadd.f32 %v4016, %v4024
    %v4027 = vtanh.pop %v4026
    %4029 = vrot.lane.b32.xlu0 %v4027, 64
    %v4030 = vpop.permute.xlu0 %4029
    %v4032 = vmul.f32 %v4014, %v4030
    %v4035 = vunpack.c.l.s4 1966171168
    %v4036 = vunpack.c.0.s8 %v4035
    %v4037 = vlaneseq
    %v4038 = vshrl.u32 %v4037, 7
    %v4039 = vsub.s32 %v4036, %v4038
    %v4040 = vrot.slane %v4032, %v4039
    %v4041 = vcombine.high %v4040, %v4040
    %v4043 = vunpack.c.l.s4 1966171168
    %v4044 = vunpack.c.0.s8 %v4043
    %v4045 = vlaneseq
    %v4046 = vshrl.u32 %v4045, 7
    %v4047 = vsub.s32 %v4044, %v4046
    %v4048 = vrot.slane %v4040, %v4047
    %v4050 = vunpack.c.l.s4 1966171168
    %v4051 = vunpack.c.0.s8 %v4050
    %v4052 = vlaneseq
    %v4053 = vshrl.u32 %v4052, 7
    %v4054 = vsub.s32 %v4051, %v4053
    %v4055 = vrot.slane %v4041, %v4054
    %v4056 = vlaneseq
    %v4057 = vshrl.u32 %v4056, 7
    %v4058 = vsub.s32 0, %v4057
    %v4059 = vrot.slane %v4048, %v4058
    %v4060 = vlaneseq
    %v4061 = vshrl.u32 %v4060, 7
    %v4062 = vsub.s32 0, %v4061
    %v4063 = vrot.slane %v4055, %v4062
    %4064 = vrot.lane.b32.xlu0 %v4059, 32
    %v4065 = vpop.permute.xlu0 %4064
    %4066 = vrot.lane.b32.xlu0 %v4063, 32
    %v4067 = vpop.permute.xlu0 %4066
    %4070 = vst.msk [vmem:[#allocation2 + $0x3] sm:$0x1] %vm1708, %v4065
    %4071 = vst.msk [vmem:[#allocation2 + $0xb] sm:$0x1] %vm1708, %v4067
    %v4072 = vld [vmem:[%s8] sm:$0xff]
    %v4073 = vld [vmem:[%s8 + $0x8] sm:$0xff]
    %v4074 = vld [vmem:[%s8 + $0x10] sm:$0xff]
    %v4075 = vld [vmem:[%s8 + $0x18] sm:$0xff]
    %4076 = vmatprep.subr.mxu0 0.0
    %4077 = vmatpush1.msra.mxu0 %v4072
    %4078 = vmatprep.subr.mxu0 0.0
    %4079 = vmatpush1.msra.mxu0 %v4073
    %4080 = vmatprep.subr.mxu0 0.0
    %4081 = vmatpush1.msra.mxu0 %v4074
    %4082 = vmatprep.subr.mxu0 0.0
    %4083 = vmatpush1.msra.mxu0 %v4075
    %4084 = vmatprep.subr.mxu0 0.0
    %4085 = vmatpush1.msra.mxu0 0.0
    %4086 = vmatprep.subr.mxu0 0.0
    %4087 = vmatpush1.msra.mxu0 0.0
    %4088 = vmatprep.subr.mxu0 0.0
    %4089 = vmatpush1.msra.mxu0 0.0
    %4090 = vmatprep.subr.mxu0 0.0
    %4091 = vmatpush1.msra.mxu0 0.0
    %4092 = vmatprep.subr.mxu0 0.0
    %4093 = vmatpush1.msra.mxu0 0.0
    %4094 = vmatprep.subr.mxu0 0.0
    %4095 = vmatpush1.msra.mxu0 0.0
    %4096 = vmatprep.subr.mxu0 0.0
    %4097 = vmatpush1.msra.mxu0 0.0
    %4098 = vmatprep.subr.mxu0 0.0
    %4099 = vmatpush1.msra.mxu0 0.0
    %4100 = vmatprep.subr.mxu0 0.0
    %4101 = vmatpush1.msra.mxu0 0.0
    %4102 = vmatprep.subr.mxu0 0.0
    %4103 = vmatpush1.msra.mxu0 0.0
    %4104 = vmatprep.subr.mxu0 0.0
    %4105 = vmatpush1.msra.mxu0 0.0
    %4106 = vmatprep.subr.mxu0 0.0
    %4107 = vmatpush1.msra.mxu0 0.0
    %4108 = vmatprep.subr.mxu0 0.0
    %4109 = vmatpush1.msra.mxu0 0.0
    %4110 = vmatprep.subr.mxu0 0.0
    %4111 = vmatpush1.msra.mxu0 0.0
    %4112 = vmatprep.subr.mxu0 0.0
    %4113 = vmatpush1.msra.mxu0 0.0
    %4114 = vmatprep.subr.mxu0 0.0
    %4115 = vmatpush1.msra.mxu0 0.0
    %4116 = vmatprep.subr.mxu0 0.0
    %4117 = vmatpush1.msra.mxu0 0.0
    %4118 = vmatprep.subr.mxu0 0.0
    %4119 = vmatpush1.msra.mxu0 0.0
    %4120 = vmatprep.subr.mxu0 0.0
    %4121 = vmatpush1.msra.mxu0 0.0
    %4122 = vmatprep.subr.mxu0 0.0
    %4123 = vmatpush1.msra.mxu0 0.0
    %4124 = vmatprep.subr.mxu0 0.0
    %4125 = vmatpush1.msra.mxu0 0.0
    %4126 = vmatprep.subr.mxu0 0.0
    %4127 = vmatpush1.msra.mxu0 0.0
    %4128 = vmatprep.subr.mxu0 0.0
    %4129 = vmatpush1.msra.mxu0 0.0
    %4130 = vmatprep.subr.mxu0 0.0
    %4131 = vmatpush1.msra.mxu0 0.0
    %4132 = vmatprep.subr.mxu0 0.0
    %4133 = vmatpush1.msra.mxu0 0.0
    %4134 = vmatprep.subr.mxu0 0.0
    %4135 = vmatpush1.msra.mxu0 0.0
    %4136 = vmatprep.subr.mxu0 0.0
    %4137 = vmatpush1.msra.mxu0 0.0
    %4138 = vmatprep.subr.mxu0 0.0
    %4139 = vmatpush1.msra.mxu0 0.0
    %4140 = vmatprep.mubr.f32.mxu0 0.0
    %4141 = vmatmul.mubr.f32.gmra.mrb[0].mxu0 %v3929
    %v4142 = vpop.f32.mrb[0].mxu0
    %v4143 = vadd.f32 0.0, %v4142
    %v4144 = vpop.f32.mrb[0].mxu0
    %4145 = vdwg.mxu0
    %v4146 = vld [vmem:[#allocation13] sm:$0xff]
    %v4147 = vld [vmem:[#allocation13 + $0x8] sm:$0xff]
    %v4148 = vld [vmem:[#allocation13 + $0x10] sm:$0xff]
    %v4149 = vld [vmem:[#allocation13 + $0x18] sm:$0xff]
    %v4150 = vld [vmem:[#allocation13 + $0x20] sm:$0xff]
    %v4151 = vld [vmem:[#allocation13 + $0x28] sm:$0xff]
    %v4152 = vld [vmem:[#allocation13 + $0x30] sm:$0xff]
    %v4153 = vld [vmem:[#allocation13 + $0x38] sm:$0xff]
    %4155 = vrot.lane.b32.xlu0 %v3692, 64
    %v4156 = vpop.permute.xlu0 %4155
    %v4157 = vsel %vm502, %v4156, 0
    %4159 = vmatprep.subr.mxu0 0.0
    %4160 = vmatpush1.msra.mxu0 %v4146
    %4161 = vmatprep.subr.mxu0 0.0
    %4162 = vmatpush1.msra.mxu0 %v4147
    %4163 = vmatprep.subr.mxu0 0.0
    %4164 = vmatpush1.msra.mxu0 %v4148
    %4165 = vmatprep.subr.mxu0 0.0
    %4166 = vmatpush1.msra.mxu0 %v4149
    %4167 = vmatprep.subr.mxu0 0.0
    %4168 = vmatpush1.msra.mxu0 %v4150
    %4169 = vmatprep.subr.mxu0 0.0
    %4170 = vmatpush1.msra.mxu0 %v4151
    %4171 = vmatprep.subr.mxu0 0.0
    %4172 = vmatpush1.msra.mxu0 %v4152
    %4173 = vmatprep.subr.mxu0 0.0
    %4174 = vmatpush1.msra.mxu0 %v4153
    %4175 = vmatprep.subr.mxu0 0.0
    %4176 = vmatpush1.msra.mxu0 0.0
    %4177 = vmatprep.subr.mxu0 0.0
    %4178 = vmatpush1.msra.mxu0 0.0
    %4179 = vmatprep.subr.mxu0 0.0
    %4180 = vmatpush1.msra.mxu0 0.0
    %4181 = vmatprep.subr.mxu0 0.0
    %4182 = vmatpush1.msra.mxu0 0.0
    %4183 = vmatprep.subr.mxu0 0.0
    %4184 = vmatpush1.msra.mxu0 0.0
    %4185 = vmatprep.subr.mxu0 0.0
    %4186 = vmatpush1.msra.mxu0 0.0
    %4187 = vmatprep.subr.mxu0 0.0
    %4188 = vmatpush1.msra.mxu0 0.0
    %4189 = vmatprep.subr.mxu0 0.0
    %4190 = vmatpush1.msra.mxu0 0.0
    %4191 = vmatprep.subr.mxu0 0.0
    %4192 = vmatpush1.msra.mxu0 0.0
    %4193 = vmatprep.subr.mxu0 0.0
    %4194 = vmatpush1.msra.mxu0 0.0
    %4195 = vmatprep.subr.mxu0 0.0
    %4196 = vmatpush1.msra.mxu0 0.0
    %4197 = vmatprep.subr.mxu0 0.0
    %4198 = vmatpush1.msra.mxu0 0.0
    %4199 = vmatprep.subr.mxu0 0.0
    %4200 = vmatpush1.msra.mxu0 0.0
    %4201 = vmatprep.subr.mxu0 0.0
    %4202 = vmatpush1.msra.mxu0 0.0
    %4203 = vmatprep.subr.mxu0 0.0
    %4204 = vmatpush1.msra.mxu0 0.0
    %4205 = vmatprep.subr.mxu0 0.0
    %4206 = vmatpush1.msra.mxu0 0.0
    %4207 = vmatprep.subr.mxu0 0.0
    %4208 = vmatpush1.msra.mxu0 0.0
    %4209 = vmatprep.subr.mxu0 0.0
    %4210 = vmatpush1.msra.mxu0 0.0
    %4211 = vmatprep.subr.mxu0 0.0
    %4212 = vmatpush1.msra.mxu0 0.0
    %4213 = vmatprep.subr.mxu0 0.0
    %4214 = vmatpush1.msra.mxu0 0.0
    %4215 = vmatprep.subr.mxu0 0.0
    %4216 = vmatpush1.msra.mxu0 0.0
    %4217 = vmatprep.subr.mxu0 0.0
    %4218 = vmatpush1.msra.mxu0 0.0
    %4219 = vmatprep.subr.mxu0 0.0
    %4220 = vmatpush1.msra.mxu0 0.0
    %4221 = vmatprep.subr.mxu0 0.0
    %4222 = vmatpush1.msra.mxu0 0.0
    %4223 = vmatprep.mubr.f32.mxu0 0.0
    %4224 = vmatmul.mubr.f32.gmra.mrb[0].mxu0 %v4157
    %v4225 = vpop.f32.mrb[0].mxu0
    %v4226 = vadd.f32 %v4143, %v4225
    %v4227 = vpop.f32.mrb[0].mxu0
    %4228 = vdwg.mxu0
    %v4229 = vld [vmem:[%s9] sm:$0x1]
    %v4231 = vlaneseq
    %v4232 = vshrl.u32 %v4231, 7
    %v4233 = vsub.s32 0, %v4232
    %v4234 = vrot.slane %v4229, %v4233
    %v4236 = vadd.f32 %v4226, %v4234
    %v4237 = vxor.u32 %v4236, 2147483648
    %v4238 = vmul.f32 %v4237, 1.442695
    %v4239 = vpow.pop %v4238
    %v4240 = vadd.f32 %v4239, 1.0
    %v4241 = vrcp.pop %v4240
    %v4242 = vmul.f32 1.0, %v4241
    %v4243 = vtanh.pop %v4236
    %v4244 = vmul.f32 %v4242, %v3467
    %4246 = vrot.lane.b32.xlu0 %v4243, 64
    %v4247 = vpop.permute.xlu0 %4246
    %v4249 = vmul.f32 %v4242, %v4247
    %4251 = vrot.lane.b32.xlu0 %v4249, 32
    %v4252 = vpop.permute.xlu0 %4251
    %v4254 = vadd.f32 %v4244, %v4252
    %v4255 = vtanh.pop %v4254
    %4257 = vrot.lane.b32.xlu0 %v4255, 64
    %v4258 = vpop.permute.xlu0 %4257
    %v4260 = vmul.f32 %v4242, %v4258
    %v4261 = vld [vmem:[#allocation10] sm:$0xff]
    %v4262 = vld [vmem:[#allocation10 + $0x8] sm:$0xff]
    %v4263 = vld [vmem:[#allocation10 + $0x10] sm:$0xff]
    %v4264 = vld [vmem:[#allocation10 + $0x18] sm:$0xff]
    %v4265 = vld [vmem:[#allocation10 + $0x20] sm:$0xff]
    %v4266 = vld [vmem:[#allocation10 + $0x28] sm:$0xff]
    %v4267 = vld [vmem:[#allocation10 + $0x30] sm:$0xff]
    %v4268 = vld [vmem:[#allocation10 + $0x38] sm:$0xff]
    %v4269 = vld [vmem:[#allocation10 + $0x40] sm:$0xff]
    %v4270 = vld [vmem:[#allocation10 + $0x48] sm:$0xff]
    %v4271 = vld [vmem:[#allocation10 + $0x50] sm:$0xff]
    %v4272 = vld [vmem:[#allocation10 + $0x58] sm:$0xff]
    %v4273 = vld [vmem:[#allocation10 + $0x60] sm:$0xff]
    %v4274 = vld [vmem:[#allocation10 + $0x68] sm:$0xff]
    %v4275 = vld [vmem:[#allocation10 + $0x70] sm:$0xff]
    %v4276 = vld [vmem:[#allocation10 + $0x78] sm:$0xff]
    %4277 = vmatprep.subr.mxu0 %v4262
    %4278 = vmatpush1.msra.mxu0 %v4261
    %4279 = vmatprep.subr.mxu0 %v4264
    %4280 = vmatpush1.msra.mxu0 %v4263
    %4281 = vmatprep.subr.mxu0 %v4266
    %4282 = vmatpush1.msra.mxu0 %v4265
    %4283 = vmatprep.subr.mxu0 %v4268
    %4284 = vmatpush1.msra.mxu0 %v4267
    %4285 = vmatprep.subr.mxu0 %v4270
    %4286 = vmatpush1.msra.mxu0 %v4269
    %4287 = vmatprep.subr.mxu0 %v4272
    %4288 = vmatpush1.msra.mxu0 %v4271
    %4289 = vmatprep.subr.mxu0 %v4274
    %4290 = vmatpush1.msra.mxu0 %v4273
    %4291 = vmatprep.subr.mxu0 %v4276
    %4292 = vmatpush1.msra.mxu0 %v4275
    %4293 = vmatprep.subr.mxu0 0.0
    %4294 = vmatpush1.msra.mxu0 0.0
    %4295 = vmatprep.subr.mxu0 0.0
    %4296 = vmatpush1.msra.mxu0 0.0
    %4297 = vmatprep.subr.mxu0 0.0
    %4298 = vmatpush1.msra.mxu0 0.0
    %4299 = vmatprep.subr.mxu0 0.0
    %4300 = vmatpush1.msra.mxu0 0.0
    %4301 = vmatprep.subr.mxu0 0.0
    %4302 = vmatpush1.msra.mxu0 0.0
    %4303 = vmatprep.subr.mxu0 0.0
    %4304 = vmatpush1.msra.mxu0 0.0
    %4305 = vmatprep.subr.mxu0 0.0
    %4306 = vmatpush1.msra.mxu0 0.0
    %4307 = vmatprep.subr.mxu0 0.0
    %4308 = vmatpush1.msra.mxu0 0.0
    %4309 = vmatprep.subr.mxu0 0.0
    %4310 = vmatpush1.msra.mxu0 0.0
    %4311 = vmatprep.subr.mxu0 0.0
    %4312 = vmatpush1.msra.mxu0 0.0
    %4313 = vmatprep.subr.mxu0 0.0
    %4314 = vmatpush1.msra.mxu0 0.0
    %4315 = vmatprep.subr.mxu0 0.0
    %4316 = vmatpush1.msra.mxu0 0.0
    %4317 = vmatprep.subr.mxu0 0.0
    %4318 = vmatpush1.msra.mxu0 0.0
    %4319 = vmatprep.subr.mxu0 0.0
    %4320 = vmatpush1.msra.mxu0 0.0
    %4321 = vmatprep.subr.mxu0 0.0
    %4322 = vmatpush1.msra.mxu0 0.0
    %4323 = vmatprep.subr.mxu0 0.0
    %4324 = vmatpush1.msra.mxu0 0.0
    %4325 = vmatprep.subr.mxu0 0.0
    %4326 = vmatpush1.msra.mxu0 0.0
    %4327 = vmatprep.subr.mxu0 0.0
    %4328 = vmatpush1.msra.mxu0 0.0
    %4329 = vmatprep.subr.mxu0 0.0
    %4330 = vmatpush1.msra.mxu0 0.0
    %4331 = vmatprep.subr.mxu0 0.0
    %4332 = vmatpush1.msra.mxu0 0.0
    %4333 = vmatprep.subr.mxu0 0.0
    %4334 = vmatpush1.msra.mxu0 0.0
    %4335 = vmatprep.subr.mxu0 0.0
    %4336 = vmatpush1.msra.mxu0 0.0
    %4337 = vmatprep.subr.mxu0 0.0
    %4338 = vmatpush1.msra.mxu0 0.0
    %4339 = vmatprep.subr.mxu0 0.0
    %4340 = vmatpush1.msra.mxu0 0.0
    %4341 = vmatprep.mubr.f32.mxu0 0.0
    %4342 = vmatmul.mubr.f32.gmra.mrb[0].mxu0 %v4157
    %v4343 = vpop.f32.mrb[0].mxu0
    %v4344 = vadd.f32 0.0, %v4343
    %v4345 = vpop.f32.mrb[0].mxu0
    %v4346 = vadd.f32 0.0, %v4345
    %4347 = vdwg.mxu0
    %v4348 = vld [vmem:[#allocation8] sm:$0xff]
    %v4349 = vld [vmem:[#allocation8 + $0x8] sm:$0xff]
    %v4350 = vld [vmem:[#allocation8 + $0x10] sm:$0xff]
    %v4351 = vld [vmem:[#allocation8 + $0x18] sm:$0xff]
    %v4352 = vld [vmem:[#allocation8 + $0x20] sm:$0xff]
    %v4353 = vld [vmem:[#allocation8 + $0x28] sm:$0xff]
    %v4354 = vld [vmem:[#allocation8 + $0x30] sm:$0xff]
    %v4355 = vld [vmem:[#allocation8 + $0x38] sm:$0xff]
    %v4356 = vld [vmem:[#allocation8 + $0x40] sm:$0xff]
    %v4357 = vld [vmem:[#allocation8 + $0x48] sm:$0xff]
    %v4358 = vld [vmem:[#allocation8 + $0x50] sm:$0xff]
    %v4359 = vld [vmem:[#allocation8 + $0x58] sm:$0xff]
    %v4360 = vld [vmem:[#allocation8 + $0x60] sm:$0xff]
    %v4361 = vld [vmem:[#allocation8 + $0x68] sm:$0xff]
    %v4362 = vld [vmem:[#allocation8 + $0x70] sm:$0xff]
    %v4363 = vld [vmem:[#allocation8 + $0x78] sm:$0xff]
    %v4366 = vrot.slane %v3842, 5
    %v4367 = vrot.slane %v3843, 4
    %v4368 = vsel %vm739, %v4367, %v4366
    %4369 = vrot.lane.b32.xlu0 %v4368, 64
    %v4370 = vpop.permute.xlu0 %4369
    %v4371 = vsel %vm502, %v4370, 0
    %4373 = vmatprep.subr.mxu0 %v4349
    %4374 = vmatpush1.msra.mxu0 %v4348
    %4375 = vmatprep.subr.mxu0 %v4351
    %4376 = vmatpush1.msra.mxu0 %v4350
    %4377 = vmatprep.subr.mxu0 %v4353
    %4378 = vmatpush1.msra.mxu0 %v4352
    %4379 = vmatprep.subr.mxu0 %v4355
    %4380 = vmatpush1.msra.mxu0 %v4354
    %4381 = vmatprep.subr.mxu0 %v4357
    %4382 = vmatpush1.msra.mxu0 %v4356
    %4383 = vmatprep.subr.mxu0 %v4359
    %4384 = vmatpush1.msra.mxu0 %v4358
    %4385 = vmatprep.subr.mxu0 %v4361
    %4386 = vmatpush1.msra.mxu0 %v4360
    %4387 = vmatprep.subr.mxu0 %v4363
    %4388 = vmatpush1.msra.mxu0 %v4362
    %4389 = vmatprep.subr.mxu0 0.0
    %4390 = vmatpush1.msra.mxu0 0.0
    %4391 = vmatprep.subr.mxu0 0.0
    %4392 = vmatpush1.msra.mxu0 0.0
    %4393 = vmatprep.subr.mxu0 0.0
    %4394 = vmatpush1.msra.mxu0 0.0
    %4395 = vmatprep.subr.mxu0 0.0
    %4396 = vmatpush1.msra.mxu0 0.0
    %4397 = vmatprep.subr.mxu0 0.0
    %4398 = vmatpush1.msra.mxu0 0.0
    %4399 = vmatprep.subr.mxu0 0.0
    %4400 = vmatpush1.msra.mxu0 0.0
    %4401 = vmatprep.subr.mxu0 0.0
    %4402 = vmatpush1.msra.mxu0 0.0
    %4403 = vmatprep.subr.mxu0 0.0
    %4404 = vmatpush1.msra.mxu0 0.0
    %4405 = vmatprep.subr.mxu0 0.0
    %4406 = vmatpush1.msra.mxu0 0.0
    %4407 = vmatprep.subr.mxu0 0.0
    %4408 = vmatpush1.msra.mxu0 0.0
    %4409 = vmatprep.subr.mxu0 0.0
    %4410 = vmatpush1.msra.mxu0 0.0
    %4411 = vmatprep.subr.mxu0 0.0
    %4412 = vmatpush1.msra.mxu0 0.0
    %4413 = vmatprep.subr.mxu0 0.0
    %4414 = vmatpush1.msra.mxu0 0.0
    %4415 = vmatprep.subr.mxu0 0.0
    %4416 = vmatpush1.msra.mxu0 0.0
    %4417 = vmatprep.subr.mxu0 0.0
    %4418 = vmatpush1.msra.mxu0 0.0
    %4419 = vmatprep.subr.mxu0 0.0
    %4420 = vmatpush1.msra.mxu0 0.0
    %4421 = vmatprep.subr.mxu0 0.0
    %4422 = vmatpush1.msra.mxu0 0.0
    %4423 = vmatprep.subr.mxu0 0.0
    %4424 = vmatpush1.msra.mxu0 0.0
    %4425 = vmatprep.subr.mxu0 0.0
    %4426 = vmatpush1.msra.mxu0 0.0
    %4427 = vmatprep.subr.mxu0 0.0
    %4428 = vmatpush1.msra.mxu0 0.0
    %4429 = vmatprep.subr.mxu0 0.0
    %4430 = vmatpush1.msra.mxu0 0.0
    %4431 = vmatprep.subr.mxu0 0.0
    %4432 = vmatpush1.msra.mxu0 0.0
    %4433 = vmatprep.subr.mxu0 0.0
    %4434 = vmatpush1.msra.mxu0 0.0
    %4435 = vmatprep.subr.mxu0 0.0
    %4436 = vmatpush1.msra.mxu0 0.0
    %4437 = vmatprep.mubr.f32.mxu0 0.0
    %4438 = vmatmul.mubr.f32.gmra.mrb[0].mxu0 %v4371
    %v4439 = vpop.f32.mrb[0].mxu0
    %v4440 = vadd.f32 %v4344, %v4439
    %v4441 = vpop.f32.mrb[0].mxu0
    %v4442 = vadd.f32 %v4346, %v4441
    %4443 = vdwg.mxu0
    %v4444 = vld [vmem:[#allocation11] sm:$0x3]
    %v4446 = vlaneseq
    %v4447 = vshrl.u32 %v4446, 7
    %v4448 = vsub.s32 0, %v4447
    %v4449 = vrot.slane %v4444, %v4448
    %v4450 = vlaneseq
    %v4451 = vshrl.u32 %v4450, 7
    %v4452 = vsub.s32 1, %v4451
    %v4453 = vrot.slane %v4444, %v4452
    %v4456 = vadd.f32 %v4440, %v4449
    %v4457 = vadd.f32 %v4442, %v4453
    %v4458 = vxor.u32 %v4456, 2147483648
    %v4459 = vmul.f32 %v4458, 1.442695
    %v4460 = vpow.pop %v4459
    %v4461 = vadd.f32 %v4460, 1.0
    %v4462 = vrcp.pop %v4461
    %v4463 = vmul.f32 1.0, %v4462
    %v4464 = vtanh.pop %v4457
    %v4465 = vxor.u32 %v4457, 2147483648
    %v4466 = vmul.f32 %v4465, 1.442695
    %v4467 = vpow.pop %v4466
    %v4468 = vadd.f32 %v4467, 1.0
    %v4469 = vrcp.pop %v4468
    %v4470 = vmul.f32 1.0, %v4469
    %v4471 = vmul.f32 %v4463, %v3690
    %v4472 = vmul.f32 %v4463, %v4464
    %4474 = vrot.lane.b32.xlu0 %v4472, 64
    %v4475 = vpop.permute.xlu0 %4474
    %v4477 = vadd.f32 %v4471, %v4475
    %v4478 = vtanh.pop %v4477
    %v4479 = vmul.f32 %v4470, %v4478
    %v4480 = vld [vmem:[#allocation7] sm:$0xff]
    %v4481 = vld [vmem:[#allocation7 + $0x8] sm:$0xff]
    %v4482 = vld [vmem:[#allocation7 + $0x10] sm:$0xff]
    %v4483 = vld [vmem:[#allocation7 + $0x18] sm:$0xff]
    %v4484 = vld [vmem:[#allocation7 + $0x20] sm:$0xff]
    %v4485 = vld [vmem:[#allocation7 + $0x28] sm:$0xff]
    %v4486 = vld [vmem:[#allocation7 + $0x30] sm:$0xff]
    %v4487 = vld [vmem:[#allocation7 + $0x38] sm:$0xff]
    %v4488 = vld [vmem:[#allocation7 + $0x40] sm:$0xff]
    %v4489 = vld [vmem:[#allocation7 + $0x48] sm:$0xff]
    %v4490 = vld [vmem:[#allocation7 + $0x50] sm:$0xff]
    %v4491 = vld [vmem:[#allocation7 + $0x58] sm:$0xff]
    %v4492 = vld [vmem:[#allocation7 + $0x60] sm:$0xff]
    %v4493 = vld [vmem:[#allocation7 + $0x68] sm:$0xff]
    %v4494 = vld [vmem:[#allocation7 + $0x70] sm:$0xff]
    %v4495 = vld [vmem:[#allocation7 + $0x78] sm:$0xff]
    %4496 = vmatprep.subr.mxu0 %v4481
    %4497 = vmatpush1.msra.mxu0 %v4480
    %4498 = vmatprep.subr.mxu0 %v4483
    %4499 = vmatpush1.msra.mxu0 %v4482
    %4500 = vmatprep.subr.mxu0 %v4485
    %4501 = vmatpush1.msra.mxu0 %v4484
    %4502 = vmatprep.subr.mxu0 %v4487
    %4503 = vmatpush1.msra.mxu0 %v4486
    %4504 = vmatprep.subr.mxu0 %v4489
    %4505 = vmatpush1.msra.mxu0 %v4488
    %4506 = vmatprep.subr.mxu0 %v4491
    %4507 = vmatpush1.msra.mxu0 %v4490
    %4508 = vmatprep.subr.mxu0 %v4493
    %4509 = vmatpush1.msra.mxu0 %v4492
    %4510 = vmatprep.subr.mxu0 %v4495
    %4511 = vmatpush1.msra.mxu0 %v4494
    %4512 = vmatprep.subr.mxu0 0.0
    %4513 = vmatpush1.msra.mxu0 0.0
    %4514 = vmatprep.subr.mxu0 0.0
    %4515 = vmatpush1.msra.mxu0 0.0
    %4516 = vmatprep.subr.mxu0 0.0
    %4517 = vmatpush1.msra.mxu0 0.0
    %4518 = vmatprep.subr.mxu0 0.0
    %4519 = vmatpush1.msra.mxu0 0.0
    %4520 = vmatprep.subr.mxu0 0.0
    %4521 = vmatpush1.msra.mxu0 0.0
    %4522 = vmatprep.subr.mxu0 0.0
    %4523 = vmatpush1.msra.mxu0 0.0
    %4524 = vmatprep.subr.mxu0 0.0
    %4525 = vmatpush1.msra.mxu0 0.0
    %4526 = vmatprep.subr.mxu0 0.0
    %4527 = vmatpush1.msra.mxu0 0.0
    %4528 = vmatprep.subr.mxu0 0.0
    %4529 = vmatpush1.msra.mxu0 0.0
    %4530 = vmatprep.subr.mxu0 0.0
    %4531 = vmatpush1.msra.mxu0 0.0
    %4532 = vmatprep.subr.mxu0 0.0
    %4533 = vmatpush1.msra.mxu0 0.0
    %4534 = vmatprep.subr.mxu0 0.0
    %4535 = vmatpush1.msra.mxu0 0.0
    %4536 = vmatprep.subr.mxu0 0.0
    %4537 = vmatpush1.msra.mxu0 0.0
    %4538 = vmatprep.subr.mxu0 0.0
    %4539 = vmatpush1.msra.mxu0 0.0
    %4540 = vmatprep.subr.mxu0 0.0
    %4541 = vmatpush1.msra.mxu0 0.0
    %4542 = vmatprep.subr.mxu0 0.0
    %4543 = vmatpush1.msra.mxu0 0.0
    %4544 = vmatprep.subr.mxu0 0.0
    %4545 = vmatpush1.msra.mxu0 0.0
    %4546 = vmatprep.subr.mxu0 0.0
    %4547 = vmatpush1.msra.mxu0 0.0
    %4548 = vmatprep.subr.mxu0 0.0
    %4549 = vmatpush1.msra.mxu0 0.0
    %4550 = vmatprep.subr.mxu0 0.0
    %4551 = vmatpush1.msra.mxu0 0.0
    %4552 = vmatprep.subr.mxu0 0.0
    %4553 = vmatpush1.msra.mxu0 0.0
    %4554 = vmatprep.subr.mxu0 0.0
    %4555 = vmatpush1.msra.mxu0 0.0
    %4556 = vmatprep.subr.mxu0 0.0
    %4557 = vmatpush1.msra.mxu0 0.0
    %4558 = vmatprep.subr.mxu0 0.0
    %4559 = vmatpush1.msra.mxu0 0.0
    %4560 = vmatprep.mubr.f32.mxu0 0.0
    %4561 = vmatmul.mubr.f32.gmra.mrb[0].mxu0 %v4371
    %v4562 = vpop.f32.mrb[0].mxu0
    %v4563 = vadd.f32 0.0, %v4562
    %v4564 = vpop.f32.mrb[0].mxu0
    %v4565 = vadd.f32 0.0, %v4564
    %4566 = vdwg.mxu0
    %v4569 = vrot.slane %v4563, 2
    %v4570 = vrot.slane %v4565, 2
    %v4571 = vrot.slane %v4563, 3
    %v4572 = vrot.slane %v4565, 3
    %v4577 = vadd.f32 %v476, %v4569
    %v4578 = vadd.f32 %v478, %v4570
    %v4579 = vadd.f32 %v482, %v4571
    %v4580 = vadd.f32 %v484, %v4572
    %v4581 = vxor.u32 %v4577, 2147483648
    %v4582 = vxor.u32 %v4579, 2147483648
    %v4583 = vmul.f32 %v4581, 1.442695
    %v4584 = vpow.pop %v4583
    %v4585 = vmul.f32 %v4582, 1.442695
    %v4586 = vpow.pop %v4585
    %v4587 = vadd.f32 %v4584, 1.0
    %v4588 = vadd.f32 %v4586, 1.0
    %v4589 = vrcp.pop %v4587
    %v4590 = vmul.f32 1.0, %v4589
    %v4591 = vrcp.pop %v4588
    %v4592 = vmul.f32 1.0, %v4591
    %v4593 = vtanh.pop %v4578
    %v4594 = vtanh.pop %v4580
    %v4595 = vxor.u32 %v4578, 2147483648
    %v4596 = vxor.u32 %v4580, 2147483648
    %v4597 = vmul.f32 %v4595, 1.442695
    %v4598 = vpow.pop %v4597
    %v4599 = vmul.f32 %v4596, 1.442695
    %v4600 = vpow.pop %v4599
    %v4601 = vadd.f32 %v4598, 1.0
    %v4602 = vadd.f32 %v4600, 1.0
    %v4603 = vrcp.pop %v4601
    %v4604 = vmul.f32 1.0, %v4603
    %v4605 = vrcp.pop %v4602
    %v4606 = vmul.f32 1.0, %v4605
    %v4609 = vrot.slane %v3838, 7
    %v4610 = vrot.slane %v3839, 7
    %v4613 = vmul.f32 %v4590, %v4609
    %v4614 = vmul.f32 %v4592, %v4610
    %v4615 = vmul.f32 %v4590, %v4593
    %v4616 = vmul.f32 %v4592, %v4594
    %4619 = vrot.lane.b32.xlu0 %v4615, 64
    %v4620 = vpop.permute.xlu0 %4619
    %4621 = vrot.lane.b32.xlu0 %v4616, 64
    %v4622 = vpop.permute.xlu0 %4621
    %v4625 = vadd.f32 %v4613, %v4620
    %v4626 = vadd.f32 %v4614, %v4622
    %v4627 = vtanh.pop %v4625
    %v4628 = vtanh.pop %v4626
    %v4629 = vmul.f32 %v4604, %v4627
    %v4630 = vmul.f32 %v4606, %v4628
    %v4631 = vld [vmem:[#allocation16] sm:$0xff]
    %v4632 = vld [vmem:[#allocation16 + $0x8] sm:$0xff]
    %v4633 = vld [vmem:[#allocation16 + $0x10] sm:$0xff]
    %v4634 = vld [vmem:[#allocation16 + $0x18] sm:$0xff]
    %4635 = vrot.lane.b32.xlu0 %v4032, 32
    %v4636 = vpop.permute.xlu0 %4635
    %v4637 = vsel %vm989, %v4636, 0
    %4639 = vmatprep.subr.mxu0 0.0
    %4640 = vmatpush1.msra.mxu0 %v4631
    %4641 = vmatprep.subr.mxu0 0.0
    %4642 = vmatpush1.msra.mxu0 %v4632
    %4643 = vmatprep.subr.mxu0 0.0
    %4644 = vmatpush1.msra.mxu0 %v4633
    %4645 = vmatprep.subr.mxu0 0.0
    %4646 = vmatpush1.msra.mxu0 %v4634
    %4647 = vmatprep.subr.mxu0 0.0
    %4648 = vmatpush1.msra.mxu0 0.0
    %4649 = vmatprep.subr.mxu0 0.0
    %4650 = vmatpush1.msra.mxu0 0.0
    %4651 = vmatprep.subr.mxu0 0.0
    %4652 = vmatpush1.msra.mxu0 0.0
    %4653 = vmatprep.subr.mxu0 0.0
    %4654 = vmatpush1.msra.mxu0 0.0
    %4655 = vmatprep.subr.mxu0 0.0
    %4656 = vmatpush1.msra.mxu0 0.0
    %4657 = vmatprep.subr.mxu0 0.0
    %4658 = vmatpush1.msra.mxu0 0.0
    %4659 = vmatprep.subr.mxu0 0.0
    %4660 = vmatpush1.msra.mxu0 0.0
    %4661 = vmatprep.subr.mxu0 0.0
    %4662 = vmatpush1.msra.mxu0 0.0
    %4663 = vmatprep.subr.mxu0 0.0
    %4664 = vmatpush1.msra.mxu0 0.0
    %4665 = vmatprep.subr.mxu0 0.0
    %4666 = vmatpush1.msra.mxu0 0.0
    %4667 = vmatprep.subr.mxu0 0.0
    %4668 = vmatpush1.msra.mxu0 0.0
    %4669 = vmatprep.subr.mxu0 0.0
    %4670 = vmatpush1.msra.mxu0 0.0
    %4671 = vmatprep.subr.mxu0 0.0
    %4672 = vmatpush1.msra.mxu0 0.0
    %4673 = vmatprep.subr.mxu0 0.0
    %4674 = vmatpush1.msra.mxu0 0.0
    %4675 = vmatprep.subr.mxu0 0.0
    %4676 = vmatpush1.msra.mxu0 0.0
    %4677 = vmatprep.subr.mxu0 0.0
    %4678 = vmatpush1.msra.mxu0 0.0
    %4679 = vmatprep.subr.mxu0 0.0
    %4680 = vmatpush1.msra.mxu0 0.0
    %4681 = vmatprep.subr.mxu0 0.0
    %4682 = vmatpush1.msra.mxu0 0.0
    %4683 = vmatprep.subr.mxu0 0.0
    %4684 = vmatpush1.msra.mxu0 0.0
    %4685 = vmatprep.subr.mxu0 0.0
    %4686 = vmatpush1.msra.mxu0 0.0
    %4687 = vmatprep.subr.mxu0 0.0
    %4688 = vmatpush1.msra.mxu0 0.0
    %4689 = vmatprep.subr.mxu0 0.0
    %4690 = vmatpush1.msra.mxu0 0.0
    %4691 = vmatprep.subr.mxu0 0.0
    %4692 = vmatpush1.msra.mxu0 0.0
    %4693 = vmatprep.subr.mxu0 0.0
    %4694 = vmatpush1.msra.mxu0 0.0
    %4695 = vmatprep.subr.mxu0 0.0
    %4696 = vmatpush1.msra.mxu0 0.0
    %4697 = vmatprep.subr.mxu0 0.0
    %4698 = vmatpush1.msra.mxu0 0.0
    %4699 = vmatprep.subr.mxu0 0.0
    %4700 = vmatpush1.msra.mxu0 0.0
    %4701 = vmatprep.subr.mxu0 0.0
    %4702 = vmatpush1.msra.mxu0 0.0
    %4703 = vmatprep.mubr.f32.mxu0 0.0
    %4704 = vmatmul.mubr.f32.gmra.mrb[0].mxu0 %v4637
    %v4705 = vpop.f32.mrb[0].mxu0
    %v4706 = vadd.f32 0.0, %v4705
    %v4707 = vpop.f32.mrb[0].mxu0
    %4708 = vdwg.mxu0
    %v4709 = vld [vmem:[#allocation14] sm:$0xff]
    %v4710 = vld [vmem:[#allocation14 + $0x8] sm:$0xff]
    %v4711 = vld [vmem:[#allocation14 + $0x10] sm:$0xff]
    %v4712 = vld [vmem:[#allocation14 + $0x18] sm:$0xff]
    %4714 = vrot.lane.b32.xlu0 %v4260, 32
    %v4715 = vpop.permute.xlu0 %4714
    %v4716 = vsel %vm989, %v4715, 0
    %4718 = vmatprep.subr.mxu0 0.0
    %4719 = vmatpush1.msra.mxu0 %v4709
    %4720 = vmatprep.subr.mxu0 0.0
    %4721 = vmatpush1.msra.mxu0 %v4710
    %4722 = vmatprep.subr.mxu0 0.0
    %4723 = vmatpush1.msra.mxu0 %v4711
    %4724 = vmatprep.subr.mxu0 0.0
    %4725 = vmatpush1.msra.mxu0 %v4712
    %4726 = vmatprep.subr.mxu0 0.0
    %4727 = vmatpush1.msra.mxu0 0.0
    %4728 = vmatprep.subr.mxu0 0.0
    %4729 = vmatpush1.msra.mxu0 0.0
    %4730 = vmatprep.subr.mxu0 0.0
    %4731 = vmatpush1.msra.mxu0 0.0
    %4732 = vmatprep.subr.mxu0 0.0
    %4733 = vmatpush1.msra.mxu0 0.0
    %4734 = vmatprep.subr.mxu0 0.0
    %4735 = vmatpush1.msra.mxu0 0.0
    %4736 = vmatprep.subr.mxu0 0.0
    %4737 = vmatpush1.msra.mxu0 0.0
    %4738 = vmatprep.subr.mxu0 0.0
    %4739 = vmatpush1.msra.mxu0 0.0
    %4740 = vmatprep.subr.mxu0 0.0
    %4741 = vmatpush1.msra.mxu0 0.0
    %4742 = vmatprep.subr.mxu0 0.0
    %4743 = vmatpush1.msra.mxu0 0.0
    %4744 = vmatprep.subr.mxu0 0.0
    %4745 = vmatpush1.msra.mxu0 0.0
    %4746 = vmatprep.subr.mxu0 0.0
    %4747 = vmatpush1.msra.mxu0 0.0
    %4748 = vmatprep.subr.mxu0 0.0
    %4749 = vmatpush1.msra.mxu0 0.0
    %4750 = vmatprep.subr.mxu0 0.0
    %4751 = vmatpush1.msra.mxu0 0.0
    %4752 = vmatprep.subr.mxu0 0.0
    %4753 = vmatpush1.msra.mxu0 0.0
    %4754 = vmatprep.subr.mxu0 0.0
    %4755 = vmatpush1.msra.mxu0 0.0
    %4756 = vmatprep.subr.mxu0 0.0
    %4757 = vmatpush1.msra.mxu0 0.0
    %4758 = vmatprep.subr.mxu0 0.0
    %4759 = vmatpush1.msra.mxu0 0.0
    %4760 = vmatprep.subr.mxu0 0.0
    %4761 = vmatpush1.msra.mxu0 0.0
    %4762 = vmatprep.subr.mxu0 0.0
    %4763 = vmatpush1.msra.mxu0 0.0
    %4764 = vmatprep.subr.mxu0 0.0
    %4765 = vmatpush1.msra.mxu0 0.0
    %4766 = vmatprep.subr.mxu0 0.0
    %4767 = vmatpush1.msra.mxu0 0.0
    %4768 = vmatprep.subr.mxu0 0.0
    %4769 = vmatpush1.msra.mxu0 0.0
    %4770 = vmatprep.subr.mxu0 0.0
    %4771 = vmatpush1.msra.mxu0 0.0
    %4772 = vmatprep.subr.mxu0 0.0
    %4773 = vmatpush1.msra.mxu0 0.0
    %4774 = vmatprep.subr.mxu0 0.0
    %4775 = vmatpush1.msra.mxu0 0.0
    %4776 = vmatprep.subr.mxu0 0.0
    %4777 = vmatpush1.msra.mxu0 0.0
    %4778 = vmatprep.subr.mxu0 0.0
    %4779 = vmatpush1.msra.mxu0 0.0
    %4780 = vmatprep.subr.mxu0 0.0
    %4781 = vmatpush1.msra.mxu0 0.0
    %4782 = vmatprep.mubr.f32.mxu0 0.0
    %4783 = vmatmul.mubr.f32.gmra.mrb[0].mxu0 %v4716
    %v4784 = vpop.f32.mrb[0].mxu0
    %v4785 = vadd.f32 %v4706, %v4784
    %v4786 = vpop.f32.mrb[0].mxu0
    %4787 = vdwg.mxu0
    %v4788 = vld [vmem:[%s12] sm:$0x1]
    %v4790 = vlaneseq
    %v4791 = vshrl.u32 %v4790, 7
    %v4792 = vsub.s32 0, %v4791
    %v4793 = vrot.slane %v4788, %v4792
    %v4795 = vadd.f32 %v4785, %v4793
    %v4796 = vxor.u32 %v4795, 2147483648
    %v4797 = vmul.f32 %v4796, 1.442695
    %v4798 = vpow.pop %v4797
    %v4799 = vadd.f32 %v4798, 1.0
    %v4800 = vrcp.pop %v4799
    %v4801 = vmul.f32 1.0, %v4800
    %v4802 = vtanh.pop %v4795
    %v4803 = vmul.f32 %v4801, %v4026
    %4805 = vrot.lane.b32.xlu0 %v4802, 64
    %v4806 = vpop.permute.xlu0 %4805
    %v4808 = vmul.f32 %v4801, %v4806
    %4810 = vrot.lane.b32.xlu0 %v4808, 32
    %v4811 = vpop.permute.xlu0 %4810
    %v4813 = vadd.f32 %v4803, %v4811
    %v4814 = vtanh.pop %v4813
    %4816 = vrot.lane.b32.xlu0 %v4814, 64
    %v4817 = vpop.permute.xlu0 %4816
    %v4819 = vmul.f32 %v4801, %v4817
    %v4822 = vunpack.c.l.s4 1966171168
    %v4823 = vunpack.c.0.s8 %v4822
    %v4824 = vlaneseq
    %v4825 = vshrl.u32 %v4824, 7
    %v4826 = vsub.s32 %v4823, %v4825
    %v4827 = vrot.slane %v4819, %v4826
    %v4828 = vcombine.high %v4827, %v4827
    %v4830 = vunpack.c.l.s4 1966171168
    %v4831 = vunpack.c.0.s8 %v4830
    %v4832 = vlaneseq
    %v4833 = vshrl.u32 %v4832, 7
    %v4834 = vsub.s32 %v4831, %v4833
    %v4835 = vrot.slane %v4827, %v4834
    %v4837 = vunpack.c.l.s4 1966171168
    %v4838 = vunpack.c.0.s8 %v4837
    %v4839 = vlaneseq
    %v4840 = vshrl.u32 %v4839, 7
    %v4841 = vsub.s32 %v4838, %v4840
    %v4842 = vrot.slane %v4828, %v4841
    %v4843 = vlaneseq
    %v4844 = vshrl.u32 %v4843, 7
    %v4845 = vsub.s32 0, %v4844
    %v4846 = vrot.slane %v4835, %v4845
    %v4847 = vlaneseq
    %v4848 = vshrl.u32 %v4847, 7
    %v4849 = vsub.s32 0, %v4848
    %v4850 = vrot.slane %v4842, %v4849
    %4851 = vrot.lane.b32.xlu0 %v4846, 32
    %v4852 = vpop.permute.xlu0 %4851
    %4853 = vrot.lane.b32.xlu0 %v4850, 32
    %v4854 = vpop.permute.xlu0 %4853
    %4857 = vst.msk [vmem:[#allocation2 + $0x4] sm:$0x1] %vm1708, %v4852
    %4858 = vst.msk [vmem:[#allocation2 + $0xc] sm:$0x1] %vm1708, %v4854
    %v4859 = vld [vmem:[%s8] sm:$0xff]
    %v4860 = vld [vmem:[%s8 + $0x8] sm:$0xff]
    %v4861 = vld [vmem:[%s8 + $0x10] sm:$0xff]
    %v4862 = vld [vmem:[%s8 + $0x18] sm:$0xff]
    %4863 = vmatprep.subr.mxu0 0.0
    %4864 = vmatpush1.msra.mxu0 %v4859
    %4865 = vmatprep.subr.mxu0 0.0
    %4866 = vmatpush1.msra.mxu0 %v4860
    %4867 = vmatprep.subr.mxu0 0.0
    %4868 = vmatpush1.msra.mxu0 %v4861
    %4869 = vmatprep.subr.mxu0 0.0
    %4870 = vmatpush1.msra.mxu0 %v4862
    %4871 = vmatprep.subr.mxu0 0.0
    %4872 = vmatpush1.msra.mxu0 0.0
    %4873 = vmatprep.subr.mxu0 0.0
    %4874 = vmatpush1.msra.mxu0 0.0
    %4875 = vmatprep.subr.mxu0 0.0
    %4876 = vmatpush1.msra.mxu0 0.0
    %4877 = vmatprep.subr.mxu0 0.0
    %4878 = vmatpush1.msra.mxu0 0.0
    %4879 = vmatprep.subr.mxu0 0.0
    %4880 = vmatpush1.msra.mxu0 0.0
    %4881 = vmatprep.subr.mxu0 0.0
    %4882 = vmatpush1.msra.mxu0 0.0
    %4883 = vmatprep.subr.mxu0 0.0
    %4884 = vmatpush1.msra.mxu0 0.0
    %4885 = vmatprep.subr.mxu0 0.0
    %4886 = vmatpush1.msra.mxu0 0.0
    %4887 = vmatprep.subr.mxu0 0.0
    %4888 = vmatpush1.msra.mxu0 0.0
    %4889 = vmatprep.subr.mxu0 0.0
    %4890 = vmatpush1.msra.mxu0 0.0
    %4891 = vmatprep.subr.mxu0 0.0
    %4892 = vmatpush1.msra.mxu0 0.0
    %4893 = vmatprep.subr.mxu0 0.0
    %4894 = vmatpush1.msra.mxu0 0.0
    %4895 = vmatprep.subr.mxu0 0.0
    %4896 = vmatpush1.msra.mxu0 0.0
    %4897 = vmatprep.subr.mxu0 0.0
    %4898 = vmatpush1.msra.mxu0 0.0
    %4899 = vmatprep.subr.mxu0 0.0
    %4900 = vmatpush1.msra.mxu0 0.0
    %4901 = vmatprep.subr.mxu0 0.0
    %4902 = vmatpush1.msra.mxu0 0.0
    %4903 = vmatprep.subr.mxu0 0.0
    %4904 = vmatpush1.msra.mxu0 0.0
    %4905 = vmatprep.subr.mxu0 0.0
    %4906 = vmatpush1.msra.mxu0 0.0
    %4907 = vmatprep.subr.mxu0 0.0
    %4908 = vmatpush1.msra.mxu0 0.0
    %4909 = vmatprep.subr.mxu0 0.0
    %4910 = vmatpush1.msra.mxu0 0.0
    %4911 = vmatprep.subr.mxu0 0.0
    %4912 = vmatpush1.msra.mxu0 0.0
    %4913 = vmatprep.subr.mxu0 0.0
    %4914 = vmatpush1.msra.mxu0 0.0
    %4915 = vmatprep.subr.mxu0 0.0
    %4916 = vmatpush1.msra.mxu0 0.0
    %4917 = vmatprep.subr.mxu0 0.0
    %4918 = vmatpush1.msra.mxu0 0.0
    %4919 = vmatprep.subr.mxu0 0.0
    %4920 = vmatpush1.msra.mxu0 0.0
    %4921 = vmatprep.subr.mxu0 0.0
    %4922 = vmatpush1.msra.mxu0 0.0
    %4923 = vmatprep.subr.mxu0 0.0
    %4924 = vmatpush1.msra.mxu0 0.0
    %4925 = vmatprep.subr.mxu0 0.0
    %4926 = vmatpush1.msra.mxu0 0.0
    %4927 = vmatprep.mubr.f32.mxu0 0.0
    %4928 = vmatmul.mubr.f32.gmra.mrb[0].mxu0 %v4716
    %v4929 = vpop.f32.mrb[0].mxu0
    %v4930 = vadd.f32 0.0, %v4929
    %v4931 = vpop.f32.mrb[0].mxu0
    %4932 = vdwg.mxu0
    %v4933 = vld [vmem:[#allocation13] sm:$0xff]
    %v4934 = vld [vmem:[#allocation13 + $0x8] sm:$0xff]
    %v4935 = vld [vmem:[#allocation13 + $0x10] sm:$0xff]
    %v4936 = vld [vmem:[#allocation13 + $0x18] sm:$0xff]
    %v4937 = vld [vmem:[#allocation13 + $0x20] sm:$0xff]
    %v4938 = vld [vmem:[#allocation13 + $0x28] sm:$0xff]
    %v4939 = vld [vmem:[#allocation13 + $0x30] sm:$0xff]
    %v4940 = vld [vmem:[#allocation13 + $0x38] sm:$0xff]
    %4942 = vrot.lane.b32.xlu0 %v4479, 64
    %v4943 = vpop.permute.xlu0 %4942
    %v4944 = vsel %vm502, %v4943, 0
    %4946 = vmatprep.subr.mxu0 0.0
    %4947 = vmatpush1.msra.mxu0 %v4933
    %4948 = vmatprep.subr.mxu0 0.0
    %4949 = vmatpush1.msra.mxu0 %v4934
    %4950 = vmatprep.subr.mxu0 0.0
    %4951 = vmatpush1.msra.mxu0 %v4935
    %4952 = vmatprep.subr.mxu0 0.0
    %4953 = vmatpush1.msra.mxu0 %v4936
    %4954 = vmatprep.subr.mxu0 0.0
    %4955 = vmatpush1.msra.mxu0 %v4937
    %4956 = vmatprep.subr.mxu0 0.0
    %4957 = vmatpush1.msra.mxu0 %v4938
    %4958 = vmatprep.subr.mxu0 0.0
    %4959 = vmatpush1.msra.mxu0 %v4939
    %4960 = vmatprep.subr.mxu0 0.0
    %4961 = vmatpush1.msra.mxu0 %v4940
    %4962 = vmatprep.subr.mxu0 0.0
    %4963 = vmatpush1.msra.mxu0 0.0
    %4964 = vmatprep.subr.mxu0 0.0
    %4965 = vmatpush1.msra.mxu0 0.0
    %4966 = vmatprep.subr.mxu0 0.0
    %4967 = vmatpush1.msra.mxu0 0.0
    %4968 = vmatprep.subr.mxu0 0.0
    %4969 = vmatpush1.msra.mxu0 0.0
    %4970 = vmatprep.subr.mxu0 0.0
    %4971 = vmatpush1.msra.mxu0 0.0
    %4972 = vmatprep.subr.mxu0 0.0
    %4973 = vmatpush1.msra.mxu0 0.0
    %4974 = vmatprep.subr.mxu0 0.0
    %4975 = vmatpush1.msra.mxu0 0.0
    %4976 = vmatprep.subr.mxu0 0.0
    %4977 = vmatpush1.msra.mxu0 0.0
    %4978 = vmatprep.subr.mxu0 0.0
    %4979 = vmatpush1.msra.mxu0 0.0
    %4980 = vmatprep.subr.mxu0 0.0
    %4981 = vmatpush1.msra.mxu0 0.0
    %4982 = vmatprep.subr.mxu0 0.0
    %4983 = vmatpush1.msra.mxu0 0.0
    %4984 = vmatprep.subr.mxu0 0.0
    %4985 = vmatpush1.msra.mxu0 0.0
    %4986 = vmatprep.subr.mxu0 0.0
    %4987 = vmatpush1.msra.mxu0 0.0
    %4988 = vmatprep.subr.mxu0 0.0
    %4989 = vmatpush1.msra.mxu0 0.0
    %4990 = vmatprep.subr.mxu0 0.0
    %4991 = vmatpush1.msra.mxu0 0.0
    %4992 = vmatprep.subr.mxu0 0.0
    %4993 = vmatpush1.msra.mxu0 0.0
    %4994 = vmatprep.subr.mxu0 0.0
    %4995 = vmatpush1.msra.mxu0 0.0
    %4996 = vmatprep.subr.mxu0 0.0
    %4997 = vmatpush1.msra.mxu0 0.0
    %4998 = vmatprep.subr.mxu0 0.0
    %4999 = vmatpush1.msra.mxu0 0.0
    %5000 = vmatprep.subr.mxu0 0.0
    %5001 = vmatpush1.msra.mxu0 0.0
    %5002 = vmatprep.subr.mxu0 0.0
    %5003 = vmatpush1.msra.mxu0 0.0
    %5004 = vmatprep.subr.mxu0 0.0
    %5005 = vmatpush1.msra.mxu0 0.0
    %5006 = vmatprep.subr.mxu0 0.0
    %5007 = vmatpush1.msra.mxu0 0.0
    %5008 = vmatprep.subr.mxu0 0.0
    %5009 = vmatpush1.msra.mxu0 0.0
    %5010 = vmatprep.mubr.f32.mxu0 0.0
    %5011 = vmatmul.mubr.f32.gmra.mrb[0].mxu0 %v4944
    %v5012 = vpop.f32.mrb[0].mxu0
    %v5013 = vadd.f32 %v4930, %v5012
    %v5014 = vpop.f32.mrb[0].mxu0
    %5015 = vdwg.mxu0
    %v5016 = vld [vmem:[%s9] sm:$0x1]
    %v5018 = vlaneseq
    %v5019 = vshrl.u32 %v5018, 7
    %v5020 = vsub.s32 0, %v5019
    %v5021 = vrot.slane %v5016, %v5020
    %v5023 = vadd.f32 %v5013, %v5021
    %v5024 = vxor.u32 %v5023, 2147483648
    %v5025 = vmul.f32 %v5024, 1.442695
    %v5026 = vpow.pop %v5025
    %v5027 = vadd.f32 %v5026, 1.0
    %v5028 = vrcp.pop %v5027
    %v5029 = vmul.f32 1.0, %v5028
    %v5030 = vtanh.pop %v5023
    %v5031 = vmul.f32 %v5029, %v4254
    %5033 = vrot.lane.b32.xlu0 %v5030, 64
    %v5034 = vpop.permute.xlu0 %5033
    %v5036 = vmul.f32 %v5029, %v5034
    %5038 = vrot.lane.b32.xlu0 %v5036, 32
    %v5039 = vpop.permute.xlu0 %5038
    %v5041 = vadd.f32 %v5031, %v5039
    %v5042 = vtanh.pop %v5041
    %5044 = vrot.lane.b32.xlu0 %v5042, 64
    %v5045 = vpop.permute.xlu0 %5044
    %v5047 = vmul.f32 %v5029, %v5045
    %v5048 = vld [vmem:[#allocation10] sm:$0xff]
    %v5049 = vld [vmem:[#allocation10 + $0x8] sm:$0xff]
    %v5050 = vld [vmem:[#allocation10 + $0x10] sm:$0xff]
    %v5051 = vld [vmem:[#allocation10 + $0x18] sm:$0xff]
    %v5052 = vld [vmem:[#allocation10 + $0x20] sm:$0xff]
    %v5053 = vld [vmem:[#allocation10 + $0x28] sm:$0xff]
    %v5054 = vld [vmem:[#allocation10 + $0x30] sm:$0xff]
    %v5055 = vld [vmem:[#allocation10 + $0x38] sm:$0xff]
    %v5056 = vld [vmem:[#allocation10 + $0x40] sm:$0xff]
    %v5057 = vld [vmem:[#allocation10 + $0x48] sm:$0xff]
    %v5058 = vld [vmem:[#allocation10 + $0x50] sm:$0xff]
    %v5059 = vld [vmem:[#allocation10 + $0x58] sm:$0xff]
    %v5060 = vld [vmem:[#allocation10 + $0x60] sm:$0xff]
    %v5061 = vld [vmem:[#allocation10 + $0x68] sm:$0xff]
    %v5062 = vld [vmem:[#allocation10 + $0x70] sm:$0xff]
    %v5063 = vld [vmem:[#allocation10 + $0x78] sm:$0xff]
    %5064 = vmatprep.subr.mxu0 %v5049
    %5065 = vmatpush1.msra.mxu0 %v5048
    %5066 = vmatprep.subr.mxu0 %v5051
    %5067 = vmatpush1.msra.mxu0 %v5050
    %5068 = vmatprep.subr.mxu0 %v5053
    %5069 = vmatpush1.msra.mxu0 %v5052
    %5070 = vmatprep.subr.mxu0 %v5055
    %5071 = vmatpush1.msra.mxu0 %v5054
    %5072 = vmatprep.subr.mxu0 %v5057
    %5073 = vmatpush1.msra.mxu0 %v5056
    %5074 = vmatprep.subr.mxu0 %v5059
    %5075 = vmatpush1.msra.mxu0 %v5058
    %5076 = vmatprep.subr.mxu0 %v5061
    %5077 = vmatpush1.msra.mxu0 %v5060
    %5078 = vmatprep.subr.mxu0 %v5063
    %5079 = vmatpush1.msra.mxu0 %v5062
    %5080 = vmatprep.subr.mxu0 0.0
    %5081 = vmatpush1.msra.mxu0 0.0
    %5082 = vmatprep.subr.mxu0 0.0
    %5083 = vmatpush1.msra.mxu0 0.0
    %5084 = vmatprep.subr.mxu0 0.0
    %5085 = vmatpush1.msra.mxu0 0.0
    %5086 = vmatprep.subr.mxu0 0.0
    %5087 = vmatpush1.msra.mxu0 0.0
    %5088 = vmatprep.subr.mxu0 0.0
    %5089 = vmatpush1.msra.mxu0 0.0
    %5090 = vmatprep.subr.mxu0 0.0
    %5091 = vmatpush1.msra.mxu0 0.0
    %5092 = vmatprep.subr.mxu0 0.0
    %5093 = vmatpush1.msra.mxu0 0.0
    %5094 = vmatprep.subr.mxu0 0.0
    %5095 = vmatpush1.msra.mxu0 0.0
    %5096 = vmatprep.subr.mxu0 0.0
    %5097 = vmatpush1.msra.mxu0 0.0
    %5098 = vmatprep.subr.mxu0 0.0
    %5099 = vmatpush1.msra.mxu0 0.0
    %5100 = vmatprep.subr.mxu0 0.0
    %5101 = vmatpush1.msra.mxu0 0.0
    %5102 = vmatprep.subr.mxu0 0.0
    %5103 = vmatpush1.msra.mxu0 0.0
    %5104 = vmatprep.subr.mxu0 0.0
    %5105 = vmatpush1.msra.mxu0 0.0
    %5106 = vmatprep.subr.mxu0 0.0
    %5107 = vmatpush1.msra.mxu0 0.0
    %5108 = vmatprep.subr.mxu0 0.0
    %5109 = vmatpush1.msra.mxu0 0.0
    %5110 = vmatprep.subr.mxu0 0.0
    %5111 = vmatpush1.msra.mxu0 0.0
    %5112 = vmatprep.subr.mxu0 0.0
    %5113 = vmatpush1.msra.mxu0 0.0
    %5114 = vmatprep.subr.mxu0 0.0
    %5115 = vmatpush1.msra.mxu0 0.0
    %5116 = vmatprep.subr.mxu0 0.0
    %5117 = vmatpush1.msra.mxu0 0.0
    %5118 = vmatprep.subr.mxu0 0.0
    %5119 = vmatpush1.msra.mxu0 0.0
    %5120 = vmatprep.subr.mxu0 0.0
    %5121 = vmatpush1.msra.mxu0 0.0
    %5122 = vmatprep.subr.mxu0 0.0
    %5123 = vmatpush1.msra.mxu0 0.0
    %5124 = vmatprep.subr.mxu0 0.0
    %5125 = vmatpush1.msra.mxu0 0.0
    %5126 = vmatprep.subr.mxu0 0.0
    %5127 = vmatpush1.msra.mxu0 0.0
    %5128 = vmatprep.mubr.f32.mxu0 0.0
    %5129 = vmatmul.mubr.f32.gmra.mrb[0].mxu0 %v4944
    %v5130 = vpop.f32.mrb[0].mxu0
    %v5131 = vadd.f32 0.0, %v5130
    %v5132 = vpop.f32.mrb[0].mxu0
    %v5133 = vadd.f32 0.0, %v5132
    %5134 = vdwg.mxu0
    %v5135 = vld [vmem:[#allocation8] sm:$0xff]
    %v5136 = vld [vmem:[#allocation8 + $0x8] sm:$0xff]
    %v5137 = vld [vmem:[#allocation8 + $0x10] sm:$0xff]
    %v5138 = vld [vmem:[#allocation8 + $0x18] sm:$0xff]
    %v5139 = vld [vmem:[#allocation8 + $0x20] sm:$0xff]
    %v5140 = vld [vmem:[#allocation8 + $0x28] sm:$0xff]
    %v5141 = vld [vmem:[#allocation8 + $0x30] sm:$0xff]
    %v5142 = vld [vmem:[#allocation8 + $0x38] sm:$0xff]
    %v5143 = vld [vmem:[#allocation8 + $0x40] sm:$0xff]
    %v5144 = vld [vmem:[#allocation8 + $0x48] sm:$0xff]
    %v5145 = vld [vmem:[#allocation8 + $0x50] sm:$0xff]
    %v5146 = vld [vmem:[#allocation8 + $0x58] sm:$0xff]
    %v5147 = vld [vmem:[#allocation8 + $0x60] sm:$0xff]
    %v5148 = vld [vmem:[#allocation8 + $0x68] sm:$0xff]
    %v5149 = vld [vmem:[#allocation8 + $0x70] sm:$0xff]
    %v5150 = vld [vmem:[#allocation8 + $0x78] sm:$0xff]
    %v5153 = vrot.slane %v4629, 6
    %v5154 = vrot.slane %v4630, 5
    %v5155 = vsel %vm739, %v5154, %v5153
    %5156 = vrot.lane.b32.xlu0 %v5155, 64
    %v5157 = vpop.permute.xlu0 %5156
    %v5158 = vsel %vm502, %v5157, 0
    %5160 = vmatprep.subr.mxu0 %v5136
    %5161 = vmatpush1.msra.mxu0 %v5135
    %5162 = vmatprep.subr.mxu0 %v5138
    %5163 = vmatpush1.msra.mxu0 %v5137
    %5164 = vmatprep.subr.mxu0 %v5140
    %5165 = vmatpush1.msra.mxu0 %v5139
    %5166 = vmatprep.subr.mxu0 %v5142
    %5167 = vmatpush1.msra.mxu0 %v5141
    %5168 = vmatprep.subr.mxu0 %v5144
    %5169 = vmatpush1.msra.mxu0 %v5143
    %5170 = vmatprep.subr.mxu0 %v5146
    %5171 = vmatpush1.msra.mxu0 %v5145
    %5172 = vmatprep.subr.mxu0 %v5148
    %5173 = vmatpush1.msra.mxu0 %v5147
    %5174 = vmatprep.subr.mxu0 %v5150
    %5175 = vmatpush1.msra.mxu0 %v5149
    %5176 = vmatprep.subr.mxu0 0.0
    %5177 = vmatpush1.msra.mxu0 0.0
    %5178 = vmatprep.subr.mxu0 0.0
    %5179 = vmatpush1.msra.mxu0 0.0
    %5180 = vmatprep.subr.mxu0 0.0
    %5181 = vmatpush1.msra.mxu0 0.0
    %5182 = vmatprep.subr.mxu0 0.0
    %5183 = vmatpush1.msra.mxu0 0.0
    %5184 = vmatprep.subr.mxu0 0.0
    %5185 = vmatpush1.msra.mxu0 0.0
    %5186 = vmatprep.subr.mxu0 0.0
    %5187 = vmatpush1.msra.mxu0 0.0
    %5188 = vmatprep.subr.mxu0 0.0
    %5189 = vmatpush1.msra.mxu0 0.0
    %5190 = vmatprep.subr.mxu0 0.0
    %5191 = vmatpush1.msra.mxu0 0.0
    %5192 = vmatprep.subr.mxu0 0.0
    %5193 = vmatpush1.msra.mxu0 0.0
    %5194 = vmatprep.subr.mxu0 0.0
    %5195 = vmatpush1.msra.mxu0 0.0
    %5196 = vmatprep.subr.mxu0 0.0
    %5197 = vmatpush1.msra.mxu0 0.0
    %5198 = vmatprep.subr.mxu0 0.0
    %5199 = vmatpush1.msra.mxu0 0.0
    %5200 = vmatprep.subr.mxu0 0.0
    %5201 = vmatpush1.msra.mxu0 0.0
    %5202 = vmatprep.subr.mxu0 0.0
    %5203 = vmatpush1.msra.mxu0 0.0
    %5204 = vmatprep.subr.mxu0 0.0
    %5205 = vmatpush1.msra.mxu0 0.0
    %5206 = vmatprep.subr.mxu0 0.0
    %5207 = vmatpush1.msra.mxu0 0.0
    %5208 = vmatprep.subr.mxu0 0.0
    %5209 = vmatpush1.msra.mxu0 0.0
    %5210 = vmatprep.subr.mxu0 0.0
    %5211 = vmatpush1.msra.mxu0 0.0
    %5212 = vmatprep.subr.mxu0 0.0
    %5213 = vmatpush1.msra.mxu0 0.0
    %5214 = vmatprep.subr.mxu0 0.0
    %5215 = vmatpush1.msra.mxu0 0.0
    %5216 = vmatprep.subr.mxu0 0.0
    %5217 = vmatpush1.msra.mxu0 0.0
    %5218 = vmatprep.subr.mxu0 0.0
    %5219 = vmatpush1.msra.mxu0 0.0
    %5220 = vmatprep.subr.mxu0 0.0
    %5221 = vmatpush1.msra.mxu0 0.0
    %5222 = vmatprep.subr.mxu0 0.0
    %5223 = vmatpush1.msra.mxu0 0.0
    %5224 = vmatprep.mubr.f32.mxu0 0.0
    %5225 = vmatmul.mubr.f32.gmra.mrb[0].mxu0 %v5158
    %v5226 = vpop.f32.mrb[0].mxu0
    %v5227 = vadd.f32 %v5131, %v5226
    %v5228 = vpop.f32.mrb[0].mxu0
    %v5229 = vadd.f32 %v5133, %v5228
    %5230 = vdwg.mxu0
    %v5231 = vld [vmem:[#allocation11] sm:$0x3]
    %v5233 = vlaneseq
    %v5234 = vshrl.u32 %v5233, 7
    %v5235 = vsub.s32 0, %v5234
    %v5236 = vrot.slane %v5231, %v5235
    %v5237 = vlaneseq
    %v5238 = vshrl.u32 %v5237, 7
    %v5239 = vsub.s32 1, %v5238
    %v5240 = vrot.slane %v5231, %v5239
    %v5243 = vadd.f32 %v5227, %v5236
    %v5244 = vadd.f32 %v5229, %v5240
    %v5245 = vxor.u32 %v5243, 2147483648
    %v5246 = vmul.f32 %v5245, 1.442695
    %v5247 = vpow.pop %v5246
    %v5248 = vadd.f32 %v5247, 1.0
    %v5249 = vrcp.pop %v5248
    %v5250 = vmul.f32 1.0, %v5249
    %v5251 = vtanh.pop %v5244
    %v5252 = vxor.u32 %v5244, 2147483648
    %v5253 = vmul.f32 %v5252, 1.442695
    %v5254 = vpow.pop %v5253
    %v5255 = vadd.f32 %v5254, 1.0
    %v5256 = vrcp.pop %v5255
    %v5257 = vmul.f32 1.0, %v5256
    %v5258 = vmul.f32 %v5250, %v4477
    %v5259 = vmul.f32 %v5250, %v5251
    %5261 = vrot.lane.b32.xlu0 %v5259, 64
    %v5262 = vpop.permute.xlu0 %5261
    %v5264 = vadd.f32 %v5258, %v5262
    %v5265 = vtanh.pop %v5264
    %v5266 = vmul.f32 %v5257, %v5265
    %v5267 = vld [vmem:[#allocation7] sm:$0xff]
    %v5268 = vld [vmem:[#allocation7 + $0x8] sm:$0xff]
    %v5269 = vld [vmem:[#allocation7 + $0x10] sm:$0xff]
    %v5270 = vld [vmem:[#allocation7 + $0x18] sm:$0xff]
    %v5271 = vld [vmem:[#allocation7 + $0x20] sm:$0xff]
    %v5272 = vld [vmem:[#allocation7 + $0x28] sm:$0xff]
    %v5273 = vld [vmem:[#allocation7 + $0x30] sm:$0xff]
    %v5274 = vld [vmem:[#allocation7 + $0x38] sm:$0xff]
    %v5275 = vld [vmem:[#allocation7 + $0x40] sm:$0xff]
    %v5276 = vld [vmem:[#allocation7 + $0x48] sm:$0xff]
    %v5277 = vld [vmem:[#allocation7 + $0x50] sm:$0xff]
    %v5278 = vld [vmem:[#allocation7 + $0x58] sm:$0xff]
    %v5279 = vld [vmem:[#allocation7 + $0x60] sm:$0xff]
    %v5280 = vld [vmem:[#allocation7 + $0x68] sm:$0xff]
    %v5281 = vld [vmem:[#allocation7 + $0x70] sm:$0xff]
    %v5282 = vld [vmem:[#allocation7 + $0x78] sm:$0xff]
    %5283 = vmatprep.subr.mxu0 %v5268
    %5284 = vmatpush1.msra.mxu0 %v5267
    %5285 = vmatprep.subr.mxu0 %v5270
    %5286 = vmatpush1.msra.mxu0 %v5269
    %5287 = vmatprep.subr.mxu0 %v5272
    %5288 = vmatpush1.msra.mxu0 %v5271
    %5289 = vmatprep.subr.mxu0 %v5274
    %5290 = vmatpush1.msra.mxu0 %v5273
    %5291 = vmatprep.subr.mxu0 %v5276
    %5292 = vmatpush1.msra.mxu0 %v5275
    %5293 = vmatprep.subr.mxu0 %v5278
    %5294 = vmatpush1.msra.mxu0 %v5277
    %5295 = vmatprep.subr.mxu0 %v5280
    %5296 = vmatpush1.msra.mxu0 %v5279
    %5297 = vmatprep.subr.mxu0 %v5282
    %5298 = vmatpush1.msra.mxu0 %v5281
    %5299 = vmatprep.subr.mxu0 0.0
    %5300 = vmatpush1.msra.mxu0 0.0
    %5301 = vmatprep.subr.mxu0 0.0
    %5302 = vmatpush1.msra.mxu0 0.0
    %5303 = vmatprep.subr.mxu0 0.0
    %5304 = vmatpush1.msra.mxu0 0.0
    %5305 = vmatprep.subr.mxu0 0.0
    %5306 = vmatpush1.msra.mxu0 0.0
    %5307 = vmatprep.subr.mxu0 0.0
    %5308 = vmatpush1.msra.mxu0 0.0
    %5309 = vmatprep.subr.mxu0 0.0
    %5310 = vmatpush1.msra.mxu0 0.0
    %5311 = vmatprep.subr.mxu0 0.0
    %5312 = vmatpush1.msra.mxu0 0.0
    %5313 = vmatprep.subr.mxu0 0.0
    %5314 = vmatpush1.msra.mxu0 0.0
    %5315 = vmatprep.subr.mxu0 0.0
    %5316 = vmatpush1.msra.mxu0 0.0
    %5317 = vmatprep.subr.mxu0 0.0
    %5318 = vmatpush1.msra.mxu0 0.0
    %5319 = vmatprep.subr.mxu0 0.0
    %5320 = vmatpush1.msra.mxu0 0.0
    %5321 = vmatprep.subr.mxu0 0.0
    %5322 = vmatpush1.msra.mxu0 0.0
    %5323 = vmatprep.subr.mxu0 0.0
    %5324 = vmatpush1.msra.mxu0 0.0
    %5325 = vmatprep.subr.mxu0 0.0
    %5326 = vmatpush1.msra.mxu0 0.0
    %5327 = vmatprep.subr.mxu0 0.0
    %5328 = vmatpush1.msra.mxu0 0.0
    %5329 = vmatprep.subr.mxu0 0.0
    %5330 = vmatpush1.msra.mxu0 0.0
    %5331 = vmatprep.subr.mxu0 0.0
    %5332 = vmatpush1.msra.mxu0 0.0
    %5333 = vmatprep.subr.mxu0 0.0
    %5334 = vmatpush1.msra.mxu0 0.0
    %5335 = vmatprep.subr.mxu0 0.0
    %5336 = vmatpush1.msra.mxu0 0.0
    %5337 = vmatprep.subr.mxu0 0.0
    %5338 = vmatpush1.msra.mxu0 0.0
    %5339 = vmatprep.subr.mxu0 0.0
    %5340 = vmatpush1.msra.mxu0 0.0
    %5341 = vmatprep.subr.mxu0 0.0
    %5342 = vmatpush1.msra.mxu0 0.0
    %5343 = vmatprep.subr.mxu0 0.0
    %5344 = vmatpush1.msra.mxu0 0.0
    %5345 = vmatprep.subr.mxu0 0.0
    %5346 = vmatpush1.msra.mxu0 0.0
    %5347 = vmatprep.mubr.f32.mxu0 0.0
    %5348 = vmatmul.mubr.f32.gmra.mrb[0].mxu0 %v5158
    %v5349 = vpop.f32.mrb[0].mxu0
    %v5350 = vadd.f32 0.0, %v5349
    %v5351 = vpop.f32.mrb[0].mxu0
    %v5352 = vadd.f32 0.0, %v5351
    %5353 = vdwg.mxu0
    %v5356 = vrot.slane %v5350, 1
    %v5357 = vrot.slane %v5352, 1
    %v5358 = vrot.slane %v5350, 2
    %v5359 = vrot.slane %v5352, 2
    %v5364 = vadd.f32 %v476, %v5356
    %v5365 = vadd.f32 %v478, %v5357
    %v5366 = vadd.f32 %v482, %v5358
    %v5367 = vadd.f32 %v484, %v5359
    %v5368 = vxor.u32 %v5364, 2147483648
    %v5369 = vxor.u32 %v5366, 2147483648
    %v5370 = vmul.f32 %v5368, 1.442695
    %v5371 = vpow.pop %v5370
    %v5372 = vmul.f32 %v5369, 1.442695
    %v5373 = vpow.pop %v5372
    %v5374 = vadd.f32 %v5371, 1.0
    %v5375 = vadd.f32 %v5373, 1.0
    %v5376 = vrcp.pop %v5374
    %v5377 = vmul.f32 1.0, %v5376
    %v5378 = vrcp.pop %v5375
    %v5379 = vmul.f32 1.0, %v5378
    %v5380 = vtanh.pop %v5365
    %v5381 = vtanh.pop %v5367
    %v5382 = vxor.u32 %v5365, 2147483648
    %v5383 = vxor.u32 %v5367, 2147483648
    %v5384 = vmul.f32 %v5382, 1.442695
    %v5385 = vpow.pop %v5384
    %v5386 = vmul.f32 %v5383, 1.442695
    %v5387 = vpow.pop %v5386
    %v5388 = vadd.f32 %v5385, 1.0
    %v5389 = vadd.f32 %v5387, 1.0
    %v5390 = vrcp.pop %v5388
    %v5391 = vmul.f32 1.0, %v5390
    %v5392 = vrcp.pop %v5389
    %v5393 = vmul.f32 1.0, %v5392
    %v5396 = vrot.slane %v4625, 7
    %v5397 = vrot.slane %v4626, 7
    %v5400 = vmul.f32 %v5377, %v5396
    %v5401 = vmul.f32 %v5379, %v5397
    %v5402 = vmul.f32 %v5377, %v5380
    %v5403 = vmul.f32 %v5379, %v5381
    %5406 = vrot.lane.b32.xlu0 %v5402, 64
    %v5407 = vpop.permute.xlu0 %5406
    %5408 = vrot.lane.b32.xlu0 %v5403, 64
    %v5409 = vpop.permute.xlu0 %5408
    %v5412 = vadd.f32 %v5400, %v5407
    %v5413 = vadd.f32 %v5401, %v5409
    %v5414 = vtanh.pop %v5412
    %v5415 = vtanh.pop %v5413
    %v5416 = vmul.f32 %v5391, %v5414
    %v5417 = vmul.f32 %v5393, %v5415
    %v5418 = vld [vmem:[#allocation16] sm:$0xff]
    %v5419 = vld [vmem:[#allocation16 + $0x8] sm:$0xff]
    %v5420 = vld [vmem:[#allocation16 + $0x10] sm:$0xff]
    %v5421 = vld [vmem:[#allocation16 + $0x18] sm:$0xff]
    %5422 = vrot.lane.b32.xlu0 %v4819, 32
    %v5423 = vpop.permute.xlu0 %5422
    %v5424 = vsel %vm989, %v5423, 0
    %5426 = vmatprep.subr.mxu0 0.0
    %5427 = vmatpush1.msra.mxu0 %v5418
    %5428 = vmatprep.subr.mxu0 0.0
    %5429 = vmatpush1.msra.mxu0 %v5419
    %5430 = vmatprep.subr.mxu0 0.0
    %5431 = vmatpush1.msra.mxu0 %v5420
    %5432 = vmatprep.subr.mxu0 0.0
    %5433 = vmatpush1.msra.mxu0 %v5421
    %5434 = vmatprep.subr.mxu0 0.0
    %5435 = vmatpush1.msra.mxu0 0.0
    %5436 = vmatprep.subr.mxu0 0.0
    %5437 = vmatpush1.msra.mxu0 0.0
    %5438 = vmatprep.subr.mxu0 0.0
    %5439 = vmatpush1.msra.mxu0 0.0
    %5440 = vmatprep.subr.mxu0 0.0
    %5441 = vmatpush1.msra.mxu0 0.0
    %5442 = vmatprep.subr.mxu0 0.0
    %5443 = vmatpush1.msra.mxu0 0.0
    %5444 = vmatprep.subr.mxu0 0.0
    %5445 = vmatpush1.msra.mxu0 0.0
    %5446 = vmatprep.subr.mxu0 0.0
    %5447 = vmatpush1.msra.mxu0 0.0
    %5448 = vmatprep.subr.mxu0 0.0
    %5449 = vmatpush1.msra.mxu0 0.0
    %5450 = vmatprep.subr.mxu0 0.0
    %5451 = vmatpush1.msra.mxu0 0.0
    %5452 = vmatprep.subr.mxu0 0.0
    %5453 = vmatpush1.msra.mxu0 0.0
    %5454 = vmatprep.subr.mxu0 0.0
    %5455 = vmatpush1.msra.mxu0 0.0
    %5456 = vmatprep.subr.mxu0 0.0
    %5457 = vmatpush1.msra.mxu0 0.0
    %5458 = vmatprep.subr.mxu0 0.0
    %5459 = vmatpush1.msra.mxu0 0.0
    %5460 = vmatprep.subr.mxu0 0.0
    %5461 = vmatpush1.msra.mxu0 0.0
    %5462 = vmatprep.subr.mxu0 0.0
    %5463 = vmatpush1.msra.mxu0 0.0
    %5464 = vmatprep.subr.mxu0 0.0
    %5465 = vmatpush1.msra.mxu0 0.0
    %5466 = vmatprep.subr.mxu0 0.0
    %5467 = vmatpush1.msra.mxu0 0.0
    %5468 = vmatprep.subr.mxu0 0.0
    %5469 = vmatpush1.msra.mxu0 0.0
    %5470 = vmatprep.subr.mxu0 0.0
    %5471 = vmatpush1.msra.mxu0 0.0
    %5472 = vmatprep.subr.mxu0 0.0
    %5473 = vmatpush1.msra.mxu0 0.0
    %5474 = vmatprep.subr.mxu0 0.0
    %5475 = vmatpush1.msra.mxu0 0.0
    %5476 = vmatprep.subr.mxu0 0.0
    %5477 = vmatpush1.msra.mxu0 0.0
    %5478 = vmatprep.subr.mxu0 0.0
    %5479 = vmatpush1.msra.mxu0 0.0
    %5480 = vmatprep.subr.mxu0 0.0
    %5481 = vmatpush1.msra.mxu0 0.0
    %5482 = vmatprep.subr.mxu0 0.0
    %5483 = vmatpush1.msra.mxu0 0.0
    %5484 = vmatprep.subr.mxu0 0.0
    %5485 = vmatpush1.msra.mxu0 0.0
    %5486 = vmatprep.subr.mxu0 0.0
    %5487 = vmatpush1.msra.mxu0 0.0
    %5488 = vmatprep.subr.mxu0 0.0
    %5489 = vmatpush1.msra.mxu0 0.0
    %5490 = vmatprep.mubr.f32.mxu0 0.0
    %5491 = vmatmul.mubr.f32.gmra.mrb[0].mxu0 %v5424
    %v5492 = vpop.f32.mrb[0].mxu0
    %v5493 = vadd.f32 0.0, %v5492
    %v5494 = vpop.f32.mrb[0].mxu0
    %5495 = vdwg.mxu0
    %v5496 = vld [vmem:[#allocation14] sm:$0xff]
    %v5497 = vld [vmem:[#allocation14 + $0x8] sm:$0xff]
    %v5498 = vld [vmem:[#allocation14 + $0x10] sm:$0xff]
    %v5499 = vld [vmem:[#allocation14 + $0x18] sm:$0xff]
    %5501 = vrot.lane.b32.xlu0 %v5047, 32
    %v5502 = vpop.permute.xlu0 %5501
    %v5503 = vsel %vm989, %v5502, 0
    %5505 = vmatprep.subr.mxu0 0.0
    %5506 = vmatpush1.msra.mxu0 %v5496
    %5507 = vmatprep.subr.mxu0 0.0
    %5508 = vmatpush1.msra.mxu0 %v5497
    %5509 = vmatprep.subr.mxu0 0.0
    %5510 = vmatpush1.msra.mxu0 %v5498
    %5511 = vmatprep.subr.mxu0 0.0
    %5512 = vmatpush1.msra.mxu0 %v5499
    %5513 = vmatprep.subr.mxu0 0.0
    %5514 = vmatpush1.msra.mxu0 0.0
    %5515 = vmatprep.subr.mxu0 0.0
    %5516 = vmatpush1.msra.mxu0 0.0
    %5517 = vmatprep.subr.mxu0 0.0
    %5518 = vmatpush1.msra.mxu0 0.0
    %5519 = vmatprep.subr.mxu0 0.0
    %5520 = vmatpush1.msra.mxu0 0.0
    %5521 = vmatprep.subr.mxu0 0.0
    %5522 = vmatpush1.msra.mxu0 0.0
    %5523 = vmatprep.subr.mxu0 0.0
    %5524 = vmatpush1.msra.mxu0 0.0
    %5525 = vmatprep.subr.mxu0 0.0
    %5526 = vmatpush1.msra.mxu0 0.0
    %5527 = vmatprep.subr.mxu0 0.0
    %5528 = vmatpush1.msra.mxu0 0.0
    %5529 = vmatprep.subr.mxu0 0.0
    %5530 = vmatpush1.msra.mxu0 0.0
    %5531 = vmatprep.subr.mxu0 0.0
    %5532 = vmatpush1.msra.mxu0 0.0
    %5533 = vmatprep.subr.mxu0 0.0
    %5534 = vmatpush1.msra.mxu0 0.0
    %5535 = vmatprep.subr.mxu0 0.0
    %5536 = vmatpush1.msra.mxu0 0.0
    %5537 = vmatprep.subr.mxu0 0.0
    %5538 = vmatpush1.msra.mxu0 0.0
    %5539 = vmatprep.subr.mxu0 0.0
    %5540 = vmatpush1.msra.mxu0 0.0
    %5541 = vmatprep.subr.mxu0 0.0
    %5542 = vmatpush1.msra.mxu0 0.0
    %5543 = vmatprep.subr.mxu0 0.0
    %5544 = vmatpush1.msra.mxu0 0.0
    %5545 = vmatprep.subr.mxu0 0.0
    %5546 = vmatpush1.msra.mxu0 0.0
    %5547 = vmatprep.subr.mxu0 0.0
    %5548 = vmatpush1.msra.mxu0 0.0
    %5549 = vmatprep.subr.mxu0 0.0
    %5550 = vmatpush1.msra.mxu0 0.0
    %5551 = vmatprep.subr.mxu0 0.0
    %5552 = vmatpush1.msra.mxu0 0.0
    %5553 = vmatprep.subr.mxu0 0.0
    %5554 = vmatpush1.msra.mxu0 0.0
    %5555 = vmatprep.subr.mxu0 0.0
    %5556 = vmatpush1.msra.mxu0 0.0
    %5557 = vmatprep.subr.mxu0 0.0
    %5558 = vmatpush1.msra.mxu0 0.0
    %5559 = vmatprep.subr.mxu0 0.0
    %5560 = vmatpush1.msra.mxu0 0.0
    %5561 = vmatprep.subr.mxu0 0.0
    %5562 = vmatpush1.msra.mxu0 0.0
    %5563 = vmatprep.subr.mxu0 0.0
    %5564 = vmatpush1.msra.mxu0 0.0
    %5565 = vmatprep.subr.mxu0 0.0
    %5566 = vmatpush1.msra.mxu0 0.0
    %5567 = vmatprep.subr.mxu0 0.0
    %5568 = vmatpush1.msra.mxu0 0.0
    %5569 = vmatprep.mubr.f32.mxu0 0.0
    %5570 = vmatmul.mubr.f32.gmra.mrb[0].mxu0 %v5503
    %v5571 = vpop.f32.mrb[0].mxu0
    %v5572 = vadd.f32 %v5493, %v5571
    %v5573 = vpop.f32.mrb[0].mxu0
    %5574 = vdwg.mxu0
    %v5575 = vld [vmem:[%s12] sm:$0x1]
    %v5577 = vlaneseq
    %v5578 = vshrl.u32 %v5577, 7
    %v5579 = vsub.s32 0, %v5578
    %v5580 = vrot.slane %v5575, %v5579
    %v5582 = vadd.f32 %v5572, %v5580
    %v5583 = vxor.u32 %v5582, 2147483648
    %v5584 = vmul.f32 %v5583, 1.442695
    %v5585 = vpow.pop %v5584
    %v5586 = vadd.f32 %v5585, 1.0
    %v5587 = vrcp.pop %v5586
    %v5588 = vmul.f32 1.0, %v5587
    %v5589 = vtanh.pop %v5582
    %v5590 = vmul.f32 %v5588, %v4813
    %5592 = vrot.lane.b32.xlu0 %v5589, 64
    %v5593 = vpop.permute.xlu0 %5592
    %v5595 = vmul.f32 %v5588, %v5593
    %5597 = vrot.lane.b32.xlu0 %v5595, 32
    %v5598 = vpop.permute.xlu0 %5597
    %v5600 = vadd.f32 %v5590, %v5598
    %v5601 = vtanh.pop %v5600
    %5603 = vrot.lane.b32.xlu0 %v5601, 64
    %v5604 = vpop.permute.xlu0 %5603
    %v5606 = vmul.f32 %v5588, %v5604
    %v5609 = vunpack.c.l.s4 1966171168
    %v5610 = vunpack.c.0.s8 %v5609
    %v5611 = vlaneseq
    %v5612 = vshrl.u32 %v5611, 7
    %v5613 = vsub.s32 %v5610, %v5612
    %v5614 = vrot.slane %v5606, %v5613
    %v5615 = vcombine.high %v5614, %v5614
    %v5617 = vunpack.c.l.s4 1966171168
    %v5618 = vunpack.c.0.s8 %v5617
    %v5619 = vlaneseq
    %v5620 = vshrl.u32 %v5619, 7
    %v5621 = vsub.s32 %v5618, %v5620
    %v5622 = vrot.slane %v5614, %v5621
    %v5624 = vunpack.c.l.s4 1966171168
    %v5625 = vunpack.c.0.s8 %v5624
    %v5626 = vlaneseq
    %v5627 = vshrl.u32 %v5626, 7
    %v5628 = vsub.s32 %v5625, %v5627
    %v5629 = vrot.slane %v5615, %v5628
    %v5630 = vlaneseq
    %v5631 = vshrl.u32 %v5630, 7
    %v5632 = vsub.s32 0, %v5631
    %v5633 = vrot.slane %v5622, %v5632
    %v5634 = vlaneseq
    %v5635 = vshrl.u32 %v5634, 7
    %v5636 = vsub.s32 0, %v5635
    %v5637 = vrot.slane %v5629, %v5636
    %5638 = vrot.lane.b32.xlu0 %v5633, 32
    %v5639 = vpop.permute.xlu0 %5638
    %5640 = vrot.lane.b32.xlu0 %v5637, 32
    %v5641 = vpop.permute.xlu0 %5640
    %5644 = vst.msk [vmem:[#allocation2 + $0x5] sm:$0x1] %vm1708, %v5639
    %5645 = vst.msk [vmem:[#allocation2 + $0xd] sm:$0x1] %vm1708, %v5641
    %v5646 = vld [vmem:[%s8] sm:$0xff]
    %v5647 = vld [vmem:[%s8 + $0x8] sm:$0xff]
    %v5648 = vld [vmem:[%s8 + $0x10] sm:$0xff]
    %v5649 = vld [vmem:[%s8 + $0x18] sm:$0xff]
    %5650 = vmatprep.subr.mxu0 0.0
    %5651 = vmatpush1.msra.mxu0 %v5646
    %5652 = vmatprep.subr.mxu0 0.0
    %5653 = vmatpush1.msra.mxu0 %v5647
    %5654 = vmatprep.subr.mxu0 0.0
    %5655 = vmatpush1.msra.mxu0 %v5648
    %5656 = vmatprep.subr.mxu0 0.0
    %5657 = vmatpush1.msra.mxu0 %v5649
    %5658 = vmatprep.subr.mxu0 0.0
    %5659 = vmatpush1.msra.mxu0 0.0
    %5660 = vmatprep.subr.mxu0 0.0
    %5661 = vmatpush1.msra.mxu0 0.0
    %5662 = vmatprep.subr.mxu0 0.0
    %5663 = vmatpush1.msra.mxu0 0.0
    %5664 = vmatprep.subr.mxu0 0.0
    %5665 = vmatpush1.msra.mxu0 0.0
    %5666 = vmatprep.subr.mxu0 0.0
    %5667 = vmatpush1.msra.mxu0 0.0
    %5668 = vmatprep.subr.mxu0 0.0
    %5669 = vmatpush1.msra.mxu0 0.0
    %5670 = vmatprep.subr.mxu0 0.0
    %5671 = vmatpush1.msra.mxu0 0.0
    %5672 = vmatprep.subr.mxu0 0.0
    %5673 = vmatpush1.msra.mxu0 0.0
    %5674 = vmatprep.subr.mxu0 0.0
    %5675 = vmatpush1.msra.mxu0 0.0
    %5676 = vmatprep.subr.mxu0 0.0
    %5677 = vmatpush1.msra.mxu0 0.0
    %5678 = vmatprep.subr.mxu0 0.0
    %5679 = vmatpush1.msra.mxu0 0.0
    %5680 = vmatprep.subr.mxu0 0.0
    %5681 = vmatpush1.msra.mxu0 0.0
    %5682 = vmatprep.subr.mxu0 0.0
    %5683 = vmatpush1.msra.mxu0 0.0
    %5684 = vmatprep.subr.mxu0 0.0
    %5685 = vmatpush1.msra.mxu0 0.0
    %5686 = vmatprep.subr.mxu0 0.0
    %5687 = vmatpush1.msra.mxu0 0.0
    %5688 = vmatprep.subr.mxu0 0.0
    %5689 = vmatpush1.msra.mxu0 0.0
    %5690 = vmatprep.subr.mxu0 0.0
    %5691 = vmatpush1.msra.mxu0 0.0
    %5692 = vmatprep.subr.mxu0 0.0
    %5693 = vmatpush1.msra.mxu0 0.0
    %5694 = vmatprep.subr.mxu0 0.0
    %5695 = vmatpush1.msra.mxu0 0.0
    %5696 = vmatprep.subr.mxu0 0.0
    %5697 = vmatpush1.msra.mxu0 0.0
    %5698 = vmatprep.subr.mxu0 0.0
    %5699 = vmatpush1.msra.mxu0 0.0
    %5700 = vmatprep.subr.mxu0 0.0
    %5701 = vmatpush1.msra.mxu0 0.0
    %5702 = vmatprep.subr.mxu0 0.0
    %5703 = vmatpush1.msra.mxu0 0.0
    %5704 = vmatprep.subr.mxu0 0.0
    %5705 = vmatpush1.msra.mxu0 0.0
    %5706 = vmatprep.subr.mxu0 0.0
    %5707 = vmatpush1.msra.mxu0 0.0
    %5708 = vmatprep.subr.mxu0 0.0
    %5709 = vmatpush1.msra.mxu0 0.0
    %5710 = vmatprep.subr.mxu0 0.0
    %5711 = vmatpush1.msra.mxu0 0.0
    %5712 = vmatprep.subr.mxu0 0.0
    %5713 = vmatpush1.msra.mxu0 0.0
    %5714 = vmatprep.mubr.f32.mxu0 0.0
    %5715 = vmatmul.mubr.f32.gmra.mrb[0].mxu0 %v5503
    %v5716 = vpop.f32.mrb[0].mxu0
    %v5717 = vadd.f32 0.0, %v5716
    %v5718 = vpop.f32.mrb[0].mxu0
    %5719 = vdwg.mxu0
    %v5720 = vld [vmem:[#allocation13] sm:$0xff]
    %v5721 = vld [vmem:[#allocation13 + $0x8] sm:$0xff]
    %v5722 = vld [vmem:[#allocation13 + $0x10] sm:$0xff]
    %v5723 = vld [vmem:[#allocation13 + $0x18] sm:$0xff]
    %v5724 = vld [vmem:[#allocation13 + $0x20] sm:$0xff]
    %v5725 = vld [vmem:[#allocation13 + $0x28] sm:$0xff]
    %v5726 = vld [vmem:[#allocation13 + $0x30] sm:$0xff]
    %v5727 = vld [vmem:[#allocation13 + $0x38] sm:$0xff]
    %5729 = vrot.lane.b32.xlu0 %v5266, 64
    %v5730 = vpop.permute.xlu0 %5729
    %v5731 = vsel %vm502, %v5730, 0
    %5733 = vmatprep.subr.mxu0 0.0
    %5734 = vmatpush1.msra.mxu0 %v5720
    %5735 = vmatprep.subr.mxu0 0.0
    %5736 = vmatpush1.msra.mxu0 %v5721
    %5737 = vmatprep.subr.mxu0 0.0
    %5738 = vmatpush1.msra.mxu0 %v5722
    %5739 = vmatprep.subr.mxu0 0.0
    %5740 = vmatpush1.msra.mxu0 %v5723
    %5741 = vmatprep.subr.mxu0 0.0
    %5742 = vmatpush1.msra.mxu0 %v5724
    %5743 = vmatprep.subr.mxu0 0.0
    %5744 = vmatpush1.msra.mxu0 %v5725
    %5745 = vmatprep.subr.mxu0 0.0
    %5746 = vmatpush1.msra.mxu0 %v5726
    %5747 = vmatprep.subr.mxu0 0.0
    %5748 = vmatpush1.msra.mxu0 %v5727
    %5749 = vmatprep.subr.mxu0 0.0
    %5750 = vmatpush1.msra.mxu0 0.0
    %5751 = vmatprep.subr.mxu0 0.0
    %5752 = vmatpush1.msra.mxu0 0.0
    %5753 = vmatprep.subr.mxu0 0.0
    %5754 = vmatpush1.msra.mxu0 0.0
    %5755 = vmatprep.subr.mxu0 0.0
    %5756 = vmatpush1.msra.mxu0 0.0
    %5757 = vmatprep.subr.mxu0 0.0
    %5758 = vmatpush1.msra.mxu0 0.0
    %5759 = vmatprep.subr.mxu0 0.0
    %5760 = vmatpush1.msra.mxu0 0.0
    %5761 = vmatprep.subr.mxu0 0.0
    %5762 = vmatpush1.msra.mxu0 0.0
    %5763 = vmatprep.subr.mxu0 0.0
    %5764 = vmatpush1.msra.mxu0 0.0
    %5765 = vmatprep.subr.mxu0 0.0
    %5766 = vmatpush1.msra.mxu0 0.0
    %5767 = vmatprep.subr.mxu0 0.0
    %5768 = vmatpush1.msra.mxu0 0.0
    %5769 = vmatprep.subr.mxu0 0.0
    %5770 = vmatpush1.msra.mxu0 0.0
    %5771 = vmatprep.subr.mxu0 0.0
    %5772 = vmatpush1.msra.mxu0 0.0
    %5773 = vmatprep.subr.mxu0 0.0
    %5774 = vmatpush1.msra.mxu0 0.0
    %5775 = vmatprep.subr.mxu0 0.0
    %5776 = vmatpush1.msra.mxu0 0.0
    %5777 = vmatprep.subr.mxu0 0.0
    %5778 = vmatpush1.msra.mxu0 0.0
    %5779 = vmatprep.subr.mxu0 0.0
    %5780 = vmatpush1.msra.mxu0 0.0
    %5781 = vmatprep.subr.mxu0 0.0
    %5782 = vmatpush1.msra.mxu0 0.0
    %5783 = vmatprep.subr.mxu0 0.0
    %5784 = vmatpush1.msra.mxu0 0.0
    %5785 = vmatprep.subr.mxu0 0.0
    %5786 = vmatpush1.msra.mxu0 0.0
    %5787 = vmatprep.subr.mxu0 0.0
    %5788 = vmatpush1.msra.mxu0 0.0
    %5789 = vmatprep.subr.mxu0 0.0
    %5790 = vmatpush1.msra.mxu0 0.0
    %5791 = vmatprep.subr.mxu0 0.0
    %5792 = vmatpush1.msra.mxu0 0.0
    %5793 = vmatprep.subr.mxu0 0.0
    %5794 = vmatpush1.msra.mxu0 0.0
    %5795 = vmatprep.subr.mxu0 0.0
    %5796 = vmatpush1.msra.mxu0 0.0
    %5797 = vmatprep.mubr.f32.mxu0 0.0
    %5798 = vmatmul.mubr.f32.gmra.mrb[0].mxu0 %v5731
    %v5799 = vpop.f32.mrb[0].mxu0
    %v5800 = vadd.f32 %v5717, %v5799
    %v5801 = vpop.f32.mrb[0].mxu0
    %5802 = vdwg.mxu0
    %v5803 = vld [vmem:[%s9] sm:$0x1]
    %v5805 = vlaneseq
    %v5806 = vshrl.u32 %v5805, 7
    %v5807 = vsub.s32 0, %v5806
    %v5808 = vrot.slane %v5803, %v5807
    %v5810 = vadd.f32 %v5800, %v5808
    %v5811 = vxor.u32 %v5810, 2147483648
    %v5812 = vmul.f32 %v5811, 1.442695
    %v5813 = vpow.pop %v5812
    %v5814 = vadd.f32 %v5813, 1.0
    %v5815 = vrcp.pop %v5814
    %v5816 = vmul.f32 1.0, %v5815
    %v5817 = vtanh.pop %v5810
    %v5818 = vmul.f32 %v5816, %v5041
    %5820 = vrot.lane.b32.xlu0 %v5817, 64
    %v5821 = vpop.permute.xlu0 %5820
    %v5823 = vmul.f32 %v5816, %v5821
    %5825 = vrot.lane.b32.xlu0 %v5823, 32
    %v5826 = vpop.permute.xlu0 %5825
    %v5828 = vadd.f32 %v5818, %v5826
    %v5829 = vtanh.pop %v5828
    %5831 = vrot.lane.b32.xlu0 %v5829, 64
    %v5832 = vpop.permute.xlu0 %5831
    %v5834 = vmul.f32 %v5816, %v5832
    %v5835 = vld [vmem:[#allocation10] sm:$0xff]
    %v5836 = vld [vmem:[#allocation10 + $0x8] sm:$0xff]
    %v5837 = vld [vmem:[#allocation10 + $0x10] sm:$0xff]
    %v5838 = vld [vmem:[#allocation10 + $0x18] sm:$0xff]
    %v5839 = vld [vmem:[#allocation10 + $0x20] sm:$0xff]
    %v5840 = vld [vmem:[#allocation10 + $0x28] sm:$0xff]
    %v5841 = vld [vmem:[#allocation10 + $0x30] sm:$0xff]
    %v5842 = vld [vmem:[#allocation10 + $0x38] sm:$0xff]
    %v5843 = vld [vmem:[#allocation10 + $0x40] sm:$0xff]
    %v5844 = vld [vmem:[#allocation10 + $0x48] sm:$0xff]
    %v5845 = vld [vmem:[#allocation10 + $0x50] sm:$0xff]
    %v5846 = vld [vmem:[#allocation10 + $0x58] sm:$0xff]
    %v5847 = vld [vmem:[#allocation10 + $0x60] sm:$0xff]
    %v5848 = vld [vmem:[#allocation10 + $0x68] sm:$0xff]
    %v5849 = vld [vmem:[#allocation10 + $0x70] sm:$0xff]
    %v5850 = vld [vmem:[#allocation10 + $0x78] sm:$0xff]
    %5851 = vmatprep.subr.mxu0 %v5836
    %5852 = vmatpush1.msra.mxu0 %v5835
    %5853 = vmatprep.subr.mxu0 %v5838
    %5854 = vmatpush1.msra.mxu0 %v5837
    %5855 = vmatprep.subr.mxu0 %v5840
    %5856 = vmatpush1.msra.mxu0 %v5839
    %5857 = vmatprep.subr.mxu0 %v5842
    %5858 = vmatpush1.msra.mxu0 %v5841
    %5859 = vmatprep.subr.mxu0 %v5844
    %5860 = vmatpush1.msra.mxu0 %v5843
    %5861 = vmatprep.subr.mxu0 %v5846
    %5862 = vmatpush1.msra.mxu0 %v5845
    %5863 = vmatprep.subr.mxu0 %v5848
    %5864 = vmatpush1.msra.mxu0 %v5847
    %5865 = vmatprep.subr.mxu0 %v5850
    %5866 = vmatpush1.msra.mxu0 %v5849
    %5867 = vmatprep.subr.mxu0 0.0
    %5868 = vmatpush1.msra.mxu0 0.0
    %5869 = vmatprep.subr.mxu0 0.0
    %5870 = vmatpush1.msra.mxu0 0.0
    %5871 = vmatprep.subr.mxu0 0.0
    %5872 = vmatpush1.msra.mxu0 0.0
    %5873 = vmatprep.subr.mxu0 0.0
    %5874 = vmatpush1.msra.mxu0 0.0
    %5875 = vmatprep.subr.mxu0 0.0
    %5876 = vmatpush1.msra.mxu0 0.0
    %5877 = vmatprep.subr.mxu0 0.0
    %5878 = vmatpush1.msra.mxu0 0.0
    %5879 = vmatprep.subr.mxu0 0.0
    %5880 = vmatpush1.msra.mxu0 0.0
    %5881 = vmatprep.subr.mxu0 0.0
    %5882 = vmatpush1.msra.mxu0 0.0
    %5883 = vmatprep.subr.mxu0 0.0
    %5884 = vmatpush1.msra.mxu0 0.0
    %5885 = vmatprep.subr.mxu0 0.0
    %5886 = vmatpush1.msra.mxu0 0.0
    %5887 = vmatprep.subr.mxu0 0.0
    %5888 = vmatpush1.msra.mxu0 0.0
    %5889 = vmatprep.subr.mxu0 0.0
    %5890 = vmatpush1.msra.mxu0 0.0
    %5891 = vmatprep.subr.mxu0 0.0
    %5892 = vmatpush1.msra.mxu0 0.0
    %5893 = vmatprep.subr.mxu0 0.0
    %5894 = vmatpush1.msra.mxu0 0.0
    %5895 = vmatprep.subr.mxu0 0.0
    %5896 = vmatpush1.msra.mxu0 0.0
    %5897 = vmatprep.subr.mxu0 0.0
    %5898 = vmatpush1.msra.mxu0 0.0
    %5899 = vmatprep.subr.mxu0 0.0
    %5900 = vmatpush1.msra.mxu0 0.0
    %5901 = vmatprep.subr.mxu0 0.0
    %5902 = vmatpush1.msra.mxu0 0.0
    %5903 = vmatprep.subr.mxu0 0.0
    %5904 = vmatpush1.msra.mxu0 0.0
    %5905 = vmatprep.subr.mxu0 0.0
    %5906 = vmatpush1.msra.mxu0 0.0
    %5907 = vmatprep.subr.mxu0 0.0
    %5908 = vmatpush1.msra.mxu0 0.0
    %5909 = vmatprep.subr.mxu0 0.0
    %5910 = vmatpush1.msra.mxu0 0.0
    %5911 = vmatprep.subr.mxu0 0.0
    %5912 = vmatpush1.msra.mxu0 0.0
    %5913 = vmatprep.subr.mxu0 0.0
    %5914 = vmatpush1.msra.mxu0 0.0
    %5915 = vmatprep.mubr.f32.mxu0 0.0
    %5916 = vmatmul.mubr.f32.gmra.mrb[0].mxu0 %v5731
    %v5917 = vpop.f32.mrb[0].mxu0
    %v5918 = vadd.f32 0.0, %v5917
    %v5919 = vpop.f32.mrb[0].mxu0
    %v5920 = vadd.f32 0.0, %v5919
    %5921 = vdwg.mxu0
    %v5922 = vld [vmem:[#allocation8] sm:$0xff]
    %v5923 = vld [vmem:[#allocation8 + $0x8] sm:$0xff]
    %v5924 = vld [vmem:[#allocation8 + $0x10] sm:$0xff]
    %v5925 = vld [vmem:[#allocation8 + $0x18] sm:$0xff]
    %v5926 = vld [vmem:[#allocation8 + $0x20] sm:$0xff]
    %v5927 = vld [vmem:[#allocation8 + $0x28] sm:$0xff]
    %v5928 = vld [vmem:[#allocation8 + $0x30] sm:$0xff]
    %v5929 = vld [vmem:[#allocation8 + $0x38] sm:$0xff]
    %v5930 = vld [vmem:[#allocation8 + $0x40] sm:$0xff]
    %v5931 = vld [vmem:[#allocation8 + $0x48] sm:$0xff]
    %v5932 = vld [vmem:[#allocation8 + $0x50] sm:$0xff]
    %v5933 = vld [vmem:[#allocation8 + $0x58] sm:$0xff]
    %v5934 = vld [vmem:[#allocation8 + $0x60] sm:$0xff]
    %v5935 = vld [vmem:[#allocation8 + $0x68] sm:$0xff]
    %v5936 = vld [vmem:[#allocation8 + $0x70] sm:$0xff]
    %v5937 = vld [vmem:[#allocation8 + $0x78] sm:$0xff]
    %v5940 = vrot.slane %v5416, 7
    %v5941 = vrot.slane %v5417, 6
    %v5942 = vsel %vm739, %v5941, %v5940
    %5943 = vrot.lane.b32.xlu0 %v5942, 64
    %v5944 = vpop.permute.xlu0 %5943
    %v5945 = vsel %vm502, %v5944, 0
    %5947 = vmatprep.subr.mxu0 %v5923
    %5948 = vmatpush1.msra.mxu0 %v5922
    %5949 = vmatprep.subr.mxu0 %v5925
    %5950 = vmatpush1.msra.mxu0 %v5924
    %5951 = vmatprep.subr.mxu0 %v5927
    %5952 = vmatpush1.msra.mxu0 %v5926
    %5953 = vmatprep.subr.mxu0 %v5929
    %5954 = vmatpush1.msra.mxu0 %v5928
    %5955 = vmatprep.subr.mxu0 %v5931
    %5956 = vmatpush1.msra.mxu0 %v5930
    %5957 = vmatprep.subr.mxu0 %v5933
    %5958 = vmatpush1.msra.mxu0 %v5932
    %5959 = vmatprep.subr.mxu0 %v5935
    %5960 = vmatpush1.msra.mxu0 %v5934
    %5961 = vmatprep.subr.mxu0 %v5937
    %5962 = vmatpush1.msra.mxu0 %v5936
    %5963 = vmatprep.subr.mxu0 0.0
    %5964 = vmatpush1.msra.mxu0 0.0
    %5965 = vmatprep.subr.mxu0 0.0
    %5966 = vmatpush1.msra.mxu0 0.0
    %5967 = vmatprep.subr.mxu0 0.0
    %5968 = vmatpush1.msra.mxu0 0.0
    %5969 = vmatprep.subr.mxu0 0.0
    %5970 = vmatpush1.msra.mxu0 0.0
    %5971 = vmatprep.subr.mxu0 0.0
    %5972 = vmatpush1.msra.mxu0 0.0
    %5973 = vmatprep.subr.mxu0 0.0
    %5974 = vmatpush1.msra.mxu0 0.0
    %5975 = vmatprep.subr.mxu0 0.0
    %5976 = vmatpush1.msra.mxu0 0.0
    %5977 = vmatprep.subr.mxu0 0.0
    %5978 = vmatpush1.msra.mxu0 0.0
    %5979 = vmatprep.subr.mxu0 0.0
    %5980 = vmatpush1.msra.mxu0 0.0
    %5981 = vmatprep.subr.mxu0 0.0
    %5982 = vmatpush1.msra.mxu0 0.0
    %5983 = vmatprep.subr.mxu0 0.0
    %5984 = vmatpush1.msra.mxu0 0.0
    %5985 = vmatprep.subr.mxu0 0.0
    %5986 = vmatpush1.msra.mxu0 0.0
    %5987 = vmatprep.subr.mxu0 0.0
    %5988 = vmatpush1.msra.mxu0 0.0
    %5989 = vmatprep.subr.mxu0 0.0
    %5990 = vmatpush1.msra.mxu0 0.0
    %5991 = vmatprep.subr.mxu0 0.0
    %5992 = vmatpush1.msra.mxu0 0.0
    %5993 = vmatprep.subr.mxu0 0.0
    %5994 = vmatpush1.msra.mxu0 0.0
    %5995 = vmatprep.subr.mxu0 0.0
    %5996 = vmatpush1.msra.mxu0 0.0
    %5997 = vmatprep.subr.mxu0 0.0
    %5998 = vmatpush1.msra.mxu0 0.0
    %5999 = vmatprep.subr.mxu0 0.0
    %6000 = vmatpush1.msra.mxu0 0.0
    %6001 = vmatprep.subr.mxu0 0.0
    %6002 = vmatpush1.msra.mxu0 0.0
    %6003 = vmatprep.subr.mxu0 0.0
    %6004 = vmatpush1.msra.mxu0 0.0
    %6005 = vmatprep.subr.mxu0 0.0
    %6006 = vmatpush1.msra.mxu0 0.0
    %6007 = vmatprep.subr.mxu0 0.0
    %6008 = vmatpush1.msra.mxu0 0.0
    %6009 = vmatprep.subr.mxu0 0.0
    %6010 = vmatpush1.msra.mxu0 0.0
    %6011 = vmatprep.mubr.f32.mxu0 0.0
    %6012 = vmatmul.mubr.f32.gmra.mrb[0].mxu0 %v5945
    %v6013 = vpop.f32.mrb[0].mxu0
    %v6014 = vadd.f32 %v5918, %v6013
    %v6015 = vpop.f32.mrb[0].mxu0
    %v6016 = vadd.f32 %v5920, %v6015
    %6017 = vdwg.mxu0
    %v6018 = vld [vmem:[#allocation11] sm:$0x3]
    %v6020 = vlaneseq
    %v6021 = vshrl.u32 %v6020, 7
    %v6022 = vsub.s32 0, %v6021
    %v6023 = vrot.slane %v6018, %v6022
    %v6024 = vlaneseq
    %v6025 = vshrl.u32 %v6024, 7
    %v6026 = vsub.s32 1, %v6025
    %v6027 = vrot.slane %v6018, %v6026
    %v6030 = vadd.f32 %v6014, %v6023
    %v6031 = vadd.f32 %v6016, %v6027
    %v6032 = vxor.u32 %v6030, 2147483648
    %v6033 = vmul.f32 %v6032, 1.442695
    %v6034 = vpow.pop %v6033
    %v6035 = vadd.f32 %v6034, 1.0
    %v6036 = vrcp.pop %v6035
    %v6037 = vmul.f32 1.0, %v6036
    %v6038 = vtanh.pop %v6031
    %v6039 = vxor.u32 %v6031, 2147483648
    %v6040 = vmul.f32 %v6039, 1.442695
    %v6041 = vpow.pop %v6040
    %v6042 = vadd.f32 %v6041, 1.0
    %v6043 = vrcp.pop %v6042
    %v6044 = vmul.f32 1.0, %v6043
    %v6045 = vmul.f32 %v6037, %v5264
    %v6046 = vmul.f32 %v6037, %v6038
    %6048 = vrot.lane.b32.xlu0 %v6046, 64
    %v6049 = vpop.permute.xlu0 %6048
    %v6051 = vadd.f32 %v6045, %v6049
    %v6052 = vtanh.pop %v6051
    %v6053 = vmul.f32 %v6044, %v6052
    %v6054 = vld [vmem:[#allocation16] sm:$0xff]
    %v6055 = vld [vmem:[#allocation16 + $0x8] sm:$0xff]
    %v6056 = vld [vmem:[#allocation16 + $0x10] sm:$0xff]
    %v6057 = vld [vmem:[#allocation16 + $0x18] sm:$0xff]
    %6058 = vrot.lane.b32.xlu0 %v5606, 32
    %v6059 = vpop.permute.xlu0 %6058
    %v6060 = vsel %vm989, %v6059, 0
    %6062 = vmatprep.subr.mxu0 0.0
    %6063 = vmatpush1.msra.mxu0 %v6054
    %6064 = vmatprep.subr.mxu0 0.0
    %6065 = vmatpush1.msra.mxu0 %v6055
    %6066 = vmatprep.subr.mxu0 0.0
    %6067 = vmatpush1.msra.mxu0 %v6056
    %6068 = vmatprep.subr.mxu0 0.0
    %6069 = vmatpush1.msra.mxu0 %v6057
    %6070 = vmatprep.subr.mxu0 0.0
    %6071 = vmatpush1.msra.mxu0 0.0
    %6072 = vmatprep.subr.mxu0 0.0
    %6073 = vmatpush1.msra.mxu0 0.0
    %6074 = vmatprep.subr.mxu0 0.0
    %6075 = vmatpush1.msra.mxu0 0.0
    %6076 = vmatprep.subr.mxu0 0.0
    %6077 = vmatpush1.msra.mxu0 0.0
    %6078 = vmatprep.subr.mxu0 0.0
    %6079 = vmatpush1.msra.mxu0 0.0
    %6080 = vmatprep.subr.mxu0 0.0
    %6081 = vmatpush1.msra.mxu0 0.0
    %6082 = vmatprep.subr.mxu0 0.0
    %6083 = vmatpush1.msra.mxu0 0.0
    %6084 = vmatprep.subr.mxu0 0.0
    %6085 = vmatpush1.msra.mxu0 0.0
    %6086 = vmatprep.subr.mxu0 0.0
    %6087 = vmatpush1.msra.mxu0 0.0
    %6088 = vmatprep.subr.mxu0 0.0
    %6089 = vmatpush1.msra.mxu0 0.0
    %6090 = vmatprep.subr.mxu0 0.0
    %6091 = vmatpush1.msra.mxu0 0.0
    %6092 = vmatprep.subr.mxu0 0.0
    %6093 = vmatpush1.msra.mxu0 0.0
    %6094 = vmatprep.subr.mxu0 0.0
    %6095 = vmatpush1.msra.mxu0 0.0
    %6096 = vmatprep.subr.mxu0 0.0
    %6097 = vmatpush1.msra.mxu0 0.0
    %6098 = vmatprep.subr.mxu0 0.0
    %6099 = vmatpush1.msra.mxu0 0.0
    %6100 = vmatprep.subr.mxu0 0.0
    %6101 = vmatpush1.msra.mxu0 0.0
    %6102 = vmatprep.subr.mxu0 0.0
    %6103 = vmatpush1.msra.mxu0 0.0
    %6104 = vmatprep.subr.mxu0 0.0
    %6105 = vmatpush1.msra.mxu0 0.0
    %6106 = vmatprep.subr.mxu0 0.0
    %6107 = vmatpush1.msra.mxu0 0.0
    %6108 = vmatprep.subr.mxu0 0.0
    %6109 = vmatpush1.msra.mxu0 0.0
    %6110 = vmatprep.subr.mxu0 0.0
    %6111 = vmatpush1.msra.mxu0 0.0
    %6112 = vmatprep.subr.mxu0 0.0
    %6113 = vmatpush1.msra.mxu0 0.0
    %6114 = vmatprep.subr.mxu0 0.0
    %6115 = vmatpush1.msra.mxu0 0.0
    %6116 = vmatprep.subr.mxu0 0.0
    %6117 = vmatpush1.msra.mxu0 0.0
    %6118 = vmatprep.subr.mxu0 0.0
    %6119 = vmatpush1.msra.mxu0 0.0
    %6120 = vmatprep.subr.mxu0 0.0
    %6121 = vmatpush1.msra.mxu0 0.0
    %6122 = vmatprep.subr.mxu0 0.0
    %6123 = vmatpush1.msra.mxu0 0.0
    %6124 = vmatprep.subr.mxu0 0.0
    %6125 = vmatpush1.msra.mxu0 0.0
    %6126 = vmatprep.mubr.f32.mxu0 0.0
    %6127 = vmatmul.mubr.f32.gmra.mrb[0].mxu0 %v6060
    %v6128 = vpop.f32.mrb[0].mxu0
    %v6129 = vadd.f32 0.0, %v6128
    %v6130 = vpop.f32.mrb[0].mxu0
    %6131 = vdwg.mxu0
    %v6132 = vld [vmem:[#allocation14] sm:$0xff]
    %v6133 = vld [vmem:[#allocation14 + $0x8] sm:$0xff]
    %v6134 = vld [vmem:[#allocation14 + $0x10] sm:$0xff]
    %v6135 = vld [vmem:[#allocation14 + $0x18] sm:$0xff]
    %6137 = vrot.lane.b32.xlu0 %v5834, 32
    %v6138 = vpop.permute.xlu0 %6137
    %v6139 = vsel %vm989, %v6138, 0
    %6141 = vmatprep.subr.mxu0 0.0
    %6142 = vmatpush1.msra.mxu0 %v6132
    %6143 = vmatprep.subr.mxu0 0.0
    %6144 = vmatpush1.msra.mxu0 %v6133
    %6145 = vmatprep.subr.mxu0 0.0
    %6146 = vmatpush1.msra.mxu0 %v6134
    %6147 = vmatprep.subr.mxu0 0.0
    %6148 = vmatpush1.msra.mxu0 %v6135
    %6149 = vmatprep.subr.mxu0 0.0
    %6150 = vmatpush1.msra.mxu0 0.0
    %6151 = vmatprep.subr.mxu0 0.0
    %6152 = vmatpush1.msra.mxu0 0.0
    %6153 = vmatprep.subr.mxu0 0.0
    %6154 = vmatpush1.msra.mxu0 0.0
    %6155 = vmatprep.subr.mxu0 0.0
    %6156 = vmatpush1.msra.mxu0 0.0
    %6157 = vmatprep.subr.mxu0 0.0
    %6158 = vmatpush1.msra.mxu0 0.0
    %6159 = vmatprep.subr.mxu0 0.0
    %6160 = vmatpush1.msra.mxu0 0.0
    %6161 = vmatprep.subr.mxu0 0.0
    %6162 = vmatpush1.msra.mxu0 0.0
    %6163 = vmatprep.subr.mxu0 0.0
    %6164 = vmatpush1.msra.mxu0 0.0
    %6165 = vmatprep.subr.mxu0 0.0
    %6166 = vmatpush1.msra.mxu0 0.0
    %6167 = vmatprep.subr.mxu0 0.0
    %6168 = vmatpush1.msra.mxu0 0.0
    %6169 = vmatprep.subr.mxu0 0.0
    %6170 = vmatpush1.msra.mxu0 0.0
    %6171 = vmatprep.subr.mxu0 0.0
    %6172 = vmatpush1.msra.mxu0 0.0
    %6173 = vmatprep.subr.mxu0 0.0
    %6174 = vmatpush1.msra.mxu0 0.0
    %6175 = vmatprep.subr.mxu0 0.0
    %6176 = vmatpush1.msra.mxu0 0.0
    %6177 = vmatprep.subr.mxu0 0.0
    %6178 = vmatpush1.msra.mxu0 0.0
    %6179 = vmatprep.subr.mxu0 0.0
    %6180 = vmatpush1.msra.mxu0 0.0
    %6181 = vmatprep.subr.mxu0 0.0
    %6182 = vmatpush1.msra.mxu0 0.0
    %6183 = vmatprep.subr.mxu0 0.0
    %6184 = vmatpush1.msra.mxu0 0.0
    %6185 = vmatprep.subr.mxu0 0.0
    %6186 = vmatpush1.msra.mxu0 0.0
    %6187 = vmatprep.subr.mxu0 0.0
    %6188 = vmatpush1.msra.mxu0 0.0
    %6189 = vmatprep.subr.mxu0 0.0
    %6190 = vmatpush1.msra.mxu0 0.0
    %6191 = vmatprep.subr.mxu0 0.0
    %6192 = vmatpush1.msra.mxu0 0.0
    %6193 = vmatprep.subr.mxu0 0.0
    %6194 = vmatpush1.msra.mxu0 0.0
    %6195 = vmatprep.subr.mxu0 0.0
    %6196 = vmatpush1.msra.mxu0 0.0
    %6197 = vmatprep.subr.mxu0 0.0
    %6198 = vmatpush1.msra.mxu0 0.0
    %6199 = vmatprep.subr.mxu0 0.0
    %6200 = vmatpush1.msra.mxu0 0.0
    %6201 = vmatprep.subr.mxu0 0.0
    %6202 = vmatpush1.msra.mxu0 0.0
    %6203 = vmatprep.subr.mxu0 0.0
    %6204 = vmatpush1.msra.mxu0 0.0
    %6205 = vmatprep.mubr.f32.mxu0 0.0
    %6206 = vmatmul.mubr.f32.gmra.mrb[0].mxu0 %v6139
    %v6207 = vpop.f32.mrb[0].mxu0
    %v6208 = vadd.f32 %v6129, %v6207
    %v6209 = vpop.f32.mrb[0].mxu0
    %6210 = vdwg.mxu0
    %v6211 = vld [vmem:[%s12] sm:$0x1]
    %v6213 = vlaneseq
    %v6214 = vshrl.u32 %v6213, 7
    %v6215 = vsub.s32 0, %v6214
    %v6216 = vrot.slane %v6211, %v6215
    %v6218 = vadd.f32 %v6208, %v6216
    %v6219 = vxor.u32 %v6218, 2147483648
    %v6220 = vmul.f32 %v6219, 1.442695
    %v6221 = vpow.pop %v6220
    %v6222 = vadd.f32 %v6221, 1.0
    %v6223 = vrcp.pop %v6222
    %v6224 = vmul.f32 1.0, %v6223
    %v6225 = vtanh.pop %v6218
    %v6226 = vmul.f32 %v6224, %v5600
    %6228 = vrot.lane.b32.xlu0 %v6225, 64
    %v6229 = vpop.permute.xlu0 %6228
    %v6231 = vmul.f32 %v6224, %v6229
    %6233 = vrot.lane.b32.xlu0 %v6231, 32
    %v6234 = vpop.permute.xlu0 %6233
    %v6236 = vadd.f32 %v6226, %v6234
    %v6237 = vtanh.pop %v6236
    %6239 = vrot.lane.b32.xlu0 %v6237, 64
    %v6240 = vpop.permute.xlu0 %6239
    %v6242 = vmul.f32 %v6224, %v6240
    %v6245 = vunpack.c.l.s4 1966171168
    %v6246 = vunpack.c.0.s8 %v6245
    %v6247 = vlaneseq
    %v6248 = vshrl.u32 %v6247, 7
    %v6249 = vsub.s32 %v6246, %v6248
    %v6250 = vrot.slane %v6242, %v6249
    %v6251 = vcombine.high %v6250, %v6250
    %v6253 = vunpack.c.l.s4 1966171168
    %v6254 = vunpack.c.0.s8 %v6253
    %v6255 = vlaneseq
    %v6256 = vshrl.u32 %v6255, 7
    %v6257 = vsub.s32 %v6254, %v6256
    %v6258 = vrot.slane %v6250, %v6257
    %v6260 = vunpack.c.l.s4 1966171168
    %v6261 = vunpack.c.0.s8 %v6260
    %v6262 = vlaneseq
    %v6263 = vshrl.u32 %v6262, 7
    %v6264 = vsub.s32 %v6261, %v6263
    %v6265 = vrot.slane %v6251, %v6264
    %v6266 = vlaneseq
    %v6267 = vshrl.u32 %v6266, 7
    %v6268 = vsub.s32 0, %v6267
    %v6269 = vrot.slane %v6258, %v6268
    %v6270 = vlaneseq
    %v6271 = vshrl.u32 %v6270, 7
    %v6272 = vsub.s32 0, %v6271
    %v6273 = vrot.slane %v6265, %v6272
    %6274 = vrot.lane.b32.xlu0 %v6269, 32
    %v6275 = vpop.permute.xlu0 %6274
    %6276 = vrot.lane.b32.xlu0 %v6273, 32
    %v6277 = vpop.permute.xlu0 %6276
    %6280 = vst.msk [vmem:[#allocation2 + $0x6] sm:$0x1] %vm1708, %v6275
    %6281 = vst.msk [vmem:[#allocation2 + $0xe] sm:$0x1] %vm1708, %v6277
    %v6282 = vld [vmem:[%s8] sm:$0xff]
    %v6283 = vld [vmem:[%s8 + $0x8] sm:$0xff]
    %v6284 = vld [vmem:[%s8 + $0x10] sm:$0xff]
    %v6285 = vld [vmem:[%s8 + $0x18] sm:$0xff]
    %6286 = vmatprep.subr.mxu0 0.0
    %6287 = vmatpush1.msra.mxu0 %v6282
    %6288 = vmatprep.subr.mxu0 0.0
    %6289 = vmatpush1.msra.mxu0 %v6283
    %6290 = vmatprep.subr.mxu0 0.0
    %6291 = vmatpush1.msra.mxu0 %v6284
    %6292 = vmatprep.subr.mxu0 0.0
    %6293 = vmatpush1.msra.mxu0 %v6285
    %6294 = vmatprep.subr.mxu0 0.0
    %6295 = vmatpush1.msra.mxu0 0.0
    %6296 = vmatprep.subr.mxu0 0.0
    %6297 = vmatpush1.msra.mxu0 0.0
    %6298 = vmatprep.subr.mxu0 0.0
    %6299 = vmatpush1.msra.mxu0 0.0
    %6300 = vmatprep.subr.mxu0 0.0
    %6301 = vmatpush1.msra.mxu0 0.0
    %6302 = vmatprep.subr.mxu0 0.0
    %6303 = vmatpush1.msra.mxu0 0.0
    %6304 = vmatprep.subr.mxu0 0.0
    %6305 = vmatpush1.msra.mxu0 0.0
    %6306 = vmatprep.subr.mxu0 0.0
    %6307 = vmatpush1.msra.mxu0 0.0
    %6308 = vmatprep.subr.mxu0 0.0
    %6309 = vmatpush1.msra.mxu0 0.0
    %6310 = vmatprep.subr.mxu0 0.0
    %6311 = vmatpush1.msra.mxu0 0.0
    %6312 = vmatprep.subr.mxu0 0.0
    %6313 = vmatpush1.msra.mxu0 0.0
    %6314 = vmatprep.subr.mxu0 0.0
    %6315 = vmatpush1.msra.mxu0 0.0
    %6316 = vmatprep.subr.mxu0 0.0
    %6317 = vmatpush1.msra.mxu0 0.0
    %6318 = vmatprep.subr.mxu0 0.0
    %6319 = vmatpush1.msra.mxu0 0.0
    %6320 = vmatprep.subr.mxu0 0.0
    %6321 = vmatpush1.msra.mxu0 0.0
    %6322 = vmatprep.subr.mxu0 0.0
    %6323 = vmatpush1.msra.mxu0 0.0
    %6324 = vmatprep.subr.mxu0 0.0
    %6325 = vmatpush1.msra.mxu0 0.0
    %6326 = vmatprep.subr.mxu0 0.0
    %6327 = vmatpush1.msra.mxu0 0.0
    %6328 = vmatprep.subr.mxu0 0.0
    %6329 = vmatpush1.msra.mxu0 0.0
    %6330 = vmatprep.subr.mxu0 0.0
    %6331 = vmatpush1.msra.mxu0 0.0
    %6332 = vmatprep.subr.mxu0 0.0
    %6333 = vmatpush1.msra.mxu0 0.0
    %6334 = vmatprep.subr.mxu0 0.0
    %6335 = vmatpush1.msra.mxu0 0.0
    %6336 = vmatprep.subr.mxu0 0.0
    %6337 = vmatpush1.msra.mxu0 0.0
    %6338 = vmatprep.subr.mxu0 0.0
    %6339 = vmatpush1.msra.mxu0 0.0
    %6340 = vmatprep.subr.mxu0 0.0
    %6341 = vmatpush1.msra.mxu0 0.0
    %6342 = vmatprep.subr.mxu0 0.0
    %6343 = vmatpush1.msra.mxu0 0.0
    %6344 = vmatprep.subr.mxu0 0.0
    %6345 = vmatpush1.msra.mxu0 0.0
    %6346 = vmatprep.subr.mxu0 0.0
    %6347 = vmatpush1.msra.mxu0 0.0
    %6348 = vmatprep.subr.mxu0 0.0
    %6349 = vmatpush1.msra.mxu0 0.0
    %6350 = vmatprep.mubr.f32.mxu0 0.0
    %6351 = vmatmul.mubr.f32.gmra.mrb[0].mxu0 %v6139
    %v6352 = vpop.f32.mrb[0].mxu0
    %v6353 = vadd.f32 0.0, %v6352
    %v6354 = vpop.f32.mrb[0].mxu0
    %6355 = vdwg.mxu0
    %v6356 = vld [vmem:[#allocation13] sm:$0xff]
    %v6357 = vld [vmem:[#allocation13 + $0x8] sm:$0xff]
    %v6358 = vld [vmem:[#allocation13 + $0x10] sm:$0xff]
    %v6359 = vld [vmem:[#allocation13 + $0x18] sm:$0xff]
    %v6360 = vld [vmem:[#allocation13 + $0x20] sm:$0xff]
    %v6361 = vld [vmem:[#allocation13 + $0x28] sm:$0xff]
    %v6362 = vld [vmem:[#allocation13 + $0x30] sm:$0xff]
    %v6363 = vld [vmem:[#allocation13 + $0x38] sm:$0xff]
    %6365 = vrot.lane.b32.xlu0 %v6053, 64
    %v6366 = vpop.permute.xlu0 %6365
    %v6367 = vsel %vm502, %v6366, 0
    %6369 = vmatprep.subr.mxu0 0.0
    %6370 = vmatpush1.msra.mxu0 %v6356
    %6371 = vmatprep.subr.mxu0 0.0
    %6372 = vmatpush1.msra.mxu0 %v6357
    %6373 = vmatprep.subr.mxu0 0.0
    %6374 = vmatpush1.msra.mxu0 %v6358
    %6375 = vmatprep.subr.mxu0 0.0
    %6376 = vmatpush1.msra.mxu0 %v6359
    %6377 = vmatprep.subr.mxu0 0.0
    %6378 = vmatpush1.msra.mxu0 %v6360
    %6379 = vmatprep.subr.mxu0 0.0
    %6380 = vmatpush1.msra.mxu0 %v6361
    %6381 = vmatprep.subr.mxu0 0.0
    %6382 = vmatpush1.msra.mxu0 %v6362
    %6383 = vmatprep.subr.mxu0 0.0
    %6384 = vmatpush1.msra.mxu0 %v6363
    %6385 = vmatprep.subr.mxu0 0.0
    %6386 = vmatpush1.msra.mxu0 0.0
    %6387 = vmatprep.subr.mxu0 0.0
    %6388 = vmatpush1.msra.mxu0 0.0
    %6389 = vmatprep.subr.mxu0 0.0
    %6390 = vmatpush1.msra.mxu0 0.0
    %6391 = vmatprep.subr.mxu0 0.0
    %6392 = vmatpush1.msra.mxu0 0.0
    %6393 = vmatprep.subr.mxu0 0.0
    %6394 = vmatpush1.msra.mxu0 0.0
    %6395 = vmatprep.subr.mxu0 0.0
    %6396 = vmatpush1.msra.mxu0 0.0
    %6397 = vmatprep.subr.mxu0 0.0
    %6398 = vmatpush1.msra.mxu0 0.0
    %6399 = vmatprep.subr.mxu0 0.0
    %6400 = vmatpush1.msra.mxu0 0.0
    %6401 = vmatprep.subr.mxu0 0.0
    %6402 = vmatpush1.msra.mxu0 0.0
    %6403 = vmatprep.subr.mxu0 0.0
    %6404 = vmatpush1.msra.mxu0 0.0
    %6405 = vmatprep.subr.mxu0 0.0
    %6406 = vmatpush1.msra.mxu0 0.0
    %6407 = vmatprep.subr.mxu0 0.0
    %6408 = vmatpush1.msra.mxu0 0.0
    %6409 = vmatprep.subr.mxu0 0.0
    %6410 = vmatpush1.msra.mxu0 0.0
    %6411 = vmatprep.subr.mxu0 0.0
    %6412 = vmatpush1.msra.mxu0 0.0
    %6413 = vmatprep.subr.mxu0 0.0
    %6414 = vmatpush1.msra.mxu0 0.0
    %6415 = vmatprep.subr.mxu0 0.0
    %6416 = vmatpush1.msra.mxu0 0.0
    %6417 = vmatprep.subr.mxu0 0.0
    %6418 = vmatpush1.msra.mxu0 0.0
    %6419 = vmatprep.subr.mxu0 0.0
    %6420 = vmatpush1.msra.mxu0 0.0
    %6421 = vmatprep.subr.mxu0 0.0
    %6422 = vmatpush1.msra.mxu0 0.0
    %6423 = vmatprep.subr.mxu0 0.0
    %6424 = vmatpush1.msra.mxu0 0.0
    %6425 = vmatprep.subr.mxu0 0.0
    %6426 = vmatpush1.msra.mxu0 0.0
    %6427 = vmatprep.subr.mxu0 0.0
    %6428 = vmatpush1.msra.mxu0 0.0
    %6429 = vmatprep.subr.mxu0 0.0
    %6430 = vmatpush1.msra.mxu0 0.0
    %6431 = vmatprep.subr.mxu0 0.0
    %6432 = vmatpush1.msra.mxu0 0.0
    %6433 = vmatprep.mubr.f32.mxu0 0.0
    %6434 = vmatmul.mubr.f32.gmra.mrb[0].mxu0 %v6367
    %v6435 = vpop.f32.mrb[0].mxu0
    %v6436 = vadd.f32 %v6353, %v6435
    %v6437 = vpop.f32.mrb[0].mxu0
    %6438 = vdwg.mxu0
    %v6439 = vld [vmem:[%s9] sm:$0x1]
    %v6441 = vlaneseq
    %v6442 = vshrl.u32 %v6441, 7
    %v6443 = vsub.s32 0, %v6442
    %v6444 = vrot.slane %v6439, %v6443
    %v6446 = vadd.f32 %v6436, %v6444
    %v6447 = vxor.u32 %v6446, 2147483648
    %v6448 = vmul.f32 %v6447, 1.442695
    %v6449 = vpow.pop %v6448
    %v6450 = vadd.f32 %v6449, 1.0
    %v6451 = vrcp.pop %v6450
    %v6452 = vmul.f32 1.0, %v6451
    %v6453 = vtanh.pop %v6446
    %v6454 = vmul.f32 %v6452, %v5828
    %6456 = vrot.lane.b32.xlu0 %v6453, 64
    %v6457 = vpop.permute.xlu0 %6456
    %v6459 = vmul.f32 %v6452, %v6457
    %6461 = vrot.lane.b32.xlu0 %v6459, 32
    %v6462 = vpop.permute.xlu0 %6461
    %v6464 = vadd.f32 %v6454, %v6462
    %v6465 = vtanh.pop %v6464
    %6467 = vrot.lane.b32.xlu0 %v6465, 64
    %v6468 = vpop.permute.xlu0 %6467
    %v6470 = vmul.f32 %v6452, %v6468
    %v6471 = vld [vmem:[#allocation16] sm:$0xff]
    %v6472 = vld [vmem:[#allocation16 + $0x8] sm:$0xff]
    %v6473 = vld [vmem:[#allocation16 + $0x10] sm:$0xff]
    %v6474 = vld [vmem:[#allocation16 + $0x18] sm:$0xff]
    %6475 = vrot.lane.b32.xlu0 %v6242, 32
    %v6476 = vpop.permute.xlu0 %6475
    %v6477 = vsel %vm989, %v6476, 0
    %6479 = vmatprep.subr.mxu0 0.0
    %6480 = vmatpush1.msra.mxu0 %v6471
    %6481 = vmatprep.subr.mxu0 0.0
    %6482 = vmatpush1.msra.mxu0 %v6472
    %6483 = vmatprep.subr.mxu0 0.0
    %6484 = vmatpush1.msra.mxu0 %v6473
    %6485 = vmatprep.subr.mxu0 0.0
    %6486 = vmatpush1.msra.mxu0 %v6474
    %6487 = vmatprep.subr.mxu0 0.0
    %6488 = vmatpush1.msra.mxu0 0.0
    %6489 = vmatprep.subr.mxu0 0.0
    %6490 = vmatpush1.msra.mxu0 0.0
    %6491 = vmatprep.subr.mxu0 0.0
    %6492 = vmatpush1.msra.mxu0 0.0
    %6493 = vmatprep.subr.mxu0 0.0
    %6494 = vmatpush1.msra.mxu0 0.0
    %6495 = vmatprep.subr.mxu0 0.0
    %6496 = vmatpush1.msra.mxu0 0.0
    %6497 = vmatprep.subr.mxu0 0.0
    %6498 = vmatpush1.msra.mxu0 0.0
    %6499 = vmatprep.subr.mxu0 0.0
    %6500 = vmatpush1.msra.mxu0 0.0
    %6501 = vmatprep.subr.mxu0 0.0
    %6502 = vmatpush1.msra.mxu0 0.0
    %6503 = vmatprep.subr.mxu0 0.0
    %6504 = vmatpush1.msra.mxu0 0.0
    %6505 = vmatprep.subr.mxu0 0.0
    %6506 = vmatpush1.msra.mxu0 0.0
    %6507 = vmatprep.subr.mxu0 0.0
    %6508 = vmatpush1.msra.mxu0 0.0
    %6509 = vmatprep.subr.mxu0 0.0
    %6510 = vmatpush1.msra.mxu0 0.0
    %6511 = vmatprep.subr.mxu0 0.0
    %6512 = vmatpush1.msra.mxu0 0.0
    %6513 = vmatprep.subr.mxu0 0.0
    %6514 = vmatpush1.msra.mxu0 0.0
    %6515 = vmatprep.subr.mxu0 0.0
    %6516 = vmatpush1.msra.mxu0 0.0
    %6517 = vmatprep.subr.mxu0 0.0
    %6518 = vmatpush1.msra.mxu0 0.0
    %6519 = vmatprep.subr.mxu0 0.0
    %6520 = vmatpush1.msra.mxu0 0.0
    %6521 = vmatprep.subr.mxu0 0.0
    %6522 = vmatpush1.msra.mxu0 0.0
    %6523 = vmatprep.subr.mxu0 0.0
    %6524 = vmatpush1.msra.mxu0 0.0
    %6525 = vmatprep.subr.mxu0 0.0
    %6526 = vmatpush1.msra.mxu0 0.0
    %6527 = vmatprep.subr.mxu0 0.0
    %6528 = vmatpush1.msra.mxu0 0.0
    %6529 = vmatprep.subr.mxu0 0.0
    %6530 = vmatpush1.msra.mxu0 0.0
    %6531 = vmatprep.subr.mxu0 0.0
    %6532 = vmatpush1.msra.mxu0 0.0
    %6533 = vmatprep.subr.mxu0 0.0
    %6534 = vmatpush1.msra.mxu0 0.0
    %6535 = vmatprep.subr.mxu0 0.0
    %6536 = vmatpush1.msra.mxu0 0.0
    %6537 = vmatprep.subr.mxu0 0.0
    %6538 = vmatpush1.msra.mxu0 0.0
    %6539 = vmatprep.subr.mxu0 0.0
    %6540 = vmatpush1.msra.mxu0 0.0
    %6541 = vmatprep.subr.mxu0 0.0
    %6542 = vmatpush1.msra.mxu0 0.0
    %6543 = vmatprep.mubr.f32.mxu0 0.0
    %6544 = vmatmul.mubr.f32.gmra.mrb[0].mxu0 %v6477
    %v6545 = vpop.f32.mrb[0].mxu0
    %v6546 = vadd.f32 0.0, %v6545
    %v6547 = vpop.f32.mrb[0].mxu0
    %6548 = vdwg.mxu0
    %v6549 = vld [vmem:[#allocation14] sm:$0xff]
    %v6550 = vld [vmem:[#allocation14 + $0x8] sm:$0xff]
    %v6551 = vld [vmem:[#allocation14 + $0x10] sm:$0xff]
    %v6552 = vld [vmem:[#allocation14 + $0x18] sm:$0xff]
    %6554 = vrot.lane.b32.xlu0 %v6470, 32
    %v6555 = vpop.permute.xlu0 %6554
    %v6556 = vsel %vm989, %v6555, 0
    %6558 = vmatprep.subr.mxu0 0.0
    %6559 = vmatpush1.msra.mxu0 %v6549
    %6560 = vmatprep.subr.mxu0 0.0
    %6561 = vmatpush1.msra.mxu0 %v6550
    %6562 = vmatprep.subr.mxu0 0.0
    %6563 = vmatpush1.msra.mxu0 %v6551
    %6564 = vmatprep.subr.mxu0 0.0
    %6565 = vmatpush1.msra.mxu0 %v6552
    %6566 = vmatprep.subr.mxu0 0.0
    %6567 = vmatpush1.msra.mxu0 0.0
    %6568 = vmatprep.subr.mxu0 0.0
    %6569 = vmatpush1.msra.mxu0 0.0
    %6570 = vmatprep.subr.mxu0 0.0
    %6571 = vmatpush1.msra.mxu0 0.0
    %6572 = vmatprep.subr.mxu0 0.0
    %6573 = vmatpush1.msra.mxu0 0.0
    %6574 = vmatprep.subr.mxu0 0.0
    %6575 = vmatpush1.msra.mxu0 0.0
    %6576 = vmatprep.subr.mxu0 0.0
    %6577 = vmatpush1.msra.mxu0 0.0
    %6578 = vmatprep.subr.mxu0 0.0
    %6579 = vmatpush1.msra.mxu0 0.0
    %6580 = vmatprep.subr.mxu0 0.0
    %6581 = vmatpush1.msra.mxu0 0.0
    %6582 = vmatprep.subr.mxu0 0.0
    %6583 = vmatpush1.msra.mxu0 0.0
    %6584 = vmatprep.subr.mxu0 0.0
    %6585 = vmatpush1.msra.mxu0 0.0
    %6586 = vmatprep.subr.mxu0 0.0
    %6587 = vmatpush1.msra.mxu0 0.0
    %6588 = vmatprep.subr.mxu0 0.0
    %6589 = vmatpush1.msra.mxu0 0.0
    %6590 = vmatprep.subr.mxu0 0.0
    %6591 = vmatpush1.msra.mxu0 0.0
    %6592 = vmatprep.subr.mxu0 0.0
    %6593 = vmatpush1.msra.mxu0 0.0
    %6594 = vmatprep.subr.mxu0 0.0
    %6595 = vmatpush1.msra.mxu0 0.0
    %6596 = vmatprep.subr.mxu0 0.0
    %6597 = vmatpush1.msra.mxu0 0.0
    %6598 = vmatprep.subr.mxu0 0.0
    %6599 = vmatpush1.msra.mxu0 0.0
    %6600 = vmatprep.subr.mxu0 0.0
    %6601 = vmatpush1.msra.mxu0 0.0
    %6602 = vmatprep.subr.mxu0 0.0
    %6603 = vmatpush1.msra.mxu0 0.0
    %6604 = vmatprep.subr.mxu0 0.0
    %6605 = vmatpush1.msra.mxu0 0.0
    %6606 = vmatprep.subr.mxu0 0.0
    %6607 = vmatpush1.msra.mxu0 0.0
    %6608 = vmatprep.subr.mxu0 0.0
    %6609 = vmatpush1.msra.mxu0 0.0
    %6610 = vmatprep.subr.mxu0 0.0
    %6611 = vmatpush1.msra.mxu0 0.0
    %6612 = vmatprep.subr.mxu0 0.0
    %6613 = vmatpush1.msra.mxu0 0.0
    %6614 = vmatprep.subr.mxu0 0.0
    %6615 = vmatpush1.msra.mxu0 0.0
    %6616 = vmatprep.subr.mxu0 0.0
    %6617 = vmatpush1.msra.mxu0 0.0
    %6618 = vmatprep.subr.mxu0 0.0
    %6619 = vmatpush1.msra.mxu0 0.0
    %6620 = vmatprep.subr.mxu0 0.0
    %6621 = vmatpush1.msra.mxu0 0.0
    %6622 = vmatprep.mubr.f32.mxu0 0.0
    %6623 = vmatmul.mubr.f32.gmra.mrb[0].mxu0 %v6556
    %v6624 = vpop.f32.mrb[0].mxu0
    %v6625 = vadd.f32 %v6546, %v6624
    %v6626 = vpop.f32.mrb[0].mxu0
    %6627 = vdwg.mxu0
    %v6628 = vld [vmem:[%s12] sm:$0x1]
    %v6630 = vlaneseq
    %v6631 = vshrl.u32 %v6630, 7
    %v6632 = vsub.s32 0, %v6631
    %v6633 = vrot.slane %v6628, %v6632
    %v6635 = vadd.f32 %v6625, %v6633
    %v6636 = vxor.u32 %v6635, 2147483648
    %v6637 = vmul.f32 %v6636, 1.442695
    %v6638 = vpow.pop %v6637
    %v6639 = vadd.f32 %v6638, 1.0
    %v6640 = vrcp.pop %v6639
    %v6641 = vmul.f32 1.0, %v6640
    %v6642 = vtanh.pop %v6635
    %v6643 = vmul.f32 %v6641, %v6236
    %6645 = vrot.lane.b32.xlu0 %v6642, 64
    %v6646 = vpop.permute.xlu0 %6645
    %v6648 = vmul.f32 %v6641, %v6646
    %6650 = vrot.lane.b32.xlu0 %v6648, 32
    %v6651 = vpop.permute.xlu0 %6650
    %v6653 = vadd.f32 %v6643, %v6651
    %v6654 = vtanh.pop %v6653
    %6656 = vrot.lane.b32.xlu0 %v6654, 64
    %v6657 = vpop.permute.xlu0 %6656
    %v6659 = vmul.f32 %v6641, %v6657
    %v6662 = vunpack.c.l.s4 1966171168
    %v6663 = vunpack.c.0.s8 %v6662
    %v6664 = vlaneseq
    %v6665 = vshrl.u32 %v6664, 7
    %v6666 = vsub.s32 %v6663, %v6665
    %v6667 = vrot.slane %v6659, %v6666
    %v6668 = vcombine.high %v6667, %v6667
    %v6670 = vunpack.c.l.s4 1966171168
    %v6671 = vunpack.c.0.s8 %v6670
    %v6672 = vlaneseq
    %v6673 = vshrl.u32 %v6672, 7
    %v6674 = vsub.s32 %v6671, %v6673
    %v6675 = vrot.slane %v6667, %v6674
    %v6677 = vunpack.c.l.s4 1966171168
    %v6678 = vunpack.c.0.s8 %v6677
    %v6679 = vlaneseq
    %v6680 = vshrl.u32 %v6679, 7
    %v6681 = vsub.s32 %v6678, %v6680
    %v6682 = vrot.slane %v6668, %v6681
    %v6683 = vlaneseq
    %v6684 = vshrl.u32 %v6683, 7
    %v6685 = vsub.s32 0, %v6684
    %v6686 = vrot.slane %v6675, %v6685
    %v6687 = vlaneseq
    %v6688 = vshrl.u32 %v6687, 7
    %v6689 = vsub.s32 0, %v6688
    %v6690 = vrot.slane %v6682, %v6689
    %6691 = vrot.lane.b32.xlu0 %v6686, 32
    %v6692 = vpop.permute.xlu0 %6691
    %6693 = vrot.lane.b32.xlu0 %v6690, 32
    %v6694 = vpop.permute.xlu0 %6693
    %6697 = vst.msk [vmem:[#allocation2 + $0x7] sm:$0x1] %vm1708, %v6692
    %6698 = vst.msk [vmem:[#allocation2 + $0xf] sm:$0x1] %vm1708, %v6694
    %v6699 = vld [vmem:[#allocation2] sm:$0xff]
    %v6700 = vld [vmem:[#allocation17] sm:$0xff]
    %v6701 = vld [vmem:[#allocation17 + $0x8] sm:$0xff]
    %v6702 = vld [vmem:[#allocation17 + $0x10] sm:$0xff]
    %v6703 = vld [vmem:[#allocation17 + $0x18] sm:$0xff]
    %v6704 = vld [vmem:[%s14] sm:$0x1]
    %v6706 = vlaneseq
    %v6707 = vshrl.u32 %v6706, 7
    %v6708 = vsub.s32 0, %v6707
    %v6709 = vrot.slane %v6704, %v6708
    %v6712 = vsel %vm989, %v6699, 0
    %6714 = vmatprep.subr.mxu0 0.0
    %6715 = vmatpush1.msra.mxu0 %v6700
    %6716 = vmatprep.subr.mxu0 0.0
    %6717 = vmatpush1.msra.mxu0 %v6701
    %6718 = vmatprep.subr.mxu0 0.0
    %6719 = vmatpush1.msra.mxu0 %v6702
    %6720 = vmatprep.subr.mxu0 0.0
    %6721 = vmatpush1.msra.mxu0 %v6703
    %6722 = vmatprep.subr.mxu0 0.0
    %6723 = vmatpush1.msra.mxu0 0.0
    %6724 = vmatprep.subr.mxu0 0.0
    %6725 = vmatpush1.msra.mxu0 0.0
    %6726 = vmatprep.subr.mxu0 0.0
    %6727 = vmatpush1.msra.mxu0 0.0
    %6728 = vmatprep.subr.mxu0 0.0
    %6729 = vmatpush1.msra.mxu0 0.0
    %6730 = vmatprep.subr.mxu0 0.0
    %6731 = vmatpush1.msra.mxu0 0.0
    %6732 = vmatprep.subr.mxu0 0.0
    %6733 = vmatpush1.msra.mxu0 0.0
    %6734 = vmatprep.subr.mxu0 0.0
    %6735 = vmatpush1.msra.mxu0 0.0
    %6736 = vmatprep.subr.mxu0 0.0
    %6737 = vmatpush1.msra.mxu0 0.0
    %6738 = vmatprep.subr.mxu0 0.0
    %6739 = vmatpush1.msra.mxu0 0.0
    %6740 = vmatprep.subr.mxu0 0.0
    %6741 = vmatpush1.msra.mxu0 0.0
    %6742 = vmatprep.subr.mxu0 0.0
    %6743 = vmatpush1.msra.mxu0 0.0
    %6744 = vmatprep.subr.mxu0 0.0
    %6745 = vmatpush1.msra.mxu0 0.0
    %6746 = vmatprep.subr.mxu0 0.0
    %6747 = vmatpush1.msra.mxu0 0.0
    %6748 = vmatprep.subr.mxu0 0.0
    %6749 = vmatpush1.msra.mxu0 0.0
    %6750 = vmatprep.subr.mxu0 0.0
    %6751 = vmatpush1.msra.mxu0 0.0
    %6752 = vmatprep.subr.mxu0 0.0
    %6753 = vmatpush1.msra.mxu0 0.0
    %6754 = vmatprep.subr.mxu0 0.0
    %6755 = vmatpush1.msra.mxu0 0.0
    %6756 = vmatprep.subr.mxu0 0.0
    %6757 = vmatpush1.msra.mxu0 0.0
    %6758 = vmatprep.subr.mxu0 0.0
    %6759 = vmatpush1.msra.mxu0 0.0
    %6760 = vmatprep.subr.mxu0 0.0
    %6761 = vmatpush1.msra.mxu0 0.0
    %6762 = vmatprep.subr.mxu0 0.0
    %6763 = vmatpush1.msra.mxu0 0.0
    %6764 = vmatprep.subr.mxu0 0.0
    %6765 = vmatpush1.msra.mxu0 0.0
    %6766 = vmatprep.subr.mxu0 0.0
    %6767 = vmatpush1.msra.mxu0 0.0
    %6768 = vmatprep.subr.mxu0 0.0
    %6769 = vmatpush1.msra.mxu0 0.0
    %6770 = vmatprep.subr.mxu0 0.0
    %6771 = vmatpush1.msra.mxu0 0.0
    %6772 = vmatprep.subr.mxu0 0.0
    %6773 = vmatpush1.msra.mxu0 0.0
    %6774 = vmatprep.subr.mxu0 0.0
    %6775 = vmatpush1.msra.mxu0 0.0
    %6776 = vmatprep.subr.mxu0 0.0
    %6777 = vmatpush1.msra.mxu0 0.0
    %6778 = vmatprep.mubr.f32.mxu0 0.0
    %6779 = vmatmul.mubr.f32.gmra.mrb[0].mxu0 %v6712
    %v6780 = vpop.f32.mrb[0].mxu0
    %v6781 = vadd.f32 %v6709, %v6780
    %v6782 = vpop.f32.mrb[0].mxu0
    %6783 = vdwg.mxu0
    %6784 = vst [vmem:[%s15] sm:$0xff] %v6781
    %s6785 = scalar_lea.vmem [#allocation2], 8
    %v6786 = vld [vmem:[%s6785] sm:$0xff]
    %v6787 = vld [vmem:[#allocation17] sm:$0xff]
    %v6788 = vld [vmem:[#allocation17 + $0x8] sm:$0xff]
    %v6789 = vld [vmem:[#allocation17 + $0x10] sm:$0xff]
    %v6790 = vld [vmem:[#allocation17 + $0x18] sm:$0xff]
    %v6791 = vld [vmem:[%s14] sm:$0x1]
    %v6793 = vlaneseq
    %v6794 = vshrl.u32 %v6793, 7
    %v6795 = vsub.s32 0, %v6794
    %v6796 = vrot.slane %v6791, %v6795
    %v6799 = vsel %vm989, %v6786, 0
    %6801 = vmatprep.subr.mxu0 0.0
    %6802 = vmatpush1.msra.mxu0 %v6787
    %6803 = vmatprep.subr.mxu0 0.0
    %6804 = vmatpush1.msra.mxu0 %v6788
    %6805 = vmatprep.subr.mxu0 0.0
    %6806 = vmatpush1.msra.mxu0 %v6789
    %6807 = vmatprep.subr.mxu0 0.0
    %6808 = vmatpush1.msra.mxu0 %v6790
    %6809 = vmatprep.subr.mxu0 0.0
    %6810 = vmatpush1.msra.mxu0 0.0
    %6811 = vmatprep.subr.mxu0 0.0
    %6812 = vmatpush1.msra.mxu0 0.0
    %6813 = vmatprep.subr.mxu0 0.0
    %6814 = vmatpush1.msra.mxu0 0.0
    %6815 = vmatprep.subr.mxu0 0.0
    %6816 = vmatpush1.msra.mxu0 0.0
    %6817 = vmatprep.subr.mxu0 0.0
    %6818 = vmatpush1.msra.mxu0 0.0
    %6819 = vmatprep.subr.mxu0 0.0
    %6820 = vmatpush1.msra.mxu0 0.0
    %6821 = vmatprep.subr.mxu0 0.0
    %6822 = vmatpush1.msra.mxu0 0.0
    %6823 = vmatprep.subr.mxu0 0.0
    %6824 = vmatpush1.msra.mxu0 0.0
    %6825 = vmatprep.subr.mxu0 0.0
    %6826 = vmatpush1.msra.mxu0 0.0
    %6827 = vmatprep.subr.mxu0 0.0
    %6828 = vmatpush1.msra.mxu0 0.0
    %6829 = vmatprep.subr.mxu0 0.0
    %6830 = vmatpush1.msra.mxu0 0.0
    %6831 = vmatprep.subr.mxu0 0.0
    %6832 = vmatpush1.msra.mxu0 0.0
    %6833 = vmatprep.subr.mxu0 0.0
    %6834 = vmatpush1.msra.mxu0 0.0
    %6835 = vmatprep.subr.mxu0 0.0
    %6836 = vmatpush1.msra.mxu0 0.0
    %6837 = vmatprep.subr.mxu0 0.0
    %6838 = vmatpush1.msra.mxu0 0.0
    %6839 = vmatprep.subr.mxu0 0.0
    %6840 = vmatpush1.msra.mxu0 0.0
    %6841 = vmatprep.subr.mxu0 0.0
    %6842 = vmatpush1.msra.mxu0 0.0
    %6843 = vmatprep.subr.mxu0 0.0
    %6844 = vmatpush1.msra.mxu0 0.0
    %6845 = vmatprep.subr.mxu0 0.0
    %6846 = vmatpush1.msra.mxu0 0.0
    %6847 = vmatprep.subr.mxu0 0.0
    %6848 = vmatpush1.msra.mxu0 0.0
    %6849 = vmatprep.subr.mxu0 0.0
    %6850 = vmatpush1.msra.mxu0 0.0
    %6851 = vmatprep.subr.mxu0 0.0
    %6852 = vmatpush1.msra.mxu0 0.0
    %6853 = vmatprep.subr.mxu0 0.0
    %6854 = vmatpush1.msra.mxu0 0.0
    %6855 = vmatprep.subr.mxu0 0.0
    %6856 = vmatpush1.msra.mxu0 0.0
    %6857 = vmatprep.subr.mxu0 0.0
    %6858 = vmatpush1.msra.mxu0 0.0
    %6859 = vmatprep.subr.mxu0 0.0
    %6860 = vmatpush1.msra.mxu0 0.0
    %6861 = vmatprep.subr.mxu0 0.0
    %6862 = vmatpush1.msra.mxu0 0.0
    %6863 = vmatprep.subr.mxu0 0.0
    %6864 = vmatpush1.msra.mxu0 0.0
    %6865 = vmatprep.mubr.f32.mxu0 0.0
    %6866 = vmatmul.mubr.f32.gmra.mrb[0].mxu0 %v6799
    %v6867 = vpop.f32.mrb[0].mxu0
    %v6868 = vadd.f32 %v6796, %v6867
    %v6869 = vpop.f32.mrb[0].mxu0
    %6870 = vdwg.mxu0
    %6871 = vst [vmem:[%s15 + $0x8] sm:$0xff] %v6868
    // Predicated region
    $region102: #{model2_forward.1} parent=1 // pred_check
      _
    $region103: #{model2_forward.1} parent=1 // pred_check_branch
      %6873 = sbr.rel (0) target = $region105
    $region104: #{model2_forward.1} parent=1 // pred_region
      _
    $region105: #{model2_forward.1} parent=1 // pred_fallthru
      _
    // Predicated region
    $region106: #{model2_forward.1} parent=1 // pred_check
      _
    $region107: #{model2_forward.1} parent=1 // pred_check_branch
      %6875 = sbr.rel (0) target = $region109
    $region108: #{model2_forward.1} parent=1 // pred_region
      _
    $region109: #{model2_forward.1} parent=1 // pred_fallthru
      _
    %6876 = vsyncpa [#allocation4], 1
    %6877 = vsyncpa [#allocation6], 1
    %6878 = vsyncpa [#allocation9], 1
    %6879 = vsyncpa [#allocation12], 1
    %6880 = vsyncpa [#allocation15], 1
    %6881 = vsyncpa [#allocation18], 1

</llo_original>
